<compile_context>
chip_gen: v5e
topology: v5e:2x2
jax: 0.10.0
libtpu: 0.0.40
codegen_flags: <defaults>
</compile_context>

<pallas_src>
import functools

import jax
import jax.numpy as jnp
from jax.experimental import pallas as pl
from jax.experimental.pallas import tpu as pltpu

LN_EPS = 1e-5
BN_EPS = 1e-5


# ----------------------------- Pallas kernel ---------------------------------
def _block_kernel(x_ref, wc_ref, bc_ref, wl_ref, bl_ref, wm_ref, wv_ref,
                  o_ref, act_ref, *, num_heads):
    """Whole TransformerBlock forward for one batch element, one layer per grid step.

    Grid = (batch, num_layers); batch "parallel", layer "arbitrary".

    x_ref : (1, c1, S) f32   NCHW input with spatial flattened (free reshape in wrapper)
    wc_ref: (c2, c1)   f32   1x1 conv weight with BatchNorm scale folded in
    bc_ref: (c2, 1)    f32   folded BatchNorm shift (column -> lane broadcast)
    wl_ref: (c2, c2)   bf16  TransformerBlock.linear weight, pre-transposed (in, out)
    bl_ref: (1, c2)    f32   linear bias (row -> sublane broadcast)
    wm_ref: (1, 5, c2, c2) bf16  this layer's fused matrices:
            [0] q∘in_proj_q  [1] k∘in_proj_k  [2] v∘in_proj_v  [3] out_proj  [4] fc2∘fc1
    wv_ref: (1, 8, c2) f32   ln1 g,b | in_proj bias q,k,v | out_proj bias | ln2 g,b
    o_ref : (1, c2, S) f32   final NCHW-friendly output (written only at the last layer)
    act_ref: (S, c2)   f32   VMEM scratch carrying activations across layer steps
    """
    layer = pl.program_id(1)
    n_layers = pl.num_programs(1)

    # ---- embed: conv(1x1)+BN+SiLU, token-major transpose, p + linear(p) ----
    @pl.when(layer == 0)
    def _():
        xT = x_ref[0]                                                  # (c1, S)
        hT = jnp.dot(wc_ref[...], xT, preferred_element_type=jnp.float32)  # (c2, S)
        hT = hT + bc_ref[...]                                          # BN shift
        hT = hT * jax.nn.sigmoid(hT)                                   # SiLU (EUP)
        h = hT.T                                                       # (S, c2) token-major
        e = jnp.dot(h.astype(jnp.bfloat16), wl_ref[...],
                    preferred_element_type=jnp.float32) + bl_ref[...]
        act_ref[...] = h + e                                           # p + linear(p)

    # ---- one TransformerLayer on the VMEM-resident activations ----
    X = act_ref[...]                                                   # (S, c2) f32
    S, c = X.shape
    dh = c // num_heads
    scale = 1.0 / float(dh) ** 0.5

    def layernorm(t, g, b):
        mu = jnp.mean(t, axis=-1, keepdims=True)
        tc = t - mu
        var = jnp.mean(tc * tc, axis=-1, keepdims=True)
        return tc * jax.lax.rsqrt(var + LN_EPS) * g + b

    g1 = wv_ref[0, 0:1, :]; b1 = wv_ref[0, 1:2, :]
    bq = wv_ref[0, 2:3, :]; bk = wv_ref[0, 3:4, :]; bv = wv_ref[0, 4:5, :]
    bo = wv_ref[0, 5:6, :]
    g2 = wv_ref[0, 6:7, :]; b2 = wv_ref[0, 7:8, :]

    xn = layernorm(X, g1, b1).astype(jnp.bfloat16)

    q = jnp.dot(xn, wm_ref[0, 0], preferred_element_type=jnp.float32) + bq
    k = jnp.dot(xn, wm_ref[0, 1], preferred_element_type=jnp.float32) + bk
    v = jnp.dot(xn, wm_ref[0, 2], preferred_element_type=jnp.float32) + bv

    qs = (q * scale).astype(jnp.bfloat16)
    kb = k.astype(jnp.bfloat16)
    vb = v.astype(jnp.bfloat16)

    heads = []
    for hh in range(num_heads):                                        # static, unrolled
        lo = hh * dh
        qh = qs[:, lo:lo + dh]
        kh = kb[:, lo:lo + dh]
        vh = vb[:, lo:lo + dh]
        # scores = qh @ kh^T  (contract last dims; MXU, f32 accumulate)
        s_h = jax.lax.dot_general(qh, kh, (((1,), (1,)), ((), ())),
                                  preferred_element_type=jnp.float32)  # (S, S)
        m = jnp.max(s_h, axis=-1, keepdims=True)
        p = jnp.exp(s_h - m)
        p = p * pl.reciprocal(jnp.sum(p, axis=-1, keepdims=True), approx=True)
        heads.append(jnp.dot(p.astype(jnp.bfloat16), vh,
                             preferred_element_type=jnp.float32))      # (S, dh)
    attn = jnp.concatenate(heads, axis=-1)                             # (S, c)

    a = jnp.dot(attn.astype(jnp.bfloat16), wm_ref[0, 3],
                preferred_element_type=jnp.float32) + bo
    x2 = a + X                                                         # residual 1
    y = layernorm(x2, g2, b2)
    mlp = jnp.dot(y.astype(jnp.bfloat16), wm_ref[0, 4],
                  preferred_element_type=jnp.float32)                  # fc2(fc1(y)) fused
    out = mlp + y                                                      # residual 2
    act_ref[...] = out

    @pl.when(layer == n_layers - 1)
    def _():
        o_ref[0] = out.T.astype(o_ref.dtype)                           # (c2, S) -> NCHW layout


# ----------------------------- wrapper ---------------------------------------
def _fused_weights(params, c2):
    # Fold BatchNorm (eval) into the 1x1 conv.
    inv = params["bn_gamma"] * jax.lax.rsqrt(params["bn_var"] + BN_EPS)
    wc = params["conv_w"].reshape(c2, -1) * inv[:, None]               # (c2, c1)
    bc = (params["bn_beta"] - params["bn_mean"] * inv).reshape(c2, 1)
    wl = params["lin_w"].T.astype(jnp.bfloat16)                        # (c2, c2) (in, out)
    bl = params["lin_b"].reshape(1, c2)

    wm = jnp.stack([jnp.stack([
        L["wq"].T @ L["wqi"].T,            # self.q fused with MHA in_proj (q)
        L["wk"].T @ L["wki"].T,
        L["wv"].T @ L["wvi"].T,
        L["wo"].T,                         # MHA out_proj
        L["w1"].T @ L["w2"].T,             # fc2(fc1(.)) -- no nonlinearity between them
    ]) for L in params["layers"]]).astype(jnp.bfloat16)                # (nl, 5, c2, c2)

    wv = jnp.stack([jnp.stack([
        L["g1"], L["b1"], L["bqi"], L["bki"], L["bvi"],
        L["bo"], L["g2"], L["b2"],
    ]) for L in params["layers"]]).astype(jnp.float32)                 # (nl, 8, c2)
    return wc, bc, wl, bl, wm, wv


@functools.partial(jax.jit, static_argnames=("num_heads",))
def transformer_block_forward(x, params, num_heads):
    b, c1, w, h = x.shape
    c2 = params["lin_w"].shape[0]
    S = w * h
    num_layers = len(params["layers"])
    if c1 == c2:
        # TODO(synk): conv-less path (module skips Conv when c1 == c2) not wired here.
        raise NotImplementedError("c1 == c2 path not implemented")
    assert c2 % 128 == 0, "c2 must be a multiple of 128 for the lane-dense layout"
    assert c2 % num_heads == 0
    assert num_layers >= 1

    wc, bc, wl, bl, wm, wv = _fused_weights(params, c2)
    x3 = x.reshape(b, c1, S).astype(jnp.float32)                       # free reshape only

    cost = pl.CostEstimate(
        flops=b * (2 * S * c2 * (c1 + c2)
                   + num_layers * (10 * S * c2 * c2 + 4 * S * S * c2)),
        transcendentals=b * (S * c2 + num_layers * (num_heads * S * S + 4 * S * c2)),
        bytes_accessed=(4 * b * S * (c1 + c2)
                        + 4 * c2 * (c1 + 2) + 2 * c2 * c2
                        + num_layers * (2 * 5 * c2 * c2 + 4 * 8 * c2)))

    out = pl.pallas_call(
        functools.partial(_block_kernel, num_heads=num_heads),
        out_shape=jax.ShapeDtypeStruct((b, c2, S), jnp.float32),
        grid_spec=pltpu.PrefetchScalarGridSpec(
            num_scalar_prefetch=0,
            grid=(b, num_layers),
            in_specs=[
                pl.BlockSpec((1, c1, S), lambda n, l: (n, 0, 0)),      # resident across l
                pl.BlockSpec((c2, c1), lambda n, l: (0, 0)),
                pl.BlockSpec((c2, 1), lambda n, l: (0, 0)),
                pl.BlockSpec((c2, c2), lambda n, l: (0, 0)),
                pl.BlockSpec((1, c2), lambda n, l: (0, 0)),
                pl.BlockSpec((1, 5, c2, c2), lambda n, l: (l, 0, 0, 0)),
                pl.BlockSpec((1, 8, c2), lambda n, l: (l, 0, 0)),
            ],
            out_specs=pl.BlockSpec((1, c2, S), lambda n, l: (n, 0, 0)),
            scratch_shapes=[pltpu.VMEM((S, c2), jnp.float32)]),
        compiler_params=pltpu.CompilerParams(
            dimension_semantics=("parallel", "arbitrary"),
            vmem_limit_bytes=64 * 1024 * 1024),
        cost_estimate=cost,
    )(x3, wc, bc, wl, bl, wm, wv)

    # Kernel already wrote (b, c2, S); unflatten is a free reshape.
    return out.reshape(b, c2, w, h)


# ----------------------------- pure-JAX reference ----------------------------
def _reference_forward(x, params, num_heads):
    b, c1, w, h = x.shape
    c2 = params["lin_w"].shape[0]
    S = w * h
    dh = c2 // num_heads

    z = jax.lax.conv_general_dilated(
        x, params["conv_w"], window_strides=(1, 1), padding=[(0, 0), (0, 0)],
        dimension_numbers=("NCHW", "OIHW", "NCHW"))
    inv = params["bn_gamma"] / jnp.sqrt(params["bn_var"] + BN_EPS)
    z = (z - params["bn_mean"][None, :, None, None]) * inv[None, :, None, None] \
        + params["bn_beta"][None, :, None, None]
    z = z * jax.nn.sigmoid(z)

    p = jnp.transpose(z.reshape(b, c2, S), (2, 0, 1))            # (S, b, c2), seq-first
    e = p @ params["lin_w"].T + params["lin_b"]
    xx = p + e

    def ln(t, g, bb):
        mu = t.mean(-1, keepdims=True)
        var = ((t - mu) ** 2).mean(-1, keepdims=True)
        return (t - mu) / jnp.sqrt(var + LN_EPS) * g + bb

    for L in params["layers"]:
        xn = ln(xx, L["g1"], L["b1"])
        q = xn @ L["wq"].T @ L["wqi"].T + L["bqi"]
        k = xn @ L["wk"].T @ L["wki"].T + L["bki"]
        v = xn @ L["wv"].T @ L["wvi"].T + L["bvi"]

        def split(t):  # PyTorch MHA head split: (S, b, c) -> (b*H, S, dh)
            return jnp.transpose(t.reshape(S, b * num_heads, dh), (1, 0, 2))

        qh = split(q) * (1.0 / float(dh) ** 0.5)
        kh, vh = split(k), split(v)
        att = jax.nn.softmax(jnp.einsum("nsd,ntd->nst", qh, kh), axis=-1)
        oh = jnp.einsum("nst,ntd->nsd", att, vh)
        o = jnp.transpose(oh, (1, 0, 2)).reshape(S, b, c2)
        a = o @ L["wo"].T + L["bo"]
        x2 = a + xx
        y = ln(x2, L["g2"], L["b2"])
        xx = y @ L["w1"].T @ L["w2"].T + y

    return jnp.transpose(xx, (1, 2, 0)).reshape(b, c2, w, h)


# ----------------------------- params & demo ---------------------------------
def init_params(key, c1, c2, num_layers):
    keys = jax.random.split(key, 7 + num_layers)

    def nrm(k, shape, s=0.08):
        return s * jax.random.normal(k, shape, dtype=jnp.float32)

    params = {
        "conv_w": nrm(keys[0], (c2, c1, 1, 1), 0.3),
        "bn_gamma": 1.0 + nrm(keys[1], (c2,), 0.1),
        "bn_beta": nrm(keys[2], (c2,), 0.1),
        "bn_mean": nrm(keys[3], (c2,), 0.1),
        "bn_var": 0.5 + jax.random.uniform(keys[4], (c2,), dtype=jnp.float32),
        "lin_w": nrm(keys[5], (c2, c2)),
        "lin_b": nrm(keys[6], (c2,), 0.05),
        "layers": [],
    }
    for li in range(num_layers):
        lk = jax.random.split(keys[7 + li], 17)
        params["layers"].append({
            "g1": 1.0 + nrm(lk[0], (c2,), 0.1), "b1": nrm(lk[1], (c2,), 0.05),
            "wq": nrm(lk[2], (c2, c2)), "wk": nrm(lk[3], (c2, c2)), "wv": nrm(lk[4], (c2, c2)),
            "wqi": nrm(lk[5], (c2, c2)), "wki": nrm(lk[6], (c2, c2)), "wvi": nrm(lk[7], (c2, c2)),
            "bqi": nrm(lk[8], (c2,), 0.05), "bki": nrm(lk[9], (c2,), 0.05),
            "bvi": nrm(lk[10], (c2,), 0.05),
            "wo": nrm(lk[11], (c2, c2)), "bo": nrm(lk[12], (c2,), 0.05),
            "g2": 1.0 + nrm(lk[13], (c2,), 0.1), "b2": nrm(lk[14], (c2,), 0.05),
            "w1": nrm(lk[15], (c2, c2)), "w2": nrm(lk[16], (c2, c2)),
        })
    return params


if __name__ == "__main__":
    key = jax.random.PRNGKey(0)
    B, C1, C2, W, H = 2, 4, 128, 16, 16          # c1 != c2 -> conv path; S = 256 tokens
    NUM_HEADS, NUM_LAYERS = 4, 2

    k_x, k_p = jax.random.split(key)
    x = jax.random.normal(k_x, (B, C1, W, H), dtype=jnp.float32)
    params = init_params(k_p, C1, C2, NUM_LAYERS)

    y = transformer_block_forward(x, params, num_heads=NUM_HEADS)
    y = jax.block_until_ready(y)

    ref = _reference_forward(x, params, NUM_HEADS)
    assert y.shape == ref.shape == (B, C2, W, H)
    err = float(jnp.max(jnp.abs(y - ref)))
    scale = float(jnp.max(jnp.abs(ref)))
    assert err <= 0.05 * max(1.0, scale), (err, scale)   # bf16-matmul tolerance

    print("KERNEL_OK")
</pallas_src>

<mosaic_0001>
module attributes {stable_mosaic.version = 11 : i64} {
  func.func @_block_kernel(%arg0: i32, %arg1: i32, %arg2: memref<1x4x256xf32, #tpu.memory_space<vmem>>, %arg3: memref<128x4xf32, #tpu.memory_space<vmem>>, %arg4: memref<128x1xf32, #tpu.memory_space<vmem>>, %arg5: memref<128x128xbf16, #tpu.memory_space<vmem>>, %arg6: memref<1x128xf32, #tpu.memory_space<vmem>>, %arg7: memref<1x5x128x128xbf16, #tpu.memory_space<vmem>>, %arg8: memref<1x8x128xf32, #tpu.memory_space<vmem>>, %arg9: memref<1x128x256xf32, #tpu.memory_space<vmem>>, %arg10: memref<256x128xf32, #tpu.memory_space<vmem>>) attributes {dimension_semantics = [#tpu.dimension_semantics<parallel>, #tpu.dimension_semantics<arbitrary>], iteration_bounds = array<i64: 2, 2>, scalar_prefetch = 0 : i64, scratch_operands = 1 : i64, tpu.core_type = #tpu.core_type<tc>, window_params = [{transform_indices = @transform_0, window_bounds = array<i64: 1, 4, 256>}, {pipeline_mode = #tpu.pipeline_mode<synchronous>, transform_indices = @transform_1, window_bounds = array<i64: 128, 4>}, {pipeline_mode = #tpu.pipeline_mode<synchronous>, transform_indices = @transform_2, window_bounds = array<i64: 128, 1>}, {pipeline_mode = #tpu.pipeline_mode<synchronous>, transform_indices = @transform_3, window_bounds = array<i64: 128, 128>}, {pipeline_mode = #tpu.pipeline_mode<synchronous>, transform_indices = @transform_4, window_bounds = array<i64: 1, 128>}, {transform_indices = @transform_5, window_bounds = array<i64: 1, 5, 128, 128>}, {transform_indices = @transform_6, window_bounds = array<i64: 1, 8, 128>}, {transform_indices = @transform_7, window_bounds = array<i64: 1, 128, 256>}]} {
    %c0_i32 = arith.constant 0 : i32
    %0 = arith.cmpi eq, %arg1, %c0_i32 : i32
    %1 = arith.extui %0 : i1 to i32
    %c0_i32_0 = arith.constant 0 : i32
    %2 = arith.cmpi ne, %1, %c0_i32_0 : i32
    scf.if %2 {
      %c0_73 = arith.constant 0 : index
      %c0_74 = arith.constant 0 : index
      %c0_75 = arith.constant 0 : index
      %162 = vector.load %arg2[%c0_73, %c0_74, %c0_75] : memref<1x4x256xf32, #tpu.memory_space<vmem>>, vector<1x4x256xf32>
      %163 = vector.shape_cast %162 : vector<1x4x256xf32> to vector<4x256xf32>
      %c0_76 = arith.constant 0 : index
      %c0_77 = arith.constant 0 : index
      %164 = vector.load %arg3[%c0_76, %c0_77] : memref<128x4xf32, #tpu.memory_space<vmem>>, vector<128x4xf32>
      %cst_78 = arith.constant dense<0.000000e+00> : vector<128x256xf32>
      %165 = tpu.matmul %164, %163, %cst_78 {dimension_numbers = #tpu.dot_dimension_numbers<[1], [0], [0], [1], [0, 0, 1, 1], [], []>} : vector<128x4xf32>, vector<4x256xf32>, vector<128x256xf32> -> vector<128x256xf32>
      %c0_79 = arith.constant 0 : index
      %c0_80 = arith.constant 0 : index
      %166 = vector.load %arg4[%c0_79, %c0_80] : memref<128x1xf32, #tpu.memory_space<vmem>>, vector<128x1xf32>
      %167 = vector.broadcast %166 : vector<128x1xf32> to vector<128x256xf32>
      %168 = arith.addf %165, %167 : vector<128x256xf32>
      %169 = arith.negf %168 : vector<128x256xf32>
      %170 = math.exp %169 : vector<128x256xf32>
      %cst_81 = arith.constant 1.000000e+00 : f32
      %171 = vector.broadcast %cst_81 : f32 to vector<128x256xf32>
      %172 = arith.addf %171, %170 : vector<128x256xf32>
      %173 = arith.divf %171, %172 : vector<128x256xf32>
      %174 = arith.mulf %168, %173 : vector<128x256xf32>
      %175 = tpu.transpose %174, [1, 0] : vector<128x256xf32> -> vector<256x128xf32>
      %176 = arith.truncf %175 : vector<256x128xf32> to vector<256x128xbf16>
      %c0_82 = arith.constant 0 : index
      %c0_83 = arith.constant 0 : index
      %177 = vector.load %arg5[%c0_82, %c0_83] : memref<128x128xbf16, #tpu.memory_space<vmem>>, vector<128x128xbf16>
      %cst_84 = arith.constant dense<0.000000e+00> : vector<256x128xf32>
      %178 = tpu.matmul %176, %177, %cst_84 {dimension_numbers = #tpu.dot_dimension_numbers<[1], [0], [0], [1], [0, 0, 1, 1], [], []>} : vector<256x128xbf16>, vector<128x128xbf16>, vector<256x128xf32> -> vector<256x128xf32>
      %c0_85 = arith.constant 0 : index
      %c0_86 = arith.constant 0 : index
      %179 = vector.load %arg6[%c0_85, %c0_86] : memref<1x128xf32, #tpu.memory_space<vmem>>, vector<1x128xf32>
      %180 = vector.broadcast %179 : vector<1x128xf32> to vector<256x128xf32>
      %181 = arith.addf %178, %180 : vector<256x128xf32>
      %182 = arith.addf %175, %181 : vector<256x128xf32>
      %c0_87 = arith.constant 0 : index
      %c0_88 = arith.constant 0 : index
      %183 = vector.load %arg10[%c0_87, %c0_88] : memref<256x128xf32, #tpu.memory_space<vmem>>, vector<256x128xf32>
      tpu.vector_store %arg10[%c0_87, %c0_88], %182 {strides = array<i32>} : memref<256x128xf32, #tpu.memory_space<vmem>>, vector<256x128xf32>,
    } else {
    }
    %c0 = arith.constant 0 : index
    %c0_1 = arith.constant 0 : index
    %3 = vector.load %arg10[%c0, %c0_1] : memref<256x128xf32, #tpu.memory_space<vmem>>, vector<256x128xf32>
    %c0_2 = arith.constant 0 : index
    %c0_3 = arith.constant 0 : index
    %c0_4 = arith.constant 0 : index
    %4 = vector.load %arg8[%c0_2, %c0_3, %c0_4] : memref<1x8x128xf32, #tpu.memory_space<vmem>>, vector<1x1x128xf32>
    %5 = vector.shape_cast %4 : vector<1x1x128xf32> to vector<1x128xf32>
    %c0_5 = arith.constant 0 : index
    %c1 = arith.constant 1 : index
    %c0_6 = arith.constant 0 : index
    %6 = vector.load %arg8[%c0_5, %c1, %c0_6] : memref<1x8x128xf32, #tpu.memory_space<vmem>>, vector<1x1x128xf32>
    %7 = vector.shape_cast %6 : vector<1x1x128xf32> to vector<1x128xf32>
    %c0_7 = arith.constant 0 : index
    %c2 = arith.constant 2 : index
    %c0_8 = arith.constant 0 : index
    %8 = vector.load %arg8[%c0_7, %c2, %c0_8] : memref<1x8x128xf32, #tpu.memory_space<vmem>>, vector<1x1x128xf32>
    %9 = vector.shape_cast %8 : vector<1x1x128xf32> to vector<1x128xf32>
    %c0_9 = arith.constant 0 : index
    %c3 = arith.constant 3 : index
    %c0_10 = arith.constant 0 : index
    %10 = vector.load %arg8[%c0_9, %c3, %c0_10] : memref<1x8x128xf32, #tpu.memory_space<vmem>>, vector<1x1x128xf32>
    %11 = vector.shape_cast %10 : vector<1x1x128xf32> to vector<1x128xf32>
    %c0_11 = arith.constant 0 : index
    %c4 = arith.constant 4 : index
    %c0_12 = arith.constant 0 : index
    %12 = vector.load %arg8[%c0_11, %c4, %c0_12] : memref<1x8x128xf32, #tpu.memory_space<vmem>>, vector<1x1x128xf32>
    %13 = vector.shape_cast %12 : vector<1x1x128xf32> to vector<1x128xf32>
    %c0_13 = arith.constant 0 : index
    %c5 = arith.constant 5 : index
    %c0_14 = arith.constant 0 : index
    %14 = vector.load %arg8[%c0_13, %c5, %c0_14] : memref<1x8x128xf32, #tpu.memory_space<vmem>>, vector<1x1x128xf32>
    %15 = vector.shape_cast %14 : vector<1x1x128xf32> to vector<1x128xf32>
    %c0_15 = arith.constant 0 : index
    %c6 = arith.constant 6 : index
    %c0_16 = arith.constant 0 : index
    %16 = vector.load %arg8[%c0_15, %c6, %c0_16] : memref<1x8x128xf32, #tpu.memory_space<vmem>>, vector<1x1x128xf32>
    %17 = vector.shape_cast %16 : vector<1x1x128xf32> to vector<1x128xf32>
    %c0_17 = arith.constant 0 : index
    %c7 = arith.constant 7 : index
    %c0_18 = arith.constant 0 : index
    %18 = vector.load %arg8[%c0_17, %c7, %c0_18] : memref<1x8x128xf32, #tpu.memory_space<vmem>>, vector<1x1x128xf32>
    %19 = vector.shape_cast %18 : vector<1x1x128xf32> to vector<1x128xf32>
    %cst = arith.constant dense<0.000000e+00> : vector<256xf32>
    %20 = vector.multi_reduction <add>, %3, %cst [1] : vector<256x128xf32> to vector<256xf32>
    %21 = vector.shape_cast %20 : vector<256xf32> to vector<256x1xf32>
    %cst_19 = arith.constant 1.280000e+02 : f32
    %22 = vector.broadcast %cst_19 : f32 to vector<256x1xf32>
    %23 = arith.divf %21, %22 : vector<256x1xf32>
    %24 = vector.broadcast %23 : vector<256x1xf32> to vector<256x128xf32>
    %25 = arith.subf %3, %24 : vector<256x128xf32>
    %26 = arith.mulf %25, %25 : vector<256x128xf32>
    %cst_20 = arith.constant dense<0.000000e+00> : vector<256xf32>
    %27 = vector.multi_reduction <add>, %26, %cst_20 [1] : vector<256x128xf32> to vector<256xf32>
    %28 = vector.shape_cast %27 : vector<256xf32> to vector<256x1xf32>
    %cst_21 = arith.constant 1.280000e+02 : f32
    %29 = vector.broadcast %cst_21 : f32 to vector<256x1xf32>
    %30 = arith.divf %28, %29 : vector<256x1xf32>
    %cst_22 = arith.constant 9.99999974E-6 : f32
    %31 = vector.broadcast %cst_22 : f32 to vector<256x1xf32>
    %32 = arith.addf %30, %31 : vector<256x1xf32>
    %33 = math.rsqrt %32 : vector<256x1xf32>
    %34 = vector.broadcast %33 : vector<256x1xf32> to vector<256x128xf32>
    %35 = arith.mulf %25, %34 : vector<256x128xf32>
    %36 = vector.broadcast %5 : vector<1x128xf32> to vector<256x128xf32>
    %37 = arith.mulf %35, %36 : vector<256x128xf32>
    %38 = vector.broadcast %7 : vector<1x128xf32> to vector<256x128xf32>
    %39 = arith.addf %37, %38 : vector<256x128xf32>
    %40 = arith.truncf %39 : vector<256x128xf32> to vector<256x128xbf16>
    %c0_23 = arith.constant 0 : index
    %c0_24 = arith.constant 0 : index
    %c0_25 = arith.constant 0 : index
    %c0_26 = arith.constant 0 : index
    %41 = vector.load %arg7[%c0_23, %c0_24, %c0_25, %c0_26] : memref<1x5x128x128xbf16, #tpu.memory_space<vmem>>, vector<1x1x128x128xbf16>
    %42 = vector.shape_cast %41 : vector<1x1x128x128xbf16> to vector<128x128xbf16>
    %cst_27 = arith.constant dense<0.000000e+00> : vector<256x128xf32>
    %43 = tpu.matmul %40, %42, %cst_27 {dimension_numbers = #tpu.dot_dimension_numbers<[1], [0], [0], [1], [0, 0, 1, 1], [], []>} : vector<256x128xbf16>, vector<128x128xbf16>, vector<256x128xf32> -> vector<256x128xf32>
    %44 = vector.broadcast %9 : vector<1x128xf32> to vector<256x128xf32>
    %45 = arith.addf %43, %44 : vector<256x128xf32>
    %c0_28 = arith.constant 0 : index
    %c1_29 = arith.constant 1 : index
    %c0_30 = arith.constant 0 : index
    %c0_31 = arith.constant 0 : index
    %46 = vector.load %arg7[%c0_28, %c1_29, %c0_30, %c0_31] : memref<1x5x128x128xbf16, #tpu.memory_space<vmem>>, vector<1x1x128x128xbf16>
    %47 = vector.shape_cast %46 : vector<1x1x128x128xbf16> to vector<128x128xbf16>
    %cst_32 = arith.constant dense<0.000000e+00> : vector<256x128xf32>
    %48 = tpu.matmul %40, %47, %cst_32 {dimension_numbers = #tpu.dot_dimension_numbers<[1], [0], [0], [1], [0, 0, 1, 1], [], []>} : vector<256x128xbf16>, vector<128x128xbf16>, vector<256x128xf32> -> vector<256x128xf32>
    %49 = vector.broadcast %11 : vector<1x128xf32> to vector<256x128xf32>
    %50 = arith.addf %48, %49 : vector<256x128xf32>
    %c0_33 = arith.constant 0 : index
    %c2_34 = arith.constant 2 : index
    %c0_35 = arith.constant 0 : index
    %c0_36 = arith.constant 0 : index
    %51 = vector.load %arg7[%c0_33, %c2_34, %c0_35, %c0_36] : memref<1x5x128x128xbf16, #tpu.memory_space<vmem>>, vector<1x1x128x128xbf16>
    %52 = vector.shape_cast %51 : vector<1x1x128x128xbf16> to vector<128x128xbf16>
    %cst_37 = arith.constant dense<0.000000e+00> : vector<256x128xf32>
    %53 = tpu.matmul %40, %52, %cst_37 {dimension_numbers = #tpu.dot_dimension_numbers<[1], [0], [0], [1], [0, 0, 1, 1], [], []>} : vector<256x128xbf16>, vector<128x128xbf16>, vector<256x128xf32> -> vector<256x128xf32>
    %54 = vector.broadcast %13 : vector<1x128xf32> to vector<256x128xf32>
    %55 = arith.addf %53, %54 : vector<256x128xf32>
    %cst_38 = arith.constant 0.176776692 : f32
    %56 = vector.broadcast %cst_38 : f32 to vector<256x128xf32>
    %57 = arith.mulf %45, %56 : vector<256x128xf32>
    %58 = arith.truncf %57 : vector<256x128xf32> to vector<256x128xbf16>
    %59 = arith.truncf %50 : vector<256x128xf32> to vector<256x128xbf16>
    %60 = arith.truncf %55 : vector<256x128xf32> to vector<256x128xbf16>
    %61 = vector.extract_strided_slice %58 {offsets = [0, 0], sizes = [256, 32], strides = [1, 1]} : vector<256x128xbf16> to vector<256x32xbf16>
    %62 = vector.extract_strided_slice %59 {offsets = [0, 0], sizes = [256, 32], strides = [1, 1]} : vector<256x128xbf16> to vector<256x32xbf16>
    %63 = vector.extract_strided_slice %60 {offsets = [0, 0], sizes = [256, 32], strides = [1, 1]} : vector<256x128xbf16> to vector<256x32xbf16>
    %cst_39 = arith.constant dense<0.000000e+00> : vector<256x256xf32>
    %64 = tpu.matmul %61, %62, %cst_39 {dimension_numbers = #tpu.dot_dimension_numbers<[1], [1], [0], [0], [0, 0, 1, 0], [], []>} : vector<256x32xbf16>, vector<256x32xbf16>, vector<256x256xf32> -> vector<256x256xf32>
    %cst_40 = arith.constant dense<0xFF800000> : vector<256xf32>
    %65 = vector.multi_reduction <maximumf>, %64, %cst_40 [1] : vector<256x256xf32> to vector<256xf32>
    %66 = vector.shape_cast %65 : vector<256xf32> to vector<256x1xf32>
    %67 = vector.broadcast %66 : vector<256x1xf32> to vector<256x256xf32>
    %68 = arith.subf %64, %67 : vector<256x256xf32>
    %69 = math.exp %68 : vector<256x256xf32>
    %cst_41 = arith.constant dense<0.000000e+00> : vector<256xf32>
    %70 = vector.multi_reduction <add>, %69, %cst_41 [1] : vector<256x256xf32> to vector<256xf32>
    %71 = vector.shape_cast %70 : vector<256xf32> to vector<256x1xf32>
    %72 = tpu.reciprocal %71 {approx = true} : vector<256x1xf32> -> vector<256x1xf32>
    %73 = vector.broadcast %72 : vector<256x1xf32> to vector<256x256xf32>
    %74 = arith.mulf %69, %73 : vector<256x256xf32>
    %75 = arith.truncf %74 : vector<256x256xf32> to vector<256x256xbf16>
    %cst_42 = arith.constant dense<0.000000e+00> : vector<256x32xf32>
    %76 = tpu.matmul %75, %63, %cst_42 {dimension_numbers = #tpu.dot_dimension_numbers<[1], [0], [0], [1], [0, 0, 1, 1], [], []>} : vector<256x256xbf16>, vector<256x32xbf16>, vector<256x32xf32> -> vector<256x32xf32>
    %77 = vector.extract_strided_slice %58 {offsets = [0, 32], sizes = [256, 32], strides = [1, 1]} : vector<256x128xbf16> to vector<256x32xbf16>
    %78 = vector.extract_strided_slice %59 {offsets = [0, 32], sizes = [256, 32], strides = [1, 1]} : vector<256x128xbf16> to vector<256x32xbf16>
    %79 = vector.extract_strided_slice %60 {offsets = [0, 32], sizes = [256, 32], strides = [1, 1]} : vector<256x128xbf16> to vector<256x32xbf16>
    %cst_43 = arith.constant dense<0.000000e+00> : vector<256x256xf32>
    %80 = tpu.matmul %77, %78, %cst_43 {dimension_numbers = #tpu.dot_dimension_numbers<[1], [1], [0], [0], [0, 0, 1, 0], [], []>} : vector<256x32xbf16>, vector<256x32xbf16>, vector<256x256xf32> -> vector<256x256xf32>
    %cst_44 = arith.constant dense<0xFF800000> : vector<256xf32>
    %81 = vector.multi_reduction <maximumf>, %80, %cst_44 [1] : vector<256x256xf32> to vector<256xf32>
    %82 = vector.shape_cast %81 : vector<256xf32> to vector<256x1xf32>
    %83 = vector.broadcast %82 : vector<256x1xf32> to vector<256x256xf32>
    %84 = arith.subf %80, %83 : vector<256x256xf32>
    %85 = math.exp %84 : vector<256x256xf32>
    %cst_45 = arith.constant dense<0.000000e+00> : vector<256xf32>
    %86 = vector.multi_reduction <add>, %85, %cst_45 [1] : vector<256x256xf32> to vector<256xf32>
    %87 = vector.shape_cast %86 : vector<256xf32> to vector<256x1xf32>
    %88 = tpu.reciprocal %87 {approx = true} : vector<256x1xf32> -> vector<256x1xf32>
    %89 = vector.broadcast %88 : vector<256x1xf32> to vector<256x256xf32>
    %90 = arith.mulf %85, %89 : vector<256x256xf32>
    %91 = arith.truncf %90 : vector<256x256xf32> to vector<256x256xbf16>
    %cst_46 = arith.constant dense<0.000000e+00> : vector<256x32xf32>
    %92 = tpu.matmul %91, %79, %cst_46 {dimension_numbers = #tpu.dot_dimension_numbers<[1], [0], [0], [1], [0, 0, 1, 1], [], []>} : vector<256x256xbf16>, vector<256x32xbf16>, vector<256x32xf32> -> vector<256x32xf32>
    %93 = vector.extract_strided_slice %58 {offsets = [0, 64], sizes = [256, 32], strides = [1, 1]} : vector<256x128xbf16> to vector<256x32xbf16>
    %94 = vector.extract_strided_slice %59 {offsets = [0, 64], sizes = [256, 32], strides = [1, 1]} : vector<256x128xbf16> to vector<256x32xbf16>
    %95 = vector.extract_strided_slice %60 {offsets = [0, 64], sizes = [256, 32], strides = [1, 1]} : vector<256x128xbf16> to vector<256x32xbf16>
    %cst_47 = arith.constant dense<0.000000e+00> : vector<256x256xf32>
    %96 = tpu.matmul %93, %94, %cst_47 {dimension_numbers = #tpu.dot_dimension_numbers<[1], [1], [0], [0], [0, 0, 1, 0], [], []>} : vector<256x32xbf16>, vector<256x32xbf16>, vector<256x256xf32> -> vector<256x256xf32>
    %cst_48 = arith.constant dense<0xFF800000> : vector<256xf32>
    %97 = vector.multi_reduction <maximumf>, %96, %cst_48 [1] : vector<256x256xf32> to vector<256xf32>
    %98 = vector.shape_cast %97 : vector<256xf32> to vector<256x1xf32>
    %99 = vector.broadcast %98 : vector<256x1xf32> to vector<256x256xf32>
    %100 = arith.subf %96, %99 : vector<256x256xf32>
    %101 = math.exp %100 : vector<256x256xf32>
    %cst_49 = arith.constant dense<0.000000e+00> : vector<256xf32>
    %102 = vector.multi_reduction <add>, %101, %cst_49 [1] : vector<256x256xf32> to vector<256xf32>
    %103 = vector.shape_cast %102 : vector<256xf32> to vector<256x1xf32>
    %104 = tpu.reciprocal %103 {approx = true} : vector<256x1xf32> -> vector<256x1xf32>
    %105 = vector.broadcast %104 : vector<256x1xf32> to vector<256x256xf32>
    %106 = arith.mulf %101, %105 : vector<256x256xf32>
    %107 = arith.truncf %106 : vector<256x256xf32> to vector<256x256xbf16>
    %cst_50 = arith.constant dense<0.000000e+00> : vector<256x32xf32>
    %108 = tpu.matmul %107, %95, %cst_50 {dimension_numbers = #tpu.dot_dimension_numbers<[1], [0], [0], [1], [0, 0, 1, 1], [], []>} : vector<256x256xbf16>, vector<256x32xbf16>, vector<256x32xf32> -> vector<256x32xf32>
    %109 = vector.extract_strided_slice %58 {offsets = [0, 96], sizes = [256, 32], strides = [1, 1]} : vector<256x128xbf16> to vector<256x32xbf16>
    %110 = vector.extract_strided_slice %59 {offsets = [0, 96], sizes = [256, 32], strides = [1, 1]} : vector<256x128xbf16> to vector<256x32xbf16>
    %111 = vector.extract_strided_slice %60 {offsets = [0, 96], sizes = [256, 32], strides = [1, 1]} : vector<256x128xbf16> to vector<256x32xbf16>
    %cst_51 = arith.constant dense<0.000000e+00> : vector<256x256xf32>
    %112 = tpu.matmul %109, %110, %cst_51 {dimension_numbers = #tpu.dot_dimension_numbers<[1], [1], [0], [0], [0, 0, 1, 0], [], []>} : vector<256x32xbf16>, vector<256x32xbf16>, vector<256x256xf32> -> vector<256x256xf32>
    %cst_52 = arith.constant dense<0xFF800000> : vector<256xf32>
    %113 = vector.multi_reduction <maximumf>, %112, %cst_52 [1] : vector<256x256xf32> to vector<256xf32>
    %114 = vector.shape_cast %113 : vector<256xf32> to vector<256x1xf32>
    %115 = vector.broadcast %114 : vector<256x1xf32> to vector<256x256xf32>
    %116 = arith.subf %112, %115 : vector<256x256xf32>
    %117 = math.exp %116 : vector<256x256xf32>
    %cst_53 = arith.constant dense<0.000000e+00> : vector<256xf32>
    %118 = vector.multi_reduction <add>, %117, %cst_53 [1] : vector<256x256xf32> to vector<256xf32>
    %119 = vector.shape_cast %118 : vector<256xf32> to vector<256x1xf32>
    %120 = tpu.reciprocal %119 {approx = true} : vector<256x1xf32> -> vector<256x1xf32>
    %121 = vector.broadcast %120 : vector<256x1xf32> to vector<256x256xf32>
    %122 = arith.mulf %117, %121 : vector<256x256xf32>
    %123 = arith.truncf %122 : vector<256x256xf32> to vector<256x256xbf16>
    %cst_54 = arith.constant dense<0.000000e+00> : vector<256x32xf32>
    %124 = tpu.matmul %123, %111, %cst_54 {dimension_numbers = #tpu.dot_dimension_numbers<[1], [0], [0], [1], [0, 0, 1, 1], [], []>} : vector<256x256xbf16>, vector<256x32xbf16>, vector<256x32xf32> -> vector<256x32xf32>
    %125 = tpu.concatenate %76, %92, %108, %124 in 1 : vector<256x32xf32>, vector<256x32xf32>, vector<256x32xf32>, vector<256x32xf32> -> vector<256x128xf32>
    %126 = arith.truncf %125 : vector<256x128xf32> to vector<256x128xbf16>
    %c0_55 = arith.constant 0 : index
    %c3_56 = arith.constant 3 : index
    %c0_57 = arith.constant 0 : index
    %c0_58 = arith.constant 0 : index
    %127 = vector.load %arg7[%c0_55, %c3_56, %c0_57, %c0_58] : memref<1x5x128x128xbf16, #tpu.memory_space<vmem>>, vector<1x1x128x128xbf16>
    %128 = vector.shape_cast %127 : vector<1x1x128x128xbf16> to vector<128x128xbf16>
    %cst_59 = arith.constant dense<0.000000e+00> : vector<256x128xf32>
    %129 = tpu.matmul %126, %128, %cst_59 {dimension_numbers = #tpu.dot_dimension_numbers<[1], [0], [0], [1], [0, 0, 1, 1], [], []>} : vector<256x128xbf16>, vector<128x128xbf16>, vector<256x128xf32> -> vector<256x128xf32>
    %130 = vector.broadcast %15 : vector<1x128xf32> to vector<256x128xf32>
    %131 = arith.addf %129, %130 : vector<256x128xf32>
    %132 = arith.addf %131, %3 : vector<256x128xf32>
    %cst_60 = arith.constant dense<0.000000e+00> : vector<256xf32>
    %133 = vector.multi_reduction <add>, %132, %cst_60 [1] : vector<256x128xf32> to vector<256xf32>
    %134 = vector.shape_cast %133 : vector<256xf32> to vector<256x1xf32>
    %cst_61 = arith.constant 1.280000e+02 : f32
    %135 = vector.broadcast %cst_61 : f32 to vector<256x1xf32>
    %136 = arith.divf %134, %135 : vector<256x1xf32>
    %137 = vector.broadcast %136 : vector<256x1xf32> to vector<256x128xf32>
    %138 = arith.subf %132, %137 : vector<256x128xf32>
    %139 = arith.mulf %138, %138 : vector<256x128xf32>
    %cst_62 = arith.constant dense<0.000000e+00> : vector<256xf32>
    %140 = vector.multi_reduction <add>, %139, %cst_62 [1] : vector<256x128xf32> to vector<256xf32>
    %141 = vector.shape_cast %140 : vector<256xf32> to vector<256x1xf32>
    %cst_63 = arith.constant 1.280000e+02 : f32
    %142 = vector.broadcast %cst_63 : f32 to vector<256x1xf32>
    %143 = arith.divf %141, %142 : vector<256x1xf32>
    %cst_64 = arith.constant 9.99999974E-6 : f32
    %144 = vector.broadcast %cst_64 : f32 to vector<256x1xf32>
    %145 = arith.addf %143, %144 : vector<256x1xf32>
    %146 = math.rsqrt %145 : vector<256x1xf32>
    %147 = vector.broadcast %146 : vector<256x1xf32> to vector<256x128xf32>
    %148 = arith.mulf %138, %147 : vector<256x128xf32>
    %149 = vector.broadcast %17 : vector<1x128xf32> to vector<256x128xf32>
    %150 = arith.mulf %148, %149 : vector<256x128xf32>
    %151 = vector.broadcast %19 : vector<1x128xf32> to vector<256x128xf32>
    %152 = arith.addf %150, %151 : vector<256x128xf32>
    %153 = arith.truncf %152 : vector<256x128xf32> to vector<256x128xbf16>
    %c0_65 = arith.constant 0 : index
    %c4_66 = arith.constant 4 : index
    %c0_67 = arith.constant 0 : index
    %c0_68 = arith.constant 0 : index
    %154 = vector.load %arg7[%c0_65, %c4_66, %c0_67, %c0_68] : memref<1x5x128x128xbf16, #tpu.memory_space<vmem>>, vector<1x1x128x128xbf16>
    %155 = vector.shape_cast %154 : vector<1x1x128x128xbf16> to vector<128x128xbf16>
    %cst_69 = arith.constant dense<0.000000e+00> : vector<256x128xf32>
    %156 = tpu.matmul %153, %155, %cst_69 {dimension_numbers = #tpu.dot_dimension_numbers<[1], [0], [0], [1], [0, 0, 1, 1], [], []>} : vector<256x128xbf16>, vector<128x128xbf16>, vector<256x128xf32> -> vector<256x128xf32>
    %157 = arith.addf %156, %152 : vector<256x128xf32>
    %c0_70 = arith.constant 0 : index
    %c0_71 = arith.constant 0 : index
    %158 = vector.load %arg10[%c0_70, %c0_71] : memref<256x128xf32, #tpu.memory_space<vmem>>, vector<256x128xf32>
    tpu.vector_store %arg10[%c0_70, %c0_71], %157 {strides = array<i32>} : memref<256x128xf32, #tpu.memory_space<vmem>>, vector<256x128xf32>,
    %c1_i32 = arith.constant 1 : i32
    %159 = arith.cmpi eq, %arg1, %c1_i32 : i32
    %160 = arith.extui %159 : i1 to i32
    %c0_i32_72 = arith.constant 0 : i32
    %161 = arith.cmpi ne, %160, %c0_i32_72 : i32
    scf.if %161 {
      %162 = tpu.transpose %157, [1, 0] : vector<256x128xf32> -> vector<128x256xf32>
      %c0_73 = arith.constant 0 : index
      %c0_74 = arith.constant 0 : index
      %c0_75 = arith.constant 0 : index
      %163 = vector.load %arg9[%c0_73, %c0_74, %c0_75] : memref<1x128x256xf32, #tpu.memory_space<vmem>>, vector<1x128x256xf32>
      %164 = vector.shape_cast %163 : vector<1x128x256xf32> to vector<128x256xf32>
      %165 = vector.shape_cast %162 : vector<128x256xf32> to vector<1x128x256xf32>
      tpu.vector_store %arg9[%c0_73, %c0_74, %c0_75], %165 {strides = array<i32>} : memref<1x128x256xf32, #tpu.memory_space<vmem>>, vector<1x128x256xf32>,
    } else {
    }
    return
  }
  func.func @transform_0(%arg0: i32, %arg1: i32) -> (i32, i32, i32) {
    %c0_i32 = arith.constant 0 : i32
    %c0_i32_0 = arith.constant 0 : i32
    %c0_i32_1 = arith.constant 0 : i32
    return %arg0, %c0_i32, %c0_i32_0 : i32, i32, i32
  }
  func.func @transform_1(%arg0: i32, %arg1: i32) -> (i32, i32) {
    %c0_i32 = arith.constant 0 : i32
    %c0_i32_0 = arith.constant 0 : i32
    %c0_i32_1 = arith.constant 0 : i32
    return %c0_i32, %c0_i32_0 : i32, i32
  }
  func.func @transform_2(%arg0: i32, %arg1: i32) -> (i32, i32) {
    %c0_i32 = arith.constant 0 : i32
    %c0_i32_0 = arith.constant 0 : i32
    %c0_i32_1 = arith.constant 0 : i32
    return %c0_i32, %c0_i32_0 : i32, i32
  }
  func.func @transform_3(%arg0: i32, %arg1: i32) -> (i32, i32) {
    %c0_i32 = arith.constant 0 : i32
    %c0_i32_0 = arith.constant 0 : i32
    %c0_i32_1 = arith.constant 0 : i32
    return %c0_i32, %c0_i32_0 : i32, i32
  }
  func.func @transform_4(%arg0: i32, %arg1: i32) -> (i32, i32) {
    %c0_i32 = arith.constant 0 : i32
    %c0_i32_0 = arith.constant 0 : i32
    %c0_i32_1 = arith.constant 0 : i32
    return %c0_i32, %c0_i32_0 : i32, i32
  }
  func.func @transform_5(%arg0: i32, %arg1: i32) -> (i32, i32, i32, i32) {
    %c0_i32 = arith.constant 0 : i32
    %c0_i32_0 = arith.constant 0 : i32
    %c0_i32_1 = arith.constant 0 : i32
    %c0_i32_2 = arith.constant 0 : i32
    return %arg1, %c0_i32, %c0_i32_0, %c0_i32_1 : i32, i32, i32, i32
  }
  func.func @transform_6(%arg0: i32, %arg1: i32) -> (i32, i32, i32) {
    %c0_i32 = arith.constant 0 : i32
    %c0_i32_0 = arith.constant 0 : i32
    %c0_i32_1 = arith.constant 0 : i32
    return %arg1, %c0_i32, %c0_i32_0 : i32, i32, i32
  }
  func.func @transform_7(%arg0: i32, %arg1: i32) -> (i32, i32, i32) {
    %c0_i32 = arith.constant 0 : i32
    %c0_i32_0 = arith.constant 0 : i32
    %c0_i32_1 = arith.constant 0 : i32
    return %arg0, %c0_i32, %c0_i32_0 : i32, i32, i32
  }
}

</mosaic_0001>

<llo_original>
// kernel: transformer_block_forward.1
$region0: #{transformer_block_forward.1}
  #allocation0 [shape = 'u32[]', space=smem, size = 0x4, offset = 0x4, fixed_abs, tag = 'smem constant byte address 0x4 - core index']
  #allocation1 [shape = 'u32[72,128]{1,0:T(1,128)}', space=vmem, size = 0x9000, scoped, tag = 'internal scratch']
  #allocation2 [shape = 'f32[256,128]{1,0:T(8,128)}', space=vmem, size = 0x20000, scoped, tag = 'scratch operand']
  %s0 = inlined_call_operand.vmem [shape: f32[2,4,256], index: 0, kind: input, shape index: {}]
  %s1 = inlined_call_operand.vmem [shape: f32[128,4], index: 1, kind: input, shape index: {}]
  %s2 = inlined_call_operand.vmem [shape: f32[128,1], index: 2, kind: input, shape index: {}]
  %s3 = inlined_call_operand.vmem [shape: bf16[128,128], index: 3, kind: input, shape index: {}]
  %s4 = inlined_call_operand.vmem [shape: f32[1,128], index: 4, kind: input, shape index: {}]
  %s5 = inlined_call_operand.vmem [shape: bf16[2,5,128,128], index: 5, kind: input, shape index: {}]
  %s6 = inlined_call_operand.vmem [shape: f32[2,8,128], index: 6, kind: input, shape index: {}]
  %s7 = inlined_call_operand.vmem [shape: f32[2,128,256], index: 7, kind: output, shape index: {}]
  %s8 = sld [smem:[#allocation0]]
  $region69: #{transformer_block_forward.1} parent=0
    _
  %s10 = ssub.s32 1, %s8
  %s11 = scalar_select 0, %s10, %s8
  loop: start=0, step=1, limit=6
  $region2: #{transformer_block_forward.1} parent=0 // loop_pre_header
    _
  $region3: #{transformer_block_forward.1} parent=0 // loop_header
    %s13 = sphi 0, %s17
    %p14 = scmp.ge.s32.totalorder %s13, 6
    %s20 = sphi 0, %s32
    %s21 = sphi 0, %s28
    %s22 = sphi 0, %s20
    %s23 = sphi 0, %s21
    %s24 = sphi 0, %s22
    %s25 = sphi 0, %s23
    %s35 = sphi 0, %s37
    %s38 = sphi 0, %s35
    %s39 = sphi 0, %s38
    %s55 = sphi 0, %s39
    %s59 = sphi 0, %s59
    %s61 = sphi 0, %s59
    %s62 = sphi 0, %s61
    %s76 = sphi 0, %s62
    %s80 = sphi 0, %s80
    %s82 = sphi 0, %s80
    %s83 = sphi 0, %s82
    %s97 = sphi 0, %s83
    %s101 = sphi 0, %s101
    %s103 = sphi 0, %s101
    %s104 = sphi 0, %s103
    %s118 = sphi 0, %s104
    %s122 = sphi 0, %s122
    %s124 = sphi 0, %s122
    %s125 = sphi 0, %s124
    %s139 = sphi 0, %s125
    %s145 = sphi 0, %s147
    %s148 = sphi 0, %s145
    %s149 = sphi 0, %s148
    %s165 = sphi 0, %s149
    %s171 = sphi 0, %s173
    %s174 = sphi 0, %s171
    %s175 = sphi 0, %s174
    %s191 = sphi 0, %s175
    %s197 = sphi 0, %s199
    %s200 = sphi 0, %s197
    %s201 = sphi 0, %s200
    %s217 = sphi 0, %s201
  $region4: #{transformer_block_forward.1} parent=0 // loop_header_branch
    %16 = sbr.rel (%p14) target = $region8
  $region5: #{transformer_block_forward.1} parent=0 // loop_body
    %s18 = ssub.s32 %s13, 1
    %s19 = ssub.s32 %s13, 2
    %s26 = sadd.s32 1, %s21
    %p27 = scmp.ge.s32.totalorder %s26, 2
    %s28 = scalar_select %p27, 0, %s26
    %s29 = sadd.s32 1, %s20
    %s30 = scalar_select %p27, %s29, %s20
    %p31 = scmp.ge.s32.totalorder %s30, 2
    %s32 = scalar_select %p31, 0, %s30
    %s33 = ssub.s32 %s20, %s32
    %p34 = scmp.eq.s32.totalorder %s33, 0
    %s36 = sadd.s32 %s35, 1
    %s37 = scalar_select %p34, %s35, %s36
    %p40 = pneg %p34
    %p41 = scmp.eq.s32.totalorder %s13, 3
    %p42 = por %p40, %p41
    %p43 = scmp.ne.s32.totalorder %s35, %s38
    %p44 = scmp.eq.s32.totalorder %s13, 0
    %p45 = por %p43, %p44
    %p46 = scmp.ne.s32.totalorder %s35, %s38
    %p47 = scmp.eq.s32.totalorder %s18, 3
    %p48 = por %p46, %p47
    %p49 = scmp.ne.s32.totalorder %s38, %s39
    %p50 = scmp.eq.s32.totalorder %s18, 0
    %p51 = por %p49, %p50
    %p52 = scmp.ne.s32.totalorder %s38, %s39
    %p53 = scmp.eq.s32.totalorder %s19, 3
    %p54 = por %p52, %p53
    %p56 = scmp.ne.s32.totalorder %s39, %s55
    %p57 = scmp.eq.s32.totalorder %s19, 0
    %p58 = por %p56, %p57
    %s60 = sadd.s32 %s59, 1
    %p63 = scmp.eq.s32.totalorder %s13, 3
    %p64 = scmp.ne.s32.totalorder %s59, %s61
    %p65 = scmp.eq.s32.totalorder %s13, 0
    %p66 = por %p64, %p65
    %p67 = scmp.ne.s32.totalorder %s59, %s61
    %p68 = scmp.eq.s32.totalorder %s18, 3
    %p69 = por %p67, %p68
    %p70 = scmp.ne.s32.totalorder %s61, %s62
    %p71 = scmp.eq.s32.totalorder %s18, 0
    %p72 = por %p70, %p71
    %p73 = scmp.ne.s32.totalorder %s61, %s62
    %p74 = scmp.eq.s32.totalorder %s19, 3
    %p75 = por %p73, %p74
    %p77 = scmp.ne.s32.totalorder %s62, %s76
    %p78 = scmp.eq.s32.totalorder %s19, 0
    %p79 = por %p77, %p78
    %s81 = sadd.s32 %s80, 1
    %p84 = scmp.eq.s32.totalorder %s13, 3
    %p85 = scmp.ne.s32.totalorder %s80, %s82
    %p86 = scmp.eq.s32.totalorder %s13, 0
    %p87 = por %p85, %p86
    %p88 = scmp.ne.s32.totalorder %s80, %s82
    %p89 = scmp.eq.s32.totalorder %s18, 3
    %p90 = por %p88, %p89
    %p91 = scmp.ne.s32.totalorder %s82, %s83
    %p92 = scmp.eq.s32.totalorder %s18, 0
    %p93 = por %p91, %p92
    %p94 = scmp.ne.s32.totalorder %s82, %s83
    %p95 = scmp.eq.s32.totalorder %s19, 3
    %p96 = por %p94, %p95
    %p98 = scmp.ne.s32.totalorder %s83, %s97
    %p99 = scmp.eq.s32.totalorder %s19, 0
    %p100 = por %p98, %p99
    %s102 = sadd.s32 %s101, 1
    %p105 = scmp.eq.s32.totalorder %s13, 3
    %p106 = scmp.ne.s32.totalorder %s101, %s103
    %p107 = scmp.eq.s32.totalorder %s13, 0
    %p108 = por %p106, %p107
    %p109 = scmp.ne.s32.totalorder %s101, %s103
    %p110 = scmp.eq.s32.totalorder %s18, 3
    %p111 = por %p109, %p110
    %p112 = scmp.ne.s32.totalorder %s103, %s104
    %p113 = scmp.eq.s32.totalorder %s18, 0
    %p114 = por %p112, %p113
    %p115 = scmp.ne.s32.totalorder %s103, %s104
    %p116 = scmp.eq.s32.totalorder %s19, 3
    %p117 = por %p115, %p116
    %p119 = scmp.ne.s32.totalorder %s104, %s118
    %p120 = scmp.eq.s32.totalorder %s19, 0
    %p121 = por %p119, %p120
    %s123 = sadd.s32 %s122, 1
    %p126 = scmp.eq.s32.totalorder %s13, 3
    %p127 = scmp.ne.s32.totalorder %s122, %s124
    %p128 = scmp.eq.s32.totalorder %s13, 0
    %p129 = por %p127, %p128
    %p130 = scmp.ne.s32.totalorder %s122, %s124
    %p131 = scmp.eq.s32.totalorder %s18, 3
    %p132 = por %p130, %p131
    %p133 = scmp.ne.s32.totalorder %s124, %s125
    %p134 = scmp.eq.s32.totalorder %s18, 0
    %p135 = por %p133, %p134
    %p136 = scmp.ne.s32.totalorder %s124, %s125
    %p137 = scmp.eq.s32.totalorder %s19, 3
    %p138 = por %p136, %p137
    %p140 = scmp.ne.s32.totalorder %s125, %s139
    %p141 = scmp.eq.s32.totalorder %s19, 0
    %p142 = por %p140, %p141
    %s143 = ssub.s32 %s21, %s28
    %p144 = scmp.eq.s32.totalorder %s143, 0
    %s146 = sadd.s32 %s145, 1
    %s147 = scalar_select %p144, %s145, %s146
    %p150 = pneg %p144
    %p151 = scmp.eq.s32.totalorder %s13, 3
    %p152 = por %p150, %p151
    %p153 = scmp.ne.s32.totalorder %s145, %s148
    %p154 = scmp.eq.s32.totalorder %s13, 0
    %p155 = por %p153, %p154
    %p156 = scmp.ne.s32.totalorder %s145, %s148
    %p157 = scmp.eq.s32.totalorder %s18, 3
    %p158 = por %p156, %p157
    %p159 = scmp.ne.s32.totalorder %s148, %s149
    %p160 = scmp.eq.s32.totalorder %s18, 0
    %p161 = por %p159, %p160
    %p162 = scmp.ne.s32.totalorder %s148, %s149
    %p163 = scmp.eq.s32.totalorder %s19, 3
    %p164 = por %p162, %p163
    %p166 = scmp.ne.s32.totalorder %s149, %s165
    %p167 = scmp.eq.s32.totalorder %s19, 0
    %p168 = por %p166, %p167
    %s169 = ssub.s32 %s21, %s28
    %p170 = scmp.eq.s32.totalorder %s169, 0
    %s172 = sadd.s32 %s171, 1
    %s173 = scalar_select %p170, %s171, %s172
    %p176 = pneg %p170
    %p177 = scmp.eq.s32.totalorder %s13, 3
    %p178 = por %p176, %p177
    %p179 = scmp.ne.s32.totalorder %s171, %s174
    %p180 = scmp.eq.s32.totalorder %s13, 0
    %p181 = por %p179, %p180
    %p182 = scmp.ne.s32.totalorder %s171, %s174
    %p183 = scmp.eq.s32.totalorder %s18, 3
    %p184 = por %p182, %p183
    %p185 = scmp.ne.s32.totalorder %s174, %s175
    %p186 = scmp.eq.s32.totalorder %s18, 0
    %p187 = por %p185, %p186
    %p188 = scmp.ne.s32.totalorder %s174, %s175
    %p189 = scmp.eq.s32.totalorder %s19, 3
    %p190 = por %p188, %p189
    %p192 = scmp.ne.s32.totalorder %s175, %s191
    %p193 = scmp.eq.s32.totalorder %s19, 0
    %p194 = por %p192, %p193
    %s195 = ssub.s32 %s20, %s32
    %p196 = scmp.eq.s32.totalorder %s195, 0
    %s198 = sadd.s32 %s197, 1
    %s199 = scalar_select %p196, %s197, %s198
    %p202 = pneg %p196
    %p203 = scmp.eq.s32.totalorder %s13, 3
    %p204 = por %p202, %p203
    %p205 = scmp.ne.s32.totalorder %s197, %s200
    %p206 = scmp.eq.s32.totalorder %s13, 0
    %p207 = por %p205, %p206
    %p208 = scmp.ne.s32.totalorder %s197, %s200
    %p209 = scmp.eq.s32.totalorder %s18, 3
    %p210 = por %p208, %p209
    %p211 = scmp.ne.s32.totalorder %s200, %s201
    %p212 = scmp.eq.s32.totalorder %s18, 0
    %p213 = por %p211, %p212
    %p214 = scmp.ne.s32.totalorder %s200, %s201
    %p215 = scmp.eq.s32.totalorder %s19, 3
    %p216 = por %p214, %p215
    %p218 = scmp.ne.s32.totalorder %s201, %s217
    %p219 = scmp.eq.s32.totalorder %s19, 0
    %p220 = por %p218, %p219
    %p221 = scmp.le.s32.totalorder 1, %s13
    %p222 = scmp.lt.s32.totalorder %s13, 5
    %p223 = pnand %p221, %p222
    %p224 = pneg %p223
    // Predicated region
    $region9: #{transformer_block_forward.1} parent=5 // pred_check
      _
    $region10: #{transformer_block_forward.1} parent=5 // pred_check_branch
      %226 = sbr.rel (%p223) target = $region12
    $region11: #{transformer_block_forward.1} parent=5 // pred_region
      %s227 = ssub.s32 %s13, 1
      // Predicated region
      $region13: #{transformer_block_forward.1} parent=11 // pred_check
        %p228 = pneg %p72
      $region14: #{transformer_block_forward.1} parent=11 // pred_check_branch
        %230 = sbr.rel (%p228) target = $region16
      $region15: #{transformer_block_forward.1} parent=11 // pred_region
        _
      $region16: #{transformer_block_forward.1} parent=11 // pred_fallthru
        _
      // Predicated region
      $region17: #{transformer_block_forward.1} parent=11 // pred_check
        %p231 = pneg %p93
      $region18: #{transformer_block_forward.1} parent=11 // pred_check_branch
        %233 = sbr.rel (%p231) target = $region20
      $region19: #{transformer_block_forward.1} parent=11 // pred_region
        _
      $region20: #{transformer_block_forward.1} parent=11 // pred_fallthru
        _
      // Predicated region
      $region21: #{transformer_block_forward.1} parent=11 // pred_check
        %p234 = pneg %p114
      $region22: #{transformer_block_forward.1} parent=11 // pred_check_branch
        %236 = sbr.rel (%p234) target = $region24
      $region23: #{transformer_block_forward.1} parent=11 // pred_region
        _
      $region24: #{transformer_block_forward.1} parent=11 // pred_fallthru
        _
      // Predicated region
      $region25: #{transformer_block_forward.1} parent=11 // pred_check
        %p237 = pneg %p135
      $region26: #{transformer_block_forward.1} parent=11 // pred_check_branch
        %239 = sbr.rel (%p237) target = $region28
      $region27: #{transformer_block_forward.1} parent=11 // pred_region
        _
      $region28: #{transformer_block_forward.1} parent=11 // pred_fallthru
        _
    $region12: #{transformer_block_forward.1} parent=5 // pred_fallthru
      _
    %p240 = scmp.lt.s32.totalorder %s13, 4
    // Predicated region
    $region29: #{transformer_block_forward.1} parent=5 // pred_check
      %p241 = pneg %p240
    $region30: #{transformer_block_forward.1} parent=5 // pred_check_branch
      %243 = sbr.rel (%p241) target = $region32
    $region31: #{transformer_block_forward.1} parent=5 // pred_region
      // Predicated region
      $region33: #{transformer_block_forward.1} parent=31 // pred_check
        %p244 = pneg %p45
      $region34: #{transformer_block_forward.1} parent=31 // pred_check_branch
        %246 = sbr.rel (%p244) target = $region36
      $region35: #{transformer_block_forward.1} parent=31 // pred_region
        %p247 = scmp.lt.s32.totalorder %s20, 1
        %s248 = scalar_select %p247, %s20, 1
        %s249 = smul.addr %s248, 2
        %s250 = smul.addr %s249, 4
        %s251 = scalar_lea.vmem %s0, %s250
      $region36: #{transformer_block_forward.1} parent=31 // pred_fallthru
        _
      // Predicated region
      $region37: #{transformer_block_forward.1} parent=31 // pred_check
        %p252 = pneg %p155
      $region38: #{transformer_block_forward.1} parent=31 // pred_check_branch
        %254 = sbr.rel (%p252) target = $region40
      $region39: #{transformer_block_forward.1} parent=31 // pred_region
        %p255 = scmp.lt.s32.totalorder %s21, 1
        %s256 = scalar_select %p255, %s21, 1
        %s257 = smul.addr %s256, 80
        %s258 = smul.addr %s257, 4
        %s259 = scalar_lea.vmem %s5, %s258
      $region40: #{transformer_block_forward.1} parent=31 // pred_fallthru
        _
      // Predicated region
      $region41: #{transformer_block_forward.1} parent=31 // pred_check
        %p260 = pneg %p181
      $region42: #{transformer_block_forward.1} parent=31 // pred_check_branch
        %262 = sbr.rel (%p260) target = $region44
      $region43: #{transformer_block_forward.1} parent=31 // pred_region
        %p263 = scmp.lt.s32.totalorder %s21, 1
        %s264 = scalar_select %p263, %s21, 1
        %s265 = smul.addr %s264, 8
        %s266 = scalar_lea.vmem %s6, %s265
      $region44: #{transformer_block_forward.1} parent=31 // pred_fallthru
        _
    $region32: #{transformer_block_forward.1} parent=5 // pred_fallthru
      _
    %p267 = scmp.le.s32.totalorder 1, %s13
    %p268 = scmp.lt.s32.totalorder %s13, 5
    %p269 = pnand %p267, %p268
    %p270 = pneg %p269
    // Predicated region
    $region45: #{transformer_block_forward.1} parent=5 // pred_check
      _
    $region46: #{transformer_block_forward.1} parent=5 // pred_check_branch
      %272 = sbr.rel (%p269) target = $region48
    $region47: #{transformer_block_forward.1} parent=5 // pred_region
      %s273 = ssub.s32 %s13, 1
      %p274 = scmp.lt.s32.totalorder %s22, 1
      %s275 = scalar_select %p274, %s22, 1
      %s276 = smul.addr %s275, 2
      %s277 = smul.addr %s276, 4
      %s278 = scalar_lea.vmem %s0, %s277
      %p279 = pneg %p51
      %p280 = pneg %p48
      %p281 = pneg %p72
      %p282 = pneg %p69
      %p283 = pneg %p93
      %p284 = pneg %p90
      %p285 = pneg %p114
      %p286 = pneg %p111
      %p287 = pneg %p135
      %p288 = pneg %p132
      %p289 = scmp.lt.s32.totalorder %s23, 1
      %s290 = scalar_select %p289, %s23, 1
      %s291 = smul.addr %s290, 80
      %s292 = smul.addr %s291, 4
      %s293 = scalar_lea.vmem %s5, %s292
      %p294 = pneg %p161
      %p295 = pneg %p158
      %p296 = scmp.lt.s32.totalorder %s23, 1
      %s297 = scalar_select %p296, %s23, 1
      %s298 = smul.addr %s297, 8
      %s299 = scalar_lea.vmem %s6, %s298
      %p300 = pneg %p187
      %p301 = pneg %p184
      %p302 = pneg %p213
      %p303 = pneg %p210
      %p304 = scmp.lt.s32.totalorder %s22, 1
      %s305 = scalar_select %p304, %s22, 1
      %s306 = smul.addr %s305, 32
      %s307 = smul.addr %s306, 8
      %s308 = scalar_lea.vmem %s7, %s307
      %p309 = scmp.lt.s32.totalorder %s22, 1
      %s310 = scalar_select %p309, %s22, 1
      %s311 = smul.addr %s310, 2
      %s312 = smul.addr %s311, 4
      %s313 = scalar_lea.vmem %s0, %s312
      %p314 = scmp.lt.s32.totalorder %s23, 1
      %s315 = scalar_select %p314, %s23, 1
      %s316 = smul.addr %s315, 80
      %s317 = smul.addr %s316, 4
      %s318 = scalar_lea.vmem %s5, %s317
      %p319 = scmp.lt.s32.totalorder %s23, 1
      %s320 = scalar_select %p319, %s23, 1
      %s321 = smul.addr %s320, 8
      %s322 = scalar_lea.vmem %s6, %s321
      %p323 = scmp.lt.s32.totalorder %s22, 1
      %s324 = scalar_select %p323, %s22, 1
      %s325 = smul.addr %s324, 32
      %s326 = smul.addr %s325, 8
      %s327 = scalar_lea.vmem %s7, %s326
      %p328 = scmp.eq.s32.totalorder %s23, 0
      // Predicated region
      $region49: #{transformer_block_forward.1} parent=47 // pred_check
        %p329 = pneg %p328
      $region50: #{transformer_block_forward.1} parent=47 // pred_check_branch
        %331 = sbr.rel (%p329) target = $region52
      $region51: #{transformer_block_forward.1} parent=47 // pred_region
        %v332 = vld [vmem:[%s313] sm:$0xff]
        %v333 = vld [vmem:[%s1] sm:$0xff]
        %v334 = vld [vmem:[%s1 + $0x8] sm:$0xff]
        %v335 = vld [vmem:[%s1 + $0x10] sm:$0xff]
        %v336 = vld [vmem:[%s1 + $0x18] sm:$0xff]
        %v337 = vld [vmem:[%s1 + $0x20] sm:$0xff]
        %v338 = vld [vmem:[%s1 + $0x28] sm:$0xff]
        %v339 = vld [vmem:[%s1 + $0x30] sm:$0xff]
        %v340 = vld [vmem:[%s1 + $0x38] sm:$0xff]
        %v341 = vld [vmem:[%s1 + $0x40] sm:$0xff]
        %v342 = vld [vmem:[%s1 + $0x48] sm:$0xff]
        %v343 = vld [vmem:[%s1 + $0x50] sm:$0xff]
        %v344 = vld [vmem:[%s1 + $0x58] sm:$0xff]
        %v345 = vld [vmem:[%s1 + $0x60] sm:$0xff]
        %v346 = vld [vmem:[%s1 + $0x68] sm:$0xff]
        %v347 = vld [vmem:[%s1 + $0x70] sm:$0xff]
        %v348 = vld [vmem:[%s1 + $0x78] sm:$0xff]
        %v349 = vld [vmem:[%s2] sm:$0xff]
        %v350 = vld [vmem:[%s2 + $0x8] sm:$0xff]
        %v351 = vld [vmem:[%s2 + $0x10] sm:$0xff]
        %v352 = vld [vmem:[%s2 + $0x18] sm:$0xff]
        %v353 = vld [vmem:[%s2 + $0x20] sm:$0xff]
        %v354 = vld [vmem:[%s2 + $0x28] sm:$0xff]
        %v355 = vld [vmem:[%s2 + $0x30] sm:$0xff]
        %v356 = vld [vmem:[%s2 + $0x38] sm:$0xff]
        %v357 = vld [vmem:[%s2 + $0x40] sm:$0xff]
        %v358 = vld [vmem:[%s2 + $0x48] sm:$0xff]
        %v359 = vld [vmem:[%s2 + $0x50] sm:$0xff]
        %v360 = vld [vmem:[%s2 + $0x58] sm:$0xff]
        %v361 = vld [vmem:[%s2 + $0x60] sm:$0xff]
        %v362 = vld [vmem:[%s2 + $0x68] sm:$0xff]
        %v363 = vld [vmem:[%s2 + $0x70] sm:$0xff]
        %v364 = vld [vmem:[%s2 + $0x78] sm:$0xff]
        %366 = vset.pattern.permute.xlu0 0
        %367 = vperm.xlu0 %366, %v349
        %v368 = vpop.permute.xlu0 %367
        %371 = vset.pattern.permute.xlu0 0
        %372 = vperm.xlu0 %371, %v350
        %v373 = vpop.permute.xlu0 %372
        %376 = vset.pattern.permute.xlu0 0
        %377 = vperm.xlu0 %376, %v351
        %v378 = vpop.permute.xlu0 %377
        %381 = vset.pattern.permute.xlu0 0
        %382 = vperm.xlu0 %381, %v352
        %v383 = vpop.permute.xlu0 %382
        %386 = vset.pattern.permute.xlu0 0
        %387 = vperm.xlu0 %386, %v353
        %v388 = vpop.permute.xlu0 %387
        %391 = vset.pattern.permute.xlu0 0
        %392 = vperm.xlu0 %391, %v354
        %v393 = vpop.permute.xlu0 %392
        %396 = vset.pattern.permute.xlu0 0
        %397 = vperm.xlu0 %396, %v355
        %v398 = vpop.permute.xlu0 %397
        %401 = vset.pattern.permute.xlu0 0
        %402 = vperm.xlu0 %401, %v356
        %v403 = vpop.permute.xlu0 %402
        %406 = vset.pattern.permute.xlu0 0
        %407 = vperm.xlu0 %406, %v357
        %v408 = vpop.permute.xlu0 %407
        %411 = vset.pattern.permute.xlu0 0
        %412 = vperm.xlu0 %411, %v358
        %v413 = vpop.permute.xlu0 %412
        %416 = vset.pattern.permute.xlu0 0
        %417 = vperm.xlu0 %416, %v359
        %v418 = vpop.permute.xlu0 %417
        %421 = vset.pattern.permute.xlu0 0
        %422 = vperm.xlu0 %421, %v360
        %v423 = vpop.permute.xlu0 %422
        %426 = vset.pattern.permute.xlu0 0
        %427 = vperm.xlu0 %426, %v361
        %v428 = vpop.permute.xlu0 %427
        %431 = vset.pattern.permute.xlu0 0
        %432 = vperm.xlu0 %431, %v362
        %v433 = vpop.permute.xlu0 %432
        %436 = vset.pattern.permute.xlu0 0
        %437 = vperm.xlu0 %436, %v363
        %v438 = vpop.permute.xlu0 %437
        %441 = vset.pattern.permute.xlu0 0
        %442 = vperm.xlu0 %441, %v364
        %v443 = vpop.permute.xlu0 %442
        %446 = vst [vmem:[#allocation1] ss:$2 sm:$0xff] %v332
        %v447 = vld.sshfl [vmem:[#allocation1] sm:$0xff pattern:$0x75316420]
        %v448 = vld.sshfl [vmem:[#allocation1 + $0x8] sm:$0xff pattern:$0x75316420]
        %vm449 = vcmask 31744
        %v451 = vsel %vm449, %v333, 0
        %v454 = vsel %vm449, %v334, 0
        %v457 = vsel %vm449, %v335, 0
        %v460 = vsel %vm449, %v336, 0
        %v463 = vsel %vm449, %v337, 0
        %v466 = vsel %vm449, %v338, 0
        %v469 = vsel %vm449, %v339, 0
        %v472 = vsel %vm449, %v340, 0
        %v475 = vsel %vm449, %v341, 0
        %v478 = vsel %vm449, %v342, 0
        %v481 = vsel %vm449, %v343, 0
        %v484 = vsel %vm449, %v344, 0
        %v487 = vsel %vm449, %v345, 0
        %v490 = vsel %vm449, %v346, 0
        %v493 = vsel %vm449, %v347, 0
        %v496 = vsel %vm449, %v348, 0
        %vm498 = vcmask 1043456
        %v499 = vsel %vm498, %v447, 0
        %v501 = vsel %vm498, %v448, 0
        %503 = vmatpush.msra.mxu0 0.0
        %504 = vmatpush.msra.mxu0 0.0
        %505 = vmatpush.msra.mxu0 0.0
        %506 = vmatpush.msra.mxu0 0.0
        %507 = vmatpush.msra.mxu0 0.0
        %508 = vmatpush.msra.mxu0 0.0
        %509 = vmatpush.msra.mxu0 0.0
        %510 = vmatpush.msra.mxu0 0.0
        %511 = vmatpush.msra.mxu0 0.0
        %512 = vmatpush.msra.mxu0 0.0
        %513 = vmatpush.msra.mxu0 0.0
        %514 = vmatpush.msra.mxu0 0.0
        %515 = vmatpush.msra.mxu0 0.0
        %516 = vmatpush.msra.mxu0 0.0
        %517 = vmatpush.msra.mxu0 0.0
        %518 = vmatpush.msra.mxu0 %v499
        %519 = vmatmul.f32.gmra.mxu0 %v451
        %v520 = vpop.f32.mrf.mxu0
        %v521 = vadd.f32 %v368, %v520
        %522 = vmatmul.f32.gmra.mxu0 %v454
        %v523 = vpop.f32.mrf.mxu0
        %v524 = vadd.f32 %v373, %v523
        %525 = vmatmul.f32.gmra.mxu0 %v457
        %v526 = vpop.f32.mrf.mxu0
        %v527 = vadd.f32 %v378, %v526
        %528 = vmatmul.f32.gmra.mxu0 %v460
        %v529 = vpop.f32.mrf.mxu0
        %v530 = vadd.f32 %v383, %v529
        %531 = vmatmul.f32.gmra.mxu0 %v463
        %v532 = vpop.f32.mrf.mxu0
        %v533 = vadd.f32 %v388, %v532
        %534 = vmatmul.f32.gmra.mxu0 %v466
        %v535 = vpop.f32.mrf.mxu0
        %v536 = vadd.f32 %v393, %v535
        %537 = vmatmul.f32.gmra.mxu0 %v469
        %v538 = vpop.f32.mrf.mxu0
        %v539 = vadd.f32 %v398, %v538
        %540 = vmatmul.f32.gmra.mxu0 %v472
        %v541 = vpop.f32.mrf.mxu0
        %v542 = vadd.f32 %v403, %v541
        %543 = vmatmul.f32.gmra.mxu0 %v475
        %v544 = vpop.f32.mrf.mxu0
        %v545 = vadd.f32 %v408, %v544
        %546 = vmatmul.f32.gmra.mxu0 %v478
        %v547 = vpop.f32.mrf.mxu0
        %v548 = vadd.f32 %v413, %v547
        %549 = vmatmul.f32.gmra.mxu0 %v481
        %v550 = vpop.f32.mrf.mxu0
        %v551 = vadd.f32 %v418, %v550
        %552 = vmatmul.f32.gmra.mxu0 %v484
        %v553 = vpop.f32.mrf.mxu0
        %v554 = vadd.f32 %v423, %v553
        %555 = vmatmul.f32.gmra.mxu0 %v487
        %v556 = vpop.f32.mrf.mxu0
        %v557 = vadd.f32 %v428, %v556
        %558 = vmatmul.f32.gmra.mxu0 %v490
        %v559 = vpop.f32.mrf.mxu0
        %v560 = vadd.f32 %v433, %v559
        %561 = vmatmul.f32.gmra.mxu0 %v493
        %v562 = vpop.f32.mrf.mxu0
        %v563 = vadd.f32 %v438, %v562
        %564 = vmatmul.f32.gmra.mxu0 %v496
        %v565 = vpop.f32.mrf.mxu0
        %v566 = vadd.f32 %v443, %v565
        %567 = vdwg.mxu0
        %568 = vmatpush.msra.mxu0 0.0
        %569 = vmatpush.msra.mxu0 0.0
        %570 = vmatpush.msra.mxu0 0.0
        %571 = vmatpush.msra.mxu0 0.0
        %572 = vmatpush.msra.mxu0 0.0
        %573 = vmatpush.msra.mxu0 0.0
        %574 = vmatpush.msra.mxu0 0.0
        %575 = vmatpush.msra.mxu0 0.0
        %576 = vmatpush.msra.mxu0 0.0
        %577 = vmatpush.msra.mxu0 0.0
        %578 = vmatpush.msra.mxu0 0.0
        %579 = vmatpush.msra.mxu0 0.0
        %580 = vmatpush.msra.mxu0 0.0
        %581 = vmatpush.msra.mxu0 0.0
        %582 = vmatpush.msra.mxu0 0.0
        %583 = vmatpush.msra.mxu0 %v501
        %584 = vmatmul.f32.gmra.mxu0 %v451
        %v585 = vpop.f32.mrf.mxu0
        %v586 = vadd.f32 %v368, %v585
        %587 = vmatmul.f32.gmra.mxu0 %v454
        %v588 = vpop.f32.mrf.mxu0
        %v589 = vadd.f32 %v373, %v588
        %590 = vmatmul.f32.gmra.mxu0 %v457
        %v591 = vpop.f32.mrf.mxu0
        %v592 = vadd.f32 %v378, %v591
        %593 = vmatmul.f32.gmra.mxu0 %v460
        %v594 = vpop.f32.mrf.mxu0
        %v595 = vadd.f32 %v383, %v594
        %596 = vmatmul.f32.gmra.mxu0 %v463
        %v597 = vpop.f32.mrf.mxu0
        %v598 = vadd.f32 %v388, %v597
        %599 = vmatmul.f32.gmra.mxu0 %v466
        %v600 = vpop.f32.mrf.mxu0
        %v601 = vadd.f32 %v393, %v600
        %602 = vmatmul.f32.gmra.mxu0 %v469
        %v603 = vpop.f32.mrf.mxu0
        %v604 = vadd.f32 %v398, %v603
        %605 = vmatmul.f32.gmra.mxu0 %v472
        %v606 = vpop.f32.mrf.mxu0
        %v607 = vadd.f32 %v403, %v606
        %608 = vmatmul.f32.gmra.mxu0 %v475
        %v609 = vpop.f32.mrf.mxu0
        %v610 = vadd.f32 %v408, %v609
        %611 = vmatmul.f32.gmra.mxu0 %v478
        %v612 = vpop.f32.mrf.mxu0
        %v613 = vadd.f32 %v413, %v612
        %614 = vmatmul.f32.gmra.mxu0 %v481
        %v615 = vpop.f32.mrf.mxu0
        %v616 = vadd.f32 %v418, %v615
        %617 = vmatmul.f32.gmra.mxu0 %v484
        %v618 = vpop.f32.mrf.mxu0
        %v619 = vadd.f32 %v423, %v618
        %620 = vmatmul.f32.gmra.mxu0 %v487
        %v621 = vpop.f32.mrf.mxu0
        %v622 = vadd.f32 %v428, %v621
        %623 = vmatmul.f32.gmra.mxu0 %v490
        %v624 = vpop.f32.mrf.mxu0
        %v625 = vadd.f32 %v433, %v624
        %626 = vmatmul.f32.gmra.mxu0 %v493
        %v627 = vpop.f32.mrf.mxu0
        %v628 = vadd.f32 %v438, %v627
        %629 = vmatmul.f32.gmra.mxu0 %v496
        %v630 = vpop.f32.mrf.mxu0
        %v631 = vadd.f32 %v443, %v630
        %632 = vdwg.mxu0
        %v633 = vxor.u32 %v521, 2147483648
        %v634 = vxor.u32 %v586, 2147483648
        %v635 = vxor.u32 %v524, 2147483648
        %v636 = vxor.u32 %v589, 2147483648
        %v637 = vxor.u32 %v527, 2147483648
        %v638 = vxor.u32 %v592, 2147483648
        %v639 = vxor.u32 %v530, 2147483648
        %v640 = vxor.u32 %v595, 2147483648
        %v641 = vxor.u32 %v533, 2147483648
        %v642 = vxor.u32 %v598, 2147483648
        %v643 = vxor.u32 %v536, 2147483648
        %v644 = vxor.u32 %v601, 2147483648
        %v645 = vxor.u32 %v539, 2147483648
        %v646 = vxor.u32 %v604, 2147483648
        %v647 = vxor.u32 %v542, 2147483648
        %v648 = vxor.u32 %v607, 2147483648
        %v649 = vxor.u32 %v545, 2147483648
        %v650 = vxor.u32 %v610, 2147483648
        %v651 = vxor.u32 %v548, 2147483648
        %v652 = vxor.u32 %v613, 2147483648
        %v653 = vxor.u32 %v551, 2147483648
        %v654 = vxor.u32 %v616, 2147483648
        %v655 = vxor.u32 %v554, 2147483648
        %v656 = vxor.u32 %v619, 2147483648
        %v657 = vxor.u32 %v557, 2147483648
        %v658 = vxor.u32 %v622, 2147483648
        %v659 = vxor.u32 %v560, 2147483648
        %v660 = vxor.u32 %v625, 2147483648
        %v661 = vxor.u32 %v563, 2147483648
        %v662 = vxor.u32 %v628, 2147483648
        %v663 = vxor.u32 %v566, 2147483648
        %v664 = vxor.u32 %v631, 2147483648
        %v665 = vmul.f32 %v633, 1.442695
        %v666 = vpow.pop %v665
        %v667 = vmul.f32 %v634, 1.442695
        %v668 = vpow.pop %v667
        %v669 = vmul.f32 %v635, 1.442695
        %v670 = vpow.pop %v669
        %v671 = vmul.f32 %v636, 1.442695
        %v672 = vpow.pop %v671
        %v673 = vmul.f32 %v637, 1.442695
        %v674 = vpow.pop %v673
        %v675 = vmul.f32 %v638, 1.442695
        %v676 = vpow.pop %v675
        %v677 = vmul.f32 %v639, 1.442695
        %v678 = vpow.pop %v677
        %v679 = vmul.f32 %v640, 1.442695
        %v680 = vpow.pop %v679
        %v681 = vmul.f32 %v641, 1.442695
        %v682 = vpow.pop %v681
        %v683 = vmul.f32 %v642, 1.442695
        %v684 = vpow.pop %v683
        %v685 = vmul.f32 %v643, 1.442695
        %v686 = vpow.pop %v685
        %v687 = vmul.f32 %v644, 1.442695
        %v688 = vpow.pop %v687
        %v689 = vmul.f32 %v645, 1.442695
        %v690 = vpow.pop %v689
        %v691 = vmul.f32 %v646, 1.442695
        %v692 = vpow.pop %v691
        %v693 = vmul.f32 %v647, 1.442695
        %v694 = vpow.pop %v693
        %v695 = vmul.f32 %v648, 1.442695
        %v696 = vpow.pop %v695
        %v697 = vmul.f32 %v649, 1.442695
        %v698 = vpow.pop %v697
        %v699 = vmul.f32 %v650, 1.442695
        %v700 = vpow.pop %v699
        %v701 = vmul.f32 %v651, 1.442695
        %v702 = vpow.pop %v701
        %v703 = vmul.f32 %v652, 1.442695
        %v704 = vpow.pop %v703
        %v705 = vmul.f32 %v653, 1.442695
        %v706 = vpow.pop %v705
        %v707 = vmul.f32 %v654, 1.442695
        %v708 = vpow.pop %v707
        %v709 = vmul.f32 %v655, 1.442695
        %v710 = vpow.pop %v709
        %v711 = vmul.f32 %v656, 1.442695
        %v712 = vpow.pop %v711
        %v713 = vmul.f32 %v657, 1.442695
        %v714 = vpow.pop %v713
        %v715 = vmul.f32 %v658, 1.442695
        %v716 = vpow.pop %v715
        %v717 = vmul.f32 %v659, 1.442695
        %v718 = vpow.pop %v717
        %v719 = vmul.f32 %v660, 1.442695
        %v720 = vpow.pop %v719
        %v721 = vmul.f32 %v661, 1.442695
        %v722 = vpow.pop %v721
        %v723 = vmul.f32 %v662, 1.442695
        %v724 = vpow.pop %v723
        %v725 = vmul.f32 %v663, 1.442695
        %v726 = vpow.pop %v725
        %v727 = vmul.f32 %v664, 1.442695
        %v728 = vpow.pop %v727
        %v729 = vadd.f32 %v666, 1.0
        %v730 = vadd.f32 %v668, 1.0
        %v731 = vadd.f32 %v670, 1.0
        %v732 = vadd.f32 %v672, 1.0
        %v733 = vadd.f32 %v674, 1.0
        %v734 = vadd.f32 %v676, 1.0
        %v735 = vadd.f32 %v678, 1.0
        %v736 = vadd.f32 %v680, 1.0
        %v737 = vadd.f32 %v682, 1.0
        %v738 = vadd.f32 %v684, 1.0
        %v739 = vadd.f32 %v686, 1.0
        %v740 = vadd.f32 %v688, 1.0
        %v741 = vadd.f32 %v690, 1.0
        %v742 = vadd.f32 %v692, 1.0
        %v743 = vadd.f32 %v694, 1.0
        %v744 = vadd.f32 %v696, 1.0
        %v745 = vadd.f32 %v698, 1.0
        %v746 = vadd.f32 %v700, 1.0
        %v747 = vadd.f32 %v702, 1.0
        %v748 = vadd.f32 %v704, 1.0
        %v749 = vadd.f32 %v706, 1.0
        %v750 = vadd.f32 %v708, 1.0
        %v751 = vadd.f32 %v710, 1.0
        %v752 = vadd.f32 %v712, 1.0
        %v753 = vadd.f32 %v714, 1.0
        %v754 = vadd.f32 %v716, 1.0
        %v755 = vadd.f32 %v718, 1.0
        %v756 = vadd.f32 %v720, 1.0
        %v757 = vadd.f32 %v722, 1.0
        %v758 = vadd.f32 %v724, 1.0
        %v759 = vadd.f32 %v726, 1.0
        %v760 = vadd.f32 %v728, 1.0
        %v761 = vrcp.pop %v729
        %v762 = vmul.f32 %v729, %v761
        %v763 = vsub.f32 1.0, %v762
        %v764 = vmul.f32 %v761, %v763
        %v765 = vadd.f32 %v761, %v764
        %vm766 = vweird.f32 %v729
        %vm767 = vweird.f32 %v761
        %vm768 = vmor %vm766, %vm767
        %v769 = vsel %vm768, %v761, %v765
        %v770 = vand.u32 2147483647, %v729
        %vm771 = vcmp.eq.f32.partialorder %v770, 8.507059e+37
        %v772 = vand.u32 %v729, 2147483648
        %v773 = vor.u32 1.1754944e-38, %v772
        %v774 = vsel %vm771, %v773, %v769
        %v775 = vmul.f32 1.0, %v774
        %v776 = vrcp.pop %v730
        %v777 = vmul.f32 %v730, %v776
        %v778 = vsub.f32 1.0, %v777
        %v779 = vmul.f32 %v776, %v778
        %v780 = vadd.f32 %v776, %v779
        %vm781 = vweird.f32 %v730
        %vm782 = vweird.f32 %v776
        %vm783 = vmor %vm781, %vm782
        %v784 = vsel %vm783, %v776, %v780
        %v785 = vand.u32 2147483647, %v730
        %vm786 = vcmp.eq.f32.partialorder %v785, 8.507059e+37
        %v787 = vand.u32 %v730, 2147483648
        %v788 = vor.u32 1.1754944e-38, %v787
        %v789 = vsel %vm786, %v788, %v784
        %v790 = vmul.f32 1.0, %v789
        %v791 = vrcp.pop %v731
        %v792 = vmul.f32 %v731, %v791
        %v793 = vsub.f32 1.0, %v792
        %v794 = vmul.f32 %v791, %v793
        %v795 = vadd.f32 %v791, %v794
        %vm796 = vweird.f32 %v731
        %vm797 = vweird.f32 %v791
        %vm798 = vmor %vm796, %vm797
        %v799 = vsel %vm798, %v791, %v795
        %v800 = vand.u32 2147483647, %v731
        %vm801 = vcmp.eq.f32.partialorder %v800, 8.507059e+37
        %v802 = vand.u32 %v731, 2147483648
        %v803 = vor.u32 1.1754944e-38, %v802
        %v804 = vsel %vm801, %v803, %v799
        %v805 = vmul.f32 1.0, %v804
        %v806 = vrcp.pop %v732
        %v807 = vmul.f32 %v732, %v806
        %v808 = vsub.f32 1.0, %v807
        %v809 = vmul.f32 %v806, %v808
        %v810 = vadd.f32 %v806, %v809
        %vm811 = vweird.f32 %v732
        %vm812 = vweird.f32 %v806
        %vm813 = vmor %vm811, %vm812
        %v814 = vsel %vm813, %v806, %v810
        %v815 = vand.u32 2147483647, %v732
        %vm816 = vcmp.eq.f32.partialorder %v815, 8.507059e+37
        %v817 = vand.u32 %v732, 2147483648
        %v818 = vor.u32 1.1754944e-38, %v817
        %v819 = vsel %vm816, %v818, %v814
        %v820 = vmul.f32 1.0, %v819
        %v821 = vrcp.pop %v733
        %v822 = vmul.f32 %v733, %v821
        %v823 = vsub.f32 1.0, %v822
        %v824 = vmul.f32 %v821, %v823
        %v825 = vadd.f32 %v821, %v824
        %vm826 = vweird.f32 %v733
        %vm827 = vweird.f32 %v821
        %vm828 = vmor %vm826, %vm827
        %v829 = vsel %vm828, %v821, %v825
        %v830 = vand.u32 2147483647, %v733
        %vm831 = vcmp.eq.f32.partialorder %v830, 8.507059e+37
        %v832 = vand.u32 %v733, 2147483648
        %v833 = vor.u32 1.1754944e-38, %v832
        %v834 = vsel %vm831, %v833, %v829
        %v835 = vmul.f32 1.0, %v834
        %v836 = vrcp.pop %v734
        %v837 = vmul.f32 %v734, %v836
        %v838 = vsub.f32 1.0, %v837
        %v839 = vmul.f32 %v836, %v838
        %v840 = vadd.f32 %v836, %v839
        %vm841 = vweird.f32 %v734
        %vm842 = vweird.f32 %v836
        %vm843 = vmor %vm841, %vm842
        %v844 = vsel %vm843, %v836, %v840
        %v845 = vand.u32 2147483647, %v734
        %vm846 = vcmp.eq.f32.partialorder %v845, 8.507059e+37
        %v847 = vand.u32 %v734, 2147483648
        %v848 = vor.u32 1.1754944e-38, %v847
        %v849 = vsel %vm846, %v848, %v844
        %v850 = vmul.f32 1.0, %v849
        %v851 = vrcp.pop %v735
        %v852 = vmul.f32 %v735, %v851
        %v853 = vsub.f32 1.0, %v852
        %v854 = vmul.f32 %v851, %v853
        %v855 = vadd.f32 %v851, %v854
        %vm856 = vweird.f32 %v735
        %vm857 = vweird.f32 %v851
        %vm858 = vmor %vm856, %vm857
        %v859 = vsel %vm858, %v851, %v855
        %v860 = vand.u32 2147483647, %v735
        %vm861 = vcmp.eq.f32.partialorder %v860, 8.507059e+37
        %v862 = vand.u32 %v735, 2147483648
        %v863 = vor.u32 1.1754944e-38, %v862
        %v864 = vsel %vm861, %v863, %v859
        %v865 = vmul.f32 1.0, %v864
        %v866 = vrcp.pop %v736
        %v867 = vmul.f32 %v736, %v866
        %v868 = vsub.f32 1.0, %v867
        %v869 = vmul.f32 %v866, %v868
        %v870 = vadd.f32 %v866, %v869
        %vm871 = vweird.f32 %v736
        %vm872 = vweird.f32 %v866
        %vm873 = vmor %vm871, %vm872
        %v874 = vsel %vm873, %v866, %v870
        %v875 = vand.u32 2147483647, %v736
        %vm876 = vcmp.eq.f32.partialorder %v875, 8.507059e+37
        %v877 = vand.u32 %v736, 2147483648
        %v878 = vor.u32 1.1754944e-38, %v877
        %v879 = vsel %vm876, %v878, %v874
        %v880 = vmul.f32 1.0, %v879
        %v881 = vrcp.pop %v737
        %v882 = vmul.f32 %v737, %v881
        %v883 = vsub.f32 1.0, %v882
        %v884 = vmul.f32 %v881, %v883
        %v885 = vadd.f32 %v881, %v884
        %vm886 = vweird.f32 %v737
        %vm887 = vweird.f32 %v881
        %vm888 = vmor %vm886, %vm887
        %v889 = vsel %vm888, %v881, %v885
        %v890 = vand.u32 2147483647, %v737
        %vm891 = vcmp.eq.f32.partialorder %v890, 8.507059e+37
        %v892 = vand.u32 %v737, 2147483648
        %v893 = vor.u32 1.1754944e-38, %v892
        %v894 = vsel %vm891, %v893, %v889
        %v895 = vmul.f32 1.0, %v894
        %v896 = vrcp.pop %v738
        %v897 = vmul.f32 %v738, %v896
        %v898 = vsub.f32 1.0, %v897
        %v899 = vmul.f32 %v896, %v898
        %v900 = vadd.f32 %v896, %v899
        %vm901 = vweird.f32 %v738
        %vm902 = vweird.f32 %v896
        %vm903 = vmor %vm901, %vm902
        %v904 = vsel %vm903, %v896, %v900
        %v905 = vand.u32 2147483647, %v738
        %vm906 = vcmp.eq.f32.partialorder %v905, 8.507059e+37
        %v907 = vand.u32 %v738, 2147483648
        %v908 = vor.u32 1.1754944e-38, %v907
        %v909 = vsel %vm906, %v908, %v904
        %v910 = vmul.f32 1.0, %v909
        %v911 = vrcp.pop %v739
        %v912 = vmul.f32 %v739, %v911
        %v913 = vsub.f32 1.0, %v912
        %v914 = vmul.f32 %v911, %v913
        %v915 = vadd.f32 %v911, %v914
        %vm916 = vweird.f32 %v739
        %vm917 = vweird.f32 %v911
        %vm918 = vmor %vm916, %vm917
        %v919 = vsel %vm918, %v911, %v915
        %v920 = vand.u32 2147483647, %v739
        %vm921 = vcmp.eq.f32.partialorder %v920, 8.507059e+37
        %v922 = vand.u32 %v739, 2147483648
        %v923 = vor.u32 1.1754944e-38, %v922
        %v924 = vsel %vm921, %v923, %v919
        %v925 = vmul.f32 1.0, %v924
        %v926 = vrcp.pop %v740
        %v927 = vmul.f32 %v740, %v926
        %v928 = vsub.f32 1.0, %v927
        %v929 = vmul.f32 %v926, %v928
        %v930 = vadd.f32 %v926, %v929
        %vm931 = vweird.f32 %v740
        %vm932 = vweird.f32 %v926
        %vm933 = vmor %vm931, %vm932
        %v934 = vsel %vm933, %v926, %v930
        %v935 = vand.u32 2147483647, %v740
        %vm936 = vcmp.eq.f32.partialorder %v935, 8.507059e+37
        %v937 = vand.u32 %v740, 2147483648
        %v938 = vor.u32 1.1754944e-38, %v937
        %v939 = vsel %vm936, %v938, %v934
        %v940 = vmul.f32 1.0, %v939
        %v941 = vrcp.pop %v741
        %v942 = vmul.f32 %v741, %v941
        %v943 = vsub.f32 1.0, %v942
        %v944 = vmul.f32 %v941, %v943
        %v945 = vadd.f32 %v941, %v944
        %vm946 = vweird.f32 %v741
        %vm947 = vweird.f32 %v941
        %vm948 = vmor %vm946, %vm947
        %v949 = vsel %vm948, %v941, %v945
        %v950 = vand.u32 2147483647, %v741
        %vm951 = vcmp.eq.f32.partialorder %v950, 8.507059e+37
        %v952 = vand.u32 %v741, 2147483648
        %v953 = vor.u32 1.1754944e-38, %v952
        %v954 = vsel %vm951, %v953, %v949
        %v955 = vmul.f32 1.0, %v954
        %v956 = vrcp.pop %v742
        %v957 = vmul.f32 %v742, %v956
        %v958 = vsub.f32 1.0, %v957
        %v959 = vmul.f32 %v956, %v958
        %v960 = vadd.f32 %v956, %v959
        %vm961 = vweird.f32 %v742
        %vm962 = vweird.f32 %v956
        %vm963 = vmor %vm961, %vm962
        %v964 = vsel %vm963, %v956, %v960
        %v965 = vand.u32 2147483647, %v742
        %vm966 = vcmp.eq.f32.partialorder %v965, 8.507059e+37
        %v967 = vand.u32 %v742, 2147483648
        %v968 = vor.u32 1.1754944e-38, %v967
        %v969 = vsel %vm966, %v968, %v964
        %v970 = vmul.f32 1.0, %v969
        %v971 = vrcp.pop %v743
        %v972 = vmul.f32 %v743, %v971
        %v973 = vsub.f32 1.0, %v972
        %v974 = vmul.f32 %v971, %v973
        %v975 = vadd.f32 %v971, %v974
        %vm976 = vweird.f32 %v743
        %vm977 = vweird.f32 %v971
        %vm978 = vmor %vm976, %vm977
        %v979 = vsel %vm978, %v971, %v975
        %v980 = vand.u32 2147483647, %v743
        %vm981 = vcmp.eq.f32.partialorder %v980, 8.507059e+37
        %v982 = vand.u32 %v743, 2147483648
        %v983 = vor.u32 1.1754944e-38, %v982
        %v984 = vsel %vm981, %v983, %v979
        %v985 = vmul.f32 1.0, %v984
        %v986 = vrcp.pop %v744
        %v987 = vmul.f32 %v744, %v986
        %v988 = vsub.f32 1.0, %v987
        %v989 = vmul.f32 %v986, %v988
        %v990 = vadd.f32 %v986, %v989
        %vm991 = vweird.f32 %v744
        %vm992 = vweird.f32 %v986
        %vm993 = vmor %vm991, %vm992
        %v994 = vsel %vm993, %v986, %v990
        %v995 = vand.u32 2147483647, %v744
        %vm996 = vcmp.eq.f32.partialorder %v995, 8.507059e+37
        %v997 = vand.u32 %v744, 2147483648
        %v998 = vor.u32 1.1754944e-38, %v997
        %v999 = vsel %vm996, %v998, %v994
        %v1000 = vmul.f32 1.0, %v999
        %v1001 = vrcp.pop %v745
        %v1002 = vmul.f32 %v745, %v1001
        %v1003 = vsub.f32 1.0, %v1002
        %v1004 = vmul.f32 %v1001, %v1003
        %v1005 = vadd.f32 %v1001, %v1004
        %vm1006 = vweird.f32 %v745
        %vm1007 = vweird.f32 %v1001
        %vm1008 = vmor %vm1006, %vm1007
        %v1009 = vsel %vm1008, %v1001, %v1005
        %v1010 = vand.u32 2147483647, %v745
        %vm1011 = vcmp.eq.f32.partialorder %v1010, 8.507059e+37
        %v1012 = vand.u32 %v745, 2147483648
        %v1013 = vor.u32 1.1754944e-38, %v1012
        %v1014 = vsel %vm1011, %v1013, %v1009
        %v1015 = vmul.f32 1.0, %v1014
        %v1016 = vrcp.pop %v746
        %v1017 = vmul.f32 %v746, %v1016
        %v1018 = vsub.f32 1.0, %v1017
        %v1019 = vmul.f32 %v1016, %v1018
        %v1020 = vadd.f32 %v1016, %v1019
        %vm1021 = vweird.f32 %v746
        %vm1022 = vweird.f32 %v1016
        %vm1023 = vmor %vm1021, %vm1022
        %v1024 = vsel %vm1023, %v1016, %v1020
        %v1025 = vand.u32 2147483647, %v746
        %vm1026 = vcmp.eq.f32.partialorder %v1025, 8.507059e+37
        %v1027 = vand.u32 %v746, 2147483648
        %v1028 = vor.u32 1.1754944e-38, %v1027
        %v1029 = vsel %vm1026, %v1028, %v1024
        %v1030 = vmul.f32 1.0, %v1029
        %v1031 = vrcp.pop %v747
        %v1032 = vmul.f32 %v747, %v1031
        %v1033 = vsub.f32 1.0, %v1032
        %v1034 = vmul.f32 %v1031, %v1033
        %v1035 = vadd.f32 %v1031, %v1034
        %vm1036 = vweird.f32 %v747
        %vm1037 = vweird.f32 %v1031
        %vm1038 = vmor %vm1036, %vm1037
        %v1039 = vsel %vm1038, %v1031, %v1035
        %v1040 = vand.u32 2147483647, %v747
        %vm1041 = vcmp.eq.f32.partialorder %v1040, 8.507059e+37
        %v1042 = vand.u32 %v747, 2147483648
        %v1043 = vor.u32 1.1754944e-38, %v1042
        %v1044 = vsel %vm1041, %v1043, %v1039
        %v1045 = vmul.f32 1.0, %v1044
        %v1046 = vrcp.pop %v748
        %v1047 = vmul.f32 %v748, %v1046
        %v1048 = vsub.f32 1.0, %v1047
        %v1049 = vmul.f32 %v1046, %v1048
        %v1050 = vadd.f32 %v1046, %v1049
        %vm1051 = vweird.f32 %v748
        %vm1052 = vweird.f32 %v1046
        %vm1053 = vmor %vm1051, %vm1052
        %v1054 = vsel %vm1053, %v1046, %v1050
        %v1055 = vand.u32 2147483647, %v748
        %vm1056 = vcmp.eq.f32.partialorder %v1055, 8.507059e+37
        %v1057 = vand.u32 %v748, 2147483648
        %v1058 = vor.u32 1.1754944e-38, %v1057
        %v1059 = vsel %vm1056, %v1058, %v1054
        %v1060 = vmul.f32 1.0, %v1059
        %v1061 = vrcp.pop %v749
        %v1062 = vmul.f32 %v749, %v1061
        %v1063 = vsub.f32 1.0, %v1062
        %v1064 = vmul.f32 %v1061, %v1063
        %v1065 = vadd.f32 %v1061, %v1064
        %vm1066 = vweird.f32 %v749
        %vm1067 = vweird.f32 %v1061
        %vm1068 = vmor %vm1066, %vm1067
        %v1069 = vsel %vm1068, %v1061, %v1065
        %v1070 = vand.u32 2147483647, %v749
        %vm1071 = vcmp.eq.f32.partialorder %v1070, 8.507059e+37
        %v1072 = vand.u32 %v749, 2147483648
        %v1073 = vor.u32 1.1754944e-38, %v1072
        %v1074 = vsel %vm1071, %v1073, %v1069
        %v1075 = vmul.f32 1.0, %v1074
        %v1076 = vrcp.pop %v750
        %v1077 = vmul.f32 %v750, %v1076
        %v1078 = vsub.f32 1.0, %v1077
        %v1079 = vmul.f32 %v1076, %v1078
        %v1080 = vadd.f32 %v1076, %v1079
        %vm1081 = vweird.f32 %v750
        %vm1082 = vweird.f32 %v1076
        %vm1083 = vmor %vm1081, %vm1082
        %v1084 = vsel %vm1083, %v1076, %v1080
        %v1085 = vand.u32 2147483647, %v750
        %vm1086 = vcmp.eq.f32.partialorder %v1085, 8.507059e+37
        %v1087 = vand.u32 %v750, 2147483648
        %v1088 = vor.u32 1.1754944e-38, %v1087
        %v1089 = vsel %vm1086, %v1088, %v1084
        %v1090 = vmul.f32 1.0, %v1089
        %v1091 = vrcp.pop %v751
        %v1092 = vmul.f32 %v751, %v1091
        %v1093 = vsub.f32 1.0, %v1092
        %v1094 = vmul.f32 %v1091, %v1093
        %v1095 = vadd.f32 %v1091, %v1094
        %vm1096 = vweird.f32 %v751
        %vm1097 = vweird.f32 %v1091
        %vm1098 = vmor %vm1096, %vm1097
        %v1099 = vsel %vm1098, %v1091, %v1095
        %v1100 = vand.u32 2147483647, %v751
        %vm1101 = vcmp.eq.f32.partialorder %v1100, 8.507059e+37
        %v1102 = vand.u32 %v751, 2147483648
        %v1103 = vor.u32 1.1754944e-38, %v1102
        %v1104 = vsel %vm1101, %v1103, %v1099
        %v1105 = vmul.f32 1.0, %v1104
        %v1106 = vrcp.pop %v752
        %v1107 = vmul.f32 %v752, %v1106
        %v1108 = vsub.f32 1.0, %v1107
        %v1109 = vmul.f32 %v1106, %v1108
        %v1110 = vadd.f32 %v1106, %v1109
        %vm1111 = vweird.f32 %v752
        %vm1112 = vweird.f32 %v1106
        %vm1113 = vmor %vm1111, %vm1112
        %v1114 = vsel %vm1113, %v1106, %v1110
        %v1115 = vand.u32 2147483647, %v752
        %vm1116 = vcmp.eq.f32.partialorder %v1115, 8.507059e+37
        %v1117 = vand.u32 %v752, 2147483648
        %v1118 = vor.u32 1.1754944e-38, %v1117
        %v1119 = vsel %vm1116, %v1118, %v1114
        %v1120 = vmul.f32 1.0, %v1119
        %v1121 = vrcp.pop %v753
        %v1122 = vmul.f32 %v753, %v1121
        %v1123 = vsub.f32 1.0, %v1122
        %v1124 = vmul.f32 %v1121, %v1123
        %v1125 = vadd.f32 %v1121, %v1124
        %vm1126 = vweird.f32 %v753
        %vm1127 = vweird.f32 %v1121
        %vm1128 = vmor %vm1126, %vm1127
        %v1129 = vsel %vm1128, %v1121, %v1125
        %v1130 = vand.u32 2147483647, %v753
        %vm1131 = vcmp.eq.f32.partialorder %v1130, 8.507059e+37
        %v1132 = vand.u32 %v753, 2147483648
        %v1133 = vor.u32 1.1754944e-38, %v1132
        %v1134 = vsel %vm1131, %v1133, %v1129
        %v1135 = vmul.f32 1.0, %v1134
        %v1136 = vrcp.pop %v754
        %v1137 = vmul.f32 %v754, %v1136
        %v1138 = vsub.f32 1.0, %v1137
        %v1139 = vmul.f32 %v1136, %v1138
        %v1140 = vadd.f32 %v1136, %v1139
        %vm1141 = vweird.f32 %v754
        %vm1142 = vweird.f32 %v1136
        %vm1143 = vmor %vm1141, %vm1142
        %v1144 = vsel %vm1143, %v1136, %v1140
        %v1145 = vand.u32 2147483647, %v754
        %vm1146 = vcmp.eq.f32.partialorder %v1145, 8.507059e+37
        %v1147 = vand.u32 %v754, 2147483648
        %v1148 = vor.u32 1.1754944e-38, %v1147
        %v1149 = vsel %vm1146, %v1148, %v1144
        %v1150 = vmul.f32 1.0, %v1149
        %v1151 = vrcp.pop %v755
        %v1152 = vmul.f32 %v755, %v1151
        %v1153 = vsub.f32 1.0, %v1152
        %v1154 = vmul.f32 %v1151, %v1153
        %v1155 = vadd.f32 %v1151, %v1154
        %vm1156 = vweird.f32 %v755
        %vm1157 = vweird.f32 %v1151
        %vm1158 = vmor %vm1156, %vm1157
        %v1159 = vsel %vm1158, %v1151, %v1155
        %v1160 = vand.u32 2147483647, %v755
        %vm1161 = vcmp.eq.f32.partialorder %v1160, 8.507059e+37
        %v1162 = vand.u32 %v755, 2147483648
        %v1163 = vor.u32 1.1754944e-38, %v1162
        %v1164 = vsel %vm1161, %v1163, %v1159
        %v1165 = vmul.f32 1.0, %v1164
        %v1166 = vrcp.pop %v756
        %v1167 = vmul.f32 %v756, %v1166
        %v1168 = vsub.f32 1.0, %v1167
        %v1169 = vmul.f32 %v1166, %v1168
        %v1170 = vadd.f32 %v1166, %v1169
        %vm1171 = vweird.f32 %v756
        %vm1172 = vweird.f32 %v1166
        %vm1173 = vmor %vm1171, %vm1172
        %v1174 = vsel %vm1173, %v1166, %v1170
        %v1175 = vand.u32 2147483647, %v756
        %vm1176 = vcmp.eq.f32.partialorder %v1175, 8.507059e+37
        %v1177 = vand.u32 %v756, 2147483648
        %v1178 = vor.u32 1.1754944e-38, %v1177
        %v1179 = vsel %vm1176, %v1178, %v1174
        %v1180 = vmul.f32 1.0, %v1179
        %v1181 = vrcp.pop %v757
        %v1182 = vmul.f32 %v757, %v1181
        %v1183 = vsub.f32 1.0, %v1182
        %v1184 = vmul.f32 %v1181, %v1183
        %v1185 = vadd.f32 %v1181, %v1184
        %vm1186 = vweird.f32 %v757
        %vm1187 = vweird.f32 %v1181
        %vm1188 = vmor %vm1186, %vm1187
        %v1189 = vsel %vm1188, %v1181, %v1185
        %v1190 = vand.u32 2147483647, %v757
        %vm1191 = vcmp.eq.f32.partialorder %v1190, 8.507059e+37
        %v1192 = vand.u32 %v757, 2147483648
        %v1193 = vor.u32 1.1754944e-38, %v1192
        %v1194 = vsel %vm1191, %v1193, %v1189
        %v1195 = vmul.f32 1.0, %v1194
        %v1196 = vrcp.pop %v758
        %v1197 = vmul.f32 %v758, %v1196
        %v1198 = vsub.f32 1.0, %v1197
        %v1199 = vmul.f32 %v1196, %v1198
        %v1200 = vadd.f32 %v1196, %v1199
        %vm1201 = vweird.f32 %v758
        %vm1202 = vweird.f32 %v1196
        %vm1203 = vmor %vm1201, %vm1202
        %v1204 = vsel %vm1203, %v1196, %v1200
        %v1205 = vand.u32 2147483647, %v758
        %vm1206 = vcmp.eq.f32.partialorder %v1205, 8.507059e+37
        %v1207 = vand.u32 %v758, 2147483648
        %v1208 = vor.u32 1.1754944e-38, %v1207
        %v1209 = vsel %vm1206, %v1208, %v1204
        %v1210 = vmul.f32 1.0, %v1209
        %v1211 = vrcp.pop %v759
        %v1212 = vmul.f32 %v759, %v1211
        %v1213 = vsub.f32 1.0, %v1212
        %v1214 = vmul.f32 %v1211, %v1213
        %v1215 = vadd.f32 %v1211, %v1214
        %vm1216 = vweird.f32 %v759
        %vm1217 = vweird.f32 %v1211
        %vm1218 = vmor %vm1216, %vm1217
        %v1219 = vsel %vm1218, %v1211, %v1215
        %v1220 = vand.u32 2147483647, %v759
        %vm1221 = vcmp.eq.f32.partialorder %v1220, 8.507059e+37
        %v1222 = vand.u32 %v759, 2147483648
        %v1223 = vor.u32 1.1754944e-38, %v1222
        %v1224 = vsel %vm1221, %v1223, %v1219
        %v1225 = vmul.f32 1.0, %v1224
        %v1226 = vrcp.pop %v760
        %v1227 = vmul.f32 %v760, %v1226
        %v1228 = vsub.f32 1.0, %v1227
        %v1229 = vmul.f32 %v1226, %v1228
        %v1230 = vadd.f32 %v1226, %v1229
        %vm1231 = vweird.f32 %v760
        %vm1232 = vweird.f32 %v1226
        %vm1233 = vmor %vm1231, %vm1232
        %v1234 = vsel %vm1233, %v1226, %v1230
        %v1235 = vand.u32 2147483647, %v760
        %vm1236 = vcmp.eq.f32.partialorder %v1235, 8.507059e+37
        %v1237 = vand.u32 %v760, 2147483648
        %v1238 = vor.u32 1.1754944e-38, %v1237
        %v1239 = vsel %vm1236, %v1238, %v1234
        %v1240 = vmul.f32 1.0, %v1239
        %v1241 = vmul.f32 %v521, %v775
        %v1242 = vmul.f32 %v586, %v790
        %v1243 = vmul.f32 %v524, %v805
        %v1244 = vmul.f32 %v589, %v820
        %v1245 = vmul.f32 %v527, %v835
        %v1246 = vmul.f32 %v592, %v850
        %v1247 = vmul.f32 %v530, %v865
        %v1248 = vmul.f32 %v595, %v880
        %v1249 = vmul.f32 %v533, %v895
        %v1250 = vmul.f32 %v598, %v910
        %v1251 = vmul.f32 %v536, %v925
        %v1252 = vmul.f32 %v601, %v940
        %v1253 = vmul.f32 %v539, %v955
        %v1254 = vmul.f32 %v604, %v970
        %v1255 = vmul.f32 %v542, %v985
        %v1256 = vmul.f32 %v607, %v1000
        %v1257 = vmul.f32 %v545, %v1015
        %v1258 = vmul.f32 %v610, %v1030
        %v1259 = vmul.f32 %v548, %v1045
        %v1260 = vmul.f32 %v613, %v1060
        %v1261 = vmul.f32 %v551, %v1075
        %v1262 = vmul.f32 %v616, %v1090
        %v1263 = vmul.f32 %v554, %v1105
        %v1264 = vmul.f32 %v619, %v1120
        %v1265 = vmul.f32 %v557, %v1135
        %v1266 = vmul.f32 %v622, %v1150
        %v1267 = vmul.f32 %v560, %v1165
        %v1268 = vmul.f32 %v625, %v1180
        %v1269 = vmul.f32 %v563, %v1195
        %v1270 = vmul.f32 %v628, %v1210
        %v1271 = vmul.f32 %v566, %v1225
        %v1272 = vmul.f32 %v631, %v1240
        %1273 = vxpose.xlu0.b32.start [1/16] %v1241, 128
        %1274 = vxpose.xlu0.b32.cont [2/16] %v1243, 128
        %1275 = vxpose.xlu0.b32.cont [3/16] %v1245, 128
        %1276 = vxpose.xlu0.b32.cont [4/16] %v1247, 128
        %1277 = vxpose.xlu0.b32.cont [5/16] %v1249, 128
        %1278 = vxpose.xlu0.b32.cont [6/16] %v1251, 128
        %1279 = vxpose.xlu0.b32.cont [7/16] %v1253, 128
        %1280 = vxpose.xlu0.b32.cont [8/16] %v1255, 128
        %1281 = vxpose.xlu0.b32.cont [9/16] %v1257, 128
        %1282 = vxpose.xlu0.b32.cont [10/16] %v1259, 128
        %1283 = vxpose.xlu0.b32.cont [11/16] %v1261, 128
        %1284 = vxpose.xlu0.b32.cont [12/16] %v1263, 128
        %1285 = vxpose.xlu0.b32.cont [13/16] %v1265, 128
        %1286 = vxpose.xlu0.b32.cont [14/16] %v1267, 128
        %1287 = vxpose.xlu0.b32.cont [15/16] %v1269, 128
        %1288 = vxpose.xlu0.b32.end [16/16] %v1271, 128
        %v1289 = vpop.trf.xlu0
        %v1290 = vpop.trf.xlu0
        %v1291 = vpop.trf.xlu0
        %v1292 = vpop.trf.xlu0
        %v1293 = vpop.trf.xlu0
        %v1294 = vpop.trf.xlu0
        %v1295 = vpop.trf.xlu0
        %v1296 = vpop.trf.xlu0
        %v1297 = vpop.trf.xlu0
        %v1298 = vpop.trf.xlu0
        %v1299 = vpop.trf.xlu0
        %v1300 = vpop.trf.xlu0
        %v1301 = vpop.trf.xlu0
        %v1302 = vpop.trf.xlu0
        %v1303 = vpop.trf.xlu0
        %v1304 = vpop.trf.xlu0
        %1305 = vxpose.xlu0.b32.start [1/16] %v1242, 128
        %1306 = vxpose.xlu0.b32.cont [2/16] %v1244, 128
        %1307 = vxpose.xlu0.b32.cont [3/16] %v1246, 128
        %1308 = vxpose.xlu0.b32.cont [4/16] %v1248, 128
        %1309 = vxpose.xlu0.b32.cont [5/16] %v1250, 128
        %1310 = vxpose.xlu0.b32.cont [6/16] %v1252, 128
        %1311 = vxpose.xlu0.b32.cont [7/16] %v1254, 128
        %1312 = vxpose.xlu0.b32.cont [8/16] %v1256, 128
        %1313 = vxpose.xlu0.b32.cont [9/16] %v1258, 128
        %1314 = vxpose.xlu0.b32.cont [10/16] %v1260, 128
        %1315 = vxpose.xlu0.b32.cont [11/16] %v1262, 128
        %1316 = vxpose.xlu0.b32.cont [12/16] %v1264, 128
        %1317 = vxpose.xlu0.b32.cont [13/16] %v1266, 128
        %1318 = vxpose.xlu0.b32.cont [14/16] %v1268, 128
        %1319 = vxpose.xlu0.b32.cont [15/16] %v1270, 128
        %1320 = vxpose.xlu0.b32.end [16/16] %v1272, 128
        %v1321 = vpop.trf.xlu0
        %v1322 = vpop.trf.xlu0
        %v1323 = vpop.trf.xlu0
        %v1324 = vpop.trf.xlu0
        %v1325 = vpop.trf.xlu0
        %v1326 = vpop.trf.xlu0
        %v1327 = vpop.trf.xlu0
        %v1328 = vpop.trf.xlu0
        %v1329 = vpop.trf.xlu0
        %v1330 = vpop.trf.xlu0
        %v1331 = vpop.trf.xlu0
        %v1332 = vpop.trf.xlu0
        %v1333 = vpop.trf.xlu0
        %v1334 = vpop.trf.xlu0
        %v1335 = vpop.trf.xlu0
        %v1336 = vpop.trf.xlu0
        %v1337 = vpack.c.bf16 %v1290, %v1289
        %v1338 = vpack.c.bf16 %v1292, %v1291
        %v1339 = vpack.c.bf16 %v1294, %v1293
        %v1340 = vpack.c.bf16 %v1296, %v1295
        %v1341 = vpack.c.bf16 %v1298, %v1297
        %v1342 = vpack.c.bf16 %v1300, %v1299
        %v1343 = vpack.c.bf16 %v1302, %v1301
        %v1344 = vpack.c.bf16 %v1304, %v1303
        %v1345 = vpack.c.bf16 %v1322, %v1321
        %v1346 = vpack.c.bf16 %v1324, %v1323
        %v1347 = vpack.c.bf16 %v1326, %v1325
        %v1348 = vpack.c.bf16 %v1328, %v1327
        %v1349 = vpack.c.bf16 %v1330, %v1329
        %v1350 = vpack.c.bf16 %v1332, %v1331
        %v1351 = vpack.c.bf16 %v1334, %v1333
        %v1352 = vpack.c.bf16 %v1336, %v1335
        %v1353 = vld [vmem:[%s3] sm:$0xf]
        %v1354 = vld [vmem:[%s3 + $0x4] sm:$0xf]
        %v1355 = vld [vmem:[%s3 + $0x8] sm:$0xf]
        %v1356 = vld [vmem:[%s3 + $0xc] sm:$0xf]
        %v1357 = vld [vmem:[%s3 + $0x10] sm:$0xf]
        %v1358 = vld [vmem:[%s3 + $0x14] sm:$0xf]
        %v1359 = vld [vmem:[%s3 + $0x18] sm:$0xf]
        %v1360 = vld [vmem:[%s3 + $0x1c] sm:$0xf]
        %v1361 = vld [vmem:[%s3 + $0x20] sm:$0xf]
        %v1362 = vld [vmem:[%s3 + $0x24] sm:$0xf]
        %v1363 = vld [vmem:[%s3 + $0x28] sm:$0xf]
        %v1364 = vld [vmem:[%s3 + $0x2c] sm:$0xf]
        %v1365 = vld [vmem:[%s3 + $0x30] sm:$0xf]
        %v1366 = vld [vmem:[%s3 + $0x34] sm:$0xf]
        %v1367 = vld [vmem:[%s3 + $0x38] sm:$0xf]
        %v1368 = vld [vmem:[%s3 + $0x3c] sm:$0xf]
        %v1369 = vld [vmem:[%s4] sm:$0x1]
        %v1371 = vperm.slane %v1369, 0
        %v1389 = vunpack.c.l.b16 %v1353
        %v1390 = vunpack.c.l.b16 %v1354
        %v1391 = vunpack.c.l.b16 %v1355
        %v1392 = vunpack.c.l.b16 %v1356
        %v1393 = vunpack.c.l.b16 %v1357
        %v1394 = vunpack.c.l.b16 %v1358
        %v1395 = vunpack.c.l.b16 %v1359
        %v1396 = vunpack.c.l.b16 %v1360
        %v1397 = vunpack.c.l.b16 %v1361
        %v1398 = vunpack.c.l.b16 %v1362
        %v1399 = vunpack.c.l.b16 %v1363
        %v1400 = vunpack.c.l.b16 %v1364
        %v1401 = vunpack.c.l.b16 %v1365
        %v1402 = vunpack.c.l.b16 %v1366
        %v1403 = vunpack.c.l.b16 %v1367
        %v1404 = vunpack.c.l.b16 %v1368
        %v1405 = vpack.c.b16 %v1390, %v1389
        %v1406 = vpack.c.b16 %v1392, %v1391
        %v1407 = vpack.c.b16 %v1394, %v1393
        %v1408 = vpack.c.b16 %v1396, %v1395
        %v1409 = vpack.c.b16 %v1398, %v1397
        %v1410 = vpack.c.b16 %v1400, %v1399
        %v1411 = vpack.c.b16 %v1402, %v1401
        %v1412 = vpack.c.b16 %v1404, %v1403
        %1421 = vmatpush.bf16.msra.mxu0 %v1412
        %1422 = vmatpush.bf16.msra.mxu0 %v1411
        %1423 = vmatpush.bf16.msra.mxu0 %v1410
        %1424 = vmatpush.bf16.msra.mxu0 %v1409
        %1425 = vmatpush.bf16.msra.mxu0 %v1408
        %1426 = vmatpush.bf16.msra.mxu0 %v1407
        %1427 = vmatpush.bf16.msra.mxu0 %v1406
        %1428 = vmatpush.bf16.msra.mxu0 %v1405
        %1429 = vmatmul.bf16.gmra.mxu0 %v1337
        %v1430 = vpop.f32.mrf.mxu0
        %v1431 = vadd.f32 %v1371, %v1430
        %v1432 = vpop.f32.mrf.mxu0
        %v1433 = vadd.f32 %v1371, %v1432
        %1434 = vmatmul.bf16.gmra.mxu0 %v1338
        %v1435 = vpop.f32.mrf.mxu0
        %v1436 = vadd.f32 %v1371, %v1435
        %v1437 = vpop.f32.mrf.mxu0
        %v1438 = vadd.f32 %v1371, %v1437
        %1439 = vmatmul.bf16.gmra.mxu0 %v1339
        %v1440 = vpop.f32.mrf.mxu0
        %v1441 = vadd.f32 %v1371, %v1440
        %v1442 = vpop.f32.mrf.mxu0
        %v1443 = vadd.f32 %v1371, %v1442
        %1444 = vmatmul.bf16.gmra.mxu0 %v1340
        %v1445 = vpop.f32.mrf.mxu0
        %v1446 = vadd.f32 %v1371, %v1445
        %v1447 = vpop.f32.mrf.mxu0
        %v1448 = vadd.f32 %v1371, %v1447
        %1449 = vmatmul.bf16.gmra.mxu0 %v1341
        %v1450 = vpop.f32.mrf.mxu0
        %v1451 = vadd.f32 %v1371, %v1450
        %v1452 = vpop.f32.mrf.mxu0
        %v1453 = vadd.f32 %v1371, %v1452
        %1454 = vmatmul.bf16.gmra.mxu0 %v1342
        %v1455 = vpop.f32.mrf.mxu0
        %v1456 = vadd.f32 %v1371, %v1455
        %v1457 = vpop.f32.mrf.mxu0
        %v1458 = vadd.f32 %v1371, %v1457
        %1459 = vmatmul.bf16.gmra.mxu0 %v1343
        %v1460 = vpop.f32.mrf.mxu0
        %v1461 = vadd.f32 %v1371, %v1460
        %v1462 = vpop.f32.mrf.mxu0
        %v1463 = vadd.f32 %v1371, %v1462
        %1464 = vmatmul.bf16.gmra.mxu0 %v1344
        %v1465 = vpop.f32.mrf.mxu0
        %v1466 = vadd.f32 %v1371, %v1465
        %v1467 = vpop.f32.mrf.mxu0
        %v1468 = vadd.f32 %v1371, %v1467
        %1469 = vmatmul.bf16.gmra.mxu0 %v1345
        %v1470 = vpop.f32.mrf.mxu0
        %v1471 = vadd.f32 %v1371, %v1470
        %v1472 = vpop.f32.mrf.mxu0
        %v1473 = vadd.f32 %v1371, %v1472
        %1474 = vmatmul.bf16.gmra.mxu0 %v1346
        %v1475 = vpop.f32.mrf.mxu0
        %v1476 = vadd.f32 %v1371, %v1475
        %v1477 = vpop.f32.mrf.mxu0
        %v1478 = vadd.f32 %v1371, %v1477
        %1479 = vmatmul.bf16.gmra.mxu0 %v1347
        %v1480 = vpop.f32.mrf.mxu0
        %v1481 = vadd.f32 %v1371, %v1480
        %v1482 = vpop.f32.mrf.mxu0
        %v1483 = vadd.f32 %v1371, %v1482
        %1484 = vmatmul.bf16.gmra.mxu0 %v1348
        %v1485 = vpop.f32.mrf.mxu0
        %v1486 = vadd.f32 %v1371, %v1485
        %v1487 = vpop.f32.mrf.mxu0
        %v1488 = vadd.f32 %v1371, %v1487
        %1489 = vmatmul.bf16.gmra.mxu0 %v1349
        %v1490 = vpop.f32.mrf.mxu0
        %v1491 = vadd.f32 %v1371, %v1490
        %v1492 = vpop.f32.mrf.mxu0
        %v1493 = vadd.f32 %v1371, %v1492
        %1494 = vmatmul.bf16.gmra.mxu0 %v1350
        %v1495 = vpop.f32.mrf.mxu0
        %v1496 = vadd.f32 %v1371, %v1495
        %v1497 = vpop.f32.mrf.mxu0
        %v1498 = vadd.f32 %v1371, %v1497
        %1499 = vmatmul.bf16.gmra.mxu0 %v1351
        %v1500 = vpop.f32.mrf.mxu0
        %v1501 = vadd.f32 %v1371, %v1500
        %v1502 = vpop.f32.mrf.mxu0
        %v1503 = vadd.f32 %v1371, %v1502
        %1504 = vmatmul.bf16.gmra.mxu0 %v1352
        %v1505 = vpop.f32.mrf.mxu0
        %v1506 = vadd.f32 %v1371, %v1505
        %v1507 = vpop.f32.mrf.mxu0
        %v1508 = vadd.f32 %v1371, %v1507
        %1509 = vdwg.mxu0
        %v1510 = vadd.f32 %v1289, %v1431
        %v1511 = vadd.f32 %v1290, %v1433
        %v1512 = vadd.f32 %v1291, %v1436
        %v1513 = vadd.f32 %v1292, %v1438
        %v1514 = vadd.f32 %v1293, %v1441
        %v1515 = vadd.f32 %v1294, %v1443
        %v1516 = vadd.f32 %v1295, %v1446
        %v1517 = vadd.f32 %v1296, %v1448
        %v1518 = vadd.f32 %v1297, %v1451
        %v1519 = vadd.f32 %v1298, %v1453
        %v1520 = vadd.f32 %v1299, %v1456
        %v1521 = vadd.f32 %v1300, %v1458
        %v1522 = vadd.f32 %v1301, %v1461
        %v1523 = vadd.f32 %v1302, %v1463
        %v1524 = vadd.f32 %v1303, %v1466
        %v1525 = vadd.f32 %v1304, %v1468
        %v1526 = vadd.f32 %v1321, %v1471
        %v1527 = vadd.f32 %v1322, %v1473
        %v1528 = vadd.f32 %v1323, %v1476
        %v1529 = vadd.f32 %v1324, %v1478
        %v1530 = vadd.f32 %v1325, %v1481
        %v1531 = vadd.f32 %v1326, %v1483
        %v1532 = vadd.f32 %v1327, %v1486
        %v1533 = vadd.f32 %v1328, %v1488
        %v1534 = vadd.f32 %v1329, %v1491
        %v1535 = vadd.f32 %v1330, %v1493
        %v1536 = vadd.f32 %v1331, %v1496
        %v1537 = vadd.f32 %v1332, %v1498
        %v1538 = vadd.f32 %v1333, %v1501
        %v1539 = vadd.f32 %v1334, %v1503
        %v1540 = vadd.f32 %v1335, %v1506
        %v1541 = vadd.f32 %v1336, %v1508
        %1542 = vst [vmem:[#allocation2] sm:$0xff] %v1510
        %1543 = vst [vmem:[#allocation2 + $0x8] sm:$0xff] %v1511
        %1544 = vst [vmem:[#allocation2 + $0x10] sm:$0xff] %v1512
        %1545 = vst [vmem:[#allocation2 + $0x18] sm:$0xff] %v1513
        %1546 = vst [vmem:[#allocation2 + $0x20] sm:$0xff] %v1514
        %1547 = vst [vmem:[#allocation2 + $0x28] sm:$0xff] %v1515
        %1548 = vst [vmem:[#allocation2 + $0x30] sm:$0xff] %v1516
        %1549 = vst [vmem:[#allocation2 + $0x38] sm:$0xff] %v1517
        %1550 = vst [vmem:[#allocation2 + $0x40] sm:$0xff] %v1518
        %1551 = vst [vmem:[#allocation2 + $0x48] sm:$0xff] %v1519
        %1552 = vst [vmem:[#allocation2 + $0x50] sm:$0xff] %v1520
        %1553 = vst [vmem:[#allocation2 + $0x58] sm:$0xff] %v1521
        %1554 = vst [vmem:[#allocation2 + $0x60] sm:$0xff] %v1522
        %1555 = vst [vmem:[#allocation2 + $0x68] sm:$0xff] %v1523
        %1556 = vst [vmem:[#allocation2 + $0x70] sm:$0xff] %v1524
        %1557 = vst [vmem:[#allocation2 + $0x78] sm:$0xff] %v1525
        %1558 = vst [vmem:[#allocation2 + $0x80] sm:$0xff] %v1526
        %1559 = vst [vmem:[#allocation2 + $0x88] sm:$0xff] %v1527
        %1560 = vst [vmem:[#allocation2 + $0x90] sm:$0xff] %v1528
        %1561 = vst [vmem:[#allocation2 + $0x98] sm:$0xff] %v1529
        %1562 = vst [vmem:[#allocation2 + $0xa0] sm:$0xff] %v1530
        %1563 = vst [vmem:[#allocation2 + $0xa8] sm:$0xff] %v1531
        %1564 = vst [vmem:[#allocation2 + $0xb0] sm:$0xff] %v1532
        %1565 = vst [vmem:[#allocation2 + $0xb8] sm:$0xff] %v1533
        %1566 = vst [vmem:[#allocation2 + $0xc0] sm:$0xff] %v1534
        %1567 = vst [vmem:[#allocation2 + $0xc8] sm:$0xff] %v1535
        %1568 = vst [vmem:[#allocation2 + $0xd0] sm:$0xff] %v1536
        %1569 = vst [vmem:[#allocation2 + $0xd8] sm:$0xff] %v1537
        %1570 = vst [vmem:[#allocation2 + $0xe0] sm:$0xff] %v1538
        %1571 = vst [vmem:[#allocation2 + $0xe8] sm:$0xff] %v1539
        %1572 = vst [vmem:[#allocation2 + $0xf0] sm:$0xff] %v1540
        %1573 = vst [vmem:[#allocation2 + $0xf8] sm:$0xff] %v1541
      $region52: #{transformer_block_forward.1} parent=47 // pred_fallthru
        _
      %v1574 = vld [vmem:[#allocation2] sm:$0xff]
      %v1575 = vld [vmem:[#allocation2 + $0x8] sm:$0xff]
      %v1576 = vld [vmem:[#allocation2 + $0x10] sm:$0xff]
      %v1577 = vld [vmem:[#allocation2 + $0x18] sm:$0xff]
      %v1578 = vld [vmem:[#allocation2 + $0x20] sm:$0xff]
      %v1579 = vld [vmem:[#allocation2 + $0x28] sm:$0xff]
      %v1580 = vld [vmem:[#allocation2 + $0x30] sm:$0xff]
      %v1581 = vld [vmem:[#allocation2 + $0x38] sm:$0xff]
      %v1582 = vld [vmem:[#allocation2 + $0x40] sm:$0xff]
      %v1583 = vld [vmem:[#allocation2 + $0x48] sm:$0xff]
      %v1584 = vld [vmem:[#allocation2 + $0x50] sm:$0xff]
      %v1585 = vld [vmem:[#allocation2 + $0x58] sm:$0xff]
      %v1586 = vld [vmem:[#allocation2 + $0x60] sm:$0xff]
      %v1587 = vld [vmem:[#allocation2 + $0x68] sm:$0xff]
      %v1588 = vld [vmem:[#allocation2 + $0x70] sm:$0xff]
      %v1589 = vld [vmem:[#allocation2 + $0x78] sm:$0xff]
      %v1590 = vld [vmem:[#allocation2 + $0x80] sm:$0xff]
      %v1591 = vld [vmem:[#allocation2 + $0x88] sm:$0xff]
      %v1592 = vld [vmem:[#allocation2 + $0x90] sm:$0xff]
      %v1593 = vld [vmem:[#allocation2 + $0x98] sm:$0xff]
      %v1594 = vld [vmem:[#allocation2 + $0xa0] sm:$0xff]
      %v1595 = vld [vmem:[#allocation2 + $0xa8] sm:$0xff]
      %v1596 = vld [vmem:[#allocation2 + $0xb0] sm:$0xff]
      %v1597 = vld [vmem:[#allocation2 + $0xb8] sm:$0xff]
      %v1598 = vld [vmem:[#allocation2 + $0xc0] sm:$0xff]
      %v1599 = vld [vmem:[#allocation2 + $0xc8] sm:$0xff]
      %v1600 = vld [vmem:[#allocation2 + $0xd0] sm:$0xff]
      %v1601 = vld [vmem:[#allocation2 + $0xd8] sm:$0xff]
      %v1602 = vld [vmem:[#allocation2 + $0xe0] sm:$0xff]
      %v1603 = vld [vmem:[#allocation2 + $0xe8] sm:$0xff]
      %v1604 = vld [vmem:[#allocation2 + $0xf0] sm:$0xff]
      %v1605 = vld [vmem:[#allocation2 + $0xf8] sm:$0xff]
      %v1606 = vld [vmem:[%s322] sm:$0x1]
      %v1607 = vld [vmem:[%s322 + $0x1] sm:$0x1]
      %v1608 = vld [vmem:[%s322 + $0x2] sm:$0x1]
      %v1609 = vld [vmem:[%s322 + $0x3] sm:$0x1]
      %v1610 = vld [vmem:[%s322 + $0x4] sm:$0x1]
      %v1611 = vld [vmem:[%s322 + $0x5] sm:$0x1]
      %v1612 = vld [vmem:[%s322 + $0x6] sm:$0x1]
      %v1613 = vld [vmem:[%s322 + $0x7] sm:$0x1]
      %1614 = vadd.xlane.f32.xlu0 %v1574
      %v1615 = vpop.xlane.xlu0 %1614
      %1616 = vadd.xlane.f32.xlu0 %v1575
      %v1617 = vpop.xlane.xlu0 %1616
      %1618 = vadd.xlane.f32.xlu0 %v1576
      %v1619 = vpop.xlane.xlu0 %1618
      %1620 = vadd.xlane.f32.xlu0 %v1577
      %v1621 = vpop.xlane.xlu0 %1620
      %1622 = vadd.xlane.f32.xlu0 %v1578
      %v1623 = vpop.xlane.xlu0 %1622
      %1624 = vadd.xlane.f32.xlu0 %v1579
      %v1625 = vpop.xlane.xlu0 %1624
      %1626 = vadd.xlane.f32.xlu0 %v1580
      %v1627 = vpop.xlane.xlu0 %1626
      %1628 = vadd.xlane.f32.xlu0 %v1581
      %v1629 = vpop.xlane.xlu0 %1628
      %1630 = vadd.xlane.f32.xlu0 %v1582
      %v1631 = vpop.xlane.xlu0 %1630
      %1632 = vadd.xlane.f32.xlu0 %v1583
      %v1633 = vpop.xlane.xlu0 %1632
      %1634 = vadd.xlane.f32.xlu0 %v1584
      %v1635 = vpop.xlane.xlu0 %1634
      %1636 = vadd.xlane.f32.xlu0 %v1585
      %v1637 = vpop.xlane.xlu0 %1636
      %1638 = vadd.xlane.f32.xlu0 %v1586
      %v1639 = vpop.xlane.xlu0 %1638
      %1640 = vadd.xlane.f32.xlu0 %v1587
      %v1641 = vpop.xlane.xlu0 %1640
      %1642 = vadd.xlane.f32.xlu0 %v1588
      %v1643 = vpop.xlane.xlu0 %1642
      %1644 = vadd.xlane.f32.xlu0 %v1589
      %v1645 = vpop.xlane.xlu0 %1644
      %1646 = vadd.xlane.f32.xlu0 %v1590
      %v1647 = vpop.xlane.xlu0 %1646
      %1648 = vadd.xlane.f32.xlu0 %v1591
      %v1649 = vpop.xlane.xlu0 %1648
      %1650 = vadd.xlane.f32.xlu0 %v1592
      %v1651 = vpop.xlane.xlu0 %1650
      %1652 = vadd.xlane.f32.xlu0 %v1593
      %v1653 = vpop.xlane.xlu0 %1652
      %1654 = vadd.xlane.f32.xlu0 %v1594
      %v1655 = vpop.xlane.xlu0 %1654
      %1656 = vadd.xlane.f32.xlu0 %v1595
      %v1657 = vpop.xlane.xlu0 %1656
      %1658 = vadd.xlane.f32.xlu0 %v1596
      %v1659 = vpop.xlane.xlu0 %1658
      %1660 = vadd.xlane.f32.xlu0 %v1597
      %v1661 = vpop.xlane.xlu0 %1660
      %1662 = vadd.xlane.f32.xlu0 %v1598
      %v1663 = vpop.xlane.xlu0 %1662
      %1664 = vadd.xlane.f32.xlu0 %v1599
      %v1665 = vpop.xlane.xlu0 %1664
      %1666 = vadd.xlane.f32.xlu0 %v1600
      %v1667 = vpop.xlane.xlu0 %1666
      %1668 = vadd.xlane.f32.xlu0 %v1601
      %v1669 = vpop.xlane.xlu0 %1668
      %1670 = vadd.xlane.f32.xlu0 %v1602
      %v1671 = vpop.xlane.xlu0 %1670
      %1672 = vadd.xlane.f32.xlu0 %v1603
      %v1673 = vpop.xlane.xlu0 %1672
      %1674 = vadd.xlane.f32.xlu0 %v1604
      %v1675 = vpop.xlane.xlu0 %1674
      %1676 = vadd.xlane.f32.xlu0 %v1605
      %v1677 = vpop.xlane.xlu0 %1676
      %v1678 = vrcp.pop 128.0
      %v1679 = vmul.f32 128.0, %v1678
      %v1680 = vsub.f32 1.0, %v1679
      %v1681 = vmul.f32 %v1678, %v1680
      %v1682 = vadd.f32 %v1678, %v1681
      %vm1683 = vweird.f32 %v1678
      %v1684 = vsel %vm1683, %v1678, %v1682
      %v1685 = vmul.f32 %v1615, %v1684
      %v1686 = vmul.f32 %v1617, %v1684
      %v1687 = vmul.f32 %v1619, %v1684
      %v1688 = vmul.f32 %v1621, %v1684
      %v1689 = vmul.f32 %v1623, %v1684
      %v1690 = vmul.f32 %v1625, %v1684
      %v1691 = vmul.f32 %v1627, %v1684
      %v1692 = vmul.f32 %v1629, %v1684
      %v1693 = vmul.f32 %v1631, %v1684
      %v1694 = vmul.f32 %v1633, %v1684
      %v1695 = vmul.f32 %v1635, %v1684
      %v1696 = vmul.f32 %v1637, %v1684
      %v1697 = vmul.f32 %v1639, %v1684
      %v1698 = vmul.f32 %v1641, %v1684
      %v1699 = vmul.f32 %v1643, %v1684
      %v1700 = vmul.f32 %v1645, %v1684
      %v1701 = vmul.f32 %v1647, %v1684
      %v1702 = vmul.f32 %v1649, %v1684
      %v1703 = vmul.f32 %v1651, %v1684
      %v1704 = vmul.f32 %v1653, %v1684
      %v1705 = vmul.f32 %v1655, %v1684
      %v1706 = vmul.f32 %v1657, %v1684
      %v1707 = vmul.f32 %v1659, %v1684
      %v1708 = vmul.f32 %v1661, %v1684
      %v1709 = vmul.f32 %v1663, %v1684
      %v1710 = vmul.f32 %v1665, %v1684
      %v1711 = vmul.f32 %v1667, %v1684
      %v1712 = vmul.f32 %v1669, %v1684
      %v1713 = vmul.f32 %v1671, %v1684
      %v1714 = vmul.f32 %v1673, %v1684
      %v1715 = vmul.f32 %v1675, %v1684
      %v1716 = vmul.f32 %v1677, %v1684
      %v1717 = vsub.f32 %v1574, %v1685
      %v1718 = vsub.f32 %v1575, %v1686
      %v1719 = vsub.f32 %v1576, %v1687
      %v1720 = vsub.f32 %v1577, %v1688
      %v1721 = vsub.f32 %v1578, %v1689
      %v1722 = vsub.f32 %v1579, %v1690
      %v1723 = vsub.f32 %v1580, %v1691
      %v1724 = vsub.f32 %v1581, %v1692
      %v1725 = vsub.f32 %v1582, %v1693
      %v1726 = vsub.f32 %v1583, %v1694
      %v1727 = vsub.f32 %v1584, %v1695
      %v1728 = vsub.f32 %v1585, %v1696
      %v1729 = vsub.f32 %v1586, %v1697
      %v1730 = vsub.f32 %v1587, %v1698
      %v1731 = vsub.f32 %v1588, %v1699
      %v1732 = vsub.f32 %v1589, %v1700
      %v1733 = vsub.f32 %v1590, %v1701
      %v1734 = vsub.f32 %v1591, %v1702
      %v1735 = vsub.f32 %v1592, %v1703
      %v1736 = vsub.f32 %v1593, %v1704
      %v1737 = vsub.f32 %v1594, %v1705
      %v1738 = vsub.f32 %v1595, %v1706
      %v1739 = vsub.f32 %v1596, %v1707
      %v1740 = vsub.f32 %v1597, %v1708
      %v1741 = vsub.f32 %v1598, %v1709
      %v1742 = vsub.f32 %v1599, %v1710
      %v1743 = vsub.f32 %v1600, %v1711
      %v1744 = vsub.f32 %v1601, %v1712
      %v1745 = vsub.f32 %v1602, %v1713
      %v1746 = vsub.f32 %v1603, %v1714
      %v1747 = vsub.f32 %v1604, %v1715
      %v1748 = vsub.f32 %v1605, %v1716
      %v1749 = vmul.f32 %v1717, %v1717
      %v1750 = vmul.f32 %v1718, %v1718
      %v1751 = vmul.f32 %v1719, %v1719
      %v1752 = vmul.f32 %v1720, %v1720
      %v1753 = vmul.f32 %v1721, %v1721
      %v1754 = vmul.f32 %v1722, %v1722
      %v1755 = vmul.f32 %v1723, %v1723
      %v1756 = vmul.f32 %v1724, %v1724
      %v1757 = vmul.f32 %v1725, %v1725
      %v1758 = vmul.f32 %v1726, %v1726
      %v1759 = vmul.f32 %v1727, %v1727
      %v1760 = vmul.f32 %v1728, %v1728
      %v1761 = vmul.f32 %v1729, %v1729
      %v1762 = vmul.f32 %v1730, %v1730
      %v1763 = vmul.f32 %v1731, %v1731
      %v1764 = vmul.f32 %v1732, %v1732
      %v1765 = vmul.f32 %v1733, %v1733
      %v1766 = vmul.f32 %v1734, %v1734
      %v1767 = vmul.f32 %v1735, %v1735
      %v1768 = vmul.f32 %v1736, %v1736
      %v1769 = vmul.f32 %v1737, %v1737
      %v1770 = vmul.f32 %v1738, %v1738
      %v1771 = vmul.f32 %v1739, %v1739
      %v1772 = vmul.f32 %v1740, %v1740
      %v1773 = vmul.f32 %v1741, %v1741
      %v1774 = vmul.f32 %v1742, %v1742
      %v1775 = vmul.f32 %v1743, %v1743
      %v1776 = vmul.f32 %v1744, %v1744
      %v1777 = vmul.f32 %v1745, %v1745
      %v1778 = vmul.f32 %v1746, %v1746
      %v1779 = vmul.f32 %v1747, %v1747
      %v1780 = vmul.f32 %v1748, %v1748
      %1781 = vadd.xlane.f32.xlu0 %v1749
      %v1782 = vpop.xlane.xlu0 %1781
      %1783 = vadd.xlane.f32.xlu0 %v1750
      %v1784 = vpop.xlane.xlu0 %1783
      %1785 = vadd.xlane.f32.xlu0 %v1751
      %v1786 = vpop.xlane.xlu0 %1785
      %1787 = vadd.xlane.f32.xlu0 %v1752
      %v1788 = vpop.xlane.xlu0 %1787
      %1789 = vadd.xlane.f32.xlu0 %v1753
      %v1790 = vpop.xlane.xlu0 %1789
      %1791 = vadd.xlane.f32.xlu0 %v1754
      %v1792 = vpop.xlane.xlu0 %1791
      %1793 = vadd.xlane.f32.xlu0 %v1755
      %v1794 = vpop.xlane.xlu0 %1793
      %1795 = vadd.xlane.f32.xlu0 %v1756
      %v1796 = vpop.xlane.xlu0 %1795
      %1797 = vadd.xlane.f32.xlu0 %v1757
      %v1798 = vpop.xlane.xlu0 %1797
      %1799 = vadd.xlane.f32.xlu0 %v1758
      %v1800 = vpop.xlane.xlu0 %1799
      %1801 = vadd.xlane.f32.xlu0 %v1759
      %v1802 = vpop.xlane.xlu0 %1801
      %1803 = vadd.xlane.f32.xlu0 %v1760
      %v1804 = vpop.xlane.xlu0 %1803
      %1805 = vadd.xlane.f32.xlu0 %v1761
      %v1806 = vpop.xlane.xlu0 %1805
      %1807 = vadd.xlane.f32.xlu0 %v1762
      %v1808 = vpop.xlane.xlu0 %1807
      %1809 = vadd.xlane.f32.xlu0 %v1763
      %v1810 = vpop.xlane.xlu0 %1809
      %1811 = vadd.xlane.f32.xlu0 %v1764
      %v1812 = vpop.xlane.xlu0 %1811
      %1813 = vadd.xlane.f32.xlu0 %v1765
      %v1814 = vpop.xlane.xlu0 %1813
      %1815 = vadd.xlane.f32.xlu0 %v1766
      %v1816 = vpop.xlane.xlu0 %1815
      %1817 = vadd.xlane.f32.xlu0 %v1767
      %v1818 = vpop.xlane.xlu0 %1817
      %1819 = vadd.xlane.f32.xlu0 %v1768
      %v1820 = vpop.xlane.xlu0 %1819
      %1821 = vadd.xlane.f32.xlu0 %v1769
      %v1822 = vpop.xlane.xlu0 %1821
      %1823 = vadd.xlane.f32.xlu0 %v1770
      %v1824 = vpop.xlane.xlu0 %1823
      %1825 = vadd.xlane.f32.xlu0 %v1771
      %v1826 = vpop.xlane.xlu0 %1825
      %1827 = vadd.xlane.f32.xlu0 %v1772
      %v1828 = vpop.xlane.xlu0 %1827
      %1829 = vadd.xlane.f32.xlu0 %v1773
      %v1830 = vpop.xlane.xlu0 %1829
      %1831 = vadd.xlane.f32.xlu0 %v1774
      %v1832 = vpop.xlane.xlu0 %1831
      %1833 = vadd.xlane.f32.xlu0 %v1775
      %v1834 = vpop.xlane.xlu0 %1833
      %1835 = vadd.xlane.f32.xlu0 %v1776
      %v1836 = vpop.xlane.xlu0 %1835
      %1837 = vadd.xlane.f32.xlu0 %v1777
      %v1838 = vpop.xlane.xlu0 %1837
      %1839 = vadd.xlane.f32.xlu0 %v1778
      %v1840 = vpop.xlane.xlu0 %1839
      %1841 = vadd.xlane.f32.xlu0 %v1779
      %v1842 = vpop.xlane.xlu0 %1841
      %1843 = vadd.xlane.f32.xlu0 %v1780
      %v1844 = vpop.xlane.xlu0 %1843
      %v1845 = vmul.f32 %v1782, %v1684
      %v1846 = vmul.f32 %v1784, %v1684
      %v1847 = vmul.f32 %v1786, %v1684
      %v1848 = vmul.f32 %v1788, %v1684
      %v1849 = vmul.f32 %v1790, %v1684
      %v1850 = vmul.f32 %v1792, %v1684
      %v1851 = vmul.f32 %v1794, %v1684
      %v1852 = vmul.f32 %v1796, %v1684
      %v1853 = vmul.f32 %v1798, %v1684
      %v1854 = vmul.f32 %v1800, %v1684
      %v1855 = vmul.f32 %v1802, %v1684
      %v1856 = vmul.f32 %v1804, %v1684
      %v1857 = vmul.f32 %v1806, %v1684
      %v1858 = vmul.f32 %v1808, %v1684
      %v1859 = vmul.f32 %v1810, %v1684
      %v1860 = vmul.f32 %v1812, %v1684
      %v1861 = vmul.f32 %v1814, %v1684
      %v1862 = vmul.f32 %v1816, %v1684
      %v1863 = vmul.f32 %v1818, %v1684
      %v1864 = vmul.f32 %v1820, %v1684
      %v1865 = vmul.f32 %v1822, %v1684
      %v1866 = vmul.f32 %v1824, %v1684
      %v1867 = vmul.f32 %v1826, %v1684
      %v1868 = vmul.f32 %v1828, %v1684
      %v1869 = vmul.f32 %v1830, %v1684
      %v1870 = vmul.f32 %v1832, %v1684
      %v1871 = vmul.f32 %v1834, %v1684
      %v1872 = vmul.f32 %v1836, %v1684
      %v1873 = vmul.f32 %v1838, %v1684
      %v1874 = vmul.f32 %v1840, %v1684
      %v1875 = vmul.f32 %v1842, %v1684
      %v1876 = vmul.f32 %v1844, %v1684
      %v1877 = vadd.f32 %v1845, 1e-05
      %v1878 = vadd.f32 %v1846, 1e-05
      %v1879 = vadd.f32 %v1847, 1e-05
      %v1880 = vadd.f32 %v1848, 1e-05
      %v1881 = vadd.f32 %v1849, 1e-05
      %v1882 = vadd.f32 %v1850, 1e-05
      %v1883 = vadd.f32 %v1851, 1e-05
      %v1884 = vadd.f32 %v1852, 1e-05
      %v1885 = vadd.f32 %v1853, 1e-05
      %v1886 = vadd.f32 %v1854, 1e-05
      %v1887 = vadd.f32 %v1855, 1e-05
      %v1888 = vadd.f32 %v1856, 1e-05
      %v1889 = vadd.f32 %v1857, 1e-05
      %v1890 = vadd.f32 %v1858, 1e-05
      %v1891 = vadd.f32 %v1859, 1e-05
      %v1892 = vadd.f32 %v1860, 1e-05
      %v1893 = vadd.f32 %v1861, 1e-05
      %v1894 = vadd.f32 %v1862, 1e-05
      %v1895 = vadd.f32 %v1863, 1e-05
      %v1896 = vadd.f32 %v1864, 1e-05
      %v1897 = vadd.f32 %v1865, 1e-05
      %v1898 = vadd.f32 %v1866, 1e-05
      %v1899 = vadd.f32 %v1867, 1e-05
      %v1900 = vadd.f32 %v1868, 1e-05
      %v1901 = vadd.f32 %v1869, 1e-05
      %v1902 = vadd.f32 %v1870, 1e-05
      %v1903 = vadd.f32 %v1871, 1e-05
      %v1904 = vadd.f32 %v1872, 1e-05
      %v1905 = vadd.f32 %v1873, 1e-05
      %v1906 = vadd.f32 %v1874, 1e-05
      %v1907 = vadd.f32 %v1875, 1e-05
      %v1908 = vadd.f32 %v1876, 1e-05
      %v1909 = vrsqrt.pop %v1877
      %v1910 = vmul.f32 %v1909, %v1877
      %v1911 = vmul.f32 %v1910, %v1909
      %v1912 = vmul.f32 0.5, %v1911
      %v1913 = vsub.f32 1.5, %v1912
      %v1914 = vmul.f32 %v1909, %v1913
      %vm1915 = vweird.f32 %v1877
      %vm1916 = vweird.f32 %v1909
      %vm1917 = vmor %vm1915, %vm1916
      %v1918 = vsel %vm1917, %v1909, %v1914
      %v1919 = vrsqrt.pop %v1878
      %v1920 = vmul.f32 %v1919, %v1878
      %v1921 = vmul.f32 %v1920, %v1919
      %v1922 = vmul.f32 0.5, %v1921
      %v1923 = vsub.f32 1.5, %v1922
      %v1924 = vmul.f32 %v1919, %v1923
      %vm1925 = vweird.f32 %v1878
      %vm1926 = vweird.f32 %v1919
      %vm1927 = vmor %vm1925, %vm1926
      %v1928 = vsel %vm1927, %v1919, %v1924
      %v1929 = vrsqrt.pop %v1879
      %v1930 = vmul.f32 %v1929, %v1879
      %v1931 = vmul.f32 %v1930, %v1929
      %v1932 = vmul.f32 0.5, %v1931
      %v1933 = vsub.f32 1.5, %v1932
      %v1934 = vmul.f32 %v1929, %v1933
      %vm1935 = vweird.f32 %v1879
      %vm1936 = vweird.f32 %v1929
      %vm1937 = vmor %vm1935, %vm1936
      %v1938 = vsel %vm1937, %v1929, %v1934
      %v1939 = vrsqrt.pop %v1880
      %v1940 = vmul.f32 %v1939, %v1880
      %v1941 = vmul.f32 %v1940, %v1939
      %v1942 = vmul.f32 0.5, %v1941
      %v1943 = vsub.f32 1.5, %v1942
      %v1944 = vmul.f32 %v1939, %v1943
      %vm1945 = vweird.f32 %v1880
      %vm1946 = vweird.f32 %v1939
      %vm1947 = vmor %vm1945, %vm1946
      %v1948 = vsel %vm1947, %v1939, %v1944
      %v1949 = vrsqrt.pop %v1881
      %v1950 = vmul.f32 %v1949, %v1881
      %v1951 = vmul.f32 %v1950, %v1949
      %v1952 = vmul.f32 0.5, %v1951
      %v1953 = vsub.f32 1.5, %v1952
      %v1954 = vmul.f32 %v1949, %v1953
      %vm1955 = vweird.f32 %v1881
      %vm1956 = vweird.f32 %v1949
      %vm1957 = vmor %vm1955, %vm1956
      %v1958 = vsel %vm1957, %v1949, %v1954
      %v1959 = vrsqrt.pop %v1882
      %v1960 = vmul.f32 %v1959, %v1882
      %v1961 = vmul.f32 %v1960, %v1959
      %v1962 = vmul.f32 0.5, %v1961
      %v1963 = vsub.f32 1.5, %v1962
      %v1964 = vmul.f32 %v1959, %v1963
      %vm1965 = vweird.f32 %v1882
      %vm1966 = vweird.f32 %v1959
      %vm1967 = vmor %vm1965, %vm1966
      %v1968 = vsel %vm1967, %v1959, %v1964
      %v1969 = vrsqrt.pop %v1883
      %v1970 = vmul.f32 %v1969, %v1883
      %v1971 = vmul.f32 %v1970, %v1969
      %v1972 = vmul.f32 0.5, %v1971
      %v1973 = vsub.f32 1.5, %v1972
      %v1974 = vmul.f32 %v1969, %v1973
      %vm1975 = vweird.f32 %v1883
      %vm1976 = vweird.f32 %v1969
      %vm1977 = vmor %vm1975, %vm1976
      %v1978 = vsel %vm1977, %v1969, %v1974
      %v1979 = vrsqrt.pop %v1884
      %v1980 = vmul.f32 %v1979, %v1884
      %v1981 = vmul.f32 %v1980, %v1979
      %v1982 = vmul.f32 0.5, %v1981
      %v1983 = vsub.f32 1.5, %v1982
      %v1984 = vmul.f32 %v1979, %v1983
      %vm1985 = vweird.f32 %v1884
      %vm1986 = vweird.f32 %v1979
      %vm1987 = vmor %vm1985, %vm1986
      %v1988 = vsel %vm1987, %v1979, %v1984
      %v1989 = vrsqrt.pop %v1885
      %v1990 = vmul.f32 %v1989, %v1885
      %v1991 = vmul.f32 %v1990, %v1989
      %v1992 = vmul.f32 0.5, %v1991
      %v1993 = vsub.f32 1.5, %v1992
      %v1994 = vmul.f32 %v1989, %v1993
      %vm1995 = vweird.f32 %v1885
      %vm1996 = vweird.f32 %v1989
      %vm1997 = vmor %vm1995, %vm1996
      %v1998 = vsel %vm1997, %v1989, %v1994
      %v1999 = vrsqrt.pop %v1886
      %v2000 = vmul.f32 %v1999, %v1886
      %v2001 = vmul.f32 %v2000, %v1999
      %v2002 = vmul.f32 0.5, %v2001
      %v2003 = vsub.f32 1.5, %v2002
      %v2004 = vmul.f32 %v1999, %v2003
      %vm2005 = vweird.f32 %v1886
      %vm2006 = vweird.f32 %v1999
      %vm2007 = vmor %vm2005, %vm2006
      %v2008 = vsel %vm2007, %v1999, %v2004
      %v2009 = vrsqrt.pop %v1887
      %v2010 = vmul.f32 %v2009, %v1887
      %v2011 = vmul.f32 %v2010, %v2009
      %v2012 = vmul.f32 0.5, %v2011
      %v2013 = vsub.f32 1.5, %v2012
      %v2014 = vmul.f32 %v2009, %v2013
      %vm2015 = vweird.f32 %v1887
      %vm2016 = vweird.f32 %v2009
      %vm2017 = vmor %vm2015, %vm2016
      %v2018 = vsel %vm2017, %v2009, %v2014
      %v2019 = vrsqrt.pop %v1888
      %v2020 = vmul.f32 %v2019, %v1888
      %v2021 = vmul.f32 %v2020, %v2019
      %v2022 = vmul.f32 0.5, %v2021
      %v2023 = vsub.f32 1.5, %v2022
      %v2024 = vmul.f32 %v2019, %v2023
      %vm2025 = vweird.f32 %v1888
      %vm2026 = vweird.f32 %v2019
      %vm2027 = vmor %vm2025, %vm2026
      %v2028 = vsel %vm2027, %v2019, %v2024
      %v2029 = vrsqrt.pop %v1889
      %v2030 = vmul.f32 %v2029, %v1889
      %v2031 = vmul.f32 %v2030, %v2029
      %v2032 = vmul.f32 0.5, %v2031
      %v2033 = vsub.f32 1.5, %v2032
      %v2034 = vmul.f32 %v2029, %v2033
      %vm2035 = vweird.f32 %v1889
      %vm2036 = vweird.f32 %v2029
      %vm2037 = vmor %vm2035, %vm2036
      %v2038 = vsel %vm2037, %v2029, %v2034
      %v2039 = vrsqrt.pop %v1890
      %v2040 = vmul.f32 %v2039, %v1890
      %v2041 = vmul.f32 %v2040, %v2039
      %v2042 = vmul.f32 0.5, %v2041
      %v2043 = vsub.f32 1.5, %v2042
      %v2044 = vmul.f32 %v2039, %v2043
      %vm2045 = vweird.f32 %v1890
      %vm2046 = vweird.f32 %v2039
      %vm2047 = vmor %vm2045, %vm2046
      %v2048 = vsel %vm2047, %v2039, %v2044
      %v2049 = vrsqrt.pop %v1891
      %v2050 = vmul.f32 %v2049, %v1891
      %v2051 = vmul.f32 %v2050, %v2049
      %v2052 = vmul.f32 0.5, %v2051
      %v2053 = vsub.f32 1.5, %v2052
      %v2054 = vmul.f32 %v2049, %v2053
      %vm2055 = vweird.f32 %v1891
      %vm2056 = vweird.f32 %v2049
      %vm2057 = vmor %vm2055, %vm2056
      %v2058 = vsel %vm2057, %v2049, %v2054
      %v2059 = vrsqrt.pop %v1892
      %v2060 = vmul.f32 %v2059, %v1892
      %v2061 = vmul.f32 %v2060, %v2059
      %v2062 = vmul.f32 0.5, %v2061
      %v2063 = vsub.f32 1.5, %v2062
      %v2064 = vmul.f32 %v2059, %v2063
      %vm2065 = vweird.f32 %v1892
      %vm2066 = vweird.f32 %v2059
      %vm2067 = vmor %vm2065, %vm2066
      %v2068 = vsel %vm2067, %v2059, %v2064
      %v2069 = vrsqrt.pop %v1893
      %v2070 = vmul.f32 %v2069, %v1893
      %v2071 = vmul.f32 %v2070, %v2069
      %v2072 = vmul.f32 0.5, %v2071
      %v2073 = vsub.f32 1.5, %v2072
      %v2074 = vmul.f32 %v2069, %v2073
      %vm2075 = vweird.f32 %v1893
      %vm2076 = vweird.f32 %v2069
      %vm2077 = vmor %vm2075, %vm2076
      %v2078 = vsel %vm2077, %v2069, %v2074
      %v2079 = vrsqrt.pop %v1894
      %v2080 = vmul.f32 %v2079, %v1894
      %v2081 = vmul.f32 %v2080, %v2079
      %v2082 = vmul.f32 0.5, %v2081
      %v2083 = vsub.f32 1.5, %v2082
      %v2084 = vmul.f32 %v2079, %v2083
      %vm2085 = vweird.f32 %v1894
      %vm2086 = vweird.f32 %v2079
      %vm2087 = vmor %vm2085, %vm2086
      %v2088 = vsel %vm2087, %v2079, %v2084
      %v2089 = vrsqrt.pop %v1895
      %v2090 = vmul.f32 %v2089, %v1895
      %v2091 = vmul.f32 %v2090, %v2089
      %v2092 = vmul.f32 0.5, %v2091
      %v2093 = vsub.f32 1.5, %v2092
      %v2094 = vmul.f32 %v2089, %v2093
      %vm2095 = vweird.f32 %v1895
      %vm2096 = vweird.f32 %v2089
      %vm2097 = vmor %vm2095, %vm2096
      %v2098 = vsel %vm2097, %v2089, %v2094
      %v2099 = vrsqrt.pop %v1896
      %v2100 = vmul.f32 %v2099, %v1896
      %v2101 = vmul.f32 %v2100, %v2099
      %v2102 = vmul.f32 0.5, %v2101
      %v2103 = vsub.f32 1.5, %v2102
      %v2104 = vmul.f32 %v2099, %v2103
      %vm2105 = vweird.f32 %v1896
      %vm2106 = vweird.f32 %v2099
      %vm2107 = vmor %vm2105, %vm2106
      %v2108 = vsel %vm2107, %v2099, %v2104
      %v2109 = vrsqrt.pop %v1897
      %v2110 = vmul.f32 %v2109, %v1897
      %v2111 = vmul.f32 %v2110, %v2109
      %v2112 = vmul.f32 0.5, %v2111
      %v2113 = vsub.f32 1.5, %v2112
      %v2114 = vmul.f32 %v2109, %v2113
      %vm2115 = vweird.f32 %v1897
      %vm2116 = vweird.f32 %v2109
      %vm2117 = vmor %vm2115, %vm2116
      %v2118 = vsel %vm2117, %v2109, %v2114
      %v2119 = vrsqrt.pop %v1898
      %v2120 = vmul.f32 %v2119, %v1898
      %v2121 = vmul.f32 %v2120, %v2119
      %v2122 = vmul.f32 0.5, %v2121
      %v2123 = vsub.f32 1.5, %v2122
      %v2124 = vmul.f32 %v2119, %v2123
      %vm2125 = vweird.f32 %v1898
      %vm2126 = vweird.f32 %v2119
      %vm2127 = vmor %vm2125, %vm2126
      %v2128 = vsel %vm2127, %v2119, %v2124
      %v2129 = vrsqrt.pop %v1899
      %v2130 = vmul.f32 %v2129, %v1899
      %v2131 = vmul.f32 %v2130, %v2129
      %v2132 = vmul.f32 0.5, %v2131
      %v2133 = vsub.f32 1.5, %v2132
      %v2134 = vmul.f32 %v2129, %v2133
      %vm2135 = vweird.f32 %v1899
      %vm2136 = vweird.f32 %v2129
      %vm2137 = vmor %vm2135, %vm2136
      %v2138 = vsel %vm2137, %v2129, %v2134
      %v2139 = vrsqrt.pop %v1900
      %v2140 = vmul.f32 %v2139, %v1900
      %v2141 = vmul.f32 %v2140, %v2139
      %v2142 = vmul.f32 0.5, %v2141
      %v2143 = vsub.f32 1.5, %v2142
      %v2144 = vmul.f32 %v2139, %v2143
      %vm2145 = vweird.f32 %v1900
      %vm2146 = vweird.f32 %v2139
      %vm2147 = vmor %vm2145, %vm2146
      %v2148 = vsel %vm2147, %v2139, %v2144
      %v2149 = vrsqrt.pop %v1901
      %v2150 = vmul.f32 %v2149, %v1901
      %v2151 = vmul.f32 %v2150, %v2149
      %v2152 = vmul.f32 0.5, %v2151
      %v2153 = vsub.f32 1.5, %v2152
      %v2154 = vmul.f32 %v2149, %v2153
      %vm2155 = vweird.f32 %v1901
      %vm2156 = vweird.f32 %v2149
      %vm2157 = vmor %vm2155, %vm2156
      %v2158 = vsel %vm2157, %v2149, %v2154
      %v2159 = vrsqrt.pop %v1902
      %v2160 = vmul.f32 %v2159, %v1902
      %v2161 = vmul.f32 %v2160, %v2159
      %v2162 = vmul.f32 0.5, %v2161
      %v2163 = vsub.f32 1.5, %v2162
      %v2164 = vmul.f32 %v2159, %v2163
      %vm2165 = vweird.f32 %v1902
      %vm2166 = vweird.f32 %v2159
      %vm2167 = vmor %vm2165, %vm2166
      %v2168 = vsel %vm2167, %v2159, %v2164
      %v2169 = vrsqrt.pop %v1903
      %v2170 = vmul.f32 %v2169, %v1903
      %v2171 = vmul.f32 %v2170, %v2169
      %v2172 = vmul.f32 0.5, %v2171
      %v2173 = vsub.f32 1.5, %v2172
      %v2174 = vmul.f32 %v2169, %v2173
      %vm2175 = vweird.f32 %v1903
      %vm2176 = vweird.f32 %v2169
      %vm2177 = vmor %vm2175, %vm2176
      %v2178 = vsel %vm2177, %v2169, %v2174
      %v2179 = vrsqrt.pop %v1904
      %v2180 = vmul.f32 %v2179, %v1904
      %v2181 = vmul.f32 %v2180, %v2179
      %v2182 = vmul.f32 0.5, %v2181
      %v2183 = vsub.f32 1.5, %v2182
      %v2184 = vmul.f32 %v2179, %v2183
      %vm2185 = vweird.f32 %v1904
      %vm2186 = vweird.f32 %v2179
      %vm2187 = vmor %vm2185, %vm2186
      %v2188 = vsel %vm2187, %v2179, %v2184
      %v2189 = vrsqrt.pop %v1905
      %v2190 = vmul.f32 %v2189, %v1905
      %v2191 = vmul.f32 %v2190, %v2189
      %v2192 = vmul.f32 0.5, %v2191
      %v2193 = vsub.f32 1.5, %v2192
      %v2194 = vmul.f32 %v2189, %v2193
      %vm2195 = vweird.f32 %v1905
      %vm2196 = vweird.f32 %v2189
      %vm2197 = vmor %vm2195, %vm2196
      %v2198 = vsel %vm2197, %v2189, %v2194
      %v2199 = vrsqrt.pop %v1906
      %v2200 = vmul.f32 %v2199, %v1906
      %v2201 = vmul.f32 %v2200, %v2199
      %v2202 = vmul.f32 0.5, %v2201
      %v2203 = vsub.f32 1.5, %v2202
      %v2204 = vmul.f32 %v2199, %v2203
      %vm2205 = vweird.f32 %v1906
      %vm2206 = vweird.f32 %v2199
      %vm2207 = vmor %vm2205, %vm2206
      %v2208 = vsel %vm2207, %v2199, %v2204
      %v2209 = vrsqrt.pop %v1907
      %v2210 = vmul.f32 %v2209, %v1907
      %v2211 = vmul.f32 %v2210, %v2209
      %v2212 = vmul.f32 0.5, %v2211
      %v2213 = vsub.f32 1.5, %v2212
      %v2214 = vmul.f32 %v2209, %v2213
      %vm2215 = vweird.f32 %v1907
      %vm2216 = vweird.f32 %v2209
      %vm2217 = vmor %vm2215, %vm2216
      %v2218 = vsel %vm2217, %v2209, %v2214
      %v2219 = vrsqrt.pop %v1908
      %v2220 = vmul.f32 %v2219, %v1908
      %v2221 = vmul.f32 %v2220, %v2219
      %v2222 = vmul.f32 0.5, %v2221
      %v2223 = vsub.f32 1.5, %v2222
      %v2224 = vmul.f32 %v2219, %v2223
      %vm2225 = vweird.f32 %v1908
      %vm2226 = vweird.f32 %v2219
      %vm2227 = vmor %vm2225, %vm2226
      %v2228 = vsel %vm2227, %v2219, %v2224
      %v2229 = vmul.f32 %v1717, %v1918
      %v2230 = vmul.f32 %v1718, %v1928
      %v2231 = vmul.f32 %v1719, %v1938
      %v2232 = vmul.f32 %v1720, %v1948
      %v2233 = vmul.f32 %v1721, %v1958
      %v2234 = vmul.f32 %v1722, %v1968
      %v2235 = vmul.f32 %v1723, %v1978
      %v2236 = vmul.f32 %v1724, %v1988
      %v2237 = vmul.f32 %v1725, %v1998
      %v2238 = vmul.f32 %v1726, %v2008
      %v2239 = vmul.f32 %v1727, %v2018
      %v2240 = vmul.f32 %v1728, %v2028
      %v2241 = vmul.f32 %v1729, %v2038
      %v2242 = vmul.f32 %v1730, %v2048
      %v2243 = vmul.f32 %v1731, %v2058
      %v2244 = vmul.f32 %v1732, %v2068
      %v2245 = vmul.f32 %v1733, %v2078
      %v2246 = vmul.f32 %v1734, %v2088
      %v2247 = vmul.f32 %v1735, %v2098
      %v2248 = vmul.f32 %v1736, %v2108
      %v2249 = vmul.f32 %v1737, %v2118
      %v2250 = vmul.f32 %v1738, %v2128
      %v2251 = vmul.f32 %v1739, %v2138
      %v2252 = vmul.f32 %v1740, %v2148
      %v2253 = vmul.f32 %v1741, %v2158
      %v2254 = vmul.f32 %v1742, %v2168
      %v2255 = vmul.f32 %v1743, %v2178
      %v2256 = vmul.f32 %v1744, %v2188
      %v2257 = vmul.f32 %v1745, %v2198
      %v2258 = vmul.f32 %v1746, %v2208
      %v2259 = vmul.f32 %v1747, %v2218
      %v2260 = vmul.f32 %v1748, %v2228
      %v2261 = vperm.slane %v1606, 0
      %v2262 = vmul.f32 %v2229, %v2261
      %v2263 = vmul.f32 %v2230, %v2261
      %v2264 = vmul.f32 %v2231, %v2261
      %v2265 = vmul.f32 %v2232, %v2261
      %v2266 = vmul.f32 %v2233, %v2261
      %v2267 = vmul.f32 %v2234, %v2261
      %v2268 = vmul.f32 %v2235, %v2261
      %v2269 = vmul.f32 %v2236, %v2261
      %v2270 = vmul.f32 %v2237, %v2261
      %v2271 = vmul.f32 %v2238, %v2261
      %v2272 = vmul.f32 %v2239, %v2261
      %v2273 = vmul.f32 %v2240, %v2261
      %v2274 = vmul.f32 %v2241, %v2261
      %v2275 = vmul.f32 %v2242, %v2261
      %v2276 = vmul.f32 %v2243, %v2261
      %v2277 = vmul.f32 %v2244, %v2261
      %v2278 = vmul.f32 %v2245, %v2261
      %v2279 = vmul.f32 %v2246, %v2261
      %v2280 = vmul.f32 %v2247, %v2261
      %v2281 = vmul.f32 %v2248, %v2261
      %v2282 = vmul.f32 %v2249, %v2261
      %v2283 = vmul.f32 %v2250, %v2261
      %v2284 = vmul.f32 %v2251, %v2261
      %v2285 = vmul.f32 %v2252, %v2261
      %v2286 = vmul.f32 %v2253, %v2261
      %v2287 = vmul.f32 %v2254, %v2261
      %v2288 = vmul.f32 %v2255, %v2261
      %v2289 = vmul.f32 %v2256, %v2261
      %v2290 = vmul.f32 %v2257, %v2261
      %v2291 = vmul.f32 %v2258, %v2261
      %v2292 = vmul.f32 %v2259, %v2261
      %v2293 = vmul.f32 %v2260, %v2261
      %v2294 = vperm.slane %v1607, 0
      %v2295 = vadd.f32 %v2262, %v2294
      %v2296 = vadd.f32 %v2263, %v2294
      %v2297 = vadd.f32 %v2264, %v2294
      %v2298 = vadd.f32 %v2265, %v2294
      %v2299 = vadd.f32 %v2266, %v2294
      %v2300 = vadd.f32 %v2267, %v2294
      %v2301 = vadd.f32 %v2268, %v2294
      %v2302 = vadd.f32 %v2269, %v2294
      %v2303 = vadd.f32 %v2270, %v2294
      %v2304 = vadd.f32 %v2271, %v2294
      %v2305 = vadd.f32 %v2272, %v2294
      %v2306 = vadd.f32 %v2273, %v2294
      %v2307 = vadd.f32 %v2274, %v2294
      %v2308 = vadd.f32 %v2275, %v2294
      %v2309 = vadd.f32 %v2276, %v2294
      %v2310 = vadd.f32 %v2277, %v2294
      %v2311 = vadd.f32 %v2278, %v2294
      %v2312 = vadd.f32 %v2279, %v2294
      %v2313 = vadd.f32 %v2280, %v2294
      %v2314 = vadd.f32 %v2281, %v2294
      %v2315 = vadd.f32 %v2282, %v2294
      %v2316 = vadd.f32 %v2283, %v2294
      %v2317 = vadd.f32 %v2284, %v2294
      %v2318 = vadd.f32 %v2285, %v2294
      %v2319 = vadd.f32 %v2286, %v2294
      %v2320 = vadd.f32 %v2287, %v2294
      %v2321 = vadd.f32 %v2288, %v2294
      %v2322 = vadd.f32 %v2289, %v2294
      %v2323 = vadd.f32 %v2290, %v2294
      %v2324 = vadd.f32 %v2291, %v2294
      %v2325 = vadd.f32 %v2292, %v2294
      %v2326 = vadd.f32 %v2293, %v2294
      %v2327 = vpack.c.bf16 %v2296, %v2295
      %v2328 = vpack.c.bf16 %v2298, %v2297
      %v2329 = vpack.c.bf16 %v2300, %v2299
      %v2330 = vpack.c.bf16 %v2302, %v2301
      %v2331 = vpack.c.bf16 %v2304, %v2303
      %v2332 = vpack.c.bf16 %v2306, %v2305
      %v2333 = vpack.c.bf16 %v2308, %v2307
      %v2334 = vpack.c.bf16 %v2310, %v2309
      %v2335 = vpack.c.bf16 %v2312, %v2311
      %v2336 = vpack.c.bf16 %v2314, %v2313
      %v2337 = vpack.c.bf16 %v2316, %v2315
      %v2338 = vpack.c.bf16 %v2318, %v2317
      %v2339 = vpack.c.bf16 %v2320, %v2319
      %v2340 = vpack.c.bf16 %v2322, %v2321
      %v2341 = vpack.c.bf16 %v2324, %v2323
      %v2342 = vpack.c.bf16 %v2326, %v2325
      %v2343 = vld [vmem:[%s318] sm:$0xf]
      %v2344 = vld [vmem:[%s318 + $0x4] sm:$0xf]
      %v2345 = vld [vmem:[%s318 + $0x8] sm:$0xf]
      %v2346 = vld [vmem:[%s318 + $0xc] sm:$0xf]
      %v2347 = vld [vmem:[%s318 + $0x10] sm:$0xf]
      %v2348 = vld [vmem:[%s318 + $0x14] sm:$0xf]
      %v2349 = vld [vmem:[%s318 + $0x18] sm:$0xf]
      %v2350 = vld [vmem:[%s318 + $0x1c] sm:$0xf]
      %v2351 = vld [vmem:[%s318 + $0x20] sm:$0xf]
      %v2352 = vld [vmem:[%s318 + $0x24] sm:$0xf]
      %v2353 = vld [vmem:[%s318 + $0x28] sm:$0xf]
      %v2354 = vld [vmem:[%s318 + $0x2c] sm:$0xf]
      %v2355 = vld [vmem:[%s318 + $0x30] sm:$0xf]
      %v2356 = vld [vmem:[%s318 + $0x34] sm:$0xf]
      %v2357 = vld [vmem:[%s318 + $0x38] sm:$0xf]
      %v2358 = vld [vmem:[%s318 + $0x3c] sm:$0xf]
      %v2359 = vperm.slane %v1608, 0
      %v2376 = vunpack.c.l.b16 %v2343
      %v2377 = vunpack.c.l.b16 %v2344
      %v2378 = vunpack.c.l.b16 %v2345
      %v2379 = vunpack.c.l.b16 %v2346
      %v2380 = vunpack.c.l.b16 %v2347
      %v2381 = vunpack.c.l.b16 %v2348
      %v2382 = vunpack.c.l.b16 %v2349
      %v2383 = vunpack.c.l.b16 %v2350
      %v2384 = vunpack.c.l.b16 %v2351
      %v2385 = vunpack.c.l.b16 %v2352
      %v2386 = vunpack.c.l.b16 %v2353
      %v2387 = vunpack.c.l.b16 %v2354
      %v2388 = vunpack.c.l.b16 %v2355
      %v2389 = vunpack.c.l.b16 %v2356
      %v2390 = vunpack.c.l.b16 %v2357
      %v2391 = vunpack.c.l.b16 %v2358
      %v2392 = vpack.c.b16 %v2377, %v2376
      %v2393 = vpack.c.b16 %v2379, %v2378
      %v2394 = vpack.c.b16 %v2381, %v2380
      %v2395 = vpack.c.b16 %v2383, %v2382
      %v2396 = vpack.c.b16 %v2385, %v2384
      %v2397 = vpack.c.b16 %v2387, %v2386
      %v2398 = vpack.c.b16 %v2389, %v2388
      %v2399 = vpack.c.b16 %v2391, %v2390
      %2408 = vmatpush.bf16.msra.mxu0 %v2399
      %2409 = vmatpush.bf16.msra.mxu0 %v2398
      %2410 = vmatpush.bf16.msra.mxu0 %v2397
      %2411 = vmatpush.bf16.msra.mxu0 %v2396
      %2412 = vmatpush.bf16.msra.mxu0 %v2395
      %2413 = vmatpush.bf16.msra.mxu0 %v2394
      %2414 = vmatpush.bf16.msra.mxu0 %v2393
      %2415 = vmatpush.bf16.msra.mxu0 %v2392
      %2416 = vmatmul.bf16.gmra.mxu0 %v2327
      %v2417 = vpop.f32.mrf.mxu0
      %v2418 = vadd.f32 %v2359, %v2417
      %v2419 = vpop.f32.mrf.mxu0
      %v2420 = vadd.f32 %v2359, %v2419
      %2421 = vmatmul.bf16.gmra.mxu0 %v2328
      %v2422 = vpop.f32.mrf.mxu0
      %v2423 = vadd.f32 %v2359, %v2422
      %v2424 = vpop.f32.mrf.mxu0
      %v2425 = vadd.f32 %v2359, %v2424
      %2426 = vmatmul.bf16.gmra.mxu0 %v2329
      %v2427 = vpop.f32.mrf.mxu0
      %v2428 = vadd.f32 %v2359, %v2427
      %v2429 = vpop.f32.mrf.mxu0
      %v2430 = vadd.f32 %v2359, %v2429
      %2431 = vmatmul.bf16.gmra.mxu0 %v2330
      %v2432 = vpop.f32.mrf.mxu0
      %v2433 = vadd.f32 %v2359, %v2432
      %v2434 = vpop.f32.mrf.mxu0
      %v2435 = vadd.f32 %v2359, %v2434
      %2436 = vmatmul.bf16.gmra.mxu0 %v2331
      %v2437 = vpop.f32.mrf.mxu0
      %v2438 = vadd.f32 %v2359, %v2437
      %v2439 = vpop.f32.mrf.mxu0
      %v2440 = vadd.f32 %v2359, %v2439
      %2441 = vmatmul.bf16.gmra.mxu0 %v2332
      %v2442 = vpop.f32.mrf.mxu0
      %v2443 = vadd.f32 %v2359, %v2442
      %v2444 = vpop.f32.mrf.mxu0
      %v2445 = vadd.f32 %v2359, %v2444
      %2446 = vmatmul.bf16.gmra.mxu0 %v2333
      %v2447 = vpop.f32.mrf.mxu0
      %v2448 = vadd.f32 %v2359, %v2447
      %v2449 = vpop.f32.mrf.mxu0
      %v2450 = vadd.f32 %v2359, %v2449
      %2451 = vmatmul.bf16.gmra.mxu0 %v2334
      %v2452 = vpop.f32.mrf.mxu0
      %v2453 = vadd.f32 %v2359, %v2452
      %v2454 = vpop.f32.mrf.mxu0
      %v2455 = vadd.f32 %v2359, %v2454
      %2456 = vmatmul.bf16.gmra.mxu0 %v2335
      %v2457 = vpop.f32.mrf.mxu0
      %v2458 = vadd.f32 %v2359, %v2457
      %v2459 = vpop.f32.mrf.mxu0
      %v2460 = vadd.f32 %v2359, %v2459
      %2461 = vmatmul.bf16.gmra.mxu0 %v2336
      %v2462 = vpop.f32.mrf.mxu0
      %v2463 = vadd.f32 %v2359, %v2462
      %v2464 = vpop.f32.mrf.mxu0
      %v2465 = vadd.f32 %v2359, %v2464
      %2466 = vmatmul.bf16.gmra.mxu0 %v2337
      %v2467 = vpop.f32.mrf.mxu0
      %v2468 = vadd.f32 %v2359, %v2467
      %v2469 = vpop.f32.mrf.mxu0
      %v2470 = vadd.f32 %v2359, %v2469
      %2471 = vmatmul.bf16.gmra.mxu0 %v2338
      %v2472 = vpop.f32.mrf.mxu0
      %v2473 = vadd.f32 %v2359, %v2472
      %v2474 = vpop.f32.mrf.mxu0
      %v2475 = vadd.f32 %v2359, %v2474
      %2476 = vmatmul.bf16.gmra.mxu0 %v2339
      %v2477 = vpop.f32.mrf.mxu0
      %v2478 = vadd.f32 %v2359, %v2477
      %v2479 = vpop.f32.mrf.mxu0
      %v2480 = vadd.f32 %v2359, %v2479
      %2481 = vmatmul.bf16.gmra.mxu0 %v2340
      %v2482 = vpop.f32.mrf.mxu0
      %v2483 = vadd.f32 %v2359, %v2482
      %v2484 = vpop.f32.mrf.mxu0
      %v2485 = vadd.f32 %v2359, %v2484
      %2486 = vmatmul.bf16.gmra.mxu0 %v2341
      %v2487 = vpop.f32.mrf.mxu0
      %v2488 = vadd.f32 %v2359, %v2487
      %v2489 = vpop.f32.mrf.mxu0
      %v2490 = vadd.f32 %v2359, %v2489
      %2491 = vmatmul.bf16.gmra.mxu0 %v2342
      %v2492 = vpop.f32.mrf.mxu0
      %v2493 = vadd.f32 %v2359, %v2492
      %v2494 = vpop.f32.mrf.mxu0
      %v2495 = vadd.f32 %v2359, %v2494
      %2496 = vdwg.mxu0
      %s2497 = scalar_lea.vmem %s318, 64
      %v2498 = vld [vmem:[%s2497] sm:$0xf]
      %v2499 = vld [vmem:[%s2497 + $0x4] sm:$0xf]
      %v2500 = vld [vmem:[%s2497 + $0x8] sm:$0xf]
      %v2501 = vld [vmem:[%s2497 + $0xc] sm:$0xf]
      %v2502 = vld [vmem:[%s2497 + $0x10] sm:$0xf]
      %v2503 = vld [vmem:[%s2497 + $0x14] sm:$0xf]
      %v2504 = vld [vmem:[%s2497 + $0x18] sm:$0xf]
      %v2505 = vld [vmem:[%s2497 + $0x1c] sm:$0xf]
      %v2506 = vld [vmem:[%s2497 + $0x20] sm:$0xf]
      %v2507 = vld [vmem:[%s2497 + $0x24] sm:$0xf]
      %v2508 = vld [vmem:[%s2497 + $0x28] sm:$0xf]
      %v2509 = vld [vmem:[%s2497 + $0x2c] sm:$0xf]
      %v2510 = vld [vmem:[%s2497 + $0x30] sm:$0xf]
      %v2511 = vld [vmem:[%s2497 + $0x34] sm:$0xf]
      %v2512 = vld [vmem:[%s2497 + $0x38] sm:$0xf]
      %v2513 = vld [vmem:[%s2497 + $0x3c] sm:$0xf]
      %v2514 = vperm.slane %v1609, 0
      %v2531 = vunpack.c.l.b16 %v2498
      %v2532 = vunpack.c.l.b16 %v2499
      %v2533 = vunpack.c.l.b16 %v2500
      %v2534 = vunpack.c.l.b16 %v2501
      %v2535 = vunpack.c.l.b16 %v2502
      %v2536 = vunpack.c.l.b16 %v2503
      %v2537 = vunpack.c.l.b16 %v2504
      %v2538 = vunpack.c.l.b16 %v2505
      %v2539 = vunpack.c.l.b16 %v2506
      %v2540 = vunpack.c.l.b16 %v2507
      %v2541 = vunpack.c.l.b16 %v2508
      %v2542 = vunpack.c.l.b16 %v2509
      %v2543 = vunpack.c.l.b16 %v2510
      %v2544 = vunpack.c.l.b16 %v2511
      %v2545 = vunpack.c.l.b16 %v2512
      %v2546 = vunpack.c.l.b16 %v2513
      %v2547 = vpack.c.b16 %v2532, %v2531
      %v2548 = vpack.c.b16 %v2534, %v2533
      %v2549 = vpack.c.b16 %v2536, %v2535
      %v2550 = vpack.c.b16 %v2538, %v2537
      %v2551 = vpack.c.b16 %v2540, %v2539
      %v2552 = vpack.c.b16 %v2542, %v2541
      %v2553 = vpack.c.b16 %v2544, %v2543
      %v2554 = vpack.c.b16 %v2546, %v2545
      %2563 = vmatpush.bf16.msra.mxu0 %v2554
      %2564 = vmatpush.bf16.msra.mxu0 %v2553
      %2565 = vmatpush.bf16.msra.mxu0 %v2552
      %2566 = vmatpush.bf16.msra.mxu0 %v2551
      %2567 = vmatpush.bf16.msra.mxu0 %v2550
      %2568 = vmatpush.bf16.msra.mxu0 %v2549
      %2569 = vmatpush.bf16.msra.mxu0 %v2548
      %2570 = vmatpush.bf16.msra.mxu0 %v2547
      %2571 = vmatmul.bf16.gmra.mxu0 %v2327
      %v2572 = vpop.f32.mrf.mxu0
      %v2573 = vadd.f32 %v2514, %v2572
      %v2574 = vpop.f32.mrf.mxu0
      %v2575 = vadd.f32 %v2514, %v2574
      %2576 = vmatmul.bf16.gmra.mxu0 %v2328
      %v2577 = vpop.f32.mrf.mxu0
      %v2578 = vadd.f32 %v2514, %v2577
      %v2579 = vpop.f32.mrf.mxu0
      %v2580 = vadd.f32 %v2514, %v2579
      %2581 = vmatmul.bf16.gmra.mxu0 %v2329
      %v2582 = vpop.f32.mrf.mxu0
      %v2583 = vadd.f32 %v2514, %v2582
      %v2584 = vpop.f32.mrf.mxu0
      %v2585 = vadd.f32 %v2514, %v2584
      %2586 = vmatmul.bf16.gmra.mxu0 %v2330
      %v2587 = vpop.f32.mrf.mxu0
      %v2588 = vadd.f32 %v2514, %v2587
      %v2589 = vpop.f32.mrf.mxu0
      %v2590 = vadd.f32 %v2514, %v2589
      %2591 = vmatmul.bf16.gmra.mxu0 %v2331
      %v2592 = vpop.f32.mrf.mxu0
      %v2593 = vadd.f32 %v2514, %v2592
      %v2594 = vpop.f32.mrf.mxu0
      %v2595 = vadd.f32 %v2514, %v2594
      %2596 = vmatmul.bf16.gmra.mxu0 %v2332
      %v2597 = vpop.f32.mrf.mxu0
      %v2598 = vadd.f32 %v2514, %v2597
      %v2599 = vpop.f32.mrf.mxu0
      %v2600 = vadd.f32 %v2514, %v2599
      %2601 = vmatmul.bf16.gmra.mxu0 %v2333
      %v2602 = vpop.f32.mrf.mxu0
      %v2603 = vadd.f32 %v2514, %v2602
      %v2604 = vpop.f32.mrf.mxu0
      %v2605 = vadd.f32 %v2514, %v2604
      %2606 = vmatmul.bf16.gmra.mxu0 %v2334
      %v2607 = vpop.f32.mrf.mxu0
      %v2608 = vadd.f32 %v2514, %v2607
      %v2609 = vpop.f32.mrf.mxu0
      %v2610 = vadd.f32 %v2514, %v2609
      %2611 = vmatmul.bf16.gmra.mxu0 %v2335
      %v2612 = vpop.f32.mrf.mxu0
      %v2613 = vadd.f32 %v2514, %v2612
      %v2614 = vpop.f32.mrf.mxu0
      %v2615 = vadd.f32 %v2514, %v2614
      %2616 = vmatmul.bf16.gmra.mxu0 %v2336
      %v2617 = vpop.f32.mrf.mxu0
      %v2618 = vadd.f32 %v2514, %v2617
      %v2619 = vpop.f32.mrf.mxu0
      %v2620 = vadd.f32 %v2514, %v2619
      %2621 = vmatmul.bf16.gmra.mxu0 %v2337
      %v2622 = vpop.f32.mrf.mxu0
      %v2623 = vadd.f32 %v2514, %v2622
      %v2624 = vpop.f32.mrf.mxu0
      %v2625 = vadd.f32 %v2514, %v2624
      %2626 = vmatmul.bf16.gmra.mxu0 %v2338
      %v2627 = vpop.f32.mrf.mxu0
      %v2628 = vadd.f32 %v2514, %v2627
      %v2629 = vpop.f32.mrf.mxu0
      %v2630 = vadd.f32 %v2514, %v2629
      %2631 = vmatmul.bf16.gmra.mxu0 %v2339
      %v2632 = vpop.f32.mrf.mxu0
      %v2633 = vadd.f32 %v2514, %v2632
      %v2634 = vpop.f32.mrf.mxu0
      %v2635 = vadd.f32 %v2514, %v2634
      %2636 = vmatmul.bf16.gmra.mxu0 %v2340
      %v2637 = vpop.f32.mrf.mxu0
      %v2638 = vadd.f32 %v2514, %v2637
      %v2639 = vpop.f32.mrf.mxu0
      %v2640 = vadd.f32 %v2514, %v2639
      %2641 = vmatmul.bf16.gmra.mxu0 %v2341
      %v2642 = vpop.f32.mrf.mxu0
      %v2643 = vadd.f32 %v2514, %v2642
      %v2644 = vpop.f32.mrf.mxu0
      %v2645 = vadd.f32 %v2514, %v2644
      %2646 = vmatmul.bf16.gmra.mxu0 %v2342
      %v2647 = vpop.f32.mrf.mxu0
      %v2648 = vadd.f32 %v2514, %v2647
      %v2649 = vpop.f32.mrf.mxu0
      %v2650 = vadd.f32 %v2514, %v2649
      %2651 = vdwg.mxu0
      %s2652 = scalar_lea.vmem %s318, 128
      %v2653 = vld [vmem:[%s2652] sm:$0xf]
      %v2654 = vld [vmem:[%s2652 + $0x4] sm:$0xf]
      %v2655 = vld [vmem:[%s2652 + $0x8] sm:$0xf]
      %v2656 = vld [vmem:[%s2652 + $0xc] sm:$0xf]
      %v2657 = vld [vmem:[%s2652 + $0x10] sm:$0xf]
      %v2658 = vld [vmem:[%s2652 + $0x14] sm:$0xf]
      %v2659 = vld [vmem:[%s2652 + $0x18] sm:$0xf]
      %v2660 = vld [vmem:[%s2652 + $0x1c] sm:$0xf]
      %v2661 = vld [vmem:[%s2652 + $0x20] sm:$0xf]
      %v2662 = vld [vmem:[%s2652 + $0x24] sm:$0xf]
      %v2663 = vld [vmem:[%s2652 + $0x28] sm:$0xf]
      %v2664 = vld [vmem:[%s2652 + $0x2c] sm:$0xf]
      %v2665 = vld [vmem:[%s2652 + $0x30] sm:$0xf]
      %v2666 = vld [vmem:[%s2652 + $0x34] sm:$0xf]
      %v2667 = vld [vmem:[%s2652 + $0x38] sm:$0xf]
      %v2668 = vld [vmem:[%s2652 + $0x3c] sm:$0xf]
      %v2669 = vperm.slane %v1610, 0
      %v2686 = vunpack.c.l.b16 %v2653
      %v2687 = vunpack.c.l.b16 %v2654
      %v2688 = vunpack.c.l.b16 %v2655
      %v2689 = vunpack.c.l.b16 %v2656
      %v2690 = vunpack.c.l.b16 %v2657
      %v2691 = vunpack.c.l.b16 %v2658
      %v2692 = vunpack.c.l.b16 %v2659
      %v2693 = vunpack.c.l.b16 %v2660
      %v2694 = vunpack.c.l.b16 %v2661
      %v2695 = vunpack.c.l.b16 %v2662
      %v2696 = vunpack.c.l.b16 %v2663
      %v2697 = vunpack.c.l.b16 %v2664
      %v2698 = vunpack.c.l.b16 %v2665
      %v2699 = vunpack.c.l.b16 %v2666
      %v2700 = vunpack.c.l.b16 %v2667
      %v2701 = vunpack.c.l.b16 %v2668
      %v2702 = vpack.c.b16 %v2687, %v2686
      %v2703 = vpack.c.b16 %v2689, %v2688
      %v2704 = vpack.c.b16 %v2691, %v2690
      %v2705 = vpack.c.b16 %v2693, %v2692
      %v2706 = vpack.c.b16 %v2695, %v2694
      %v2707 = vpack.c.b16 %v2697, %v2696
      %v2708 = vpack.c.b16 %v2699, %v2698
      %v2709 = vpack.c.b16 %v2701, %v2700
      %2718 = vmatpush.bf16.msra.mxu0 %v2709
      %2719 = vmatpush.bf16.msra.mxu0 %v2708
      %2720 = vmatpush.bf16.msra.mxu0 %v2707
      %2721 = vmatpush.bf16.msra.mxu0 %v2706
      %2722 = vmatpush.bf16.msra.mxu0 %v2705
      %2723 = vmatpush.bf16.msra.mxu0 %v2704
      %2724 = vmatpush.bf16.msra.mxu0 %v2703
      %2725 = vmatpush.bf16.msra.mxu0 %v2702
      %2726 = vmatmul.bf16.gmra.mxu0 %v2327
      %v2727 = vpop.f32.mrf.mxu0
      %v2728 = vadd.f32 %v2669, %v2727
      %v2729 = vpop.f32.mrf.mxu0
      %v2730 = vadd.f32 %v2669, %v2729
      %2731 = vmatmul.bf16.gmra.mxu0 %v2328
      %v2732 = vpop.f32.mrf.mxu0
      %v2733 = vadd.f32 %v2669, %v2732
      %v2734 = vpop.f32.mrf.mxu0
      %v2735 = vadd.f32 %v2669, %v2734
      %2736 = vmatmul.bf16.gmra.mxu0 %v2329
      %v2737 = vpop.f32.mrf.mxu0
      %v2738 = vadd.f32 %v2669, %v2737
      %v2739 = vpop.f32.mrf.mxu0
      %v2740 = vadd.f32 %v2669, %v2739
      %2741 = vmatmul.bf16.gmra.mxu0 %v2330
      %v2742 = vpop.f32.mrf.mxu0
      %v2743 = vadd.f32 %v2669, %v2742
      %v2744 = vpop.f32.mrf.mxu0
      %v2745 = vadd.f32 %v2669, %v2744
      %2746 = vmatmul.bf16.gmra.mxu0 %v2331
      %v2747 = vpop.f32.mrf.mxu0
      %v2748 = vadd.f32 %v2669, %v2747
      %v2749 = vpop.f32.mrf.mxu0
      %v2750 = vadd.f32 %v2669, %v2749
      %2751 = vmatmul.bf16.gmra.mxu0 %v2332
      %v2752 = vpop.f32.mrf.mxu0
      %v2753 = vadd.f32 %v2669, %v2752
      %v2754 = vpop.f32.mrf.mxu0
      %v2755 = vadd.f32 %v2669, %v2754
      %2756 = vmatmul.bf16.gmra.mxu0 %v2333
      %v2757 = vpop.f32.mrf.mxu0
      %v2758 = vadd.f32 %v2669, %v2757
      %v2759 = vpop.f32.mrf.mxu0
      %v2760 = vadd.f32 %v2669, %v2759
      %2761 = vmatmul.bf16.gmra.mxu0 %v2334
      %v2762 = vpop.f32.mrf.mxu0
      %v2763 = vadd.f32 %v2669, %v2762
      %v2764 = vpop.f32.mrf.mxu0
      %v2765 = vadd.f32 %v2669, %v2764
      %2766 = vmatmul.bf16.gmra.mxu0 %v2335
      %v2767 = vpop.f32.mrf.mxu0
      %v2768 = vadd.f32 %v2669, %v2767
      %v2769 = vpop.f32.mrf.mxu0
      %v2770 = vadd.f32 %v2669, %v2769
      %2771 = vmatmul.bf16.gmra.mxu0 %v2336
      %v2772 = vpop.f32.mrf.mxu0
      %v2773 = vadd.f32 %v2669, %v2772
      %v2774 = vpop.f32.mrf.mxu0
      %v2775 = vadd.f32 %v2669, %v2774
      %2776 = vmatmul.bf16.gmra.mxu0 %v2337
      %v2777 = vpop.f32.mrf.mxu0
      %v2778 = vadd.f32 %v2669, %v2777
      %v2779 = vpop.f32.mrf.mxu0
      %v2780 = vadd.f32 %v2669, %v2779
      %2781 = vmatmul.bf16.gmra.mxu0 %v2338
      %v2782 = vpop.f32.mrf.mxu0
      %v2783 = vadd.f32 %v2669, %v2782
      %v2784 = vpop.f32.mrf.mxu0
      %v2785 = vadd.f32 %v2669, %v2784
      %2786 = vmatmul.bf16.gmra.mxu0 %v2339
      %v2787 = vpop.f32.mrf.mxu0
      %v2788 = vadd.f32 %v2669, %v2787
      %v2789 = vpop.f32.mrf.mxu0
      %v2790 = vadd.f32 %v2669, %v2789
      %2791 = vmatmul.bf16.gmra.mxu0 %v2340
      %v2792 = vpop.f32.mrf.mxu0
      %v2793 = vadd.f32 %v2669, %v2792
      %v2794 = vpop.f32.mrf.mxu0
      %v2795 = vadd.f32 %v2669, %v2794
      %2796 = vmatmul.bf16.gmra.mxu0 %v2341
      %v2797 = vpop.f32.mrf.mxu0
      %v2798 = vadd.f32 %v2669, %v2797
      %v2799 = vpop.f32.mrf.mxu0
      %v2800 = vadd.f32 %v2669, %v2799
      %2801 = vmatmul.bf16.gmra.mxu0 %v2342
      %v2802 = vpop.f32.mrf.mxu0
      %v2803 = vadd.f32 %v2669, %v2802
      %v2804 = vpop.f32.mrf.mxu0
      %v2805 = vadd.f32 %v2669, %v2804
      %2806 = vdwg.mxu0
      %v2807 = vmul.f32 %v2418, 0.17677669
      %v2808 = vmul.f32 %v2420, 0.17677669
      %v2809 = vmul.f32 %v2423, 0.17677669
      %v2810 = vmul.f32 %v2425, 0.17677669
      %v2811 = vmul.f32 %v2428, 0.17677669
      %v2812 = vmul.f32 %v2430, 0.17677669
      %v2813 = vmul.f32 %v2433, 0.17677669
      %v2814 = vmul.f32 %v2435, 0.17677669
      %v2815 = vmul.f32 %v2438, 0.17677669
      %v2816 = vmul.f32 %v2440, 0.17677669
      %v2817 = vmul.f32 %v2443, 0.17677669
      %v2818 = vmul.f32 %v2445, 0.17677669
      %v2819 = vmul.f32 %v2448, 0.17677669
      %v2820 = vmul.f32 %v2450, 0.17677669
      %v2821 = vmul.f32 %v2453, 0.17677669
      %v2822 = vmul.f32 %v2455, 0.17677669
      %v2823 = vmul.f32 %v2458, 0.17677669
      %v2824 = vmul.f32 %v2460, 0.17677669
      %v2825 = vmul.f32 %v2463, 0.17677669
      %v2826 = vmul.f32 %v2465, 0.17677669
      %v2827 = vmul.f32 %v2468, 0.17677669
      %v2828 = vmul.f32 %v2470, 0.17677669
      %v2829 = vmul.f32 %v2473, 0.17677669
      %v2830 = vmul.f32 %v2475, 0.17677669
      %v2831 = vmul.f32 %v2478, 0.17677669
      %v2832 = vmul.f32 %v2480, 0.17677669
      %v2833 = vmul.f32 %v2483, 0.17677669
      %v2834 = vmul.f32 %v2485, 0.17677669
      %v2835 = vmul.f32 %v2488, 0.17677669
      %v2836 = vmul.f32 %v2490, 0.17677669
      %v2837 = vmul.f32 %v2493, 0.17677669
      %v2838 = vmul.f32 %v2495, 0.17677669
      %v2839 = vpack.c.bf16 %v2807, %v2807
      %v2840 = vpack.c.bf16 %v2808, %v2808
      %v2841 = vpack.c.bf16 %v2809, %v2809
      %v2842 = vpack.c.bf16 %v2810, %v2810
      %v2843 = vpack.c.bf16 %v2811, %v2811
      %v2844 = vpack.c.bf16 %v2812, %v2812
      %v2845 = vpack.c.bf16 %v2813, %v2813
      %v2846 = vpack.c.bf16 %v2814, %v2814
      %v2847 = vpack.c.bf16 %v2815, %v2815
      %v2848 = vpack.c.bf16 %v2816, %v2816
      %v2849 = vpack.c.bf16 %v2817, %v2817
      %v2850 = vpack.c.bf16 %v2818, %v2818
      %v2851 = vpack.c.bf16 %v2819, %v2819
      %v2852 = vpack.c.bf16 %v2820, %v2820
      %v2853 = vpack.c.bf16 %v2821, %v2821
      %v2854 = vpack.c.bf16 %v2822, %v2822
      %v2855 = vpack.c.bf16 %v2823, %v2823
      %v2856 = vpack.c.bf16 %v2824, %v2824
      %v2857 = vpack.c.bf16 %v2825, %v2825
      %v2858 = vpack.c.bf16 %v2826, %v2826
      %v2859 = vpack.c.bf16 %v2827, %v2827
      %v2860 = vpack.c.bf16 %v2828, %v2828
      %v2861 = vpack.c.bf16 %v2829, %v2829
      %v2862 = vpack.c.bf16 %v2830, %v2830
      %v2863 = vpack.c.bf16 %v2831, %v2831
      %v2864 = vpack.c.bf16 %v2832, %v2832
      %v2865 = vpack.c.bf16 %v2833, %v2833
      %v2866 = vpack.c.bf16 %v2834, %v2834
      %v2867 = vpack.c.bf16 %v2835, %v2835
      %v2868 = vpack.c.bf16 %v2836, %v2836
      %v2869 = vpack.c.bf16 %v2837, %v2837
      %v2870 = vpack.c.bf16 %v2838, %v2838
      %v2871 = vpack.c.bf16 %v2573, %v2573
      %v2872 = vpack.c.bf16 %v2575, %v2575
      %v2873 = vpack.c.bf16 %v2578, %v2578
      %v2874 = vpack.c.bf16 %v2580, %v2580
      %v2875 = vpack.c.bf16 %v2583, %v2583
      %v2876 = vpack.c.bf16 %v2585, %v2585
      %v2877 = vpack.c.bf16 %v2588, %v2588
      %v2878 = vpack.c.bf16 %v2590, %v2590
      %v2879 = vpack.c.bf16 %v2593, %v2593
      %v2880 = vpack.c.bf16 %v2595, %v2595
      %v2881 = vpack.c.bf16 %v2598, %v2598
      %v2882 = vpack.c.bf16 %v2600, %v2600
      %v2883 = vpack.c.bf16 %v2603, %v2603
      %v2884 = vpack.c.bf16 %v2605, %v2605
      %v2885 = vpack.c.bf16 %v2608, %v2608
      %v2886 = vpack.c.bf16 %v2610, %v2610
      %v2887 = vpack.c.bf16 %v2613, %v2613
      %v2888 = vpack.c.bf16 %v2615, %v2615
      %v2889 = vpack.c.bf16 %v2618, %v2618
      %v2890 = vpack.c.bf16 %v2620, %v2620
      %v2891 = vpack.c.bf16 %v2623, %v2623
      %v2892 = vpack.c.bf16 %v2625, %v2625
      %v2893 = vpack.c.bf16 %v2628, %v2628
      %v2894 = vpack.c.bf16 %v2630, %v2630
      %v2895 = vpack.c.bf16 %v2633, %v2633
      %v2896 = vpack.c.bf16 %v2635, %v2635
      %v2897 = vpack.c.bf16 %v2638, %v2638
      %v2898 = vpack.c.bf16 %v2640, %v2640
      %v2899 = vpack.c.bf16 %v2643, %v2643
      %v2900 = vpack.c.bf16 %v2645, %v2645
      %v2901 = vpack.c.bf16 %v2648, %v2648
      %v2902 = vpack.c.bf16 %v2650, %v2650
      %v2903 = vpack.c.bf16 %v2728, %v2728
      %v2904 = vpack.c.bf16 %v2730, %v2730
      %v2905 = vpack.c.bf16 %v2733, %v2733
      %v2906 = vpack.c.bf16 %v2735, %v2735
      %v2907 = vpack.c.bf16 %v2738, %v2738
      %v2908 = vpack.c.bf16 %v2740, %v2740
      %v2909 = vpack.c.bf16 %v2743, %v2743
      %v2910 = vpack.c.bf16 %v2745, %v2745
      %v2911 = vpack.c.bf16 %v2748, %v2748
      %v2912 = vpack.c.bf16 %v2750, %v2750
      %v2913 = vpack.c.bf16 %v2753, %v2753
      %v2914 = vpack.c.bf16 %v2755, %v2755
      %v2915 = vpack.c.bf16 %v2758, %v2758
      %v2916 = vpack.c.bf16 %v2760, %v2760
      %v2917 = vpack.c.bf16 %v2763, %v2763
      %v2918 = vpack.c.bf16 %v2765, %v2765
      %v2919 = vpack.c.bf16 %v2768, %v2768
      %v2920 = vpack.c.bf16 %v2770, %v2770
      %v2921 = vpack.c.bf16 %v2773, %v2773
      %v2922 = vpack.c.bf16 %v2775, %v2775
      %v2923 = vpack.c.bf16 %v2778, %v2778
      %v2924 = vpack.c.bf16 %v2780, %v2780
      %v2925 = vpack.c.bf16 %v2783, %v2783
      %v2926 = vpack.c.bf16 %v2785, %v2785
      %v2927 = vpack.c.bf16 %v2788, %v2788
      %v2928 = vpack.c.bf16 %v2790, %v2790
      %v2929 = vpack.c.bf16 %v2793, %v2793
      %v2930 = vpack.c.bf16 %v2795, %v2795
      %v2931 = vpack.c.bf16 %v2798, %v2798
      %v2932 = vpack.c.bf16 %v2800, %v2800
      %v2933 = vpack.c.bf16 %v2803, %v2803
      %v2934 = vpack.c.bf16 %v2805, %v2805
      %v2967 = vunpack.c.l.b16 %v2839
      %v2968 = vunpack.c.l.b16 %v2840
      %v2969 = vunpack.c.l.b16 %v2841
      %v2970 = vunpack.c.l.b16 %v2842
      %v2971 = vunpack.c.l.b16 %v2843
      %v2972 = vunpack.c.l.b16 %v2844
      %v2973 = vunpack.c.l.b16 %v2845
      %v2974 = vunpack.c.l.b16 %v2846
      %v2975 = vunpack.c.l.b16 %v2847
      %v2976 = vunpack.c.l.b16 %v2848
      %v2977 = vunpack.c.l.b16 %v2849
      %v2978 = vunpack.c.l.b16 %v2850
      %v2979 = vunpack.c.l.b16 %v2851
      %v2980 = vunpack.c.l.b16 %v2852
      %v2981 = vunpack.c.l.b16 %v2853
      %v2982 = vunpack.c.l.b16 %v2854
      %v2983 = vunpack.c.l.b16 %v2855
      %v2984 = vunpack.c.l.b16 %v2856
      %v2985 = vunpack.c.l.b16 %v2857
      %v2986 = vunpack.c.l.b16 %v2858
      %v2987 = vunpack.c.l.b16 %v2859
      %v2988 = vunpack.c.l.b16 %v2860
      %v2989 = vunpack.c.l.b16 %v2861
      %v2990 = vunpack.c.l.b16 %v2862
      %v2991 = vunpack.c.l.b16 %v2863
      %v2992 = vunpack.c.l.b16 %v2864
      %v2993 = vunpack.c.l.b16 %v2865
      %v2994 = vunpack.c.l.b16 %v2866
      %v2995 = vunpack.c.l.b16 %v2867
      %v2996 = vunpack.c.l.b16 %v2868
      %v2997 = vunpack.c.l.b16 %v2869
      %v2998 = vunpack.c.l.b16 %v2870
      %v2999 = vpack.c.b16 %v2968, %v2967
      %v3000 = vpack.c.b16 %v2970, %v2969
      %v3001 = vpack.c.b16 %v2972, %v2971
      %v3002 = vpack.c.b16 %v2974, %v2973
      %v3003 = vpack.c.b16 %v2976, %v2975
      %v3004 = vpack.c.b16 %v2978, %v2977
      %v3005 = vpack.c.b16 %v2980, %v2979
      %v3006 = vpack.c.b16 %v2982, %v2981
      %v3007 = vpack.c.b16 %v2984, %v2983
      %v3008 = vpack.c.b16 %v2986, %v2985
      %v3009 = vpack.c.b16 %v2988, %v2987
      %v3010 = vpack.c.b16 %v2990, %v2989
      %v3011 = vpack.c.b16 %v2992, %v2991
      %v3012 = vpack.c.b16 %v2994, %v2993
      %v3013 = vpack.c.b16 %v2996, %v2995
      %v3014 = vpack.c.b16 %v2998, %v2997
      %v3047 = vunpack.c.l.b16 %v2871
      %v3048 = vunpack.c.l.b16 %v2872
      %v3049 = vunpack.c.l.b16 %v2873
      %v3050 = vunpack.c.l.b16 %v2874
      %v3051 = vunpack.c.l.b16 %v2875
      %v3052 = vunpack.c.l.b16 %v2876
      %v3053 = vunpack.c.l.b16 %v2877
      %v3054 = vunpack.c.l.b16 %v2878
      %v3055 = vunpack.c.l.b16 %v2879
      %v3056 = vunpack.c.l.b16 %v2880
      %v3057 = vunpack.c.l.b16 %v2881
      %v3058 = vunpack.c.l.b16 %v2882
      %v3059 = vunpack.c.l.b16 %v2883
      %v3060 = vunpack.c.l.b16 %v2884
      %v3061 = vunpack.c.l.b16 %v2885
      %v3062 = vunpack.c.l.b16 %v2886
      %v3063 = vunpack.c.l.b16 %v2887
      %v3064 = vunpack.c.l.b16 %v2888
      %v3065 = vunpack.c.l.b16 %v2889
      %v3066 = vunpack.c.l.b16 %v2890
      %v3067 = vunpack.c.l.b16 %v2891
      %v3068 = vunpack.c.l.b16 %v2892
      %v3069 = vunpack.c.l.b16 %v2893
      %v3070 = vunpack.c.l.b16 %v2894
      %v3071 = vunpack.c.l.b16 %v2895
      %v3072 = vunpack.c.l.b16 %v2896
      %v3073 = vunpack.c.l.b16 %v2897
      %v3074 = vunpack.c.l.b16 %v2898
      %v3075 = vunpack.c.l.b16 %v2899
      %v3076 = vunpack.c.l.b16 %v2900
      %v3077 = vunpack.c.l.b16 %v2901
      %v3078 = vunpack.c.l.b16 %v2902
      %v3079 = vpack.c.b16 %v3048, %v3047
      %v3080 = vpack.c.b16 %v3050, %v3049
      %v3081 = vpack.c.b16 %v3052, %v3051
      %v3082 = vpack.c.b16 %v3054, %v3053
      %v3083 = vpack.c.b16 %v3056, %v3055
      %v3084 = vpack.c.b16 %v3058, %v3057
      %v3085 = vpack.c.b16 %v3060, %v3059
      %v3086 = vpack.c.b16 %v3062, %v3061
      %v3087 = vpack.c.b16 %v3064, %v3063
      %v3088 = vpack.c.b16 %v3066, %v3065
      %v3089 = vpack.c.b16 %v3068, %v3067
      %v3090 = vpack.c.b16 %v3070, %v3069
      %v3091 = vpack.c.b16 %v3072, %v3071
      %v3092 = vpack.c.b16 %v3074, %v3073
      %v3093 = vpack.c.b16 %v3076, %v3075
      %v3094 = vpack.c.b16 %v3078, %v3077
      %vm3095 = vcmask 261120
      %v3097 = vsel %vm3095, %v2999, 0
      %v3100 = vsel %vm3095, %v3000, 0
      %v3103 = vsel %vm3095, %v3001, 0
      %v3106 = vsel %vm3095, %v3002, 0
      %v3109 = vsel %vm3095, %v3003, 0
      %v3112 = vsel %vm3095, %v3004, 0
      %v3115 = vsel %vm3095, %v3005, 0
      %v3118 = vsel %vm3095, %v3006, 0
      %v3121 = vsel %vm3095, %v3007, 0
      %v3124 = vsel %vm3095, %v3008, 0
      %v3127 = vsel %vm3095, %v3009, 0
      %v3130 = vsel %vm3095, %v3010, 0
      %v3133 = vsel %vm3095, %v3011, 0
      %v3136 = vsel %vm3095, %v3012, 0
      %v3139 = vsel %vm3095, %v3013, 0
      %v3142 = vsel %vm3095, %v3014, 0
      %v3145 = vsel %vm3095, %v3079, 0
      %v3148 = vsel %vm3095, %v3080, 0
      %v3151 = vsel %vm3095, %v3081, 0
      %v3154 = vsel %vm3095, %v3082, 0
      %v3157 = vsel %vm3095, %v3083, 0
      %v3160 = vsel %vm3095, %v3084, 0
      %v3163 = vsel %vm3095, %v3085, 0
      %v3166 = vsel %vm3095, %v3086, 0
      %v3169 = vsel %vm3095, %v3087, 0
      %v3172 = vsel %vm3095, %v3088, 0
      %v3175 = vsel %vm3095, %v3089, 0
      %v3178 = vsel %vm3095, %v3090, 0
      %v3181 = vsel %vm3095, %v3091, 0
      %v3184 = vsel %vm3095, %v3092, 0
      %v3187 = vsel %vm3095, %v3093, 0
      %v3190 = vsel %vm3095, %v3094, 0
      %3192 = vmatpush.bf16.xpose.msra.mxu0 %v3166
      %3193 = vmatpush.bf16.xpose.msra.mxu0 %v3163
      %3194 = vmatpush.bf16.xpose.msra.mxu0 %v3160
      %3195 = vmatpush.bf16.xpose.msra.mxu0 %v3157
      %3196 = vmatpush.bf16.xpose.msra.mxu0 %v3154
      %3197 = vmatpush.bf16.xpose.msra.mxu0 %v3151
      %3198 = vmatpush.bf16.xpose.msra.mxu0 %v3148
      %3199 = vmatpush.bf16.xpose.msra.mxu0 %v3145
      %3200 = vmatmul.bf16.gmra.mxu0 %v3097
      %v3201 = vpop.f32.mrf.mxu0
      %v3202 = vadd.f32 0.0, %v3201
      %v3203 = vpop.f32.mrf.mxu0
      %v3204 = vadd.f32 0.0, %v3203
      %3205 = vmatmul.bf16.gmra.mxu0 %v3100
      %v3206 = vpop.f32.mrf.mxu0
      %v3207 = vadd.f32 0.0, %v3206
      %v3208 = vpop.f32.mrf.mxu0
      %v3209 = vadd.f32 0.0, %v3208
      %3210 = vmatmul.bf16.gmra.mxu0 %v3103
      %v3211 = vpop.f32.mrf.mxu0
      %v3212 = vadd.f32 0.0, %v3211
      %v3213 = vpop.f32.mrf.mxu0
      %v3214 = vadd.f32 0.0, %v3213
      %3215 = vmatmul.bf16.gmra.mxu0 %v3106
      %v3216 = vpop.f32.mrf.mxu0
      %v3217 = vadd.f32 0.0, %v3216
      %v3218 = vpop.f32.mrf.mxu0
      %v3219 = vadd.f32 0.0, %v3218
      %3220 = vmatmul.bf16.gmra.mxu0 %v3109
      %v3221 = vpop.f32.mrf.mxu0
      %v3222 = vadd.f32 0.0, %v3221
      %v3223 = vpop.f32.mrf.mxu0
      %v3224 = vadd.f32 0.0, %v3223
      %3225 = vmatmul.bf16.gmra.mxu0 %v3112
      %v3226 = vpop.f32.mrf.mxu0
      %v3227 = vadd.f32 0.0, %v3226
      %v3228 = vpop.f32.mrf.mxu0
      %v3229 = vadd.f32 0.0, %v3228
      %3230 = vmatmul.bf16.gmra.mxu0 %v3115
      %v3231 = vpop.f32.mrf.mxu0
      %v3232 = vadd.f32 0.0, %v3231
      %v3233 = vpop.f32.mrf.mxu0
      %v3234 = vadd.f32 0.0, %v3233
      %3235 = vmatmul.bf16.gmra.mxu0 %v3118
      %v3236 = vpop.f32.mrf.mxu0
      %v3237 = vadd.f32 0.0, %v3236
      %v3238 = vpop.f32.mrf.mxu0
      %v3239 = vadd.f32 0.0, %v3238
      %3240 = vmatmul.bf16.gmra.mxu0 %v3121
      %v3241 = vpop.f32.mrf.mxu0
      %v3242 = vadd.f32 0.0, %v3241
      %v3243 = vpop.f32.mrf.mxu0
      %v3244 = vadd.f32 0.0, %v3243
      %3245 = vmatmul.bf16.gmra.mxu0 %v3124
      %v3246 = vpop.f32.mrf.mxu0
      %v3247 = vadd.f32 0.0, %v3246
      %v3248 = vpop.f32.mrf.mxu0
      %v3249 = vadd.f32 0.0, %v3248
      %3250 = vmatmul.bf16.gmra.mxu0 %v3127
      %v3251 = vpop.f32.mrf.mxu0
      %v3252 = vadd.f32 0.0, %v3251
      %v3253 = vpop.f32.mrf.mxu0
      %v3254 = vadd.f32 0.0, %v3253
      %3255 = vmatmul.bf16.gmra.mxu0 %v3130
      %v3256 = vpop.f32.mrf.mxu0
      %v3257 = vadd.f32 0.0, %v3256
      %v3258 = vpop.f32.mrf.mxu0
      %v3259 = vadd.f32 0.0, %v3258
      %3260 = vmatmul.bf16.gmra.mxu0 %v3133
      %v3261 = vpop.f32.mrf.mxu0
      %v3262 = vadd.f32 0.0, %v3261
      %v3263 = vpop.f32.mrf.mxu0
      %v3264 = vadd.f32 0.0, %v3263
      %3265 = vmatmul.bf16.gmra.mxu0 %v3136
      %v3266 = vpop.f32.mrf.mxu0
      %v3267 = vadd.f32 0.0, %v3266
      %v3268 = vpop.f32.mrf.mxu0
      %v3269 = vadd.f32 0.0, %v3268
      %3270 = vmatmul.bf16.gmra.mxu0 %v3139
      %v3271 = vpop.f32.mrf.mxu0
      %v3272 = vadd.f32 0.0, %v3271
      %v3273 = vpop.f32.mrf.mxu0
      %v3274 = vadd.f32 0.0, %v3273
      %3275 = vmatmul.bf16.gmra.mxu0 %v3142
      %v3276 = vpop.f32.mrf.mxu0
      %v3277 = vadd.f32 0.0, %v3276
      %v3278 = vpop.f32.mrf.mxu0
      %v3279 = vadd.f32 0.0, %v3278
      %3280 = vdwg.mxu0
      %3281 = vmatpush.bf16.xpose.msra.mxu0 %v3190
      %3282 = vmatpush.bf16.xpose.msra.mxu0 %v3187
      %3283 = vmatpush.bf16.xpose.msra.mxu0 %v3184
      %3284 = vmatpush.bf16.xpose.msra.mxu0 %v3181
      %3285 = vmatpush.bf16.xpose.msra.mxu0 %v3178
      %3286 = vmatpush.bf16.xpose.msra.mxu0 %v3175
      %3287 = vmatpush.bf16.xpose.msra.mxu0 %v3172
      %3288 = vmatpush.bf16.xpose.msra.mxu0 %v3169
      %3289 = vmatmul.bf16.gmra.mxu0 %v3097
      %v3290 = vpop.f32.mrf.mxu0
      %v3291 = vadd.f32 0.0, %v3290
      %v3292 = vpop.f32.mrf.mxu0
      %v3293 = vadd.f32 0.0, %v3292
      %3294 = vmatmul.bf16.gmra.mxu0 %v3100
      %v3295 = vpop.f32.mrf.mxu0
      %v3296 = vadd.f32 0.0, %v3295
      %v3297 = vpop.f32.mrf.mxu0
      %v3298 = vadd.f32 0.0, %v3297
      %3299 = vmatmul.bf16.gmra.mxu0 %v3103
      %v3300 = vpop.f32.mrf.mxu0
      %v3301 = vadd.f32 0.0, %v3300
      %v3302 = vpop.f32.mrf.mxu0
      %v3303 = vadd.f32 0.0, %v3302
      %3304 = vmatmul.bf16.gmra.mxu0 %v3106
      %v3305 = vpop.f32.mrf.mxu0
      %v3306 = vadd.f32 0.0, %v3305
      %v3307 = vpop.f32.mrf.mxu0
      %v3308 = vadd.f32 0.0, %v3307
      %3309 = vmatmul.bf16.gmra.mxu0 %v3109
      %v3310 = vpop.f32.mrf.mxu0
      %v3311 = vadd.f32 0.0, %v3310
      %v3312 = vpop.f32.mrf.mxu0
      %v3313 = vadd.f32 0.0, %v3312
      %3314 = vmatmul.bf16.gmra.mxu0 %v3112
      %v3315 = vpop.f32.mrf.mxu0
      %v3316 = vadd.f32 0.0, %v3315
      %v3317 = vpop.f32.mrf.mxu0
      %v3318 = vadd.f32 0.0, %v3317
      %3319 = vmatmul.bf16.gmra.mxu0 %v3115
      %v3320 = vpop.f32.mrf.mxu0
      %v3321 = vadd.f32 0.0, %v3320
      %v3322 = vpop.f32.mrf.mxu0
      %v3323 = vadd.f32 0.0, %v3322
      %3324 = vmatmul.bf16.gmra.mxu0 %v3118
      %v3325 = vpop.f32.mrf.mxu0
      %v3326 = vadd.f32 0.0, %v3325
      %v3327 = vpop.f32.mrf.mxu0
      %v3328 = vadd.f32 0.0, %v3327
      %3329 = vmatmul.bf16.gmra.mxu0 %v3121
      %v3330 = vpop.f32.mrf.mxu0
      %v3331 = vadd.f32 0.0, %v3330
      %v3332 = vpop.f32.mrf.mxu0
      %v3333 = vadd.f32 0.0, %v3332
      %3334 = vmatmul.bf16.gmra.mxu0 %v3124
      %v3335 = vpop.f32.mrf.mxu0
      %v3336 = vadd.f32 0.0, %v3335
      %v3337 = vpop.f32.mrf.mxu0
      %v3338 = vadd.f32 0.0, %v3337
      %3339 = vmatmul.bf16.gmra.mxu0 %v3127
      %v3340 = vpop.f32.mrf.mxu0
      %v3341 = vadd.f32 0.0, %v3340
      %v3342 = vpop.f32.mrf.mxu0
      %v3343 = vadd.f32 0.0, %v3342
      %3344 = vmatmul.bf16.gmra.mxu0 %v3130
      %v3345 = vpop.f32.mrf.mxu0
      %v3346 = vadd.f32 0.0, %v3345
      %v3347 = vpop.f32.mrf.mxu0
      %v3348 = vadd.f32 0.0, %v3347
      %3349 = vmatmul.bf16.gmra.mxu0 %v3133
      %v3350 = vpop.f32.mrf.mxu0
      %v3351 = vadd.f32 0.0, %v3350
      %v3352 = vpop.f32.mrf.mxu0
      %v3353 = vadd.f32 0.0, %v3352
      %3354 = vmatmul.bf16.gmra.mxu0 %v3136
      %v3355 = vpop.f32.mrf.mxu0
      %v3356 = vadd.f32 0.0, %v3355
      %v3357 = vpop.f32.mrf.mxu0
      %v3358 = vadd.f32 0.0, %v3357
      %3359 = vmatmul.bf16.gmra.mxu0 %v3139
      %v3360 = vpop.f32.mrf.mxu0
      %v3361 = vadd.f32 0.0, %v3360
      %v3362 = vpop.f32.mrf.mxu0
      %v3363 = vadd.f32 0.0, %v3362
      %3364 = vmatmul.bf16.gmra.mxu0 %v3142
      %v3365 = vpop.f32.mrf.mxu0
      %v3366 = vadd.f32 0.0, %v3365
      %v3367 = vpop.f32.mrf.mxu0
      %v3368 = vadd.f32 0.0, %v3367
      %3369 = vdwg.mxu0
      %v3370 = vmax.f32 %v3202, %v3291
      %3371 = vmax.xlane.f32.xlu0 %v3370
      %v3372 = vpop.xlane.xlu0 %3371
      %v3373 = vmax.f32 %v3204, %v3293
      %3374 = vmax.xlane.f32.xlu0 %v3373
      %v3375 = vpop.xlane.xlu0 %3374
      %v3376 = vmax.f32 %v3207, %v3296
      %3377 = vmax.xlane.f32.xlu0 %v3376
      %v3378 = vpop.xlane.xlu0 %3377
      %v3379 = vmax.f32 %v3209, %v3298
      %3380 = vmax.xlane.f32.xlu0 %v3379
      %v3381 = vpop.xlane.xlu0 %3380
      %v3382 = vmax.f32 %v3212, %v3301
      %3383 = vmax.xlane.f32.xlu0 %v3382
      %v3384 = vpop.xlane.xlu0 %3383
      %v3385 = vmax.f32 %v3214, %v3303
      %3386 = vmax.xlane.f32.xlu0 %v3385
      %v3387 = vpop.xlane.xlu0 %3386
      %v3388 = vmax.f32 %v3217, %v3306
      %3389 = vmax.xlane.f32.xlu0 %v3388
      %v3390 = vpop.xlane.xlu0 %3389
      %v3391 = vmax.f32 %v3219, %v3308
      %3392 = vmax.xlane.f32.xlu0 %v3391
      %v3393 = vpop.xlane.xlu0 %3392
      %v3394 = vmax.f32 %v3222, %v3311
      %3395 = vmax.xlane.f32.xlu0 %v3394
      %v3396 = vpop.xlane.xlu0 %3395
      %v3397 = vmax.f32 %v3224, %v3313
      %3398 = vmax.xlane.f32.xlu0 %v3397
      %v3399 = vpop.xlane.xlu0 %3398
      %v3400 = vmax.f32 %v3227, %v3316
      %3401 = vmax.xlane.f32.xlu0 %v3400
      %v3402 = vpop.xlane.xlu0 %3401
      %v3403 = vmax.f32 %v3229, %v3318
      %3404 = vmax.xlane.f32.xlu0 %v3403
      %v3405 = vpop.xlane.xlu0 %3404
      %v3406 = vmax.f32 %v3232, %v3321
      %3407 = vmax.xlane.f32.xlu0 %v3406
      %v3408 = vpop.xlane.xlu0 %3407
      %v3409 = vmax.f32 %v3234, %v3323
      %3410 = vmax.xlane.f32.xlu0 %v3409
      %v3411 = vpop.xlane.xlu0 %3410
      %v3412 = vmax.f32 %v3237, %v3326
      %3413 = vmax.xlane.f32.xlu0 %v3412
      %v3414 = vpop.xlane.xlu0 %3413
      %v3415 = vmax.f32 %v3239, %v3328
      %3416 = vmax.xlane.f32.xlu0 %v3415
      %v3417 = vpop.xlane.xlu0 %3416
      %v3418 = vmax.f32 %v3242, %v3331
      %3419 = vmax.xlane.f32.xlu0 %v3418
      %v3420 = vpop.xlane.xlu0 %3419
      %v3421 = vmax.f32 %v3244, %v3333
      %3422 = vmax.xlane.f32.xlu0 %v3421
      %v3423 = vpop.xlane.xlu0 %3422
      %v3424 = vmax.f32 %v3247, %v3336
      %3425 = vmax.xlane.f32.xlu0 %v3424
      %v3426 = vpop.xlane.xlu0 %3425
      %v3427 = vmax.f32 %v3249, %v3338
      %3428 = vmax.xlane.f32.xlu0 %v3427
      %v3429 = vpop.xlane.xlu0 %3428
      %v3430 = vmax.f32 %v3252, %v3341
      %3431 = vmax.xlane.f32.xlu0 %v3430
      %v3432 = vpop.xlane.xlu0 %3431
      %v3433 = vmax.f32 %v3254, %v3343
      %3434 = vmax.xlane.f32.xlu0 %v3433
      %v3435 = vpop.xlane.xlu0 %3434
      %v3436 = vmax.f32 %v3257, %v3346
      %3437 = vmax.xlane.f32.xlu0 %v3436
      %v3438 = vpop.xlane.xlu0 %3437
      %v3439 = vmax.f32 %v3259, %v3348
      %3440 = vmax.xlane.f32.xlu0 %v3439
      %v3441 = vpop.xlane.xlu0 %3440
      %v3442 = vmax.f32 %v3262, %v3351
      %3443 = vmax.xlane.f32.xlu0 %v3442
      %v3444 = vpop.xlane.xlu0 %3443
      %v3445 = vmax.f32 %v3264, %v3353
      %3446 = vmax.xlane.f32.xlu0 %v3445
      %v3447 = vpop.xlane.xlu0 %3446
      %v3448 = vmax.f32 %v3267, %v3356
      %3449 = vmax.xlane.f32.xlu0 %v3448
      %v3450 = vpop.xlane.xlu0 %3449
      %v3451 = vmax.f32 %v3269, %v3358
      %3452 = vmax.xlane.f32.xlu0 %v3451
      %v3453 = vpop.xlane.xlu0 %3452
      %v3454 = vmax.f32 %v3272, %v3361
      %3455 = vmax.xlane.f32.xlu0 %v3454
      %v3456 = vpop.xlane.xlu0 %3455
      %v3457 = vmax.f32 %v3274, %v3363
      %3458 = vmax.xlane.f32.xlu0 %v3457
      %v3459 = vpop.xlane.xlu0 %3458
      %v3460 = vmax.f32 %v3277, %v3366
      %3461 = vmax.xlane.f32.xlu0 %v3460
      %v3462 = vpop.xlane.xlu0 %3461
      %v3463 = vmax.f32 %v3279, %v3368
      %3464 = vmax.xlane.f32.xlu0 %v3463
      %v3465 = vpop.xlane.xlu0 %3464
      %v3466 = vsub.f32 %v3202, %v3372
      %v3467 = vsub.f32 %v3291, %v3372
      %v3468 = vsub.f32 %v3204, %v3375
      %v3469 = vsub.f32 %v3293, %v3375
      %v3470 = vsub.f32 %v3207, %v3378
      %v3471 = vsub.f32 %v3296, %v3378
      %v3472 = vsub.f32 %v3209, %v3381
      %v3473 = vsub.f32 %v3298, %v3381
      %v3474 = vsub.f32 %v3212, %v3384
      %v3475 = vsub.f32 %v3301, %v3384
      %v3476 = vsub.f32 %v3214, %v3387
      %v3477 = vsub.f32 %v3303, %v3387
      %v3478 = vsub.f32 %v3217, %v3390
      %v3479 = vsub.f32 %v3306, %v3390
      %v3480 = vsub.f32 %v3219, %v3393
      %v3481 = vsub.f32 %v3308, %v3393
      %v3482 = vsub.f32 %v3222, %v3396
      %v3483 = vsub.f32 %v3311, %v3396
      %v3484 = vsub.f32 %v3224, %v3399
      %v3485 = vsub.f32 %v3313, %v3399
      %v3486 = vsub.f32 %v3227, %v3402
      %v3487 = vsub.f32 %v3316, %v3402
      %v3488 = vsub.f32 %v3229, %v3405
      %v3489 = vsub.f32 %v3318, %v3405
      %v3490 = vsub.f32 %v3232, %v3408
      %v3491 = vsub.f32 %v3321, %v3408
      %v3492 = vsub.f32 %v3234, %v3411
      %v3493 = vsub.f32 %v3323, %v3411
      %v3494 = vsub.f32 %v3237, %v3414
      %v3495 = vsub.f32 %v3326, %v3414
      %v3496 = vsub.f32 %v3239, %v3417
      %v3497 = vsub.f32 %v3328, %v3417
      %v3498 = vsub.f32 %v3242, %v3420
      %v3499 = vsub.f32 %v3331, %v3420
      %v3500 = vsub.f32 %v3244, %v3423
      %v3501 = vsub.f32 %v3333, %v3423
      %v3502 = vsub.f32 %v3247, %v3426
      %v3503 = vsub.f32 %v3336, %v3426
      %v3504 = vsub.f32 %v3249, %v3429
      %v3505 = vsub.f32 %v3338, %v3429
      %v3506 = vsub.f32 %v3252, %v3432
      %v3507 = vsub.f32 %v3341, %v3432
      %v3508 = vsub.f32 %v3254, %v3435
      %v3509 = vsub.f32 %v3343, %v3435
      %v3510 = vsub.f32 %v3257, %v3438
      %v3511 = vsub.f32 %v3346, %v3438
      %v3512 = vsub.f32 %v3259, %v3441
      %v3513 = vsub.f32 %v3348, %v3441
      %v3514 = vsub.f32 %v3262, %v3444
      %v3515 = vsub.f32 %v3351, %v3444
      %v3516 = vsub.f32 %v3264, %v3447
      %v3517 = vsub.f32 %v3353, %v3447
      %v3518 = vsub.f32 %v3267, %v3450
      %v3519 = vsub.f32 %v3356, %v3450
      %v3520 = vsub.f32 %v3269, %v3453
      %v3521 = vsub.f32 %v3358, %v3453
      %v3522 = vsub.f32 %v3272, %v3456
      %v3523 = vsub.f32 %v3361, %v3456
      %v3524 = vsub.f32 %v3274, %v3459
      %v3525 = vsub.f32 %v3363, %v3459
      %v3526 = vsub.f32 %v3277, %v3462
      %v3527 = vsub.f32 %v3366, %v3462
      %v3528 = vsub.f32 %v3279, %v3465
      %v3529 = vsub.f32 %v3368, %v3465
      %v3530 = vmul.f32 %v3466, 1.442695
      %v3531 = vpow.pop %v3530
      %v3532 = vmul.f32 %v3467, 1.442695
      %v3533 = vpow.pop %v3532
      %v3534 = vmul.f32 %v3468, 1.442695
      %v3535 = vpow.pop %v3534
      %v3536 = vmul.f32 %v3469, 1.442695
      %v3537 = vpow.pop %v3536
      %v3538 = vmul.f32 %v3470, 1.442695
      %v3539 = vpow.pop %v3538
      %v3540 = vmul.f32 %v3471, 1.442695
      %v3541 = vpow.pop %v3540
      %v3542 = vmul.f32 %v3472, 1.442695
      %v3543 = vpow.pop %v3542
      %v3544 = vmul.f32 %v3473, 1.442695
      %v3545 = vpow.pop %v3544
      %v3546 = vmul.f32 %v3474, 1.442695
      %v3547 = vpow.pop %v3546
      %v3548 = vmul.f32 %v3475, 1.442695
      %v3549 = vpow.pop %v3548
      %v3550 = vmul.f32 %v3476, 1.442695
      %v3551 = vpow.pop %v3550
      %v3552 = vmul.f32 %v3477, 1.442695
      %v3553 = vpow.pop %v3552
      %v3554 = vmul.f32 %v3478, 1.442695
      %v3555 = vpow.pop %v3554
      %v3556 = vmul.f32 %v3479, 1.442695
      %v3557 = vpow.pop %v3556
      %v3558 = vmul.f32 %v3480, 1.442695
      %v3559 = vpow.pop %v3558
      %v3560 = vmul.f32 %v3481, 1.442695
      %v3561 = vpow.pop %v3560
      %v3562 = vmul.f32 %v3482, 1.442695
      %v3563 = vpow.pop %v3562
      %v3564 = vmul.f32 %v3483, 1.442695
      %v3565 = vpow.pop %v3564
      %v3566 = vmul.f32 %v3484, 1.442695
      %v3567 = vpow.pop %v3566
      %v3568 = vmul.f32 %v3485, 1.442695
      %v3569 = vpow.pop %v3568
      %v3570 = vmul.f32 %v3486, 1.442695
      %v3571 = vpow.pop %v3570
      %v3572 = vmul.f32 %v3487, 1.442695
      %v3573 = vpow.pop %v3572
      %v3574 = vmul.f32 %v3488, 1.442695
      %v3575 = vpow.pop %v3574
      %v3576 = vmul.f32 %v3489, 1.442695
      %v3577 = vpow.pop %v3576
      %v3578 = vmul.f32 %v3490, 1.442695
      %v3579 = vpow.pop %v3578
      %v3580 = vmul.f32 %v3491, 1.442695
      %v3581 = vpow.pop %v3580
      %v3582 = vmul.f32 %v3492, 1.442695
      %v3583 = vpow.pop %v3582
      %v3584 = vmul.f32 %v3493, 1.442695
      %v3585 = vpow.pop %v3584
      %v3586 = vmul.f32 %v3494, 1.442695
      %v3587 = vpow.pop %v3586
      %v3588 = vmul.f32 %v3495, 1.442695
      %v3589 = vpow.pop %v3588
      %v3590 = vmul.f32 %v3496, 1.442695
      %v3591 = vpow.pop %v3590
      %v3592 = vmul.f32 %v3497, 1.442695
      %v3593 = vpow.pop %v3592
      %v3594 = vmul.f32 %v3498, 1.442695
      %v3595 = vpow.pop %v3594
      %v3596 = vmul.f32 %v3499, 1.442695
      %v3597 = vpow.pop %v3596
      %v3598 = vmul.f32 %v3500, 1.442695
      %v3599 = vpow.pop %v3598
      %v3600 = vmul.f32 %v3501, 1.442695
      %v3601 = vpow.pop %v3600
      %v3602 = vmul.f32 %v3502, 1.442695
      %v3603 = vpow.pop %v3602
      %v3604 = vmul.f32 %v3503, 1.442695
      %v3605 = vpow.pop %v3604
      %v3606 = vmul.f32 %v3504, 1.442695
      %v3607 = vpow.pop %v3606
      %v3608 = vmul.f32 %v3505, 1.442695
      %v3609 = vpow.pop %v3608
      %v3610 = vmul.f32 %v3506, 1.442695
      %v3611 = vpow.pop %v3610
      %v3612 = vmul.f32 %v3507, 1.442695
      %v3613 = vpow.pop %v3612
      %v3614 = vmul.f32 %v3508, 1.442695
      %v3615 = vpow.pop %v3614
      %v3616 = vmul.f32 %v3509, 1.442695
      %v3617 = vpow.pop %v3616
      %v3618 = vmul.f32 %v3510, 1.442695
      %v3619 = vpow.pop %v3618
      %v3620 = vmul.f32 %v3511, 1.442695
      %v3621 = vpow.pop %v3620
      %v3622 = vmul.f32 %v3512, 1.442695
      %v3623 = vpow.pop %v3622
      %v3624 = vmul.f32 %v3513, 1.442695
      %v3625 = vpow.pop %v3624
      %v3626 = vmul.f32 %v3514, 1.442695
      %v3627 = vpow.pop %v3626
      %v3628 = vmul.f32 %v3515, 1.442695
      %v3629 = vpow.pop %v3628
      %v3630 = vmul.f32 %v3516, 1.442695
      %v3631 = vpow.pop %v3630
      %v3632 = vmul.f32 %v3517, 1.442695
      %v3633 = vpow.pop %v3632
      %v3634 = vmul.f32 %v3518, 1.442695
      %v3635 = vpow.pop %v3634
      %v3636 = vmul.f32 %v3519, 1.442695
      %v3637 = vpow.pop %v3636
      %v3638 = vmul.f32 %v3520, 1.442695
      %v3639 = vpow.pop %v3638
      %v3640 = vmul.f32 %v3521, 1.442695
      %v3641 = vpow.pop %v3640
      %v3642 = vmul.f32 %v3522, 1.442695
      %v3643 = vpow.pop %v3642
      %v3644 = vmul.f32 %v3523, 1.442695
      %v3645 = vpow.pop %v3644
      %v3646 = vmul.f32 %v3524, 1.442695
      %v3647 = vpow.pop %v3646
      %v3648 = vmul.f32 %v3525, 1.442695
      %v3649 = vpow.pop %v3648
      %v3650 = vmul.f32 %v3526, 1.442695
      %v3651 = vpow.pop %v3650
      %v3652 = vmul.f32 %v3527, 1.442695
      %v3653 = vpow.pop %v3652
      %v3654 = vmul.f32 %v3528, 1.442695
      %v3655 = vpow.pop %v3654
      %v3656 = vmul.f32 %v3529, 1.442695
      %v3657 = vpow.pop %v3656
      %v3658 = vadd.f32 %v3531, %v3533
      %3659 = vadd.xlane.f32.xlu0 %v3658
      %v3660 = vpop.xlane.xlu0 %3659
      %v3661 = vadd.f32 %v3535, %v3537
      %3662 = vadd.xlane.f32.xlu0 %v3661
      %v3663 = vpop.xlane.xlu0 %3662
      %v3664 = vadd.f32 %v3539, %v3541
      %3665 = vadd.xlane.f32.xlu0 %v3664
      %v3666 = vpop.xlane.xlu0 %3665
      %v3667 = vadd.f32 %v3543, %v3545
      %3668 = vadd.xlane.f32.xlu0 %v3667
      %v3669 = vpop.xlane.xlu0 %3668
      %v3670 = vadd.f32 %v3547, %v3549
      %3671 = vadd.xlane.f32.xlu0 %v3670
      %v3672 = vpop.xlane.xlu0 %3671
      %v3673 = vadd.f32 %v3551, %v3553
      %3674 = vadd.xlane.f32.xlu0 %v3673
      %v3675 = vpop.xlane.xlu0 %3674
      %v3676 = vadd.f32 %v3555, %v3557
      %3677 = vadd.xlane.f32.xlu0 %v3676
      %v3678 = vpop.xlane.xlu0 %3677
      %v3679 = vadd.f32 %v3559, %v3561
      %3680 = vadd.xlane.f32.xlu0 %v3679
      %v3681 = vpop.xlane.xlu0 %3680
      %v3682 = vadd.f32 %v3563, %v3565
      %3683 = vadd.xlane.f32.xlu0 %v3682
      %v3684 = vpop.xlane.xlu0 %3683
      %v3685 = vadd.f32 %v3567, %v3569
      %3686 = vadd.xlane.f32.xlu0 %v3685
      %v3687 = vpop.xlane.xlu0 %3686
      %v3688 = vadd.f32 %v3571, %v3573
      %3689 = vadd.xlane.f32.xlu0 %v3688
      %v3690 = vpop.xlane.xlu0 %3689
      %v3691 = vadd.f32 %v3575, %v3577
      %3692 = vadd.xlane.f32.xlu0 %v3691
      %v3693 = vpop.xlane.xlu0 %3692
      %v3694 = vadd.f32 %v3579, %v3581
      %3695 = vadd.xlane.f32.xlu0 %v3694
      %v3696 = vpop.xlane.xlu0 %3695
      %v3697 = vadd.f32 %v3583, %v3585
      %3698 = vadd.xlane.f32.xlu0 %v3697
      %v3699 = vpop.xlane.xlu0 %3698
      %v3700 = vadd.f32 %v3587, %v3589
      %3701 = vadd.xlane.f32.xlu0 %v3700
      %v3702 = vpop.xlane.xlu0 %3701
      %v3703 = vadd.f32 %v3591, %v3593
      %3704 = vadd.xlane.f32.xlu0 %v3703
      %v3705 = vpop.xlane.xlu0 %3704
      %v3706 = vadd.f32 %v3595, %v3597
      %3707 = vadd.xlane.f32.xlu0 %v3706
      %v3708 = vpop.xlane.xlu0 %3707
      %v3709 = vadd.f32 %v3599, %v3601
      %3710 = vadd.xlane.f32.xlu0 %v3709
      %v3711 = vpop.xlane.xlu0 %3710
      %v3712 = vadd.f32 %v3603, %v3605
      %3713 = vadd.xlane.f32.xlu0 %v3712
      %v3714 = vpop.xlane.xlu0 %3713
      %v3715 = vadd.f32 %v3607, %v3609
      %3716 = vadd.xlane.f32.xlu0 %v3715
      %v3717 = vpop.xlane.xlu0 %3716
      %v3718 = vadd.f32 %v3611, %v3613
      %3719 = vadd.xlane.f32.xlu0 %v3718
      %v3720 = vpop.xlane.xlu0 %3719
      %v3721 = vadd.f32 %v3615, %v3617
      %3722 = vadd.xlane.f32.xlu0 %v3721
      %v3723 = vpop.xlane.xlu0 %3722
      %v3724 = vadd.f32 %v3619, %v3621
      %3725 = vadd.xlane.f32.xlu0 %v3724
      %v3726 = vpop.xlane.xlu0 %3725
      %v3727 = vadd.f32 %v3623, %v3625
      %3728 = vadd.xlane.f32.xlu0 %v3727
      %v3729 = vpop.xlane.xlu0 %3728
      %v3730 = vadd.f32 %v3627, %v3629
      %3731 = vadd.xlane.f32.xlu0 %v3730
      %v3732 = vpop.xlane.xlu0 %3731
      %v3733 = vadd.f32 %v3631, %v3633
      %3734 = vadd.xlane.f32.xlu0 %v3733
      %v3735 = vpop.xlane.xlu0 %3734
      %v3736 = vadd.f32 %v3635, %v3637
      %3737 = vadd.xlane.f32.xlu0 %v3736
      %v3738 = vpop.xlane.xlu0 %3737
      %v3739 = vadd.f32 %v3639, %v3641
      %3740 = vadd.xlane.f32.xlu0 %v3739
      %v3741 = vpop.xlane.xlu0 %3740
      %v3742 = vadd.f32 %v3643, %v3645
      %3743 = vadd.xlane.f32.xlu0 %v3742
      %v3744 = vpop.xlane.xlu0 %3743
      %v3745 = vadd.f32 %v3647, %v3649
      %3746 = vadd.xlane.f32.xlu0 %v3745
      %v3747 = vpop.xlane.xlu0 %3746
      %v3748 = vadd.f32 %v3651, %v3653
      %3749 = vadd.xlane.f32.xlu0 %v3748
      %v3750 = vpop.xlane.xlu0 %3749
      %v3751 = vadd.f32 %v3655, %v3657
      %3752 = vadd.xlane.f32.xlu0 %v3751
      %v3753 = vpop.xlane.xlu0 %3752
      %v3754 = vrcp.pop %v3660
      %v3755 = vrcp.pop %v3663
      %v3756 = vrcp.pop %v3666
      %v3757 = vrcp.pop %v3669
      %v3758 = vrcp.pop %v3672
      %v3759 = vrcp.pop %v3675
      %v3760 = vrcp.pop %v3678
      %v3761 = vrcp.pop %v3681
      %v3762 = vrcp.pop %v3684
      %v3763 = vrcp.pop %v3687
      %v3764 = vrcp.pop %v3690
      %v3765 = vrcp.pop %v3693
      %v3766 = vrcp.pop %v3696
      %v3767 = vrcp.pop %v3699
      %v3768 = vrcp.pop %v3702
      %v3769 = vrcp.pop %v3705
      %v3770 = vrcp.pop %v3708
      %v3771 = vrcp.pop %v3711
      %v3772 = vrcp.pop %v3714
      %v3773 = vrcp.pop %v3717
      %v3774 = vrcp.pop %v3720
      %v3775 = vrcp.pop %v3723
      %v3776 = vrcp.pop %v3726
      %v3777 = vrcp.pop %v3729
      %v3778 = vrcp.pop %v3732
      %v3779 = vrcp.pop %v3735
      %v3780 = vrcp.pop %v3738
      %v3781 = vrcp.pop %v3741
      %v3782 = vrcp.pop %v3744
      %v3783 = vrcp.pop %v3747
      %v3784 = vrcp.pop %v3750
      %v3785 = vrcp.pop %v3753
      %v3786 = vmul.f32 %v3531, %v3754
      %v3787 = vmul.f32 %v3533, %v3754
      %v3788 = vmul.f32 %v3535, %v3755
      %v3789 = vmul.f32 %v3537, %v3755
      %v3790 = vmul.f32 %v3539, %v3756
      %v3791 = vmul.f32 %v3541, %v3756
      %v3792 = vmul.f32 %v3543, %v3757
      %v3793 = vmul.f32 %v3545, %v3757
      %v3794 = vmul.f32 %v3547, %v3758
      %v3795 = vmul.f32 %v3549, %v3758
      %v3796 = vmul.f32 %v3551, %v3759
      %v3797 = vmul.f32 %v3553, %v3759
      %v3798 = vmul.f32 %v3555, %v3760
      %v3799 = vmul.f32 %v3557, %v3760
      %v3800 = vmul.f32 %v3559, %v3761
      %v3801 = vmul.f32 %v3561, %v3761
      %v3802 = vmul.f32 %v3563, %v3762
      %v3803 = vmul.f32 %v3565, %v3762
      %v3804 = vmul.f32 %v3567, %v3763
      %v3805 = vmul.f32 %v3569, %v3763
      %v3806 = vmul.f32 %v3571, %v3764
      %v3807 = vmul.f32 %v3573, %v3764
      %v3808 = vmul.f32 %v3575, %v3765
      %v3809 = vmul.f32 %v3577, %v3765
      %v3810 = vmul.f32 %v3579, %v3766
      %v3811 = vmul.f32 %v3581, %v3766
      %v3812 = vmul.f32 %v3583, %v3767
      %v3813 = vmul.f32 %v3585, %v3767
      %v3814 = vmul.f32 %v3587, %v3768
      %v3815 = vmul.f32 %v3589, %v3768
      %v3816 = vmul.f32 %v3591, %v3769
      %v3817 = vmul.f32 %v3593, %v3769
      %v3818 = vmul.f32 %v3595, %v3770
      %v3819 = vmul.f32 %v3597, %v3770
      %v3820 = vmul.f32 %v3599, %v3771
      %v3821 = vmul.f32 %v3601, %v3771
      %v3822 = vmul.f32 %v3603, %v3772
      %v3823 = vmul.f32 %v3605, %v3772
      %v3824 = vmul.f32 %v3607, %v3773
      %v3825 = vmul.f32 %v3609, %v3773
      %v3826 = vmul.f32 %v3611, %v3774
      %v3827 = vmul.f32 %v3613, %v3774
      %v3828 = vmul.f32 %v3615, %v3775
      %v3829 = vmul.f32 %v3617, %v3775
      %v3830 = vmul.f32 %v3619, %v3776
      %v3831 = vmul.f32 %v3621, %v3776
      %v3832 = vmul.f32 %v3623, %v3777
      %v3833 = vmul.f32 %v3625, %v3777
      %v3834 = vmul.f32 %v3627, %v3778
      %v3835 = vmul.f32 %v3629, %v3778
      %v3836 = vmul.f32 %v3631, %v3779
      %v3837 = vmul.f32 %v3633, %v3779
      %v3838 = vmul.f32 %v3635, %v3780
      %v3839 = vmul.f32 %v3637, %v3780
      %v3840 = vmul.f32 %v3639, %v3781
      %v3841 = vmul.f32 %v3641, %v3781
      %v3842 = vmul.f32 %v3643, %v3782
      %v3843 = vmul.f32 %v3645, %v3782
      %v3844 = vmul.f32 %v3647, %v3783
      %v3845 = vmul.f32 %v3649, %v3783
      %v3846 = vmul.f32 %v3651, %v3784
      %v3847 = vmul.f32 %v3653, %v3784
      %v3848 = vmul.f32 %v3655, %v3785
      %v3849 = vmul.f32 %v3657, %v3785
      %v3850 = vpack.c.bf16 %v3788, %v3786
      %v3851 = vpack.c.bf16 %v3789, %v3787
      %v3852 = vpack.c.bf16 %v3792, %v3790
      %v3853 = vpack.c.bf16 %v3793, %v3791
      %v3854 = vpack.c.bf16 %v3796, %v3794
      %v3855 = vpack.c.bf16 %v3797, %v3795
      %v3856 = vpack.c.bf16 %v3800, %v3798
      %v3857 = vpack.c.bf16 %v3801, %v3799
      %v3858 = vpack.c.bf16 %v3804, %v3802
      %v3859 = vpack.c.bf16 %v3805, %v3803
      %v3860 = vpack.c.bf16 %v3808, %v3806
      %v3861 = vpack.c.bf16 %v3809, %v3807
      %v3862 = vpack.c.bf16 %v3812, %v3810
      %v3863 = vpack.c.bf16 %v3813, %v3811
      %v3864 = vpack.c.bf16 %v3816, %v3814
      %v3865 = vpack.c.bf16 %v3817, %v3815
      %v3866 = vpack.c.bf16 %v3820, %v3818
      %v3867 = vpack.c.bf16 %v3821, %v3819
      %v3868 = vpack.c.bf16 %v3824, %v3822
      %v3869 = vpack.c.bf16 %v3825, %v3823
      %v3870 = vpack.c.bf16 %v3828, %v3826
      %v3871 = vpack.c.bf16 %v3829, %v3827
      %v3872 = vpack.c.bf16 %v3832, %v3830
      %v3873 = vpack.c.bf16 %v3833, %v3831
      %v3874 = vpack.c.bf16 %v3836, %v3834
      %v3875 = vpack.c.bf16 %v3837, %v3835
      %v3876 = vpack.c.bf16 %v3840, %v3838
      %v3877 = vpack.c.bf16 %v3841, %v3839
      %v3878 = vpack.c.bf16 %v3844, %v3842
      %v3879 = vpack.c.bf16 %v3845, %v3843
      %v3880 = vpack.c.bf16 %v3848, %v3846
      %v3881 = vpack.c.bf16 %v3849, %v3847
      %v3914 = vunpack.c.l.b16 %v2903
      %v3915 = vunpack.c.l.b16 %v2904
      %v3916 = vunpack.c.l.b16 %v2905
      %v3917 = vunpack.c.l.b16 %v2906
      %v3918 = vunpack.c.l.b16 %v2907
      %v3919 = vunpack.c.l.b16 %v2908
      %v3920 = vunpack.c.l.b16 %v2909
      %v3921 = vunpack.c.l.b16 %v2910
      %v3922 = vunpack.c.l.b16 %v2911
      %v3923 = vunpack.c.l.b16 %v2912
      %v3924 = vunpack.c.l.b16 %v2913
      %v3925 = vunpack.c.l.b16 %v2914
      %v3926 = vunpack.c.l.b16 %v2915
      %v3927 = vunpack.c.l.b16 %v2916
      %v3928 = vunpack.c.l.b16 %v2917
      %v3929 = vunpack.c.l.b16 %v2918
      %v3930 = vunpack.c.l.b16 %v2919
      %v3931 = vunpack.c.l.b16 %v2920
      %v3932 = vunpack.c.l.b16 %v2921
      %v3933 = vunpack.c.l.b16 %v2922
      %v3934 = vunpack.c.l.b16 %v2923
      %v3935 = vunpack.c.l.b16 %v2924
      %v3936 = vunpack.c.l.b16 %v2925
      %v3937 = vunpack.c.l.b16 %v2926
      %v3938 = vunpack.c.l.b16 %v2927
      %v3939 = vunpack.c.l.b16 %v2928
      %v3940 = vunpack.c.l.b16 %v2929
      %v3941 = vunpack.c.l.b16 %v2930
      %v3942 = vunpack.c.l.b16 %v2931
      %v3943 = vunpack.c.l.b16 %v2932
      %v3944 = vunpack.c.l.b16 %v2933
      %v3945 = vunpack.c.l.b16 %v2934
      %v3946 = vpack.c.b16 %v3915, %v3914
      %v3947 = vpack.c.b16 %v3917, %v3916
      %v3948 = vpack.c.b16 %v3919, %v3918
      %v3949 = vpack.c.b16 %v3921, %v3920
      %v3950 = vpack.c.b16 %v3923, %v3922
      %v3951 = vpack.c.b16 %v3925, %v3924
      %v3952 = vpack.c.b16 %v3927, %v3926
      %v3953 = vpack.c.b16 %v3929, %v3928
      %v3954 = vpack.c.b16 %v3931, %v3930
      %v3955 = vpack.c.b16 %v3933, %v3932
      %v3956 = vpack.c.b16 %v3935, %v3934
      %v3957 = vpack.c.b16 %v3937, %v3936
      %v3958 = vpack.c.b16 %v3939, %v3938
      %v3959 = vpack.c.b16 %v3941, %v3940
      %v3960 = vpack.c.b16 %v3943, %v3942
      %v3961 = vpack.c.b16 %v3945, %v3944
      %3978 = vmatpush.bf16.msra.mxu0 %v3953
      %3979 = vmatpush.bf16.msra.mxu0 %v3952
      %3980 = vmatpush.bf16.msra.mxu0 %v3951
      %3981 = vmatpush.bf16.msra.mxu0 %v3950
      %3982 = vmatpush.bf16.msra.mxu0 %v3949
      %3983 = vmatpush.bf16.msra.mxu0 %v3948
      %3984 = vmatpush.bf16.msra.mxu0 %v3947
      %3985 = vmatpush.bf16.msra.mxu0 %v3946
      %3986 = vmatmul.bf16.gmra.mxu0 %v3850
      %v3987 = vpop.f32.mrf.mxu0
      %v3988 = vadd.f32 0.0, %v3987
      %v3989 = vpop.f32.mrf.mxu0
      %v3990 = vadd.f32 0.0, %v3989
      %3991 = vmatmul.bf16.gmra.mxu0 %v3852
      %v3992 = vpop.f32.mrf.mxu0
      %v3993 = vadd.f32 0.0, %v3992
      %v3994 = vpop.f32.mrf.mxu0
      %v3995 = vadd.f32 0.0, %v3994
      %3996 = vmatmul.bf16.gmra.mxu0 %v3854
      %v3997 = vpop.f32.mrf.mxu0
      %v3998 = vadd.f32 0.0, %v3997
      %v3999 = vpop.f32.mrf.mxu0
      %v4000 = vadd.f32 0.0, %v3999
      %4001 = vmatmul.bf16.gmra.mxu0 %v3856
      %v4002 = vpop.f32.mrf.mxu0
      %v4003 = vadd.f32 0.0, %v4002
      %v4004 = vpop.f32.mrf.mxu0
      %v4005 = vadd.f32 0.0, %v4004
      %4006 = vmatmul.bf16.gmra.mxu0 %v3858
      %v4007 = vpop.f32.mrf.mxu0
      %v4008 = vadd.f32 0.0, %v4007
      %v4009 = vpop.f32.mrf.mxu0
      %v4010 = vadd.f32 0.0, %v4009
      %4011 = vmatmul.bf16.gmra.mxu0 %v3860
      %v4012 = vpop.f32.mrf.mxu0
      %v4013 = vadd.f32 0.0, %v4012
      %v4014 = vpop.f32.mrf.mxu0
      %v4015 = vadd.f32 0.0, %v4014
      %4016 = vmatmul.bf16.gmra.mxu0 %v3862
      %v4017 = vpop.f32.mrf.mxu0
      %v4018 = vadd.f32 0.0, %v4017
      %v4019 = vpop.f32.mrf.mxu0
      %v4020 = vadd.f32 0.0, %v4019
      %4021 = vmatmul.bf16.gmra.mxu0 %v3864
      %v4022 = vpop.f32.mrf.mxu0
      %v4023 = vadd.f32 0.0, %v4022
      %v4024 = vpop.f32.mrf.mxu0
      %v4025 = vadd.f32 0.0, %v4024
      %4026 = vmatmul.bf16.gmra.mxu0 %v3866
      %v4027 = vpop.f32.mrf.mxu0
      %v4028 = vadd.f32 0.0, %v4027
      %v4029 = vpop.f32.mrf.mxu0
      %v4030 = vadd.f32 0.0, %v4029
      %4031 = vmatmul.bf16.gmra.mxu0 %v3868
      %v4032 = vpop.f32.mrf.mxu0
      %v4033 = vadd.f32 0.0, %v4032
      %v4034 = vpop.f32.mrf.mxu0
      %v4035 = vadd.f32 0.0, %v4034
      %4036 = vmatmul.bf16.gmra.mxu0 %v3870
      %v4037 = vpop.f32.mrf.mxu0
      %v4038 = vadd.f32 0.0, %v4037
      %v4039 = vpop.f32.mrf.mxu0
      %v4040 = vadd.f32 0.0, %v4039
      %4041 = vmatmul.bf16.gmra.mxu0 %v3872
      %v4042 = vpop.f32.mrf.mxu0
      %v4043 = vadd.f32 0.0, %v4042
      %v4044 = vpop.f32.mrf.mxu0
      %v4045 = vadd.f32 0.0, %v4044
      %4046 = vmatmul.bf16.gmra.mxu0 %v3874
      %v4047 = vpop.f32.mrf.mxu0
      %v4048 = vadd.f32 0.0, %v4047
      %v4049 = vpop.f32.mrf.mxu0
      %v4050 = vadd.f32 0.0, %v4049
      %4051 = vmatmul.bf16.gmra.mxu0 %v3876
      %v4052 = vpop.f32.mrf.mxu0
      %v4053 = vadd.f32 0.0, %v4052
      %v4054 = vpop.f32.mrf.mxu0
      %v4055 = vadd.f32 0.0, %v4054
      %4056 = vmatmul.bf16.gmra.mxu0 %v3878
      %v4057 = vpop.f32.mrf.mxu0
      %v4058 = vadd.f32 0.0, %v4057
      %v4059 = vpop.f32.mrf.mxu0
      %v4060 = vadd.f32 0.0, %v4059
      %4061 = vmatmul.bf16.gmra.mxu0 %v3880
      %v4062 = vpop.f32.mrf.mxu0
      %v4063 = vadd.f32 0.0, %v4062
      %v4064 = vpop.f32.mrf.mxu0
      %v4065 = vadd.f32 0.0, %v4064
      %4066 = vdwg.mxu0
      %4067 = vmatpush.bf16.msra.mxu0 %v3961
      %4068 = vmatpush.bf16.msra.mxu0 %v3960
      %4069 = vmatpush.bf16.msra.mxu0 %v3959
      %4070 = vmatpush.bf16.msra.mxu0 %v3958
      %4071 = vmatpush.bf16.msra.mxu0 %v3957
      %4072 = vmatpush.bf16.msra.mxu0 %v3956
      %4073 = vmatpush.bf16.msra.mxu0 %v3955
      %4074 = vmatpush.bf16.msra.mxu0 %v3954
      %4075 = vmatmul.bf16.gmra.mxu0 %v3851
      %v4076 = vpop.f32.mrf.mxu0
      %v4077 = vadd.f32 %v3988, %v4076
      %v4078 = vpop.f32.mrf.mxu0
      %v4079 = vadd.f32 %v3990, %v4078
      %4080 = vmatmul.bf16.gmra.mxu0 %v3853
      %v4081 = vpop.f32.mrf.mxu0
      %v4082 = vadd.f32 %v3993, %v4081
      %v4083 = vpop.f32.mrf.mxu0
      %v4084 = vadd.f32 %v3995, %v4083
      %4085 = vmatmul.bf16.gmra.mxu0 %v3855
      %v4086 = vpop.f32.mrf.mxu0
      %v4087 = vadd.f32 %v3998, %v4086
      %v4088 = vpop.f32.mrf.mxu0
      %v4089 = vadd.f32 %v4000, %v4088
      %4090 = vmatmul.bf16.gmra.mxu0 %v3857
      %v4091 = vpop.f32.mrf.mxu0
      %v4092 = vadd.f32 %v4003, %v4091
      %v4093 = vpop.f32.mrf.mxu0
      %v4094 = vadd.f32 %v4005, %v4093
      %4095 = vmatmul.bf16.gmra.mxu0 %v3859
      %v4096 = vpop.f32.mrf.mxu0
      %v4097 = vadd.f32 %v4008, %v4096
      %v4098 = vpop.f32.mrf.mxu0
      %v4099 = vadd.f32 %v4010, %v4098
      %4100 = vmatmul.bf16.gmra.mxu0 %v3861
      %v4101 = vpop.f32.mrf.mxu0
      %v4102 = vadd.f32 %v4013, %v4101
      %v4103 = vpop.f32.mrf.mxu0
      %v4104 = vadd.f32 %v4015, %v4103
      %4105 = vmatmul.bf16.gmra.mxu0 %v3863
      %v4106 = vpop.f32.mrf.mxu0
      %v4107 = vadd.f32 %v4018, %v4106
      %v4108 = vpop.f32.mrf.mxu0
      %v4109 = vadd.f32 %v4020, %v4108
      %4110 = vmatmul.bf16.gmra.mxu0 %v3865
      %v4111 = vpop.f32.mrf.mxu0
      %v4112 = vadd.f32 %v4023, %v4111
      %v4113 = vpop.f32.mrf.mxu0
      %v4114 = vadd.f32 %v4025, %v4113
      %4115 = vmatmul.bf16.gmra.mxu0 %v3867
      %v4116 = vpop.f32.mrf.mxu0
      %v4117 = vadd.f32 %v4028, %v4116
      %v4118 = vpop.f32.mrf.mxu0
      %v4119 = vadd.f32 %v4030, %v4118
      %4120 = vmatmul.bf16.gmra.mxu0 %v3869
      %v4121 = vpop.f32.mrf.mxu0
      %v4122 = vadd.f32 %v4033, %v4121
      %v4123 = vpop.f32.mrf.mxu0
      %v4124 = vadd.f32 %v4035, %v4123
      %4125 = vmatmul.bf16.gmra.mxu0 %v3871
      %v4126 = vpop.f32.mrf.mxu0
      %v4127 = vadd.f32 %v4038, %v4126
      %v4128 = vpop.f32.mrf.mxu0
      %v4129 = vadd.f32 %v4040, %v4128
      %4130 = vmatmul.bf16.gmra.mxu0 %v3873
      %v4131 = vpop.f32.mrf.mxu0
      %v4132 = vadd.f32 %v4043, %v4131
      %v4133 = vpop.f32.mrf.mxu0
      %v4134 = vadd.f32 %v4045, %v4133
      %4135 = vmatmul.bf16.gmra.mxu0 %v3875
      %v4136 = vpop.f32.mrf.mxu0
      %v4137 = vadd.f32 %v4048, %v4136
      %v4138 = vpop.f32.mrf.mxu0
      %v4139 = vadd.f32 %v4050, %v4138
      %4140 = vmatmul.bf16.gmra.mxu0 %v3877
      %v4141 = vpop.f32.mrf.mxu0
      %v4142 = vadd.f32 %v4053, %v4141
      %v4143 = vpop.f32.mrf.mxu0
      %v4144 = vadd.f32 %v4055, %v4143
      %4145 = vmatmul.bf16.gmra.mxu0 %v3879
      %v4146 = vpop.f32.mrf.mxu0
      %v4147 = vadd.f32 %v4058, %v4146
      %v4148 = vpop.f32.mrf.mxu0
      %v4149 = vadd.f32 %v4060, %v4148
      %4150 = vmatmul.bf16.gmra.mxu0 %v3881
      %v4151 = vpop.f32.mrf.mxu0
      %v4152 = vadd.f32 %v4063, %v4151
      %v4153 = vpop.f32.mrf.mxu0
      %v4154 = vadd.f32 %v4065, %v4153
      %4155 = vdwg.mxu0
      %4156 = vrot.lane.b32.xlu0 %v2999, 96
      %v4157 = vpop.permute.xlu0 %4156
      %4158 = vrot.lane.b32.xlu0 %v3000, 96
      %v4159 = vpop.permute.xlu0 %4158
      %4160 = vrot.lane.b32.xlu0 %v3001, 96
      %v4161 = vpop.permute.xlu0 %4160
      %4162 = vrot.lane.b32.xlu0 %v3002, 96
      %v4163 = vpop.permute.xlu0 %4162
      %4164 = vrot.lane.b32.xlu0 %v3003, 96
      %v4165 = vpop.permute.xlu0 %4164
      %4166 = vrot.lane.b32.xlu0 %v3004, 96
      %v4167 = vpop.permute.xlu0 %4166
      %4168 = vrot.lane.b32.xlu0 %v3005, 96
      %v4169 = vpop.permute.xlu0 %4168
      %4170 = vrot.lane.b32.xlu0 %v3006, 96
      %v4171 = vpop.permute.xlu0 %4170
      %4172 = vrot.lane.b32.xlu0 %v3007, 96
      %v4173 = vpop.permute.xlu0 %4172
      %4174 = vrot.lane.b32.xlu0 %v3008, 96
      %v4175 = vpop.permute.xlu0 %4174
      %4176 = vrot.lane.b32.xlu0 %v3009, 96
      %v4177 = vpop.permute.xlu0 %4176
      %4178 = vrot.lane.b32.xlu0 %v3010, 96
      %v4179 = vpop.permute.xlu0 %4178
      %4180 = vrot.lane.b32.xlu0 %v3011, 96
      %v4181 = vpop.permute.xlu0 %4180
      %4182 = vrot.lane.b32.xlu0 %v3012, 96
      %v4183 = vpop.permute.xlu0 %4182
      %4184 = vrot.lane.b32.xlu0 %v3013, 96
      %v4185 = vpop.permute.xlu0 %4184
      %4186 = vrot.lane.b32.xlu0 %v3014, 96
      %v4187 = vpop.permute.xlu0 %4186
      %4188 = vrot.lane.b32.xlu0 %v3079, 96
      %v4189 = vpop.permute.xlu0 %4188
      %4190 = vrot.lane.b32.xlu0 %v3080, 96
      %v4191 = vpop.permute.xlu0 %4190
      %4192 = vrot.lane.b32.xlu0 %v3081, 96
      %v4193 = vpop.permute.xlu0 %4192
      %4194 = vrot.lane.b32.xlu0 %v3082, 96
      %v4195 = vpop.permute.xlu0 %4194
      %4196 = vrot.lane.b32.xlu0 %v3083, 96
      %v4197 = vpop.permute.xlu0 %4196
      %4198 = vrot.lane.b32.xlu0 %v3084, 96
      %v4199 = vpop.permute.xlu0 %4198
      %4200 = vrot.lane.b32.xlu0 %v3085, 96
      %v4201 = vpop.permute.xlu0 %4200
      %4202 = vrot.lane.b32.xlu0 %v3086, 96
      %v4203 = vpop.permute.xlu0 %4202
      %4204 = vrot.lane.b32.xlu0 %v3087, 96
      %v4205 = vpop.permute.xlu0 %4204
      %4206 = vrot.lane.b32.xlu0 %v3088, 96
      %v4207 = vpop.permute.xlu0 %4206
      %4208 = vrot.lane.b32.xlu0 %v3089, 96
      %v4209 = vpop.permute.xlu0 %4208
      %4210 = vrot.lane.b32.xlu0 %v3090, 96
      %v4211 = vpop.permute.xlu0 %4210
      %4212 = vrot.lane.b32.xlu0 %v3091, 96
      %v4213 = vpop.permute.xlu0 %4212
      %4214 = vrot.lane.b32.xlu0 %v3092, 96
      %v4215 = vpop.permute.xlu0 %4214
      %4216 = vrot.lane.b32.xlu0 %v3093, 96
      %v4217 = vpop.permute.xlu0 %4216
      %4218 = vrot.lane.b32.xlu0 %v3094, 96
      %v4219 = vpop.permute.xlu0 %4218
      %v4221 = vsel %vm3095, %v4157, 0
      %v4224 = vsel %vm3095, %v4159, 0
      %v4227 = vsel %vm3095, %v4161, 0
      %v4230 = vsel %vm3095, %v4163, 0
      %v4233 = vsel %vm3095, %v4165, 0
      %v4236 = vsel %vm3095, %v4167, 0
      %v4239 = vsel %vm3095, %v4169, 0
      %v4242 = vsel %vm3095, %v4171, 0
      %v4245 = vsel %vm3095, %v4173, 0
      %v4248 = vsel %vm3095, %v4175, 0
      %v4251 = vsel %vm3095, %v4177, 0
      %v4254 = vsel %vm3095, %v4179, 0
      %v4257 = vsel %vm3095, %v4181, 0
      %v4260 = vsel %vm3095, %v4183, 0
      %v4263 = vsel %vm3095, %v4185, 0
      %v4266 = vsel %vm3095, %v4187, 0
      %v4269 = vsel %vm3095, %v4189, 0
      %v4272 = vsel %vm3095, %v4191, 0
      %v4275 = vsel %vm3095, %v4193, 0
      %v4278 = vsel %vm3095, %v4195, 0
      %v4281 = vsel %vm3095, %v4197, 0
      %v4284 = vsel %vm3095, %v4199, 0
      %v4287 = vsel %vm3095, %v4201, 0
      %v4290 = vsel %vm3095, %v4203, 0
      %v4293 = vsel %vm3095, %v4205, 0
      %v4296 = vsel %vm3095, %v4207, 0
      %v4299 = vsel %vm3095, %v4209, 0
      %v4302 = vsel %vm3095, %v4211, 0
      %v4305 = vsel %vm3095, %v4213, 0
      %v4308 = vsel %vm3095, %v4215, 0
      %v4311 = vsel %vm3095, %v4217, 0
      %v4314 = vsel %vm3095, %v4219, 0
      %4316 = vmatpush.bf16.xpose.msra.mxu0 %v4290
      %4317 = vmatpush.bf16.xpose.msra.mxu0 %v4287
      %4318 = vmatpush.bf16.xpose.msra.mxu0 %v4284
      %4319 = vmatpush.bf16.xpose.msra.mxu0 %v4281
      %4320 = vmatpush.bf16.xpose.msra.mxu0 %v4278
      %4321 = vmatpush.bf16.xpose.msra.mxu0 %v4275
      %4322 = vmatpush.bf16.xpose.msra.mxu0 %v4272
      %4323 = vmatpush.bf16.xpose.msra.mxu0 %v4269
      %4324 = vmatmul.bf16.gmra.mxu0 %v4221
      %v4325 = vpop.f32.mrf.mxu0
      %v4326 = vadd.f32 0.0, %v4325
      %v4327 = vpop.f32.mrf.mxu0
      %v4328 = vadd.f32 0.0, %v4327
      %4329 = vmatmul.bf16.gmra.mxu0 %v4224
      %v4330 = vpop.f32.mrf.mxu0
      %v4331 = vadd.f32 0.0, %v4330
      %v4332 = vpop.f32.mrf.mxu0
      %v4333 = vadd.f32 0.0, %v4332
      %4334 = vmatmul.bf16.gmra.mxu0 %v4227
      %v4335 = vpop.f32.mrf.mxu0
      %v4336 = vadd.f32 0.0, %v4335
      %v4337 = vpop.f32.mrf.mxu0
      %v4338 = vadd.f32 0.0, %v4337
      %4339 = vmatmul.bf16.gmra.mxu0 %v4230
      %v4340 = vpop.f32.mrf.mxu0
      %v4341 = vadd.f32 0.0, %v4340
      %v4342 = vpop.f32.mrf.mxu0
      %v4343 = vadd.f32 0.0, %v4342
      %4344 = vmatmul.bf16.gmra.mxu0 %v4233
      %v4345 = vpop.f32.mrf.mxu0
      %v4346 = vadd.f32 0.0, %v4345
      %v4347 = vpop.f32.mrf.mxu0
      %v4348 = vadd.f32 0.0, %v4347
      %4349 = vmatmul.bf16.gmra.mxu0 %v4236
      %v4350 = vpop.f32.mrf.mxu0
      %v4351 = vadd.f32 0.0, %v4350
      %v4352 = vpop.f32.mrf.mxu0
      %v4353 = vadd.f32 0.0, %v4352
      %4354 = vmatmul.bf16.gmra.mxu0 %v4239
      %v4355 = vpop.f32.mrf.mxu0
      %v4356 = vadd.f32 0.0, %v4355
      %v4357 = vpop.f32.mrf.mxu0
      %v4358 = vadd.f32 0.0, %v4357
      %4359 = vmatmul.bf16.gmra.mxu0 %v4242
      %v4360 = vpop.f32.mrf.mxu0
      %v4361 = vadd.f32 0.0, %v4360
      %v4362 = vpop.f32.mrf.mxu0
      %v4363 = vadd.f32 0.0, %v4362
      %4364 = vmatmul.bf16.gmra.mxu0 %v4245
      %v4365 = vpop.f32.mrf.mxu0
      %v4366 = vadd.f32 0.0, %v4365
      %v4367 = vpop.f32.mrf.mxu0
      %v4368 = vadd.f32 0.0, %v4367
      %4369 = vmatmul.bf16.gmra.mxu0 %v4248
      %v4370 = vpop.f32.mrf.mxu0
      %v4371 = vadd.f32 0.0, %v4370
      %v4372 = vpop.f32.mrf.mxu0
      %v4373 = vadd.f32 0.0, %v4372
      %4374 = vmatmul.bf16.gmra.mxu0 %v4251
      %v4375 = vpop.f32.mrf.mxu0
      %v4376 = vadd.f32 0.0, %v4375
      %v4377 = vpop.f32.mrf.mxu0
      %v4378 = vadd.f32 0.0, %v4377
      %4379 = vmatmul.bf16.gmra.mxu0 %v4254
      %v4380 = vpop.f32.mrf.mxu0
      %v4381 = vadd.f32 0.0, %v4380
      %v4382 = vpop.f32.mrf.mxu0
      %v4383 = vadd.f32 0.0, %v4382
      %4384 = vmatmul.bf16.gmra.mxu0 %v4257
      %v4385 = vpop.f32.mrf.mxu0
      %v4386 = vadd.f32 0.0, %v4385
      %v4387 = vpop.f32.mrf.mxu0
      %v4388 = vadd.f32 0.0, %v4387
      %4389 = vmatmul.bf16.gmra.mxu0 %v4260
      %v4390 = vpop.f32.mrf.mxu0
      %v4391 = vadd.f32 0.0, %v4390
      %v4392 = vpop.f32.mrf.mxu0
      %v4393 = vadd.f32 0.0, %v4392
      %4394 = vmatmul.bf16.gmra.mxu0 %v4263
      %v4395 = vpop.f32.mrf.mxu0
      %v4396 = vadd.f32 0.0, %v4395
      %v4397 = vpop.f32.mrf.mxu0
      %v4398 = vadd.f32 0.0, %v4397
      %4399 = vmatmul.bf16.gmra.mxu0 %v4266
      %v4400 = vpop.f32.mrf.mxu0
      %v4401 = vadd.f32 0.0, %v4400
      %v4402 = vpop.f32.mrf.mxu0
      %v4403 = vadd.f32 0.0, %v4402
      %4404 = vdwg.mxu0
      %4405 = vmatpush.bf16.xpose.msra.mxu0 %v4314
      %4406 = vmatpush.bf16.xpose.msra.mxu0 %v4311
      %4407 = vmatpush.bf16.xpose.msra.mxu0 %v4308
      %4408 = vmatpush.bf16.xpose.msra.mxu0 %v4305
      %4409 = vmatpush.bf16.xpose.msra.mxu0 %v4302
      %4410 = vmatpush.bf16.xpose.msra.mxu0 %v4299
      %4411 = vmatpush.bf16.xpose.msra.mxu0 %v4296
      %4412 = vmatpush.bf16.xpose.msra.mxu0 %v4293
      %4413 = vmatmul.bf16.gmra.mxu0 %v4221
      %v4414 = vpop.f32.mrf.mxu0
      %v4415 = vadd.f32 0.0, %v4414
      %v4416 = vpop.f32.mrf.mxu0
      %v4417 = vadd.f32 0.0, %v4416
      %4418 = vmatmul.bf16.gmra.mxu0 %v4224
      %v4419 = vpop.f32.mrf.mxu0
      %v4420 = vadd.f32 0.0, %v4419
      %v4421 = vpop.f32.mrf.mxu0
      %v4422 = vadd.f32 0.0, %v4421
      %4423 = vmatmul.bf16.gmra.mxu0 %v4227
      %v4424 = vpop.f32.mrf.mxu0
      %v4425 = vadd.f32 0.0, %v4424
      %v4426 = vpop.f32.mrf.mxu0
      %v4427 = vadd.f32 0.0, %v4426
      %4428 = vmatmul.bf16.gmra.mxu0 %v4230
      %v4429 = vpop.f32.mrf.mxu0
      %v4430 = vadd.f32 0.0, %v4429
      %v4431 = vpop.f32.mrf.mxu0
      %v4432 = vadd.f32 0.0, %v4431
      %4433 = vmatmul.bf16.gmra.mxu0 %v4233
      %v4434 = vpop.f32.mrf.mxu0
      %v4435 = vadd.f32 0.0, %v4434
      %v4436 = vpop.f32.mrf.mxu0
      %v4437 = vadd.f32 0.0, %v4436
      %4438 = vmatmul.bf16.gmra.mxu0 %v4236
      %v4439 = vpop.f32.mrf.mxu0
      %v4440 = vadd.f32 0.0, %v4439
      %v4441 = vpop.f32.mrf.mxu0
      %v4442 = vadd.f32 0.0, %v4441
      %4443 = vmatmul.bf16.gmra.mxu0 %v4239
      %v4444 = vpop.f32.mrf.mxu0
      %v4445 = vadd.f32 0.0, %v4444
      %v4446 = vpop.f32.mrf.mxu0
      %v4447 = vadd.f32 0.0, %v4446
      %4448 = vmatmul.bf16.gmra.mxu0 %v4242
      %v4449 = vpop.f32.mrf.mxu0
      %v4450 = vadd.f32 0.0, %v4449
      %v4451 = vpop.f32.mrf.mxu0
      %v4452 = vadd.f32 0.0, %v4451
      %4453 = vmatmul.bf16.gmra.mxu0 %v4245
      %v4454 = vpop.f32.mrf.mxu0
      %v4455 = vadd.f32 0.0, %v4454
      %v4456 = vpop.f32.mrf.mxu0
      %v4457 = vadd.f32 0.0, %v4456
      %4458 = vmatmul.bf16.gmra.mxu0 %v4248
      %v4459 = vpop.f32.mrf.mxu0
      %v4460 = vadd.f32 0.0, %v4459
      %v4461 = vpop.f32.mrf.mxu0
      %v4462 = vadd.f32 0.0, %v4461
      %4463 = vmatmul.bf16.gmra.mxu0 %v4251
      %v4464 = vpop.f32.mrf.mxu0
      %v4465 = vadd.f32 0.0, %v4464
      %v4466 = vpop.f32.mrf.mxu0
      %v4467 = vadd.f32 0.0, %v4466
      %4468 = vmatmul.bf16.gmra.mxu0 %v4254
      %v4469 = vpop.f32.mrf.mxu0
      %v4470 = vadd.f32 0.0, %v4469
      %v4471 = vpop.f32.mrf.mxu0
      %v4472 = vadd.f32 0.0, %v4471
      %4473 = vmatmul.bf16.gmra.mxu0 %v4257
      %v4474 = vpop.f32.mrf.mxu0
      %v4475 = vadd.f32 0.0, %v4474
      %v4476 = vpop.f32.mrf.mxu0
      %v4477 = vadd.f32 0.0, %v4476
      %4478 = vmatmul.bf16.gmra.mxu0 %v4260
      %v4479 = vpop.f32.mrf.mxu0
      %v4480 = vadd.f32 0.0, %v4479
      %v4481 = vpop.f32.mrf.mxu0
      %v4482 = vadd.f32 0.0, %v4481
      %4483 = vmatmul.bf16.gmra.mxu0 %v4263
      %v4484 = vpop.f32.mrf.mxu0
      %v4485 = vadd.f32 0.0, %v4484
      %v4486 = vpop.f32.mrf.mxu0
      %v4487 = vadd.f32 0.0, %v4486
      %4488 = vmatmul.bf16.gmra.mxu0 %v4266
      %v4489 = vpop.f32.mrf.mxu0
      %v4490 = vadd.f32 0.0, %v4489
      %v4491 = vpop.f32.mrf.mxu0
      %v4492 = vadd.f32 0.0, %v4491
      %4493 = vdwg.mxu0
      %v4494 = vmax.f32 %v4326, %v4415
      %4495 = vmax.xlane.f32.xlu0 %v4494
      %v4496 = vpop.xlane.xlu0 %4495
      %v4497 = vmax.f32 %v4328, %v4417
      %4498 = vmax.xlane.f32.xlu0 %v4497
      %v4499 = vpop.xlane.xlu0 %4498
      %v4500 = vmax.f32 %v4331, %v4420
      %4501 = vmax.xlane.f32.xlu0 %v4500
      %v4502 = vpop.xlane.xlu0 %4501
      %v4503 = vmax.f32 %v4333, %v4422
      %4504 = vmax.xlane.f32.xlu0 %v4503
      %v4505 = vpop.xlane.xlu0 %4504
      %v4506 = vmax.f32 %v4336, %v4425
      %4507 = vmax.xlane.f32.xlu0 %v4506
      %v4508 = vpop.xlane.xlu0 %4507
      %v4509 = vmax.f32 %v4338, %v4427
      %4510 = vmax.xlane.f32.xlu0 %v4509
      %v4511 = vpop.xlane.xlu0 %4510
      %v4512 = vmax.f32 %v4341, %v4430
      %4513 = vmax.xlane.f32.xlu0 %v4512
      %v4514 = vpop.xlane.xlu0 %4513
      %v4515 = vmax.f32 %v4343, %v4432
      %4516 = vmax.xlane.f32.xlu0 %v4515
      %v4517 = vpop.xlane.xlu0 %4516
      %v4518 = vmax.f32 %v4346, %v4435
      %4519 = vmax.xlane.f32.xlu0 %v4518
      %v4520 = vpop.xlane.xlu0 %4519
      %v4521 = vmax.f32 %v4348, %v4437
      %4522 = vmax.xlane.f32.xlu0 %v4521
      %v4523 = vpop.xlane.xlu0 %4522
      %v4524 = vmax.f32 %v4351, %v4440
      %4525 = vmax.xlane.f32.xlu0 %v4524
      %v4526 = vpop.xlane.xlu0 %4525
      %v4527 = vmax.f32 %v4353, %v4442
      %4528 = vmax.xlane.f32.xlu0 %v4527
      %v4529 = vpop.xlane.xlu0 %4528
      %v4530 = vmax.f32 %v4356, %v4445
      %4531 = vmax.xlane.f32.xlu0 %v4530
      %v4532 = vpop.xlane.xlu0 %4531
      %v4533 = vmax.f32 %v4358, %v4447
      %4534 = vmax.xlane.f32.xlu0 %v4533
      %v4535 = vpop.xlane.xlu0 %4534
      %v4536 = vmax.f32 %v4361, %v4450
      %4537 = vmax.xlane.f32.xlu0 %v4536
      %v4538 = vpop.xlane.xlu0 %4537
      %v4539 = vmax.f32 %v4363, %v4452
      %4540 = vmax.xlane.f32.xlu0 %v4539
      %v4541 = vpop.xlane.xlu0 %4540
      %v4542 = vmax.f32 %v4366, %v4455
      %4543 = vmax.xlane.f32.xlu0 %v4542
      %v4544 = vpop.xlane.xlu0 %4543
      %v4545 = vmax.f32 %v4368, %v4457
      %4546 = vmax.xlane.f32.xlu0 %v4545
      %v4547 = vpop.xlane.xlu0 %4546
      %v4548 = vmax.f32 %v4371, %v4460
      %4549 = vmax.xlane.f32.xlu0 %v4548
      %v4550 = vpop.xlane.xlu0 %4549
      %v4551 = vmax.f32 %v4373, %v4462
      %4552 = vmax.xlane.f32.xlu0 %v4551
      %v4553 = vpop.xlane.xlu0 %4552
      %v4554 = vmax.f32 %v4376, %v4465
      %4555 = vmax.xlane.f32.xlu0 %v4554
      %v4556 = vpop.xlane.xlu0 %4555
      %v4557 = vmax.f32 %v4378, %v4467
      %4558 = vmax.xlane.f32.xlu0 %v4557
      %v4559 = vpop.xlane.xlu0 %4558
      %v4560 = vmax.f32 %v4381, %v4470
      %4561 = vmax.xlane.f32.xlu0 %v4560
      %v4562 = vpop.xlane.xlu0 %4561
      %v4563 = vmax.f32 %v4383, %v4472
      %4564 = vmax.xlane.f32.xlu0 %v4563
      %v4565 = vpop.xlane.xlu0 %4564
      %v4566 = vmax.f32 %v4386, %v4475
      %4567 = vmax.xlane.f32.xlu0 %v4566
      %v4568 = vpop.xlane.xlu0 %4567
      %v4569 = vmax.f32 %v4388, %v4477
      %4570 = vmax.xlane.f32.xlu0 %v4569
      %v4571 = vpop.xlane.xlu0 %4570
      %v4572 = vmax.f32 %v4391, %v4480
      %4573 = vmax.xlane.f32.xlu0 %v4572
      %v4574 = vpop.xlane.xlu0 %4573
      %v4575 = vmax.f32 %v4393, %v4482
      %4576 = vmax.xlane.f32.xlu0 %v4575
      %v4577 = vpop.xlane.xlu0 %4576
      %v4578 = vmax.f32 %v4396, %v4485
      %4579 = vmax.xlane.f32.xlu0 %v4578
      %v4580 = vpop.xlane.xlu0 %4579
      %v4581 = vmax.f32 %v4398, %v4487
      %4582 = vmax.xlane.f32.xlu0 %v4581
      %v4583 = vpop.xlane.xlu0 %4582
      %v4584 = vmax.f32 %v4401, %v4490
      %4585 = vmax.xlane.f32.xlu0 %v4584
      %v4586 = vpop.xlane.xlu0 %4585
      %v4587 = vmax.f32 %v4403, %v4492
      %4588 = vmax.xlane.f32.xlu0 %v4587
      %v4589 = vpop.xlane.xlu0 %4588
      %v4590 = vsub.f32 %v4326, %v4496
      %v4591 = vsub.f32 %v4415, %v4496
      %v4592 = vsub.f32 %v4328, %v4499
      %v4593 = vsub.f32 %v4417, %v4499
      %v4594 = vsub.f32 %v4331, %v4502
      %v4595 = vsub.f32 %v4420, %v4502
      %v4596 = vsub.f32 %v4333, %v4505
      %v4597 = vsub.f32 %v4422, %v4505
      %v4598 = vsub.f32 %v4336, %v4508
      %v4599 = vsub.f32 %v4425, %v4508
      %v4600 = vsub.f32 %v4338, %v4511
      %v4601 = vsub.f32 %v4427, %v4511
      %v4602 = vsub.f32 %v4341, %v4514
      %v4603 = vsub.f32 %v4430, %v4514
      %v4604 = vsub.f32 %v4343, %v4517
      %v4605 = vsub.f32 %v4432, %v4517
      %v4606 = vsub.f32 %v4346, %v4520
      %v4607 = vsub.f32 %v4435, %v4520
      %v4608 = vsub.f32 %v4348, %v4523
      %v4609 = vsub.f32 %v4437, %v4523
      %v4610 = vsub.f32 %v4351, %v4526
      %v4611 = vsub.f32 %v4440, %v4526
      %v4612 = vsub.f32 %v4353, %v4529
      %v4613 = vsub.f32 %v4442, %v4529
      %v4614 = vsub.f32 %v4356, %v4532
      %v4615 = vsub.f32 %v4445, %v4532
      %v4616 = vsub.f32 %v4358, %v4535
      %v4617 = vsub.f32 %v4447, %v4535
      %v4618 = vsub.f32 %v4361, %v4538
      %v4619 = vsub.f32 %v4450, %v4538
      %v4620 = vsub.f32 %v4363, %v4541
      %v4621 = vsub.f32 %v4452, %v4541
      %v4622 = vsub.f32 %v4366, %v4544
      %v4623 = vsub.f32 %v4455, %v4544
      %v4624 = vsub.f32 %v4368, %v4547
      %v4625 = vsub.f32 %v4457, %v4547
      %v4626 = vsub.f32 %v4371, %v4550
      %v4627 = vsub.f32 %v4460, %v4550
      %v4628 = vsub.f32 %v4373, %v4553
      %v4629 = vsub.f32 %v4462, %v4553
      %v4630 = vsub.f32 %v4376, %v4556
      %v4631 = vsub.f32 %v4465, %v4556
      %v4632 = vsub.f32 %v4378, %v4559
      %v4633 = vsub.f32 %v4467, %v4559
      %v4634 = vsub.f32 %v4381, %v4562
      %v4635 = vsub.f32 %v4470, %v4562
      %v4636 = vsub.f32 %v4383, %v4565
      %v4637 = vsub.f32 %v4472, %v4565
      %v4638 = vsub.f32 %v4386, %v4568
      %v4639 = vsub.f32 %v4475, %v4568
      %v4640 = vsub.f32 %v4388, %v4571
      %v4641 = vsub.f32 %v4477, %v4571
      %v4642 = vsub.f32 %v4391, %v4574
      %v4643 = vsub.f32 %v4480, %v4574
      %v4644 = vsub.f32 %v4393, %v4577
      %v4645 = vsub.f32 %v4482, %v4577
      %v4646 = vsub.f32 %v4396, %v4580
      %v4647 = vsub.f32 %v4485, %v4580
      %v4648 = vsub.f32 %v4398, %v4583
      %v4649 = vsub.f32 %v4487, %v4583
      %v4650 = vsub.f32 %v4401, %v4586
      %v4651 = vsub.f32 %v4490, %v4586
      %v4652 = vsub.f32 %v4403, %v4589
      %v4653 = vsub.f32 %v4492, %v4589
      %v4654 = vmul.f32 %v4590, 1.442695
      %v4655 = vpow.pop %v4654
      %v4656 = vmul.f32 %v4591, 1.442695
      %v4657 = vpow.pop %v4656
      %v4658 = vmul.f32 %v4592, 1.442695
      %v4659 = vpow.pop %v4658
      %v4660 = vmul.f32 %v4593, 1.442695
      %v4661 = vpow.pop %v4660
      %v4662 = vmul.f32 %v4594, 1.442695
      %v4663 = vpow.pop %v4662
      %v4664 = vmul.f32 %v4595, 1.442695
      %v4665 = vpow.pop %v4664
      %v4666 = vmul.f32 %v4596, 1.442695
      %v4667 = vpow.pop %v4666
      %v4668 = vmul.f32 %v4597, 1.442695
      %v4669 = vpow.pop %v4668
      %v4670 = vmul.f32 %v4598, 1.442695
      %v4671 = vpow.pop %v4670
      %v4672 = vmul.f32 %v4599, 1.442695
      %v4673 = vpow.pop %v4672
      %v4674 = vmul.f32 %v4600, 1.442695
      %v4675 = vpow.pop %v4674
      %v4676 = vmul.f32 %v4601, 1.442695
      %v4677 = vpow.pop %v4676
      %v4678 = vmul.f32 %v4602, 1.442695
      %v4679 = vpow.pop %v4678
      %v4680 = vmul.f32 %v4603, 1.442695
      %v4681 = vpow.pop %v4680
      %v4682 = vmul.f32 %v4604, 1.442695
      %v4683 = vpow.pop %v4682
      %v4684 = vmul.f32 %v4605, 1.442695
      %v4685 = vpow.pop %v4684
      %v4686 = vmul.f32 %v4606, 1.442695
      %v4687 = vpow.pop %v4686
      %v4688 = vmul.f32 %v4607, 1.442695
      %v4689 = vpow.pop %v4688
      %v4690 = vmul.f32 %v4608, 1.442695
      %v4691 = vpow.pop %v4690
      %v4692 = vmul.f32 %v4609, 1.442695
      %v4693 = vpow.pop %v4692
      %v4694 = vmul.f32 %v4610, 1.442695
      %v4695 = vpow.pop %v4694
      %v4696 = vmul.f32 %v4611, 1.442695
      %v4697 = vpow.pop %v4696
      %v4698 = vmul.f32 %v4612, 1.442695
      %v4699 = vpow.pop %v4698
      %v4700 = vmul.f32 %v4613, 1.442695
      %v4701 = vpow.pop %v4700
      %v4702 = vmul.f32 %v4614, 1.442695
      %v4703 = vpow.pop %v4702
      %v4704 = vmul.f32 %v4615, 1.442695
      %v4705 = vpow.pop %v4704
      %v4706 = vmul.f32 %v4616, 1.442695
      %v4707 = vpow.pop %v4706
      %v4708 = vmul.f32 %v4617, 1.442695
      %v4709 = vpow.pop %v4708
      %v4710 = vmul.f32 %v4618, 1.442695
      %v4711 = vpow.pop %v4710
      %v4712 = vmul.f32 %v4619, 1.442695
      %v4713 = vpow.pop %v4712
      %v4714 = vmul.f32 %v4620, 1.442695
      %v4715 = vpow.pop %v4714
      %v4716 = vmul.f32 %v4621, 1.442695
      %v4717 = vpow.pop %v4716
      %v4718 = vmul.f32 %v4622, 1.442695
      %v4719 = vpow.pop %v4718
      %v4720 = vmul.f32 %v4623, 1.442695
      %v4721 = vpow.pop %v4720
      %v4722 = vmul.f32 %v4624, 1.442695
      %v4723 = vpow.pop %v4722
      %v4724 = vmul.f32 %v4625, 1.442695
      %v4725 = vpow.pop %v4724
      %v4726 = vmul.f32 %v4626, 1.442695
      %v4727 = vpow.pop %v4726
      %v4728 = vmul.f32 %v4627, 1.442695
      %v4729 = vpow.pop %v4728
      %v4730 = vmul.f32 %v4628, 1.442695
      %v4731 = vpow.pop %v4730
      %v4732 = vmul.f32 %v4629, 1.442695
      %v4733 = vpow.pop %v4732
      %v4734 = vmul.f32 %v4630, 1.442695
      %v4735 = vpow.pop %v4734
      %v4736 = vmul.f32 %v4631, 1.442695
      %v4737 = vpow.pop %v4736
      %v4738 = vmul.f32 %v4632, 1.442695
      %v4739 = vpow.pop %v4738
      %v4740 = vmul.f32 %v4633, 1.442695
      %v4741 = vpow.pop %v4740
      %v4742 = vmul.f32 %v4634, 1.442695
      %v4743 = vpow.pop %v4742
      %v4744 = vmul.f32 %v4635, 1.442695
      %v4745 = vpow.pop %v4744
      %v4746 = vmul.f32 %v4636, 1.442695
      %v4747 = vpow.pop %v4746
      %v4748 = vmul.f32 %v4637, 1.442695
      %v4749 = vpow.pop %v4748
      %v4750 = vmul.f32 %v4638, 1.442695
      %v4751 = vpow.pop %v4750
      %v4752 = vmul.f32 %v4639, 1.442695
      %v4753 = vpow.pop %v4752
      %v4754 = vmul.f32 %v4640, 1.442695
      %v4755 = vpow.pop %v4754
      %v4756 = vmul.f32 %v4641, 1.442695
      %v4757 = vpow.pop %v4756
      %v4758 = vmul.f32 %v4642, 1.442695
      %v4759 = vpow.pop %v4758
      %v4760 = vmul.f32 %v4643, 1.442695
      %v4761 = vpow.pop %v4760
      %v4762 = vmul.f32 %v4644, 1.442695
      %v4763 = vpow.pop %v4762
      %v4764 = vmul.f32 %v4645, 1.442695
      %v4765 = vpow.pop %v4764
      %v4766 = vmul.f32 %v4646, 1.442695
      %v4767 = vpow.pop %v4766
      %v4768 = vmul.f32 %v4647, 1.442695
      %v4769 = vpow.pop %v4768
      %v4770 = vmul.f32 %v4648, 1.442695
      %v4771 = vpow.pop %v4770
      %v4772 = vmul.f32 %v4649, 1.442695
      %v4773 = vpow.pop %v4772
      %v4774 = vmul.f32 %v4650, 1.442695
      %v4775 = vpow.pop %v4774
      %v4776 = vmul.f32 %v4651, 1.442695
      %v4777 = vpow.pop %v4776
      %v4778 = vmul.f32 %v4652, 1.442695
      %v4779 = vpow.pop %v4778
      %v4780 = vmul.f32 %v4653, 1.442695
      %v4781 = vpow.pop %v4780
      %v4782 = vadd.f32 %v4655, %v4657
      %4783 = vadd.xlane.f32.xlu0 %v4782
      %v4784 = vpop.xlane.xlu0 %4783
      %v4785 = vadd.f32 %v4659, %v4661
      %4786 = vadd.xlane.f32.xlu0 %v4785
      %v4787 = vpop.xlane.xlu0 %4786
      %v4788 = vadd.f32 %v4663, %v4665
      %4789 = vadd.xlane.f32.xlu0 %v4788
      %v4790 = vpop.xlane.xlu0 %4789
      %v4791 = vadd.f32 %v4667, %v4669
      %4792 = vadd.xlane.f32.xlu0 %v4791
      %v4793 = vpop.xlane.xlu0 %4792
      %v4794 = vadd.f32 %v4671, %v4673
      %4795 = vadd.xlane.f32.xlu0 %v4794
      %v4796 = vpop.xlane.xlu0 %4795
      %v4797 = vadd.f32 %v4675, %v4677
      %4798 = vadd.xlane.f32.xlu0 %v4797
      %v4799 = vpop.xlane.xlu0 %4798
      %v4800 = vadd.f32 %v4679, %v4681
      %4801 = vadd.xlane.f32.xlu0 %v4800
      %v4802 = vpop.xlane.xlu0 %4801
      %v4803 = vadd.f32 %v4683, %v4685
      %4804 = vadd.xlane.f32.xlu0 %v4803
      %v4805 = vpop.xlane.xlu0 %4804
      %v4806 = vadd.f32 %v4687, %v4689
      %4807 = vadd.xlane.f32.xlu0 %v4806
      %v4808 = vpop.xlane.xlu0 %4807
      %v4809 = vadd.f32 %v4691, %v4693
      %4810 = vadd.xlane.f32.xlu0 %v4809
      %v4811 = vpop.xlane.xlu0 %4810
      %v4812 = vadd.f32 %v4695, %v4697
      %4813 = vadd.xlane.f32.xlu0 %v4812
      %v4814 = vpop.xlane.xlu0 %4813
      %v4815 = vadd.f32 %v4699, %v4701
      %4816 = vadd.xlane.f32.xlu0 %v4815
      %v4817 = vpop.xlane.xlu0 %4816
      %v4818 = vadd.f32 %v4703, %v4705
      %4819 = vadd.xlane.f32.xlu0 %v4818
      %v4820 = vpop.xlane.xlu0 %4819
      %v4821 = vadd.f32 %v4707, %v4709
      %4822 = vadd.xlane.f32.xlu0 %v4821
      %v4823 = vpop.xlane.xlu0 %4822
      %v4824 = vadd.f32 %v4711, %v4713
      %4825 = vadd.xlane.f32.xlu0 %v4824
      %v4826 = vpop.xlane.xlu0 %4825
      %v4827 = vadd.f32 %v4715, %v4717
      %4828 = vadd.xlane.f32.xlu0 %v4827
      %v4829 = vpop.xlane.xlu0 %4828
      %v4830 = vadd.f32 %v4719, %v4721
      %4831 = vadd.xlane.f32.xlu0 %v4830
      %v4832 = vpop.xlane.xlu0 %4831
      %v4833 = vadd.f32 %v4723, %v4725
      %4834 = vadd.xlane.f32.xlu0 %v4833
      %v4835 = vpop.xlane.xlu0 %4834
      %v4836 = vadd.f32 %v4727, %v4729
      %4837 = vadd.xlane.f32.xlu0 %v4836
      %v4838 = vpop.xlane.xlu0 %4837
      %v4839 = vadd.f32 %v4731, %v4733
      %4840 = vadd.xlane.f32.xlu0 %v4839
      %v4841 = vpop.xlane.xlu0 %4840
      %v4842 = vadd.f32 %v4735, %v4737
      %4843 = vadd.xlane.f32.xlu0 %v4842
      %v4844 = vpop.xlane.xlu0 %4843
      %v4845 = vadd.f32 %v4739, %v4741
      %4846 = vadd.xlane.f32.xlu0 %v4845
      %v4847 = vpop.xlane.xlu0 %4846
      %v4848 = vadd.f32 %v4743, %v4745
      %4849 = vadd.xlane.f32.xlu0 %v4848
      %v4850 = vpop.xlane.xlu0 %4849
      %v4851 = vadd.f32 %v4747, %v4749
      %4852 = vadd.xlane.f32.xlu0 %v4851
      %v4853 = vpop.xlane.xlu0 %4852
      %v4854 = vadd.f32 %v4751, %v4753
      %4855 = vadd.xlane.f32.xlu0 %v4854
      %v4856 = vpop.xlane.xlu0 %4855
      %v4857 = vadd.f32 %v4755, %v4757
      %4858 = vadd.xlane.f32.xlu0 %v4857
      %v4859 = vpop.xlane.xlu0 %4858
      %v4860 = vadd.f32 %v4759, %v4761
      %4861 = vadd.xlane.f32.xlu0 %v4860
      %v4862 = vpop.xlane.xlu0 %4861
      %v4863 = vadd.f32 %v4763, %v4765
      %4864 = vadd.xlane.f32.xlu0 %v4863
      %v4865 = vpop.xlane.xlu0 %4864
      %v4866 = vadd.f32 %v4767, %v4769
      %4867 = vadd.xlane.f32.xlu0 %v4866
      %v4868 = vpop.xlane.xlu0 %4867
      %v4869 = vadd.f32 %v4771, %v4773
      %4870 = vadd.xlane.f32.xlu0 %v4869
      %v4871 = vpop.xlane.xlu0 %4870
      %v4872 = vadd.f32 %v4775, %v4777
      %4873 = vadd.xlane.f32.xlu0 %v4872
      %v4874 = vpop.xlane.xlu0 %4873
      %v4875 = vadd.f32 %v4779, %v4781
      %4876 = vadd.xlane.f32.xlu0 %v4875
      %v4877 = vpop.xlane.xlu0 %4876
      %v4878 = vrcp.pop %v4784
      %v4879 = vrcp.pop %v4787
      %v4880 = vrcp.pop %v4790
      %v4881 = vrcp.pop %v4793
      %v4882 = vrcp.pop %v4796
      %v4883 = vrcp.pop %v4799
      %v4884 = vrcp.pop %v4802
      %v4885 = vrcp.pop %v4805
      %v4886 = vrcp.pop %v4808
      %v4887 = vrcp.pop %v4811
      %v4888 = vrcp.pop %v4814
      %v4889 = vrcp.pop %v4817
      %v4890 = vrcp.pop %v4820
      %v4891 = vrcp.pop %v4823
      %v4892 = vrcp.pop %v4826
      %v4893 = vrcp.pop %v4829
      %v4894 = vrcp.pop %v4832
      %v4895 = vrcp.pop %v4835
      %v4896 = vrcp.pop %v4838
      %v4897 = vrcp.pop %v4841
      %v4898 = vrcp.pop %v4844
      %v4899 = vrcp.pop %v4847
      %v4900 = vrcp.pop %v4850
      %v4901 = vrcp.pop %v4853
      %v4902 = vrcp.pop %v4856
      %v4903 = vrcp.pop %v4859
      %v4904 = vrcp.pop %v4862
      %v4905 = vrcp.pop %v4865
      %v4906 = vrcp.pop %v4868
      %v4907 = vrcp.pop %v4871
      %v4908 = vrcp.pop %v4874
      %v4909 = vrcp.pop %v4877
      %v4910 = vmul.f32 %v4655, %v4878
      %v4911 = vmul.f32 %v4657, %v4878
      %v4912 = vmul.f32 %v4659, %v4879
      %v4913 = vmul.f32 %v4661, %v4879
      %v4914 = vmul.f32 %v4663, %v4880
      %v4915 = vmul.f32 %v4665, %v4880
      %v4916 = vmul.f32 %v4667, %v4881
      %v4917 = vmul.f32 %v4669, %v4881
      %v4918 = vmul.f32 %v4671, %v4882
      %v4919 = vmul.f32 %v4673, %v4882
      %v4920 = vmul.f32 %v4675, %v4883
      %v4921 = vmul.f32 %v4677, %v4883
      %v4922 = vmul.f32 %v4679, %v4884
      %v4923 = vmul.f32 %v4681, %v4884
      %v4924 = vmul.f32 %v4683, %v4885
      %v4925 = vmul.f32 %v4685, %v4885
      %v4926 = vmul.f32 %v4687, %v4886
      %v4927 = vmul.f32 %v4689, %v4886
      %v4928 = vmul.f32 %v4691, %v4887
      %v4929 = vmul.f32 %v4693, %v4887
      %v4930 = vmul.f32 %v4695, %v4888
      %v4931 = vmul.f32 %v4697, %v4888
      %v4932 = vmul.f32 %v4699, %v4889
      %v4933 = vmul.f32 %v4701, %v4889
      %v4934 = vmul.f32 %v4703, %v4890
      %v4935 = vmul.f32 %v4705, %v4890
      %v4936 = vmul.f32 %v4707, %v4891
      %v4937 = vmul.f32 %v4709, %v4891
      %v4938 = vmul.f32 %v4711, %v4892
      %v4939 = vmul.f32 %v4713, %v4892
      %v4940 = vmul.f32 %v4715, %v4893
      %v4941 = vmul.f32 %v4717, %v4893
      %v4942 = vmul.f32 %v4719, %v4894
      %v4943 = vmul.f32 %v4721, %v4894
      %v4944 = vmul.f32 %v4723, %v4895
      %v4945 = vmul.f32 %v4725, %v4895
      %v4946 = vmul.f32 %v4727, %v4896
      %v4947 = vmul.f32 %v4729, %v4896
      %v4948 = vmul.f32 %v4731, %v4897
      %v4949 = vmul.f32 %v4733, %v4897
      %v4950 = vmul.f32 %v4735, %v4898
      %v4951 = vmul.f32 %v4737, %v4898
      %v4952 = vmul.f32 %v4739, %v4899
      %v4953 = vmul.f32 %v4741, %v4899
      %v4954 = vmul.f32 %v4743, %v4900
      %v4955 = vmul.f32 %v4745, %v4900
      %v4956 = vmul.f32 %v4747, %v4901
      %v4957 = vmul.f32 %v4749, %v4901
      %v4958 = vmul.f32 %v4751, %v4902
      %v4959 = vmul.f32 %v4753, %v4902
      %v4960 = vmul.f32 %v4755, %v4903
      %v4961 = vmul.f32 %v4757, %v4903
      %v4962 = vmul.f32 %v4759, %v4904
      %v4963 = vmul.f32 %v4761, %v4904
      %v4964 = vmul.f32 %v4763, %v4905
      %v4965 = vmul.f32 %v4765, %v4905
      %v4966 = vmul.f32 %v4767, %v4906
      %v4967 = vmul.f32 %v4769, %v4906
      %v4968 = vmul.f32 %v4771, %v4907
      %v4969 = vmul.f32 %v4773, %v4907
      %v4970 = vmul.f32 %v4775, %v4908
      %v4971 = vmul.f32 %v4777, %v4908
      %v4972 = vmul.f32 %v4779, %v4909
      %v4973 = vmul.f32 %v4781, %v4909
      %v4974 = vpack.c.bf16 %v4912, %v4910
      %v4975 = vpack.c.bf16 %v4913, %v4911
      %v4976 = vpack.c.bf16 %v4916, %v4914
      %v4977 = vpack.c.bf16 %v4917, %v4915
      %v4978 = vpack.c.bf16 %v4920, %v4918
      %v4979 = vpack.c.bf16 %v4921, %v4919
      %v4980 = vpack.c.bf16 %v4924, %v4922
      %v4981 = vpack.c.bf16 %v4925, %v4923
      %v4982 = vpack.c.bf16 %v4928, %v4926
      %v4983 = vpack.c.bf16 %v4929, %v4927
      %v4984 = vpack.c.bf16 %v4932, %v4930
      %v4985 = vpack.c.bf16 %v4933, %v4931
      %v4986 = vpack.c.bf16 %v4936, %v4934
      %v4987 = vpack.c.bf16 %v4937, %v4935
      %v4988 = vpack.c.bf16 %v4940, %v4938
      %v4989 = vpack.c.bf16 %v4941, %v4939
      %v4990 = vpack.c.bf16 %v4944, %v4942
      %v4991 = vpack.c.bf16 %v4945, %v4943
      %v4992 = vpack.c.bf16 %v4948, %v4946
      %v4993 = vpack.c.bf16 %v4949, %v4947
      %v4994 = vpack.c.bf16 %v4952, %v4950
      %v4995 = vpack.c.bf16 %v4953, %v4951
      %v4996 = vpack.c.bf16 %v4956, %v4954
      %v4997 = vpack.c.bf16 %v4957, %v4955
      %v4998 = vpack.c.bf16 %v4960, %v4958
      %v4999 = vpack.c.bf16 %v4961, %v4959
      %v5000 = vpack.c.bf16 %v4964, %v4962
      %v5001 = vpack.c.bf16 %v4965, %v4963
      %v5002 = vpack.c.bf16 %v4968, %v4966
      %v5003 = vpack.c.bf16 %v4969, %v4967
      %v5004 = vpack.c.bf16 %v4972, %v4970
      %v5005 = vpack.c.bf16 %v4973, %v4971
      %5006 = vrot.lane.b32.xlu0 %v3946, 96
      %v5007 = vpop.permute.xlu0 %5006
      %5008 = vrot.lane.b32.xlu0 %v3947, 96
      %v5009 = vpop.permute.xlu0 %5008
      %5010 = vrot.lane.b32.xlu0 %v3948, 96
      %v5011 = vpop.permute.xlu0 %5010
      %5012 = vrot.lane.b32.xlu0 %v3949, 96
      %v5013 = vpop.permute.xlu0 %5012
      %5014 = vrot.lane.b32.xlu0 %v3950, 96
      %v5015 = vpop.permute.xlu0 %5014
      %5016 = vrot.lane.b32.xlu0 %v3951, 96
      %v5017 = vpop.permute.xlu0 %5016
      %5018 = vrot.lane.b32.xlu0 %v3952, 96
      %v5019 = vpop.permute.xlu0 %5018
      %5020 = vrot.lane.b32.xlu0 %v3953, 96
      %v5021 = vpop.permute.xlu0 %5020
      %5022 = vrot.lane.b32.xlu0 %v3954, 96
      %v5023 = vpop.permute.xlu0 %5022
      %5024 = vrot.lane.b32.xlu0 %v3955, 96
      %v5025 = vpop.permute.xlu0 %5024
      %5026 = vrot.lane.b32.xlu0 %v3956, 96
      %v5027 = vpop.permute.xlu0 %5026
      %5028 = vrot.lane.b32.xlu0 %v3957, 96
      %v5029 = vpop.permute.xlu0 %5028
      %5030 = vrot.lane.b32.xlu0 %v3958, 96
      %v5031 = vpop.permute.xlu0 %5030
      %5032 = vrot.lane.b32.xlu0 %v3959, 96
      %v5033 = vpop.permute.xlu0 %5032
      %5034 = vrot.lane.b32.xlu0 %v3960, 96
      %v5035 = vpop.permute.xlu0 %5034
      %5036 = vrot.lane.b32.xlu0 %v3961, 96
      %v5037 = vpop.permute.xlu0 %5036
      %5054 = vmatpush.bf16.msra.mxu0 %v5021
      %5055 = vmatpush.bf16.msra.mxu0 %v5019
      %5056 = vmatpush.bf16.msra.mxu0 %v5017
      %5057 = vmatpush.bf16.msra.mxu0 %v5015
      %5058 = vmatpush.bf16.msra.mxu0 %v5013
      %5059 = vmatpush.bf16.msra.mxu0 %v5011
      %5060 = vmatpush.bf16.msra.mxu0 %v5009
      %5061 = vmatpush.bf16.msra.mxu0 %v5007
      %5062 = vmatmul.bf16.gmra.mxu0 %v4974
      %v5063 = vpop.f32.mrf.mxu0
      %v5064 = vadd.f32 0.0, %v5063
      %v5065 = vpop.f32.mrf.mxu0
      %v5066 = vadd.f32 0.0, %v5065
      %5067 = vmatmul.bf16.gmra.mxu0 %v4976
      %v5068 = vpop.f32.mrf.mxu0
      %v5069 = vadd.f32 0.0, %v5068
      %v5070 = vpop.f32.mrf.mxu0
      %v5071 = vadd.f32 0.0, %v5070
      %5072 = vmatmul.bf16.gmra.mxu0 %v4978
      %v5073 = vpop.f32.mrf.mxu0
      %v5074 = vadd.f32 0.0, %v5073
      %v5075 = vpop.f32.mrf.mxu0
      %v5076 = vadd.f32 0.0, %v5075
      %5077 = vmatmul.bf16.gmra.mxu0 %v4980
      %v5078 = vpop.f32.mrf.mxu0
      %v5079 = vadd.f32 0.0, %v5078
      %v5080 = vpop.f32.mrf.mxu0
      %v5081 = vadd.f32 0.0, %v5080
      %5082 = vmatmul.bf16.gmra.mxu0 %v4982
      %v5083 = vpop.f32.mrf.mxu0
      %v5084 = vadd.f32 0.0, %v5083
      %v5085 = vpop.f32.mrf.mxu0
      %v5086 = vadd.f32 0.0, %v5085
      %5087 = vmatmul.bf16.gmra.mxu0 %v4984
      %v5088 = vpop.f32.mrf.mxu0
      %v5089 = vadd.f32 0.0, %v5088
      %v5090 = vpop.f32.mrf.mxu0
      %v5091 = vadd.f32 0.0, %v5090
      %5092 = vmatmul.bf16.gmra.mxu0 %v4986
      %v5093 = vpop.f32.mrf.mxu0
      %v5094 = vadd.f32 0.0, %v5093
      %v5095 = vpop.f32.mrf.mxu0
      %v5096 = vadd.f32 0.0, %v5095
      %5097 = vmatmul.bf16.gmra.mxu0 %v4988
      %v5098 = vpop.f32.mrf.mxu0
      %v5099 = vadd.f32 0.0, %v5098
      %v5100 = vpop.f32.mrf.mxu0
      %v5101 = vadd.f32 0.0, %v5100
      %5102 = vmatmul.bf16.gmra.mxu0 %v4990
      %v5103 = vpop.f32.mrf.mxu0
      %v5104 = vadd.f32 0.0, %v5103
      %v5105 = vpop.f32.mrf.mxu0
      %v5106 = vadd.f32 0.0, %v5105
      %5107 = vmatmul.bf16.gmra.mxu0 %v4992
      %v5108 = vpop.f32.mrf.mxu0
      %v5109 = vadd.f32 0.0, %v5108
      %v5110 = vpop.f32.mrf.mxu0
      %v5111 = vadd.f32 0.0, %v5110
      %5112 = vmatmul.bf16.gmra.mxu0 %v4994
      %v5113 = vpop.f32.mrf.mxu0
      %v5114 = vadd.f32 0.0, %v5113
      %v5115 = vpop.f32.mrf.mxu0
      %v5116 = vadd.f32 0.0, %v5115
      %5117 = vmatmul.bf16.gmra.mxu0 %v4996
      %v5118 = vpop.f32.mrf.mxu0
      %v5119 = vadd.f32 0.0, %v5118
      %v5120 = vpop.f32.mrf.mxu0
      %v5121 = vadd.f32 0.0, %v5120
      %5122 = vmatmul.bf16.gmra.mxu0 %v4998
      %v5123 = vpop.f32.mrf.mxu0
      %v5124 = vadd.f32 0.0, %v5123
      %v5125 = vpop.f32.mrf.mxu0
      %v5126 = vadd.f32 0.0, %v5125
      %5127 = vmatmul.bf16.gmra.mxu0 %v5000
      %v5128 = vpop.f32.mrf.mxu0
      %v5129 = vadd.f32 0.0, %v5128
      %v5130 = vpop.f32.mrf.mxu0
      %v5131 = vadd.f32 0.0, %v5130
      %5132 = vmatmul.bf16.gmra.mxu0 %v5002
      %v5133 = vpop.f32.mrf.mxu0
      %v5134 = vadd.f32 0.0, %v5133
      %v5135 = vpop.f32.mrf.mxu0
      %v5136 = vadd.f32 0.0, %v5135
      %5137 = vmatmul.bf16.gmra.mxu0 %v5004
      %v5138 = vpop.f32.mrf.mxu0
      %v5139 = vadd.f32 0.0, %v5138
      %v5140 = vpop.f32.mrf.mxu0
      %v5141 = vadd.f32 0.0, %v5140
      %5142 = vdwg.mxu0
      %5143 = vmatpush.bf16.msra.mxu0 %v5037
      %5144 = vmatpush.bf16.msra.mxu0 %v5035
      %5145 = vmatpush.bf16.msra.mxu0 %v5033
      %5146 = vmatpush.bf16.msra.mxu0 %v5031
      %5147 = vmatpush.bf16.msra.mxu0 %v5029
      %5148 = vmatpush.bf16.msra.mxu0 %v5027
      %5149 = vmatpush.bf16.msra.mxu0 %v5025
      %5150 = vmatpush.bf16.msra.mxu0 %v5023
      %5151 = vmatmul.bf16.gmra.mxu0 %v4975
      %v5152 = vpop.f32.mrf.mxu0
      %v5153 = vadd.f32 %v5064, %v5152
      %v5154 = vpop.f32.mrf.mxu0
      %v5155 = vadd.f32 %v5066, %v5154
      %5156 = vmatmul.bf16.gmra.mxu0 %v4977
      %v5157 = vpop.f32.mrf.mxu0
      %v5158 = vadd.f32 %v5069, %v5157
      %v5159 = vpop.f32.mrf.mxu0
      %v5160 = vadd.f32 %v5071, %v5159
      %5161 = vmatmul.bf16.gmra.mxu0 %v4979
      %v5162 = vpop.f32.mrf.mxu0
      %v5163 = vadd.f32 %v5074, %v5162
      %v5164 = vpop.f32.mrf.mxu0
      %v5165 = vadd.f32 %v5076, %v5164
      %5166 = vmatmul.bf16.gmra.mxu0 %v4981
      %v5167 = vpop.f32.mrf.mxu0
      %v5168 = vadd.f32 %v5079, %v5167
      %v5169 = vpop.f32.mrf.mxu0
      %v5170 = vadd.f32 %v5081, %v5169
      %5171 = vmatmul.bf16.gmra.mxu0 %v4983
      %v5172 = vpop.f32.mrf.mxu0
      %v5173 = vadd.f32 %v5084, %v5172
      %v5174 = vpop.f32.mrf.mxu0
      %v5175 = vadd.f32 %v5086, %v5174
      %5176 = vmatmul.bf16.gmra.mxu0 %v4985
      %v5177 = vpop.f32.mrf.mxu0
      %v5178 = vadd.f32 %v5089, %v5177
      %v5179 = vpop.f32.mrf.mxu0
      %v5180 = vadd.f32 %v5091, %v5179
      %5181 = vmatmul.bf16.gmra.mxu0 %v4987
      %v5182 = vpop.f32.mrf.mxu0
      %v5183 = vadd.f32 %v5094, %v5182
      %v5184 = vpop.f32.mrf.mxu0
      %v5185 = vadd.f32 %v5096, %v5184
      %5186 = vmatmul.bf16.gmra.mxu0 %v4989
      %v5187 = vpop.f32.mrf.mxu0
      %v5188 = vadd.f32 %v5099, %v5187
      %v5189 = vpop.f32.mrf.mxu0
      %v5190 = vadd.f32 %v5101, %v5189
      %5191 = vmatmul.bf16.gmra.mxu0 %v4991
      %v5192 = vpop.f32.mrf.mxu0
      %v5193 = vadd.f32 %v5104, %v5192
      %v5194 = vpop.f32.mrf.mxu0
      %v5195 = vadd.f32 %v5106, %v5194
      %5196 = vmatmul.bf16.gmra.mxu0 %v4993
      %v5197 = vpop.f32.mrf.mxu0
      %v5198 = vadd.f32 %v5109, %v5197
      %v5199 = vpop.f32.mrf.mxu0
      %v5200 = vadd.f32 %v5111, %v5199
      %5201 = vmatmul.bf16.gmra.mxu0 %v4995
      %v5202 = vpop.f32.mrf.mxu0
      %v5203 = vadd.f32 %v5114, %v5202
      %v5204 = vpop.f32.mrf.mxu0
      %v5205 = vadd.f32 %v5116, %v5204
      %5206 = vmatmul.bf16.gmra.mxu0 %v4997
      %v5207 = vpop.f32.mrf.mxu0
      %v5208 = vadd.f32 %v5119, %v5207
      %v5209 = vpop.f32.mrf.mxu0
      %v5210 = vadd.f32 %v5121, %v5209
      %5211 = vmatmul.bf16.gmra.mxu0 %v4999
      %v5212 = vpop.f32.mrf.mxu0
      %v5213 = vadd.f32 %v5124, %v5212
      %v5214 = vpop.f32.mrf.mxu0
      %v5215 = vadd.f32 %v5126, %v5214
      %5216 = vmatmul.bf16.gmra.mxu0 %v5001
      %v5217 = vpop.f32.mrf.mxu0
      %v5218 = vadd.f32 %v5129, %v5217
      %v5219 = vpop.f32.mrf.mxu0
      %v5220 = vadd.f32 %v5131, %v5219
      %5221 = vmatmul.bf16.gmra.mxu0 %v5003
      %v5222 = vpop.f32.mrf.mxu0
      %v5223 = vadd.f32 %v5134, %v5222
      %v5224 = vpop.f32.mrf.mxu0
      %v5225 = vadd.f32 %v5136, %v5224
      %5226 = vmatmul.bf16.gmra.mxu0 %v5005
      %v5227 = vpop.f32.mrf.mxu0
      %v5228 = vadd.f32 %v5139, %v5227
      %v5229 = vpop.f32.mrf.mxu0
      %v5230 = vadd.f32 %v5141, %v5229
      %5231 = vdwg.mxu0
      %5232 = vrot.lane.b32.xlu0 %v2999, 64
      %v5233 = vpop.permute.xlu0 %5232
      %5234 = vrot.lane.b32.xlu0 %v3000, 64
      %v5235 = vpop.permute.xlu0 %5234
      %5236 = vrot.lane.b32.xlu0 %v3001, 64
      %v5237 = vpop.permute.xlu0 %5236
      %5238 = vrot.lane.b32.xlu0 %v3002, 64
      %v5239 = vpop.permute.xlu0 %5238
      %5240 = vrot.lane.b32.xlu0 %v3003, 64
      %v5241 = vpop.permute.xlu0 %5240
      %5242 = vrot.lane.b32.xlu0 %v3004, 64
      %v5243 = vpop.permute.xlu0 %5242
      %5244 = vrot.lane.b32.xlu0 %v3005, 64
      %v5245 = vpop.permute.xlu0 %5244
      %5246 = vrot.lane.b32.xlu0 %v3006, 64
      %v5247 = vpop.permute.xlu0 %5246
      %5248 = vrot.lane.b32.xlu0 %v3007, 64
      %v5249 = vpop.permute.xlu0 %5248
      %5250 = vrot.lane.b32.xlu0 %v3008, 64
      %v5251 = vpop.permute.xlu0 %5250
      %5252 = vrot.lane.b32.xlu0 %v3009, 64
      %v5253 = vpop.permute.xlu0 %5252
      %5254 = vrot.lane.b32.xlu0 %v3010, 64
      %v5255 = vpop.permute.xlu0 %5254
      %5256 = vrot.lane.b32.xlu0 %v3011, 64
      %v5257 = vpop.permute.xlu0 %5256
      %5258 = vrot.lane.b32.xlu0 %v3012, 64
      %v5259 = vpop.permute.xlu0 %5258
      %5260 = vrot.lane.b32.xlu0 %v3013, 64
      %v5261 = vpop.permute.xlu0 %5260
      %5262 = vrot.lane.b32.xlu0 %v3014, 64
      %v5263 = vpop.permute.xlu0 %5262
      %5264 = vrot.lane.b32.xlu0 %v3079, 64
      %v5265 = vpop.permute.xlu0 %5264
      %5266 = vrot.lane.b32.xlu0 %v3080, 64
      %v5267 = vpop.permute.xlu0 %5266
      %5268 = vrot.lane.b32.xlu0 %v3081, 64
      %v5269 = vpop.permute.xlu0 %5268
      %5270 = vrot.lane.b32.xlu0 %v3082, 64
      %v5271 = vpop.permute.xlu0 %5270
      %5272 = vrot.lane.b32.xlu0 %v3083, 64
      %v5273 = vpop.permute.xlu0 %5272
      %5274 = vrot.lane.b32.xlu0 %v3084, 64
      %v5275 = vpop.permute.xlu0 %5274
      %5276 = vrot.lane.b32.xlu0 %v3085, 64
      %v5277 = vpop.permute.xlu0 %5276
      %5278 = vrot.lane.b32.xlu0 %v3086, 64
      %v5279 = vpop.permute.xlu0 %5278
      %5280 = vrot.lane.b32.xlu0 %v3087, 64
      %v5281 = vpop.permute.xlu0 %5280
      %5282 = vrot.lane.b32.xlu0 %v3088, 64
      %v5283 = vpop.permute.xlu0 %5282
      %5284 = vrot.lane.b32.xlu0 %v3089, 64
      %v5285 = vpop.permute.xlu0 %5284
      %5286 = vrot.lane.b32.xlu0 %v3090, 64
      %v5287 = vpop.permute.xlu0 %5286
      %5288 = vrot.lane.b32.xlu0 %v3091, 64
      %v5289 = vpop.permute.xlu0 %5288
      %5290 = vrot.lane.b32.xlu0 %v3092, 64
      %v5291 = vpop.permute.xlu0 %5290
      %5292 = vrot.lane.b32.xlu0 %v3093, 64
      %v5293 = vpop.permute.xlu0 %5292
      %5294 = vrot.lane.b32.xlu0 %v3094, 64
      %v5295 = vpop.permute.xlu0 %5294
      %v5297 = vsel %vm3095, %v5233, 0
      %v5300 = vsel %vm3095, %v5235, 0
      %v5303 = vsel %vm3095, %v5237, 0
      %v5306 = vsel %vm3095, %v5239, 0
      %v5309 = vsel %vm3095, %v5241, 0
      %v5312 = vsel %vm3095, %v5243, 0
      %v5315 = vsel %vm3095, %v5245, 0
      %v5318 = vsel %vm3095, %v5247, 0
      %v5321 = vsel %vm3095, %v5249, 0
      %v5324 = vsel %vm3095, %v5251, 0
      %v5327 = vsel %vm3095, %v5253, 0
      %v5330 = vsel %vm3095, %v5255, 0
      %v5333 = vsel %vm3095, %v5257, 0
      %v5336 = vsel %vm3095, %v5259, 0
      %v5339 = vsel %vm3095, %v5261, 0
      %v5342 = vsel %vm3095, %v5263, 0
      %v5345 = vsel %vm3095, %v5265, 0
      %v5348 = vsel %vm3095, %v5267, 0
      %v5351 = vsel %vm3095, %v5269, 0
      %v5354 = vsel %vm3095, %v5271, 0
      %v5357 = vsel %vm3095, %v5273, 0
      %v5360 = vsel %vm3095, %v5275, 0
      %v5363 = vsel %vm3095, %v5277, 0
      %v5366 = vsel %vm3095, %v5279, 0
      %v5369 = vsel %vm3095, %v5281, 0
      %v5372 = vsel %vm3095, %v5283, 0
      %v5375 = vsel %vm3095, %v5285, 0
      %v5378 = vsel %vm3095, %v5287, 0
      %v5381 = vsel %vm3095, %v5289, 0
      %v5384 = vsel %vm3095, %v5291, 0
      %v5387 = vsel %vm3095, %v5293, 0
      %v5390 = vsel %vm3095, %v5295, 0
      %5392 = vmatpush.bf16.xpose.msra.mxu0 %v5366
      %5393 = vmatpush.bf16.xpose.msra.mxu0 %v5363
      %5394 = vmatpush.bf16.xpose.msra.mxu0 %v5360
      %5395 = vmatpush.bf16.xpose.msra.mxu0 %v5357
      %5396 = vmatpush.bf16.xpose.msra.mxu0 %v5354
      %5397 = vmatpush.bf16.xpose.msra.mxu0 %v5351
      %5398 = vmatpush.bf16.xpose.msra.mxu0 %v5348
      %5399 = vmatpush.bf16.xpose.msra.mxu0 %v5345
      %5400 = vmatmul.bf16.gmra.mxu0 %v5297
      %v5401 = vpop.f32.mrf.mxu0
      %v5402 = vadd.f32 0.0, %v5401
      %v5403 = vpop.f32.mrf.mxu0
      %v5404 = vadd.f32 0.0, %v5403
      %5405 = vmatmul.bf16.gmra.mxu0 %v5300
      %v5406 = vpop.f32.mrf.mxu0
      %v5407 = vadd.f32 0.0, %v5406
      %v5408 = vpop.f32.mrf.mxu0
      %v5409 = vadd.f32 0.0, %v5408
      %5410 = vmatmul.bf16.gmra.mxu0 %v5303
      %v5411 = vpop.f32.mrf.mxu0
      %v5412 = vadd.f32 0.0, %v5411
      %v5413 = vpop.f32.mrf.mxu0
      %v5414 = vadd.f32 0.0, %v5413
      %5415 = vmatmul.bf16.gmra.mxu0 %v5306
      %v5416 = vpop.f32.mrf.mxu0
      %v5417 = vadd.f32 0.0, %v5416
      %v5418 = vpop.f32.mrf.mxu0
      %v5419 = vadd.f32 0.0, %v5418
      %5420 = vmatmul.bf16.gmra.mxu0 %v5309
      %v5421 = vpop.f32.mrf.mxu0
      %v5422 = vadd.f32 0.0, %v5421
      %v5423 = vpop.f32.mrf.mxu0
      %v5424 = vadd.f32 0.0, %v5423
      %5425 = vmatmul.bf16.gmra.mxu0 %v5312
      %v5426 = vpop.f32.mrf.mxu0
      %v5427 = vadd.f32 0.0, %v5426
      %v5428 = vpop.f32.mrf.mxu0
      %v5429 = vadd.f32 0.0, %v5428
      %5430 = vmatmul.bf16.gmra.mxu0 %v5315
      %v5431 = vpop.f32.mrf.mxu0
      %v5432 = vadd.f32 0.0, %v5431
      %v5433 = vpop.f32.mrf.mxu0
      %v5434 = vadd.f32 0.0, %v5433
      %5435 = vmatmul.bf16.gmra.mxu0 %v5318
      %v5436 = vpop.f32.mrf.mxu0
      %v5437 = vadd.f32 0.0, %v5436
      %v5438 = vpop.f32.mrf.mxu0
      %v5439 = vadd.f32 0.0, %v5438
      %5440 = vmatmul.bf16.gmra.mxu0 %v5321
      %v5441 = vpop.f32.mrf.mxu0
      %v5442 = vadd.f32 0.0, %v5441
      %v5443 = vpop.f32.mrf.mxu0
      %v5444 = vadd.f32 0.0, %v5443
      %5445 = vmatmul.bf16.gmra.mxu0 %v5324
      %v5446 = vpop.f32.mrf.mxu0
      %v5447 = vadd.f32 0.0, %v5446
      %v5448 = vpop.f32.mrf.mxu0
      %v5449 = vadd.f32 0.0, %v5448
      %5450 = vmatmul.bf16.gmra.mxu0 %v5327
      %v5451 = vpop.f32.mrf.mxu0
      %v5452 = vadd.f32 0.0, %v5451
      %v5453 = vpop.f32.mrf.mxu0
      %v5454 = vadd.f32 0.0, %v5453
      %5455 = vmatmul.bf16.gmra.mxu0 %v5330
      %v5456 = vpop.f32.mrf.mxu0
      %v5457 = vadd.f32 0.0, %v5456
      %v5458 = vpop.f32.mrf.mxu0
      %v5459 = vadd.f32 0.0, %v5458
      %5460 = vmatmul.bf16.gmra.mxu0 %v5333
      %v5461 = vpop.f32.mrf.mxu0
      %v5462 = vadd.f32 0.0, %v5461
      %v5463 = vpop.f32.mrf.mxu0
      %v5464 = vadd.f32 0.0, %v5463
      %5465 = vmatmul.bf16.gmra.mxu0 %v5336
      %v5466 = vpop.f32.mrf.mxu0
      %v5467 = vadd.f32 0.0, %v5466
      %v5468 = vpop.f32.mrf.mxu0
      %v5469 = vadd.f32 0.0, %v5468
      %5470 = vmatmul.bf16.gmra.mxu0 %v5339
      %v5471 = vpop.f32.mrf.mxu0
      %v5472 = vadd.f32 0.0, %v5471
      %v5473 = vpop.f32.mrf.mxu0
      %v5474 = vadd.f32 0.0, %v5473
      %5475 = vmatmul.bf16.gmra.mxu0 %v5342
      %v5476 = vpop.f32.mrf.mxu0
      %v5477 = vadd.f32 0.0, %v5476
      %v5478 = vpop.f32.mrf.mxu0
      %v5479 = vadd.f32 0.0, %v5478
      %5480 = vdwg.mxu0
      %5481 = vmatpush.bf16.xpose.msra.mxu0 %v5390
      %5482 = vmatpush.bf16.xpose.msra.mxu0 %v5387
      %5483 = vmatpush.bf16.xpose.msra.mxu0 %v5384
      %5484 = vmatpush.bf16.xpose.msra.mxu0 %v5381
      %5485 = vmatpush.bf16.xpose.msra.mxu0 %v5378
      %5486 = vmatpush.bf16.xpose.msra.mxu0 %v5375
      %5487 = vmatpush.bf16.xpose.msra.mxu0 %v5372
      %5488 = vmatpush.bf16.xpose.msra.mxu0 %v5369
      %5489 = vmatmul.bf16.gmra.mxu0 %v5297
      %v5490 = vpop.f32.mrf.mxu0
      %v5491 = vadd.f32 0.0, %v5490
      %v5492 = vpop.f32.mrf.mxu0
      %v5493 = vadd.f32 0.0, %v5492
      %5494 = vmatmul.bf16.gmra.mxu0 %v5300
      %v5495 = vpop.f32.mrf.mxu0
      %v5496 = vadd.f32 0.0, %v5495
      %v5497 = vpop.f32.mrf.mxu0
      %v5498 = vadd.f32 0.0, %v5497
      %5499 = vmatmul.bf16.gmra.mxu0 %v5303
      %v5500 = vpop.f32.mrf.mxu0
      %v5501 = vadd.f32 0.0, %v5500
      %v5502 = vpop.f32.mrf.mxu0
      %v5503 = vadd.f32 0.0, %v5502
      %5504 = vmatmul.bf16.gmra.mxu0 %v5306
      %v5505 = vpop.f32.mrf.mxu0
      %v5506 = vadd.f32 0.0, %v5505
      %v5507 = vpop.f32.mrf.mxu0
      %v5508 = vadd.f32 0.0, %v5507
      %5509 = vmatmul.bf16.gmra.mxu0 %v5309
      %v5510 = vpop.f32.mrf.mxu0
      %v5511 = vadd.f32 0.0, %v5510
      %v5512 = vpop.f32.mrf.mxu0
      %v5513 = vadd.f32 0.0, %v5512
      %5514 = vmatmul.bf16.gmra.mxu0 %v5312
      %v5515 = vpop.f32.mrf.mxu0
      %v5516 = vadd.f32 0.0, %v5515
      %v5517 = vpop.f32.mrf.mxu0
      %v5518 = vadd.f32 0.0, %v5517
      %5519 = vmatmul.bf16.gmra.mxu0 %v5315
      %v5520 = vpop.f32.mrf.mxu0
      %v5521 = vadd.f32 0.0, %v5520
      %v5522 = vpop.f32.mrf.mxu0
      %v5523 = vadd.f32 0.0, %v5522
      %5524 = vmatmul.bf16.gmra.mxu0 %v5318
      %v5525 = vpop.f32.mrf.mxu0
      %v5526 = vadd.f32 0.0, %v5525
      %v5527 = vpop.f32.mrf.mxu0
      %v5528 = vadd.f32 0.0, %v5527
      %5529 = vmatmul.bf16.gmra.mxu0 %v5321
      %v5530 = vpop.f32.mrf.mxu0
      %v5531 = vadd.f32 0.0, %v5530
      %v5532 = vpop.f32.mrf.mxu0
      %v5533 = vadd.f32 0.0, %v5532
      %5534 = vmatmul.bf16.gmra.mxu0 %v5324
      %v5535 = vpop.f32.mrf.mxu0
      %v5536 = vadd.f32 0.0, %v5535
      %v5537 = vpop.f32.mrf.mxu0
      %v5538 = vadd.f32 0.0, %v5537
      %5539 = vmatmul.bf16.gmra.mxu0 %v5327
      %v5540 = vpop.f32.mrf.mxu0
      %v5541 = vadd.f32 0.0, %v5540
      %v5542 = vpop.f32.mrf.mxu0
      %v5543 = vadd.f32 0.0, %v5542
      %5544 = vmatmul.bf16.gmra.mxu0 %v5330
      %v5545 = vpop.f32.mrf.mxu0
      %v5546 = vadd.f32 0.0, %v5545
      %v5547 = vpop.f32.mrf.mxu0
      %v5548 = vadd.f32 0.0, %v5547
      %5549 = vmatmul.bf16.gmra.mxu0 %v5333
      %v5550 = vpop.f32.mrf.mxu0
      %v5551 = vadd.f32 0.0, %v5550
      %v5552 = vpop.f32.mrf.mxu0
      %v5553 = vadd.f32 0.0, %v5552
      %5554 = vmatmul.bf16.gmra.mxu0 %v5336
      %v5555 = vpop.f32.mrf.mxu0
      %v5556 = vadd.f32 0.0, %v5555
      %v5557 = vpop.f32.mrf.mxu0
      %v5558 = vadd.f32 0.0, %v5557
      %5559 = vmatmul.bf16.gmra.mxu0 %v5339
      %v5560 = vpop.f32.mrf.mxu0
      %v5561 = vadd.f32 0.0, %v5560
      %v5562 = vpop.f32.mrf.mxu0
      %v5563 = vadd.f32 0.0, %v5562
      %5564 = vmatmul.bf16.gmra.mxu0 %v5342
      %v5565 = vpop.f32.mrf.mxu0
      %v5566 = vadd.f32 0.0, %v5565
      %v5567 = vpop.f32.mrf.mxu0
      %v5568 = vadd.f32 0.0, %v5567
      %5569 = vdwg.mxu0
      %v5570 = vmax.f32 %v5402, %v5491
      %5571 = vmax.xlane.f32.xlu0 %v5570
      %v5572 = vpop.xlane.xlu0 %5571
      %v5573 = vmax.f32 %v5404, %v5493
      %5574 = vmax.xlane.f32.xlu0 %v5573
      %v5575 = vpop.xlane.xlu0 %5574
      %v5576 = vmax.f32 %v5407, %v5496
      %5577 = vmax.xlane.f32.xlu0 %v5576
      %v5578 = vpop.xlane.xlu0 %5577
      %v5579 = vmax.f32 %v5409, %v5498
      %5580 = vmax.xlane.f32.xlu0 %v5579
      %v5581 = vpop.xlane.xlu0 %5580
      %v5582 = vmax.f32 %v5412, %v5501
      %5583 = vmax.xlane.f32.xlu0 %v5582
      %v5584 = vpop.xlane.xlu0 %5583
      %v5585 = vmax.f32 %v5414, %v5503
      %5586 = vmax.xlane.f32.xlu0 %v5585
      %v5587 = vpop.xlane.xlu0 %5586
      %v5588 = vmax.f32 %v5417, %v5506
      %5589 = vmax.xlane.f32.xlu0 %v5588
      %v5590 = vpop.xlane.xlu0 %5589
      %v5591 = vmax.f32 %v5419, %v5508
      %5592 = vmax.xlane.f32.xlu0 %v5591
      %v5593 = vpop.xlane.xlu0 %5592
      %v5594 = vmax.f32 %v5422, %v5511
      %5595 = vmax.xlane.f32.xlu0 %v5594
      %v5596 = vpop.xlane.xlu0 %5595
      %v5597 = vmax.f32 %v5424, %v5513
      %5598 = vmax.xlane.f32.xlu0 %v5597
      %v5599 = vpop.xlane.xlu0 %5598
      %v5600 = vmax.f32 %v5427, %v5516
      %5601 = vmax.xlane.f32.xlu0 %v5600
      %v5602 = vpop.xlane.xlu0 %5601
      %v5603 = vmax.f32 %v5429, %v5518
      %5604 = vmax.xlane.f32.xlu0 %v5603
      %v5605 = vpop.xlane.xlu0 %5604
      %v5606 = vmax.f32 %v5432, %v5521
      %5607 = vmax.xlane.f32.xlu0 %v5606
      %v5608 = vpop.xlane.xlu0 %5607
      %v5609 = vmax.f32 %v5434, %v5523
      %5610 = vmax.xlane.f32.xlu0 %v5609
      %v5611 = vpop.xlane.xlu0 %5610
      %v5612 = vmax.f32 %v5437, %v5526
      %5613 = vmax.xlane.f32.xlu0 %v5612
      %v5614 = vpop.xlane.xlu0 %5613
      %v5615 = vmax.f32 %v5439, %v5528
      %5616 = vmax.xlane.f32.xlu0 %v5615
      %v5617 = vpop.xlane.xlu0 %5616
      %v5618 = vmax.f32 %v5442, %v5531
      %5619 = vmax.xlane.f32.xlu0 %v5618
      %v5620 = vpop.xlane.xlu0 %5619
      %v5621 = vmax.f32 %v5444, %v5533
      %5622 = vmax.xlane.f32.xlu0 %v5621
      %v5623 = vpop.xlane.xlu0 %5622
      %v5624 = vmax.f32 %v5447, %v5536
      %5625 = vmax.xlane.f32.xlu0 %v5624
      %v5626 = vpop.xlane.xlu0 %5625
      %v5627 = vmax.f32 %v5449, %v5538
      %5628 = vmax.xlane.f32.xlu0 %v5627
      %v5629 = vpop.xlane.xlu0 %5628
      %v5630 = vmax.f32 %v5452, %v5541
      %5631 = vmax.xlane.f32.xlu0 %v5630
      %v5632 = vpop.xlane.xlu0 %5631
      %v5633 = vmax.f32 %v5454, %v5543
      %5634 = vmax.xlane.f32.xlu0 %v5633
      %v5635 = vpop.xlane.xlu0 %5634
      %v5636 = vmax.f32 %v5457, %v5546
      %5637 = vmax.xlane.f32.xlu0 %v5636
      %v5638 = vpop.xlane.xlu0 %5637
      %v5639 = vmax.f32 %v5459, %v5548
      %5640 = vmax.xlane.f32.xlu0 %v5639
      %v5641 = vpop.xlane.xlu0 %5640
      %v5642 = vmax.f32 %v5462, %v5551
      %5643 = vmax.xlane.f32.xlu0 %v5642
      %v5644 = vpop.xlane.xlu0 %5643
      %v5645 = vmax.f32 %v5464, %v5553
      %5646 = vmax.xlane.f32.xlu0 %v5645
      %v5647 = vpop.xlane.xlu0 %5646
      %v5648 = vmax.f32 %v5467, %v5556
      %5649 = vmax.xlane.f32.xlu0 %v5648
      %v5650 = vpop.xlane.xlu0 %5649
      %v5651 = vmax.f32 %v5469, %v5558
      %5652 = vmax.xlane.f32.xlu0 %v5651
      %v5653 = vpop.xlane.xlu0 %5652
      %v5654 = vmax.f32 %v5472, %v5561
      %5655 = vmax.xlane.f32.xlu0 %v5654
      %v5656 = vpop.xlane.xlu0 %5655
      %v5657 = vmax.f32 %v5474, %v5563
      %5658 = vmax.xlane.f32.xlu0 %v5657
      %v5659 = vpop.xlane.xlu0 %5658
      %v5660 = vmax.f32 %v5477, %v5566
      %5661 = vmax.xlane.f32.xlu0 %v5660
      %v5662 = vpop.xlane.xlu0 %5661
      %v5663 = vmax.f32 %v5479, %v5568
      %5664 = vmax.xlane.f32.xlu0 %v5663
      %v5665 = vpop.xlane.xlu0 %5664
      %v5666 = vsub.f32 %v5402, %v5572
      %v5667 = vsub.f32 %v5491, %v5572
      %v5668 = vsub.f32 %v5404, %v5575
      %v5669 = vsub.f32 %v5493, %v5575
      %v5670 = vsub.f32 %v5407, %v5578
      %v5671 = vsub.f32 %v5496, %v5578
      %v5672 = vsub.f32 %v5409, %v5581
      %v5673 = vsub.f32 %v5498, %v5581
      %v5674 = vsub.f32 %v5412, %v5584
      %v5675 = vsub.f32 %v5501, %v5584
      %v5676 = vsub.f32 %v5414, %v5587
      %v5677 = vsub.f32 %v5503, %v5587
      %v5678 = vsub.f32 %v5417, %v5590
      %v5679 = vsub.f32 %v5506, %v5590
      %v5680 = vsub.f32 %v5419, %v5593
      %v5681 = vsub.f32 %v5508, %v5593
      %v5682 = vsub.f32 %v5422, %v5596
      %v5683 = vsub.f32 %v5511, %v5596
      %v5684 = vsub.f32 %v5424, %v5599
      %v5685 = vsub.f32 %v5513, %v5599
      %v5686 = vsub.f32 %v5427, %v5602
      %v5687 = vsub.f32 %v5516, %v5602
      %v5688 = vsub.f32 %v5429, %v5605
      %v5689 = vsub.f32 %v5518, %v5605
      %v5690 = vsub.f32 %v5432, %v5608
      %v5691 = vsub.f32 %v5521, %v5608
      %v5692 = vsub.f32 %v5434, %v5611
      %v5693 = vsub.f32 %v5523, %v5611
      %v5694 = vsub.f32 %v5437, %v5614
      %v5695 = vsub.f32 %v5526, %v5614
      %v5696 = vsub.f32 %v5439, %v5617
      %v5697 = vsub.f32 %v5528, %v5617
      %v5698 = vsub.f32 %v5442, %v5620
      %v5699 = vsub.f32 %v5531, %v5620
      %v5700 = vsub.f32 %v5444, %v5623
      %v5701 = vsub.f32 %v5533, %v5623
      %v5702 = vsub.f32 %v5447, %v5626
      %v5703 = vsub.f32 %v5536, %v5626
      %v5704 = vsub.f32 %v5449, %v5629
      %v5705 = vsub.f32 %v5538, %v5629
      %v5706 = vsub.f32 %v5452, %v5632
      %v5707 = vsub.f32 %v5541, %v5632
      %v5708 = vsub.f32 %v5454, %v5635
      %v5709 = vsub.f32 %v5543, %v5635
      %v5710 = vsub.f32 %v5457, %v5638
      %v5711 = vsub.f32 %v5546, %v5638
      %v5712 = vsub.f32 %v5459, %v5641
      %v5713 = vsub.f32 %v5548, %v5641
      %v5714 = vsub.f32 %v5462, %v5644
      %v5715 = vsub.f32 %v5551, %v5644
      %v5716 = vsub.f32 %v5464, %v5647
      %v5717 = vsub.f32 %v5553, %v5647
      %v5718 = vsub.f32 %v5467, %v5650
      %v5719 = vsub.f32 %v5556, %v5650
      %v5720 = vsub.f32 %v5469, %v5653
      %v5721 = vsub.f32 %v5558, %v5653
      %v5722 = vsub.f32 %v5472, %v5656
      %v5723 = vsub.f32 %v5561, %v5656
      %v5724 = vsub.f32 %v5474, %v5659
      %v5725 = vsub.f32 %v5563, %v5659
      %v5726 = vsub.f32 %v5477, %v5662
      %v5727 = vsub.f32 %v5566, %v5662
      %v5728 = vsub.f32 %v5479, %v5665
      %v5729 = vsub.f32 %v5568, %v5665
      %v5730 = vmul.f32 %v5666, 1.442695
      %v5731 = vpow.pop %v5730
      %v5732 = vmul.f32 %v5667, 1.442695
      %v5733 = vpow.pop %v5732
      %v5734 = vmul.f32 %v5668, 1.442695
      %v5735 = vpow.pop %v5734
      %v5736 = vmul.f32 %v5669, 1.442695
      %v5737 = vpow.pop %v5736
      %v5738 = vmul.f32 %v5670, 1.442695
      %v5739 = vpow.pop %v5738
      %v5740 = vmul.f32 %v5671, 1.442695
      %v5741 = vpow.pop %v5740
      %v5742 = vmul.f32 %v5672, 1.442695
      %v5743 = vpow.pop %v5742
      %v5744 = vmul.f32 %v5673, 1.442695
      %v5745 = vpow.pop %v5744
      %v5746 = vmul.f32 %v5674, 1.442695
      %v5747 = vpow.pop %v5746
      %v5748 = vmul.f32 %v5675, 1.442695
      %v5749 = vpow.pop %v5748
      %v5750 = vmul.f32 %v5676, 1.442695
      %v5751 = vpow.pop %v5750
      %v5752 = vmul.f32 %v5677, 1.442695
      %v5753 = vpow.pop %v5752
      %v5754 = vmul.f32 %v5678, 1.442695
      %v5755 = vpow.pop %v5754
      %v5756 = vmul.f32 %v5679, 1.442695
      %v5757 = vpow.pop %v5756
      %v5758 = vmul.f32 %v5680, 1.442695
      %v5759 = vpow.pop %v5758
      %v5760 = vmul.f32 %v5681, 1.442695
      %v5761 = vpow.pop %v5760
      %v5762 = vmul.f32 %v5682, 1.442695
      %v5763 = vpow.pop %v5762
      %v5764 = vmul.f32 %v5683, 1.442695
      %v5765 = vpow.pop %v5764
      %v5766 = vmul.f32 %v5684, 1.442695
      %v5767 = vpow.pop %v5766
      %v5768 = vmul.f32 %v5685, 1.442695
      %v5769 = vpow.pop %v5768
      %v5770 = vmul.f32 %v5686, 1.442695
      %v5771 = vpow.pop %v5770
      %v5772 = vmul.f32 %v5687, 1.442695
      %v5773 = vpow.pop %v5772
      %v5774 = vmul.f32 %v5688, 1.442695
      %v5775 = vpow.pop %v5774
      %v5776 = vmul.f32 %v5689, 1.442695
      %v5777 = vpow.pop %v5776
      %v5778 = vmul.f32 %v5690, 1.442695
      %v5779 = vpow.pop %v5778
      %v5780 = vmul.f32 %v5691, 1.442695
      %v5781 = vpow.pop %v5780
      %v5782 = vmul.f32 %v5692, 1.442695
      %v5783 = vpow.pop %v5782
      %v5784 = vmul.f32 %v5693, 1.442695
      %v5785 = vpow.pop %v5784
      %v5786 = vmul.f32 %v5694, 1.442695
      %v5787 = vpow.pop %v5786
      %v5788 = vmul.f32 %v5695, 1.442695
      %v5789 = vpow.pop %v5788
      %v5790 = vmul.f32 %v5696, 1.442695
      %v5791 = vpow.pop %v5790
      %v5792 = vmul.f32 %v5697, 1.442695
      %v5793 = vpow.pop %v5792
      %v5794 = vmul.f32 %v5698, 1.442695
      %v5795 = vpow.pop %v5794
      %v5796 = vmul.f32 %v5699, 1.442695
      %v5797 = vpow.pop %v5796
      %v5798 = vmul.f32 %v5700, 1.442695
      %v5799 = vpow.pop %v5798
      %v5800 = vmul.f32 %v5701, 1.442695
      %v5801 = vpow.pop %v5800
      %v5802 = vmul.f32 %v5702, 1.442695
      %v5803 = vpow.pop %v5802
      %v5804 = vmul.f32 %v5703, 1.442695
      %v5805 = vpow.pop %v5804
      %v5806 = vmul.f32 %v5704, 1.442695
      %v5807 = vpow.pop %v5806
      %v5808 = vmul.f32 %v5705, 1.442695
      %v5809 = vpow.pop %v5808
      %v5810 = vmul.f32 %v5706, 1.442695
      %v5811 = vpow.pop %v5810
      %v5812 = vmul.f32 %v5707, 1.442695
      %v5813 = vpow.pop %v5812
      %v5814 = vmul.f32 %v5708, 1.442695
      %v5815 = vpow.pop %v5814
      %v5816 = vmul.f32 %v5709, 1.442695
      %v5817 = vpow.pop %v5816
      %v5818 = vmul.f32 %v5710, 1.442695
      %v5819 = vpow.pop %v5818
      %v5820 = vmul.f32 %v5711, 1.442695
      %v5821 = vpow.pop %v5820
      %v5822 = vmul.f32 %v5712, 1.442695
      %v5823 = vpow.pop %v5822
      %v5824 = vmul.f32 %v5713, 1.442695
      %v5825 = vpow.pop %v5824
      %v5826 = vmul.f32 %v5714, 1.442695
      %v5827 = vpow.pop %v5826
      %v5828 = vmul.f32 %v5715, 1.442695
      %v5829 = vpow.pop %v5828
      %v5830 = vmul.f32 %v5716, 1.442695
      %v5831 = vpow.pop %v5830
      %v5832 = vmul.f32 %v5717, 1.442695
      %v5833 = vpow.pop %v5832
      %v5834 = vmul.f32 %v5718, 1.442695
      %v5835 = vpow.pop %v5834
      %v5836 = vmul.f32 %v5719, 1.442695
      %v5837 = vpow.pop %v5836
      %v5838 = vmul.f32 %v5720, 1.442695
      %v5839 = vpow.pop %v5838
      %v5840 = vmul.f32 %v5721, 1.442695
      %v5841 = vpow.pop %v5840
      %v5842 = vmul.f32 %v5722, 1.442695
      %v5843 = vpow.pop %v5842
      %v5844 = vmul.f32 %v5723, 1.442695
      %v5845 = vpow.pop %v5844
      %v5846 = vmul.f32 %v5724, 1.442695
      %v5847 = vpow.pop %v5846
      %v5848 = vmul.f32 %v5725, 1.442695
      %v5849 = vpow.pop %v5848
      %v5850 = vmul.f32 %v5726, 1.442695
      %v5851 = vpow.pop %v5850
      %v5852 = vmul.f32 %v5727, 1.442695
      %v5853 = vpow.pop %v5852
      %v5854 = vmul.f32 %v5728, 1.442695
      %v5855 = vpow.pop %v5854
      %v5856 = vmul.f32 %v5729, 1.442695
      %v5857 = vpow.pop %v5856
      %v5858 = vadd.f32 %v5731, %v5733
      %5859 = vadd.xlane.f32.xlu0 %v5858
      %v5860 = vpop.xlane.xlu0 %5859
      %v5861 = vadd.f32 %v5735, %v5737
      %5862 = vadd.xlane.f32.xlu0 %v5861
      %v5863 = vpop.xlane.xlu0 %5862
      %v5864 = vadd.f32 %v5739, %v5741
      %5865 = vadd.xlane.f32.xlu0 %v5864
      %v5866 = vpop.xlane.xlu0 %5865
      %v5867 = vadd.f32 %v5743, %v5745
      %5868 = vadd.xlane.f32.xlu0 %v5867
      %v5869 = vpop.xlane.xlu0 %5868
      %v5870 = vadd.f32 %v5747, %v5749
      %5871 = vadd.xlane.f32.xlu0 %v5870
      %v5872 = vpop.xlane.xlu0 %5871
      %v5873 = vadd.f32 %v5751, %v5753
      %5874 = vadd.xlane.f32.xlu0 %v5873
      %v5875 = vpop.xlane.xlu0 %5874
      %v5876 = vadd.f32 %v5755, %v5757
      %5877 = vadd.xlane.f32.xlu0 %v5876
      %v5878 = vpop.xlane.xlu0 %5877
      %v5879 = vadd.f32 %v5759, %v5761
      %5880 = vadd.xlane.f32.xlu0 %v5879
      %v5881 = vpop.xlane.xlu0 %5880
      %v5882 = vadd.f32 %v5763, %v5765
      %5883 = vadd.xlane.f32.xlu0 %v5882
      %v5884 = vpop.xlane.xlu0 %5883
      %v5885 = vadd.f32 %v5767, %v5769
      %5886 = vadd.xlane.f32.xlu0 %v5885
      %v5887 = vpop.xlane.xlu0 %5886
      %v5888 = vadd.f32 %v5771, %v5773
      %5889 = vadd.xlane.f32.xlu0 %v5888
      %v5890 = vpop.xlane.xlu0 %5889
      %v5891 = vadd.f32 %v5775, %v5777
      %5892 = vadd.xlane.f32.xlu0 %v5891
      %v5893 = vpop.xlane.xlu0 %5892
      %v5894 = vadd.f32 %v5779, %v5781
      %5895 = vadd.xlane.f32.xlu0 %v5894
      %v5896 = vpop.xlane.xlu0 %5895
      %v5897 = vadd.f32 %v5783, %v5785
      %5898 = vadd.xlane.f32.xlu0 %v5897
      %v5899 = vpop.xlane.xlu0 %5898
      %v5900 = vadd.f32 %v5787, %v5789
      %5901 = vadd.xlane.f32.xlu0 %v5900
      %v5902 = vpop.xlane.xlu0 %5901
      %v5903 = vadd.f32 %v5791, %v5793
      %5904 = vadd.xlane.f32.xlu0 %v5903
      %v5905 = vpop.xlane.xlu0 %5904
      %v5906 = vadd.f32 %v5795, %v5797
      %5907 = vadd.xlane.f32.xlu0 %v5906
      %v5908 = vpop.xlane.xlu0 %5907
      %v5909 = vadd.f32 %v5799, %v5801
      %5910 = vadd.xlane.f32.xlu0 %v5909
      %v5911 = vpop.xlane.xlu0 %5910
      %v5912 = vadd.f32 %v5803, %v5805
      %5913 = vadd.xlane.f32.xlu0 %v5912
      %v5914 = vpop.xlane.xlu0 %5913
      %v5915 = vadd.f32 %v5807, %v5809
      %5916 = vadd.xlane.f32.xlu0 %v5915
      %v5917 = vpop.xlane.xlu0 %5916
      %v5918 = vadd.f32 %v5811, %v5813
      %5919 = vadd.xlane.f32.xlu0 %v5918
      %v5920 = vpop.xlane.xlu0 %5919
      %v5921 = vadd.f32 %v5815, %v5817
      %5922 = vadd.xlane.f32.xlu0 %v5921
      %v5923 = vpop.xlane.xlu0 %5922
      %v5924 = vadd.f32 %v5819, %v5821
      %5925 = vadd.xlane.f32.xlu0 %v5924
      %v5926 = vpop.xlane.xlu0 %5925
      %v5927 = vadd.f32 %v5823, %v5825
      %5928 = vadd.xlane.f32.xlu0 %v5927
      %v5929 = vpop.xlane.xlu0 %5928
      %v5930 = vadd.f32 %v5827, %v5829
      %5931 = vadd.xlane.f32.xlu0 %v5930
      %v5932 = vpop.xlane.xlu0 %5931
      %v5933 = vadd.f32 %v5831, %v5833
      %5934 = vadd.xlane.f32.xlu0 %v5933
      %v5935 = vpop.xlane.xlu0 %5934
      %v5936 = vadd.f32 %v5835, %v5837
      %5937 = vadd.xlane.f32.xlu0 %v5936
      %v5938 = vpop.xlane.xlu0 %5937
      %v5939 = vadd.f32 %v5839, %v5841
      %5940 = vadd.xlane.f32.xlu0 %v5939
      %v5941 = vpop.xlane.xlu0 %5940
      %v5942 = vadd.f32 %v5843, %v5845
      %5943 = vadd.xlane.f32.xlu0 %v5942
      %v5944 = vpop.xlane.xlu0 %5943
      %v5945 = vadd.f32 %v5847, %v5849
      %5946 = vadd.xlane.f32.xlu0 %v5945
      %v5947 = vpop.xlane.xlu0 %5946
      %v5948 = vadd.f32 %v5851, %v5853
      %5949 = vadd.xlane.f32.xlu0 %v5948
      %v5950 = vpop.xlane.xlu0 %5949
      %v5951 = vadd.f32 %v5855, %v5857
      %5952 = vadd.xlane.f32.xlu0 %v5951
      %v5953 = vpop.xlane.xlu0 %5952
      %v5954 = vrcp.pop %v5860
      %v5955 = vrcp.pop %v5863
      %v5956 = vrcp.pop %v5866
      %v5957 = vrcp.pop %v5869
      %v5958 = vrcp.pop %v5872
      %v5959 = vrcp.pop %v5875
      %v5960 = vrcp.pop %v5878
      %v5961 = vrcp.pop %v5881
      %v5962 = vrcp.pop %v5884
      %v5963 = vrcp.pop %v5887
      %v5964 = vrcp.pop %v5890
      %v5965 = vrcp.pop %v5893
      %v5966 = vrcp.pop %v5896
      %v5967 = vrcp.pop %v5899
      %v5968 = vrcp.pop %v5902
      %v5969 = vrcp.pop %v5905
      %v5970 = vrcp.pop %v5908
      %v5971 = vrcp.pop %v5911
      %v5972 = vrcp.pop %v5914
      %v5973 = vrcp.pop %v5917
      %v5974 = vrcp.pop %v5920
      %v5975 = vrcp.pop %v5923
      %v5976 = vrcp.pop %v5926
      %v5977 = vrcp.pop %v5929
      %v5978 = vrcp.pop %v5932
      %v5979 = vrcp.pop %v5935
      %v5980 = vrcp.pop %v5938
      %v5981 = vrcp.pop %v5941
      %v5982 = vrcp.pop %v5944
      %v5983 = vrcp.pop %v5947
      %v5984 = vrcp.pop %v5950
      %v5985 = vrcp.pop %v5953
      %v5986 = vmul.f32 %v5731, %v5954
      %v5987 = vmul.f32 %v5733, %v5954
      %v5988 = vmul.f32 %v5735, %v5955
      %v5989 = vmul.f32 %v5737, %v5955
      %v5990 = vmul.f32 %v5739, %v5956
      %v5991 = vmul.f32 %v5741, %v5956
      %v5992 = vmul.f32 %v5743, %v5957
      %v5993 = vmul.f32 %v5745, %v5957
      %v5994 = vmul.f32 %v5747, %v5958
      %v5995 = vmul.f32 %v5749, %v5958
      %v5996 = vmul.f32 %v5751, %v5959
      %v5997 = vmul.f32 %v5753, %v5959
      %v5998 = vmul.f32 %v5755, %v5960
      %v5999 = vmul.f32 %v5757, %v5960
      %v6000 = vmul.f32 %v5759, %v5961
      %v6001 = vmul.f32 %v5761, %v5961
      %v6002 = vmul.f32 %v5763, %v5962
      %v6003 = vmul.f32 %v5765, %v5962
      %v6004 = vmul.f32 %v5767, %v5963
      %v6005 = vmul.f32 %v5769, %v5963
      %v6006 = vmul.f32 %v5771, %v5964
      %v6007 = vmul.f32 %v5773, %v5964
      %v6008 = vmul.f32 %v5775, %v5965
      %v6009 = vmul.f32 %v5777, %v5965
      %v6010 = vmul.f32 %v5779, %v5966
      %v6011 = vmul.f32 %v5781, %v5966
      %v6012 = vmul.f32 %v5783, %v5967
      %v6013 = vmul.f32 %v5785, %v5967
      %v6014 = vmul.f32 %v5787, %v5968
      %v6015 = vmul.f32 %v5789, %v5968
      %v6016 = vmul.f32 %v5791, %v5969
      %v6017 = vmul.f32 %v5793, %v5969
      %v6018 = vmul.f32 %v5795, %v5970
      %v6019 = vmul.f32 %v5797, %v5970
      %v6020 = vmul.f32 %v5799, %v5971
      %v6021 = vmul.f32 %v5801, %v5971
      %v6022 = vmul.f32 %v5803, %v5972
      %v6023 = vmul.f32 %v5805, %v5972
      %v6024 = vmul.f32 %v5807, %v5973
      %v6025 = vmul.f32 %v5809, %v5973
      %v6026 = vmul.f32 %v5811, %v5974
      %v6027 = vmul.f32 %v5813, %v5974
      %v6028 = vmul.f32 %v5815, %v5975
      %v6029 = vmul.f32 %v5817, %v5975
      %v6030 = vmul.f32 %v5819, %v5976
      %v6031 = vmul.f32 %v5821, %v5976
      %v6032 = vmul.f32 %v5823, %v5977
      %v6033 = vmul.f32 %v5825, %v5977
      %v6034 = vmul.f32 %v5827, %v5978
      %v6035 = vmul.f32 %v5829, %v5978
      %v6036 = vmul.f32 %v5831, %v5979
      %v6037 = vmul.f32 %v5833, %v5979
      %v6038 = vmul.f32 %v5835, %v5980
      %v6039 = vmul.f32 %v5837, %v5980
      %v6040 = vmul.f32 %v5839, %v5981
      %v6041 = vmul.f32 %v5841, %v5981
      %v6042 = vmul.f32 %v5843, %v5982
      %v6043 = vmul.f32 %v5845, %v5982
      %v6044 = vmul.f32 %v5847, %v5983
      %v6045 = vmul.f32 %v5849, %v5983
      %v6046 = vmul.f32 %v5851, %v5984
      %v6047 = vmul.f32 %v5853, %v5984
      %v6048 = vmul.f32 %v5855, %v5985
      %v6049 = vmul.f32 %v5857, %v5985
      %v6050 = vpack.c.bf16 %v5988, %v5986
      %v6051 = vpack.c.bf16 %v5989, %v5987
      %v6052 = vpack.c.bf16 %v5992, %v5990
      %v6053 = vpack.c.bf16 %v5993, %v5991
      %v6054 = vpack.c.bf16 %v5996, %v5994
      %v6055 = vpack.c.bf16 %v5997, %v5995
      %v6056 = vpack.c.bf16 %v6000, %v5998
      %v6057 = vpack.c.bf16 %v6001, %v5999
      %v6058 = vpack.c.bf16 %v6004, %v6002
      %v6059 = vpack.c.bf16 %v6005, %v6003
      %v6060 = vpack.c.bf16 %v6008, %v6006
      %v6061 = vpack.c.bf16 %v6009, %v6007
      %v6062 = vpack.c.bf16 %v6012, %v6010
      %v6063 = vpack.c.bf16 %v6013, %v6011
      %v6064 = vpack.c.bf16 %v6016, %v6014
      %v6065 = vpack.c.bf16 %v6017, %v6015
      %v6066 = vpack.c.bf16 %v6020, %v6018
      %v6067 = vpack.c.bf16 %v6021, %v6019
      %v6068 = vpack.c.bf16 %v6024, %v6022
      %v6069 = vpack.c.bf16 %v6025, %v6023
      %v6070 = vpack.c.bf16 %v6028, %v6026
      %v6071 = vpack.c.bf16 %v6029, %v6027
      %v6072 = vpack.c.bf16 %v6032, %v6030
      %v6073 = vpack.c.bf16 %v6033, %v6031
      %v6074 = vpack.c.bf16 %v6036, %v6034
      %v6075 = vpack.c.bf16 %v6037, %v6035
      %v6076 = vpack.c.bf16 %v6040, %v6038
      %v6077 = vpack.c.bf16 %v6041, %v6039
      %v6078 = vpack.c.bf16 %v6044, %v6042
      %v6079 = vpack.c.bf16 %v6045, %v6043
      %v6080 = vpack.c.bf16 %v6048, %v6046
      %v6081 = vpack.c.bf16 %v6049, %v6047
      %6082 = vrot.lane.b32.xlu0 %v3946, 64
      %v6083 = vpop.permute.xlu0 %6082
      %6084 = vrot.lane.b32.xlu0 %v3947, 64
      %v6085 = vpop.permute.xlu0 %6084
      %6086 = vrot.lane.b32.xlu0 %v3948, 64
      %v6087 = vpop.permute.xlu0 %6086
      %6088 = vrot.lane.b32.xlu0 %v3949, 64
      %v6089 = vpop.permute.xlu0 %6088
      %6090 = vrot.lane.b32.xlu0 %v3950, 64
      %v6091 = vpop.permute.xlu0 %6090
      %6092 = vrot.lane.b32.xlu0 %v3951, 64
      %v6093 = vpop.permute.xlu0 %6092
      %6094 = vrot.lane.b32.xlu0 %v3952, 64
      %v6095 = vpop.permute.xlu0 %6094
      %6096 = vrot.lane.b32.xlu0 %v3953, 64
      %v6097 = vpop.permute.xlu0 %6096
      %6098 = vrot.lane.b32.xlu0 %v3954, 64
      %v6099 = vpop.permute.xlu0 %6098
      %6100 = vrot.lane.b32.xlu0 %v3955, 64
      %v6101 = vpop.permute.xlu0 %6100
      %6102 = vrot.lane.b32.xlu0 %v3956, 64
      %v6103 = vpop.permute.xlu0 %6102
      %6104 = vrot.lane.b32.xlu0 %v3957, 64
      %v6105 = vpop.permute.xlu0 %6104
      %6106 = vrot.lane.b32.xlu0 %v3958, 64
      %v6107 = vpop.permute.xlu0 %6106
      %6108 = vrot.lane.b32.xlu0 %v3959, 64
      %v6109 = vpop.permute.xlu0 %6108
      %6110 = vrot.lane.b32.xlu0 %v3960, 64
      %v6111 = vpop.permute.xlu0 %6110
      %6112 = vrot.lane.b32.xlu0 %v3961, 64
      %v6113 = vpop.permute.xlu0 %6112
      %6130 = vmatpush.bf16.msra.mxu0 %v6097
      %6131 = vmatpush.bf16.msra.mxu0 %v6095
      %6132 = vmatpush.bf16.msra.mxu0 %v6093
      %6133 = vmatpush.bf16.msra.mxu0 %v6091
      %6134 = vmatpush.bf16.msra.mxu0 %v6089
      %6135 = vmatpush.bf16.msra.mxu0 %v6087
      %6136 = vmatpush.bf16.msra.mxu0 %v6085
      %6137 = vmatpush.bf16.msra.mxu0 %v6083
      %6138 = vmatmul.bf16.gmra.mxu0 %v6050
      %v6139 = vpop.f32.mrf.mxu0
      %v6140 = vadd.f32 0.0, %v6139
      %v6141 = vpop.f32.mrf.mxu0
      %v6142 = vadd.f32 0.0, %v6141
      %6143 = vmatmul.bf16.gmra.mxu0 %v6052
      %v6144 = vpop.f32.mrf.mxu0
      %v6145 = vadd.f32 0.0, %v6144
      %v6146 = vpop.f32.mrf.mxu0
      %v6147 = vadd.f32 0.0, %v6146
      %6148 = vmatmul.bf16.gmra.mxu0 %v6054
      %v6149 = vpop.f32.mrf.mxu0
      %v6150 = vadd.f32 0.0, %v6149
      %v6151 = vpop.f32.mrf.mxu0
      %v6152 = vadd.f32 0.0, %v6151
      %6153 = vmatmul.bf16.gmra.mxu0 %v6056
      %v6154 = vpop.f32.mrf.mxu0
      %v6155 = vadd.f32 0.0, %v6154
      %v6156 = vpop.f32.mrf.mxu0
      %v6157 = vadd.f32 0.0, %v6156
      %6158 = vmatmul.bf16.gmra.mxu0 %v6058
      %v6159 = vpop.f32.mrf.mxu0
      %v6160 = vadd.f32 0.0, %v6159
      %v6161 = vpop.f32.mrf.mxu0
      %v6162 = vadd.f32 0.0, %v6161
      %6163 = vmatmul.bf16.gmra.mxu0 %v6060
      %v6164 = vpop.f32.mrf.mxu0
      %v6165 = vadd.f32 0.0, %v6164
      %v6166 = vpop.f32.mrf.mxu0
      %v6167 = vadd.f32 0.0, %v6166
      %6168 = vmatmul.bf16.gmra.mxu0 %v6062
      %v6169 = vpop.f32.mrf.mxu0
      %v6170 = vadd.f32 0.0, %v6169
      %v6171 = vpop.f32.mrf.mxu0
      %v6172 = vadd.f32 0.0, %v6171
      %6173 = vmatmul.bf16.gmra.mxu0 %v6064
      %v6174 = vpop.f32.mrf.mxu0
      %v6175 = vadd.f32 0.0, %v6174
      %v6176 = vpop.f32.mrf.mxu0
      %v6177 = vadd.f32 0.0, %v6176
      %6178 = vmatmul.bf16.gmra.mxu0 %v6066
      %v6179 = vpop.f32.mrf.mxu0
      %v6180 = vadd.f32 0.0, %v6179
      %v6181 = vpop.f32.mrf.mxu0
      %v6182 = vadd.f32 0.0, %v6181
      %6183 = vmatmul.bf16.gmra.mxu0 %v6068
      %v6184 = vpop.f32.mrf.mxu0
      %v6185 = vadd.f32 0.0, %v6184
      %v6186 = vpop.f32.mrf.mxu0
      %v6187 = vadd.f32 0.0, %v6186
      %6188 = vmatmul.bf16.gmra.mxu0 %v6070
      %v6189 = vpop.f32.mrf.mxu0
      %v6190 = vadd.f32 0.0, %v6189
      %v6191 = vpop.f32.mrf.mxu0
      %v6192 = vadd.f32 0.0, %v6191
      %6193 = vmatmul.bf16.gmra.mxu0 %v6072
      %v6194 = vpop.f32.mrf.mxu0
      %v6195 = vadd.f32 0.0, %v6194
      %v6196 = vpop.f32.mrf.mxu0
      %v6197 = vadd.f32 0.0, %v6196
      %6198 = vmatmul.bf16.gmra.mxu0 %v6074
      %v6199 = vpop.f32.mrf.mxu0
      %v6200 = vadd.f32 0.0, %v6199
      %v6201 = vpop.f32.mrf.mxu0
      %v6202 = vadd.f32 0.0, %v6201
      %6203 = vmatmul.bf16.gmra.mxu0 %v6076
      %v6204 = vpop.f32.mrf.mxu0
      %v6205 = vadd.f32 0.0, %v6204
      %v6206 = vpop.f32.mrf.mxu0
      %v6207 = vadd.f32 0.0, %v6206
      %6208 = vmatmul.bf16.gmra.mxu0 %v6078
      %v6209 = vpop.f32.mrf.mxu0
      %v6210 = vadd.f32 0.0, %v6209
      %v6211 = vpop.f32.mrf.mxu0
      %v6212 = vadd.f32 0.0, %v6211
      %6213 = vmatmul.bf16.gmra.mxu0 %v6080
      %v6214 = vpop.f32.mrf.mxu0
      %v6215 = vadd.f32 0.0, %v6214
      %v6216 = vpop.f32.mrf.mxu0
      %v6217 = vadd.f32 0.0, %v6216
      %6218 = vdwg.mxu0
      %6219 = vmatpush.bf16.msra.mxu0 %v6113
      %6220 = vmatpush.bf16.msra.mxu0 %v6111
      %6221 = vmatpush.bf16.msra.mxu0 %v6109
      %6222 = vmatpush.bf16.msra.mxu0 %v6107
      %6223 = vmatpush.bf16.msra.mxu0 %v6105
      %6224 = vmatpush.bf16.msra.mxu0 %v6103
      %6225 = vmatpush.bf16.msra.mxu0 %v6101
      %6226 = vmatpush.bf16.msra.mxu0 %v6099
      %6227 = vmatmul.bf16.gmra.mxu0 %v6051
      %v6228 = vpop.f32.mrf.mxu0
      %v6229 = vadd.f32 %v6140, %v6228
      %v6230 = vpop.f32.mrf.mxu0
      %v6231 = vadd.f32 %v6142, %v6230
      %6232 = vmatmul.bf16.gmra.mxu0 %v6053
      %v6233 = vpop.f32.mrf.mxu0
      %v6234 = vadd.f32 %v6145, %v6233
      %v6235 = vpop.f32.mrf.mxu0
      %v6236 = vadd.f32 %v6147, %v6235
      %6237 = vmatmul.bf16.gmra.mxu0 %v6055
      %v6238 = vpop.f32.mrf.mxu0
      %v6239 = vadd.f32 %v6150, %v6238
      %v6240 = vpop.f32.mrf.mxu0
      %v6241 = vadd.f32 %v6152, %v6240
      %6242 = vmatmul.bf16.gmra.mxu0 %v6057
      %v6243 = vpop.f32.mrf.mxu0
      %v6244 = vadd.f32 %v6155, %v6243
      %v6245 = vpop.f32.mrf.mxu0
      %v6246 = vadd.f32 %v6157, %v6245
      %6247 = vmatmul.bf16.gmra.mxu0 %v6059
      %v6248 = vpop.f32.mrf.mxu0
      %v6249 = vadd.f32 %v6160, %v6248
      %v6250 = vpop.f32.mrf.mxu0
      %v6251 = vadd.f32 %v6162, %v6250
      %6252 = vmatmul.bf16.gmra.mxu0 %v6061
      %v6253 = vpop.f32.mrf.mxu0
      %v6254 = vadd.f32 %v6165, %v6253
      %v6255 = vpop.f32.mrf.mxu0
      %v6256 = vadd.f32 %v6167, %v6255
      %6257 = vmatmul.bf16.gmra.mxu0 %v6063
      %v6258 = vpop.f32.mrf.mxu0
      %v6259 = vadd.f32 %v6170, %v6258
      %v6260 = vpop.f32.mrf.mxu0
      %v6261 = vadd.f32 %v6172, %v6260
      %6262 = vmatmul.bf16.gmra.mxu0 %v6065
      %v6263 = vpop.f32.mrf.mxu0
      %v6264 = vadd.f32 %v6175, %v6263
      %v6265 = vpop.f32.mrf.mxu0
      %v6266 = vadd.f32 %v6177, %v6265
      %6267 = vmatmul.bf16.gmra.mxu0 %v6067
      %v6268 = vpop.f32.mrf.mxu0
      %v6269 = vadd.f32 %v6180, %v6268
      %v6270 = vpop.f32.mrf.mxu0
      %v6271 = vadd.f32 %v6182, %v6270
      %6272 = vmatmul.bf16.gmra.mxu0 %v6069
      %v6273 = vpop.f32.mrf.mxu0
      %v6274 = vadd.f32 %v6185, %v6273
      %v6275 = vpop.f32.mrf.mxu0
      %v6276 = vadd.f32 %v6187, %v6275
      %6277 = vmatmul.bf16.gmra.mxu0 %v6071
      %v6278 = vpop.f32.mrf.mxu0
      %v6279 = vadd.f32 %v6190, %v6278
      %v6280 = vpop.f32.mrf.mxu0
      %v6281 = vadd.f32 %v6192, %v6280
      %6282 = vmatmul.bf16.gmra.mxu0 %v6073
      %v6283 = vpop.f32.mrf.mxu0
      %v6284 = vadd.f32 %v6195, %v6283
      %v6285 = vpop.f32.mrf.mxu0
      %v6286 = vadd.f32 %v6197, %v6285
      %6287 = vmatmul.bf16.gmra.mxu0 %v6075
      %v6288 = vpop.f32.mrf.mxu0
      %v6289 = vadd.f32 %v6200, %v6288
      %v6290 = vpop.f32.mrf.mxu0
      %v6291 = vadd.f32 %v6202, %v6290
      %6292 = vmatmul.bf16.gmra.mxu0 %v6077
      %v6293 = vpop.f32.mrf.mxu0
      %v6294 = vadd.f32 %v6205, %v6293
      %v6295 = vpop.f32.mrf.mxu0
      %v6296 = vadd.f32 %v6207, %v6295
      %6297 = vmatmul.bf16.gmra.mxu0 %v6079
      %v6298 = vpop.f32.mrf.mxu0
      %v6299 = vadd.f32 %v6210, %v6298
      %v6300 = vpop.f32.mrf.mxu0
      %v6301 = vadd.f32 %v6212, %v6300
      %6302 = vmatmul.bf16.gmra.mxu0 %v6081
      %v6303 = vpop.f32.mrf.mxu0
      %v6304 = vadd.f32 %v6215, %v6303
      %v6305 = vpop.f32.mrf.mxu0
      %v6306 = vadd.f32 %v6217, %v6305
      %6307 = vdwg.mxu0
      %6308 = vrot.lane.b32.xlu0 %v2999, 32
      %v6309 = vpop.permute.xlu0 %6308
      %6310 = vrot.lane.b32.xlu0 %v3000, 32
      %v6311 = vpop.permute.xlu0 %6310
      %6312 = vrot.lane.b32.xlu0 %v3001, 32
      %v6313 = vpop.permute.xlu0 %6312
      %6314 = vrot.lane.b32.xlu0 %v3002, 32
      %v6315 = vpop.permute.xlu0 %6314
      %6316 = vrot.lane.b32.xlu0 %v3003, 32
      %v6317 = vpop.permute.xlu0 %6316
      %6318 = vrot.lane.b32.xlu0 %v3004, 32
      %v6319 = vpop.permute.xlu0 %6318
      %6320 = vrot.lane.b32.xlu0 %v3005, 32
      %v6321 = vpop.permute.xlu0 %6320
      %6322 = vrot.lane.b32.xlu0 %v3006, 32
      %v6323 = vpop.permute.xlu0 %6322
      %6324 = vrot.lane.b32.xlu0 %v3007, 32
      %v6325 = vpop.permute.xlu0 %6324
      %6326 = vrot.lane.b32.xlu0 %v3008, 32
      %v6327 = vpop.permute.xlu0 %6326
      %6328 = vrot.lane.b32.xlu0 %v3009, 32
      %v6329 = vpop.permute.xlu0 %6328
      %6330 = vrot.lane.b32.xlu0 %v3010, 32
      %v6331 = vpop.permute.xlu0 %6330
      %6332 = vrot.lane.b32.xlu0 %v3011, 32
      %v6333 = vpop.permute.xlu0 %6332
      %6334 = vrot.lane.b32.xlu0 %v3012, 32
      %v6335 = vpop.permute.xlu0 %6334
      %6336 = vrot.lane.b32.xlu0 %v3013, 32
      %v6337 = vpop.permute.xlu0 %6336
      %6338 = vrot.lane.b32.xlu0 %v3014, 32
      %v6339 = vpop.permute.xlu0 %6338
      %6340 = vrot.lane.b32.xlu0 %v3079, 32
      %v6341 = vpop.permute.xlu0 %6340
      %6342 = vrot.lane.b32.xlu0 %v3080, 32
      %v6343 = vpop.permute.xlu0 %6342
      %6344 = vrot.lane.b32.xlu0 %v3081, 32
      %v6345 = vpop.permute.xlu0 %6344
      %6346 = vrot.lane.b32.xlu0 %v3082, 32
      %v6347 = vpop.permute.xlu0 %6346
      %6348 = vrot.lane.b32.xlu0 %v3083, 32
      %v6349 = vpop.permute.xlu0 %6348
      %6350 = vrot.lane.b32.xlu0 %v3084, 32
      %v6351 = vpop.permute.xlu0 %6350
      %6352 = vrot.lane.b32.xlu0 %v3085, 32
      %v6353 = vpop.permute.xlu0 %6352
      %6354 = vrot.lane.b32.xlu0 %v3086, 32
      %v6355 = vpop.permute.xlu0 %6354
      %6356 = vrot.lane.b32.xlu0 %v3087, 32
      %v6357 = vpop.permute.xlu0 %6356
      %6358 = vrot.lane.b32.xlu0 %v3088, 32
      %v6359 = vpop.permute.xlu0 %6358
      %6360 = vrot.lane.b32.xlu0 %v3089, 32
      %v6361 = vpop.permute.xlu0 %6360
      %6362 = vrot.lane.b32.xlu0 %v3090, 32
      %v6363 = vpop.permute.xlu0 %6362
      %6364 = vrot.lane.b32.xlu0 %v3091, 32
      %v6365 = vpop.permute.xlu0 %6364
      %6366 = vrot.lane.b32.xlu0 %v3092, 32
      %v6367 = vpop.permute.xlu0 %6366
      %6368 = vrot.lane.b32.xlu0 %v3093, 32
      %v6369 = vpop.permute.xlu0 %6368
      %6370 = vrot.lane.b32.xlu0 %v3094, 32
      %v6371 = vpop.permute.xlu0 %6370
      %v6373 = vsel %vm3095, %v6309, 0
      %v6376 = vsel %vm3095, %v6311, 0
      %v6379 = vsel %vm3095, %v6313, 0
      %v6382 = vsel %vm3095, %v6315, 0
      %v6385 = vsel %vm3095, %v6317, 0
      %v6388 = vsel %vm3095, %v6319, 0
      %v6391 = vsel %vm3095, %v6321, 0
      %v6394 = vsel %vm3095, %v6323, 0
      %v6397 = vsel %vm3095, %v6325, 0
      %v6400 = vsel %vm3095, %v6327, 0
      %v6403 = vsel %vm3095, %v6329, 0
      %v6406 = vsel %vm3095, %v6331, 0
      %v6409 = vsel %vm3095, %v6333, 0
      %v6412 = vsel %vm3095, %v6335, 0
      %v6415 = vsel %vm3095, %v6337, 0
      %v6418 = vsel %vm3095, %v6339, 0
      %v6421 = vsel %vm3095, %v6341, 0
      %v6424 = vsel %vm3095, %v6343, 0
      %v6427 = vsel %vm3095, %v6345, 0
      %v6430 = vsel %vm3095, %v6347, 0
      %v6433 = vsel %vm3095, %v6349, 0
      %v6436 = vsel %vm3095, %v6351, 0
      %v6439 = vsel %vm3095, %v6353, 0
      %v6442 = vsel %vm3095, %v6355, 0
      %v6445 = vsel %vm3095, %v6357, 0
      %v6448 = vsel %vm3095, %v6359, 0
      %v6451 = vsel %vm3095, %v6361, 0
      %v6454 = vsel %vm3095, %v6363, 0
      %v6457 = vsel %vm3095, %v6365, 0
      %v6460 = vsel %vm3095, %v6367, 0
      %v6463 = vsel %vm3095, %v6369, 0
      %v6466 = vsel %vm3095, %v6371, 0
      %6468 = vmatpush.bf16.xpose.msra.mxu0 %v6442
      %6469 = vmatpush.bf16.xpose.msra.mxu0 %v6439
      %6470 = vmatpush.bf16.xpose.msra.mxu0 %v6436
      %6471 = vmatpush.bf16.xpose.msra.mxu0 %v6433
      %6472 = vmatpush.bf16.xpose.msra.mxu0 %v6430
      %6473 = vmatpush.bf16.xpose.msra.mxu0 %v6427
      %6474 = vmatpush.bf16.xpose.msra.mxu0 %v6424
      %6475 = vmatpush.bf16.xpose.msra.mxu0 %v6421
      %6476 = vmatmul.bf16.gmra.mxu0 %v6373
      %v6477 = vpop.f32.mrf.mxu0
      %v6478 = vadd.f32 0.0, %v6477
      %v6479 = vpop.f32.mrf.mxu0
      %v6480 = vadd.f32 0.0, %v6479
      %6481 = vmatmul.bf16.gmra.mxu0 %v6376
      %v6482 = vpop.f32.mrf.mxu0
      %v6483 = vadd.f32 0.0, %v6482
      %v6484 = vpop.f32.mrf.mxu0
      %v6485 = vadd.f32 0.0, %v6484
      %6486 = vmatmul.bf16.gmra.mxu0 %v6379
      %v6487 = vpop.f32.mrf.mxu0
      %v6488 = vadd.f32 0.0, %v6487
      %v6489 = vpop.f32.mrf.mxu0
      %v6490 = vadd.f32 0.0, %v6489
      %6491 = vmatmul.bf16.gmra.mxu0 %v6382
      %v6492 = vpop.f32.mrf.mxu0
      %v6493 = vadd.f32 0.0, %v6492
      %v6494 = vpop.f32.mrf.mxu0
      %v6495 = vadd.f32 0.0, %v6494
      %6496 = vmatmul.bf16.gmra.mxu0 %v6385
      %v6497 = vpop.f32.mrf.mxu0
      %v6498 = vadd.f32 0.0, %v6497
      %v6499 = vpop.f32.mrf.mxu0
      %v6500 = vadd.f32 0.0, %v6499
      %6501 = vmatmul.bf16.gmra.mxu0 %v6388
      %v6502 = vpop.f32.mrf.mxu0
      %v6503 = vadd.f32 0.0, %v6502
      %v6504 = vpop.f32.mrf.mxu0
      %v6505 = vadd.f32 0.0, %v6504
      %6506 = vmatmul.bf16.gmra.mxu0 %v6391
      %v6507 = vpop.f32.mrf.mxu0
      %v6508 = vadd.f32 0.0, %v6507
      %v6509 = vpop.f32.mrf.mxu0
      %v6510 = vadd.f32 0.0, %v6509
      %6511 = vmatmul.bf16.gmra.mxu0 %v6394
      %v6512 = vpop.f32.mrf.mxu0
      %v6513 = vadd.f32 0.0, %v6512
      %v6514 = vpop.f32.mrf.mxu0
      %v6515 = vadd.f32 0.0, %v6514
      %6516 = vmatmul.bf16.gmra.mxu0 %v6397
      %v6517 = vpop.f32.mrf.mxu0
      %v6518 = vadd.f32 0.0, %v6517
      %v6519 = vpop.f32.mrf.mxu0
      %v6520 = vadd.f32 0.0, %v6519
      %6521 = vmatmul.bf16.gmra.mxu0 %v6400
      %v6522 = vpop.f32.mrf.mxu0
      %v6523 = vadd.f32 0.0, %v6522
      %v6524 = vpop.f32.mrf.mxu0
      %v6525 = vadd.f32 0.0, %v6524
      %6526 = vmatmul.bf16.gmra.mxu0 %v6403
      %v6527 = vpop.f32.mrf.mxu0
      %v6528 = vadd.f32 0.0, %v6527
      %v6529 = vpop.f32.mrf.mxu0
      %v6530 = vadd.f32 0.0, %v6529
      %6531 = vmatmul.bf16.gmra.mxu0 %v6406
      %v6532 = vpop.f32.mrf.mxu0
      %v6533 = vadd.f32 0.0, %v6532
      %v6534 = vpop.f32.mrf.mxu0
      %v6535 = vadd.f32 0.0, %v6534
      %6536 = vmatmul.bf16.gmra.mxu0 %v6409
      %v6537 = vpop.f32.mrf.mxu0
      %v6538 = vadd.f32 0.0, %v6537
      %v6539 = vpop.f32.mrf.mxu0
      %v6540 = vadd.f32 0.0, %v6539
      %6541 = vmatmul.bf16.gmra.mxu0 %v6412
      %v6542 = vpop.f32.mrf.mxu0
      %v6543 = vadd.f32 0.0, %v6542
      %v6544 = vpop.f32.mrf.mxu0
      %v6545 = vadd.f32 0.0, %v6544
      %6546 = vmatmul.bf16.gmra.mxu0 %v6415
      %v6547 = vpop.f32.mrf.mxu0
      %v6548 = vadd.f32 0.0, %v6547
      %v6549 = vpop.f32.mrf.mxu0
      %v6550 = vadd.f32 0.0, %v6549
      %6551 = vmatmul.bf16.gmra.mxu0 %v6418
      %v6552 = vpop.f32.mrf.mxu0
      %v6553 = vadd.f32 0.0, %v6552
      %v6554 = vpop.f32.mrf.mxu0
      %v6555 = vadd.f32 0.0, %v6554
      %6556 = vdwg.mxu0
      %6557 = vmatpush.bf16.xpose.msra.mxu0 %v6466
      %6558 = vmatpush.bf16.xpose.msra.mxu0 %v6463
      %6559 = vmatpush.bf16.xpose.msra.mxu0 %v6460
      %6560 = vmatpush.bf16.xpose.msra.mxu0 %v6457
      %6561 = vmatpush.bf16.xpose.msra.mxu0 %v6454
      %6562 = vmatpush.bf16.xpose.msra.mxu0 %v6451
      %6563 = vmatpush.bf16.xpose.msra.mxu0 %v6448
      %6564 = vmatpush.bf16.xpose.msra.mxu0 %v6445
      %6565 = vmatmul.bf16.gmra.mxu0 %v6373
      %v6566 = vpop.f32.mrf.mxu0
      %v6567 = vadd.f32 0.0, %v6566
      %v6568 = vpop.f32.mrf.mxu0
      %v6569 = vadd.f32 0.0, %v6568
      %6570 = vmatmul.bf16.gmra.mxu0 %v6376
      %v6571 = vpop.f32.mrf.mxu0
      %v6572 = vadd.f32 0.0, %v6571
      %v6573 = vpop.f32.mrf.mxu0
      %v6574 = vadd.f32 0.0, %v6573
      %6575 = vmatmul.bf16.gmra.mxu0 %v6379
      %v6576 = vpop.f32.mrf.mxu0
      %v6577 = vadd.f32 0.0, %v6576
      %v6578 = vpop.f32.mrf.mxu0
      %v6579 = vadd.f32 0.0, %v6578
      %6580 = vmatmul.bf16.gmra.mxu0 %v6382
      %v6581 = vpop.f32.mrf.mxu0
      %v6582 = vadd.f32 0.0, %v6581
      %v6583 = vpop.f32.mrf.mxu0
      %v6584 = vadd.f32 0.0, %v6583
      %6585 = vmatmul.bf16.gmra.mxu0 %v6385
      %v6586 = vpop.f32.mrf.mxu0
      %v6587 = vadd.f32 0.0, %v6586
      %v6588 = vpop.f32.mrf.mxu0
      %v6589 = vadd.f32 0.0, %v6588
      %6590 = vmatmul.bf16.gmra.mxu0 %v6388
      %v6591 = vpop.f32.mrf.mxu0
      %v6592 = vadd.f32 0.0, %v6591
      %v6593 = vpop.f32.mrf.mxu0
      %v6594 = vadd.f32 0.0, %v6593
      %6595 = vmatmul.bf16.gmra.mxu0 %v6391
      %v6596 = vpop.f32.mrf.mxu0
      %v6597 = vadd.f32 0.0, %v6596
      %v6598 = vpop.f32.mrf.mxu0
      %v6599 = vadd.f32 0.0, %v6598
      %6600 = vmatmul.bf16.gmra.mxu0 %v6394
      %v6601 = vpop.f32.mrf.mxu0
      %v6602 = vadd.f32 0.0, %v6601
      %v6603 = vpop.f32.mrf.mxu0
      %v6604 = vadd.f32 0.0, %v6603
      %6605 = vmatmul.bf16.gmra.mxu0 %v6397
      %v6606 = vpop.f32.mrf.mxu0
      %v6607 = vadd.f32 0.0, %v6606
      %v6608 = vpop.f32.mrf.mxu0
      %v6609 = vadd.f32 0.0, %v6608
      %6610 = vmatmul.bf16.gmra.mxu0 %v6400
      %v6611 = vpop.f32.mrf.mxu0
      %v6612 = vadd.f32 0.0, %v6611
      %v6613 = vpop.f32.mrf.mxu0
      %v6614 = vadd.f32 0.0, %v6613
      %6615 = vmatmul.bf16.gmra.mxu0 %v6403
      %v6616 = vpop.f32.mrf.mxu0
      %v6617 = vadd.f32 0.0, %v6616
      %v6618 = vpop.f32.mrf.mxu0
      %v6619 = vadd.f32 0.0, %v6618
      %6620 = vmatmul.bf16.gmra.mxu0 %v6406
      %v6621 = vpop.f32.mrf.mxu0
      %v6622 = vadd.f32 0.0, %v6621
      %v6623 = vpop.f32.mrf.mxu0
      %v6624 = vadd.f32 0.0, %v6623
      %6625 = vmatmul.bf16.gmra.mxu0 %v6409
      %v6626 = vpop.f32.mrf.mxu0
      %v6627 = vadd.f32 0.0, %v6626
      %v6628 = vpop.f32.mrf.mxu0
      %v6629 = vadd.f32 0.0, %v6628
      %6630 = vmatmul.bf16.gmra.mxu0 %v6412
      %v6631 = vpop.f32.mrf.mxu0
      %v6632 = vadd.f32 0.0, %v6631
      %v6633 = vpop.f32.mrf.mxu0
      %v6634 = vadd.f32 0.0, %v6633
      %6635 = vmatmul.bf16.gmra.mxu0 %v6415
      %v6636 = vpop.f32.mrf.mxu0
      %v6637 = vadd.f32 0.0, %v6636
      %v6638 = vpop.f32.mrf.mxu0
      %v6639 = vadd.f32 0.0, %v6638
      %6640 = vmatmul.bf16.gmra.mxu0 %v6418
      %v6641 = vpop.f32.mrf.mxu0
      %v6642 = vadd.f32 0.0, %v6641
      %v6643 = vpop.f32.mrf.mxu0
      %v6644 = vadd.f32 0.0, %v6643
      %6645 = vdwg.mxu0
      %v6646 = vmax.f32 %v6478, %v6567
      %6647 = vmax.xlane.f32.xlu0 %v6646
      %v6648 = vpop.xlane.xlu0 %6647
      %v6649 = vmax.f32 %v6480, %v6569
      %6650 = vmax.xlane.f32.xlu0 %v6649
      %v6651 = vpop.xlane.xlu0 %6650
      %v6652 = vmax.f32 %v6483, %v6572
      %6653 = vmax.xlane.f32.xlu0 %v6652
      %v6654 = vpop.xlane.xlu0 %6653
      %v6655 = vmax.f32 %v6485, %v6574
      %6656 = vmax.xlane.f32.xlu0 %v6655
      %v6657 = vpop.xlane.xlu0 %6656
      %v6658 = vmax.f32 %v6488, %v6577
      %6659 = vmax.xlane.f32.xlu0 %v6658
      %v6660 = vpop.xlane.xlu0 %6659
      %v6661 = vmax.f32 %v6490, %v6579
      %6662 = vmax.xlane.f32.xlu0 %v6661
      %v6663 = vpop.xlane.xlu0 %6662
      %v6664 = vmax.f32 %v6493, %v6582
      %6665 = vmax.xlane.f32.xlu0 %v6664
      %v6666 = vpop.xlane.xlu0 %6665
      %v6667 = vmax.f32 %v6495, %v6584
      %6668 = vmax.xlane.f32.xlu0 %v6667
      %v6669 = vpop.xlane.xlu0 %6668
      %v6670 = vmax.f32 %v6498, %v6587
      %6671 = vmax.xlane.f32.xlu0 %v6670
      %v6672 = vpop.xlane.xlu0 %6671
      %v6673 = vmax.f32 %v6500, %v6589
      %6674 = vmax.xlane.f32.xlu0 %v6673
      %v6675 = vpop.xlane.xlu0 %6674
      %v6676 = vmax.f32 %v6503, %v6592
      %6677 = vmax.xlane.f32.xlu0 %v6676
      %v6678 = vpop.xlane.xlu0 %6677
      %v6679 = vmax.f32 %v6505, %v6594
      %6680 = vmax.xlane.f32.xlu0 %v6679
      %v6681 = vpop.xlane.xlu0 %6680
      %v6682 = vmax.f32 %v6508, %v6597
      %6683 = vmax.xlane.f32.xlu0 %v6682
      %v6684 = vpop.xlane.xlu0 %6683
      %v6685 = vmax.f32 %v6510, %v6599
      %6686 = vmax.xlane.f32.xlu0 %v6685
      %v6687 = vpop.xlane.xlu0 %6686
      %v6688 = vmax.f32 %v6513, %v6602
      %6689 = vmax.xlane.f32.xlu0 %v6688
      %v6690 = vpop.xlane.xlu0 %6689
      %v6691 = vmax.f32 %v6515, %v6604
      %6692 = vmax.xlane.f32.xlu0 %v6691
      %v6693 = vpop.xlane.xlu0 %6692
      %v6694 = vmax.f32 %v6518, %v6607
      %6695 = vmax.xlane.f32.xlu0 %v6694
      %v6696 = vpop.xlane.xlu0 %6695
      %v6697 = vmax.f32 %v6520, %v6609
      %6698 = vmax.xlane.f32.xlu0 %v6697
      %v6699 = vpop.xlane.xlu0 %6698
      %v6700 = vmax.f32 %v6523, %v6612
      %6701 = vmax.xlane.f32.xlu0 %v6700
      %v6702 = vpop.xlane.xlu0 %6701
      %v6703 = vmax.f32 %v6525, %v6614
      %6704 = vmax.xlane.f32.xlu0 %v6703
      %v6705 = vpop.xlane.xlu0 %6704
      %v6706 = vmax.f32 %v6528, %v6617
      %6707 = vmax.xlane.f32.xlu0 %v6706
      %v6708 = vpop.xlane.xlu0 %6707
      %v6709 = vmax.f32 %v6530, %v6619
      %6710 = vmax.xlane.f32.xlu0 %v6709
      %v6711 = vpop.xlane.xlu0 %6710
      %v6712 = vmax.f32 %v6533, %v6622
      %6713 = vmax.xlane.f32.xlu0 %v6712
      %v6714 = vpop.xlane.xlu0 %6713
      %v6715 = vmax.f32 %v6535, %v6624
      %6716 = vmax.xlane.f32.xlu0 %v6715
      %v6717 = vpop.xlane.xlu0 %6716
      %v6718 = vmax.f32 %v6538, %v6627
      %6719 = vmax.xlane.f32.xlu0 %v6718
      %v6720 = vpop.xlane.xlu0 %6719
      %v6721 = vmax.f32 %v6540, %v6629
      %6722 = vmax.xlane.f32.xlu0 %v6721
      %v6723 = vpop.xlane.xlu0 %6722
      %v6724 = vmax.f32 %v6543, %v6632
      %6725 = vmax.xlane.f32.xlu0 %v6724
      %v6726 = vpop.xlane.xlu0 %6725
      %v6727 = vmax.f32 %v6545, %v6634
      %6728 = vmax.xlane.f32.xlu0 %v6727
      %v6729 = vpop.xlane.xlu0 %6728
      %v6730 = vmax.f32 %v6548, %v6637
      %6731 = vmax.xlane.f32.xlu0 %v6730
      %v6732 = vpop.xlane.xlu0 %6731
      %v6733 = vmax.f32 %v6550, %v6639
      %6734 = vmax.xlane.f32.xlu0 %v6733
      %v6735 = vpop.xlane.xlu0 %6734
      %v6736 = vmax.f32 %v6553, %v6642
      %6737 = vmax.xlane.f32.xlu0 %v6736
      %v6738 = vpop.xlane.xlu0 %6737
      %v6739 = vmax.f32 %v6555, %v6644
      %6740 = vmax.xlane.f32.xlu0 %v6739
      %v6741 = vpop.xlane.xlu0 %6740
      %v6742 = vsub.f32 %v6478, %v6648
      %v6743 = vsub.f32 %v6567, %v6648
      %v6744 = vsub.f32 %v6480, %v6651
      %v6745 = vsub.f32 %v6569, %v6651
      %v6746 = vsub.f32 %v6483, %v6654
      %v6747 = vsub.f32 %v6572, %v6654
      %v6748 = vsub.f32 %v6485, %v6657
      %v6749 = vsub.f32 %v6574, %v6657
      %v6750 = vsub.f32 %v6488, %v6660
      %v6751 = vsub.f32 %v6577, %v6660
      %v6752 = vsub.f32 %v6490, %v6663
      %v6753 = vsub.f32 %v6579, %v6663
      %v6754 = vsub.f32 %v6493, %v6666
      %v6755 = vsub.f32 %v6582, %v6666
      %v6756 = vsub.f32 %v6495, %v6669
      %v6757 = vsub.f32 %v6584, %v6669
      %v6758 = vsub.f32 %v6498, %v6672
      %v6759 = vsub.f32 %v6587, %v6672
      %v6760 = vsub.f32 %v6500, %v6675
      %v6761 = vsub.f32 %v6589, %v6675
      %v6762 = vsub.f32 %v6503, %v6678
      %v6763 = vsub.f32 %v6592, %v6678
      %v6764 = vsub.f32 %v6505, %v6681
      %v6765 = vsub.f32 %v6594, %v6681
      %v6766 = vsub.f32 %v6508, %v6684
      %v6767 = vsub.f32 %v6597, %v6684
      %v6768 = vsub.f32 %v6510, %v6687
      %v6769 = vsub.f32 %v6599, %v6687
      %v6770 = vsub.f32 %v6513, %v6690
      %v6771 = vsub.f32 %v6602, %v6690
      %v6772 = vsub.f32 %v6515, %v6693
      %v6773 = vsub.f32 %v6604, %v6693
      %v6774 = vsub.f32 %v6518, %v6696
      %v6775 = vsub.f32 %v6607, %v6696
      %v6776 = vsub.f32 %v6520, %v6699
      %v6777 = vsub.f32 %v6609, %v6699
      %v6778 = vsub.f32 %v6523, %v6702
      %v6779 = vsub.f32 %v6612, %v6702
      %v6780 = vsub.f32 %v6525, %v6705
      %v6781 = vsub.f32 %v6614, %v6705
      %v6782 = vsub.f32 %v6528, %v6708
      %v6783 = vsub.f32 %v6617, %v6708
      %v6784 = vsub.f32 %v6530, %v6711
      %v6785 = vsub.f32 %v6619, %v6711
      %v6786 = vsub.f32 %v6533, %v6714
      %v6787 = vsub.f32 %v6622, %v6714
      %v6788 = vsub.f32 %v6535, %v6717
      %v6789 = vsub.f32 %v6624, %v6717
      %v6790 = vsub.f32 %v6538, %v6720
      %v6791 = vsub.f32 %v6627, %v6720
      %v6792 = vsub.f32 %v6540, %v6723
      %v6793 = vsub.f32 %v6629, %v6723
      %v6794 = vsub.f32 %v6543, %v6726
      %v6795 = vsub.f32 %v6632, %v6726
      %v6796 = vsub.f32 %v6545, %v6729
      %v6797 = vsub.f32 %v6634, %v6729
      %v6798 = vsub.f32 %v6548, %v6732
      %v6799 = vsub.f32 %v6637, %v6732
      %v6800 = vsub.f32 %v6550, %v6735
      %v6801 = vsub.f32 %v6639, %v6735
      %v6802 = vsub.f32 %v6553, %v6738
      %v6803 = vsub.f32 %v6642, %v6738
      %v6804 = vsub.f32 %v6555, %v6741
      %v6805 = vsub.f32 %v6644, %v6741
      %v6806 = vmul.f32 %v6742, 1.442695
      %v6807 = vpow.pop %v6806
      %v6808 = vmul.f32 %v6743, 1.442695
      %v6809 = vpow.pop %v6808
      %v6810 = vmul.f32 %v6744, 1.442695
      %v6811 = vpow.pop %v6810
      %v6812 = vmul.f32 %v6745, 1.442695
      %v6813 = vpow.pop %v6812
      %v6814 = vmul.f32 %v6746, 1.442695
      %v6815 = vpow.pop %v6814
      %v6816 = vmul.f32 %v6747, 1.442695
      %v6817 = vpow.pop %v6816
      %v6818 = vmul.f32 %v6748, 1.442695
      %v6819 = vpow.pop %v6818
      %v6820 = vmul.f32 %v6749, 1.442695
      %v6821 = vpow.pop %v6820
      %v6822 = vmul.f32 %v6750, 1.442695
      %v6823 = vpow.pop %v6822
      %v6824 = vmul.f32 %v6751, 1.442695
      %v6825 = vpow.pop %v6824
      %v6826 = vmul.f32 %v6752, 1.442695
      %v6827 = vpow.pop %v6826
      %v6828 = vmul.f32 %v6753, 1.442695
      %v6829 = vpow.pop %v6828
      %v6830 = vmul.f32 %v6754, 1.442695
      %v6831 = vpow.pop %v6830
      %v6832 = vmul.f32 %v6755, 1.442695
      %v6833 = vpow.pop %v6832
      %v6834 = vmul.f32 %v6756, 1.442695
      %v6835 = vpow.pop %v6834
      %v6836 = vmul.f32 %v6757, 1.442695
      %v6837 = vpow.pop %v6836
      %v6838 = vmul.f32 %v6758, 1.442695
      %v6839 = vpow.pop %v6838
      %v6840 = vmul.f32 %v6759, 1.442695
      %v6841 = vpow.pop %v6840
      %v6842 = vmul.f32 %v6760, 1.442695
      %v6843 = vpow.pop %v6842
      %v6844 = vmul.f32 %v6761, 1.442695
      %v6845 = vpow.pop %v6844
      %v6846 = vmul.f32 %v6762, 1.442695
      %v6847 = vpow.pop %v6846
      %v6848 = vmul.f32 %v6763, 1.442695
      %v6849 = vpow.pop %v6848
      %v6850 = vmul.f32 %v6764, 1.442695
      %v6851 = vpow.pop %v6850
      %v6852 = vmul.f32 %v6765, 1.442695
      %v6853 = vpow.pop %v6852
      %v6854 = vmul.f32 %v6766, 1.442695
      %v6855 = vpow.pop %v6854
      %v6856 = vmul.f32 %v6767, 1.442695
      %v6857 = vpow.pop %v6856
      %v6858 = vmul.f32 %v6768, 1.442695
      %v6859 = vpow.pop %v6858
      %v6860 = vmul.f32 %v6769, 1.442695
      %v6861 = vpow.pop %v6860
      %v6862 = vmul.f32 %v6770, 1.442695
      %v6863 = vpow.pop %v6862
      %v6864 = vmul.f32 %v6771, 1.442695
      %v6865 = vpow.pop %v6864
      %v6866 = vmul.f32 %v6772, 1.442695
      %v6867 = vpow.pop %v6866
      %v6868 = vmul.f32 %v6773, 1.442695
      %v6869 = vpow.pop %v6868
      %v6870 = vmul.f32 %v6774, 1.442695
      %v6871 = vpow.pop %v6870
      %v6872 = vmul.f32 %v6775, 1.442695
      %v6873 = vpow.pop %v6872
      %v6874 = vmul.f32 %v6776, 1.442695
      %v6875 = vpow.pop %v6874
      %v6876 = vmul.f32 %v6777, 1.442695
      %v6877 = vpow.pop %v6876
      %v6878 = vmul.f32 %v6778, 1.442695
      %v6879 = vpow.pop %v6878
      %v6880 = vmul.f32 %v6779, 1.442695
      %v6881 = vpow.pop %v6880
      %v6882 = vmul.f32 %v6780, 1.442695
      %v6883 = vpow.pop %v6882
      %v6884 = vmul.f32 %v6781, 1.442695
      %v6885 = vpow.pop %v6884
      %v6886 = vmul.f32 %v6782, 1.442695
      %v6887 = vpow.pop %v6886
      %v6888 = vmul.f32 %v6783, 1.442695
      %v6889 = vpow.pop %v6888
      %v6890 = vmul.f32 %v6784, 1.442695
      %v6891 = vpow.pop %v6890
      %v6892 = vmul.f32 %v6785, 1.442695
      %v6893 = vpow.pop %v6892
      %v6894 = vmul.f32 %v6786, 1.442695
      %v6895 = vpow.pop %v6894
      %v6896 = vmul.f32 %v6787, 1.442695
      %v6897 = vpow.pop %v6896
      %v6898 = vmul.f32 %v6788, 1.442695
      %v6899 = vpow.pop %v6898
      %v6900 = vmul.f32 %v6789, 1.442695
      %v6901 = vpow.pop %v6900
      %v6902 = vmul.f32 %v6790, 1.442695
      %v6903 = vpow.pop %v6902
      %v6904 = vmul.f32 %v6791, 1.442695
      %v6905 = vpow.pop %v6904
      %v6906 = vmul.f32 %v6792, 1.442695
      %v6907 = vpow.pop %v6906
      %v6908 = vmul.f32 %v6793, 1.442695
      %v6909 = vpow.pop %v6908
      %v6910 = vmul.f32 %v6794, 1.442695
      %v6911 = vpow.pop %v6910
      %v6912 = vmul.f32 %v6795, 1.442695
      %v6913 = vpow.pop %v6912
      %v6914 = vmul.f32 %v6796, 1.442695
      %v6915 = vpow.pop %v6914
      %v6916 = vmul.f32 %v6797, 1.442695
      %v6917 = vpow.pop %v6916
      %v6918 = vmul.f32 %v6798, 1.442695
      %v6919 = vpow.pop %v6918
      %v6920 = vmul.f32 %v6799, 1.442695
      %v6921 = vpow.pop %v6920
      %v6922 = vmul.f32 %v6800, 1.442695
      %v6923 = vpow.pop %v6922
      %v6924 = vmul.f32 %v6801, 1.442695
      %v6925 = vpow.pop %v6924
      %v6926 = vmul.f32 %v6802, 1.442695
      %v6927 = vpow.pop %v6926
      %v6928 = vmul.f32 %v6803, 1.442695
      %v6929 = vpow.pop %v6928
      %v6930 = vmul.f32 %v6804, 1.442695
      %v6931 = vpow.pop %v6930
      %v6932 = vmul.f32 %v6805, 1.442695
      %v6933 = vpow.pop %v6932
      %v6934 = vadd.f32 %v6807, %v6809
      %6935 = vadd.xlane.f32.xlu0 %v6934
      %v6936 = vpop.xlane.xlu0 %6935
      %v6937 = vadd.f32 %v6811, %v6813
      %6938 = vadd.xlane.f32.xlu0 %v6937
      %v6939 = vpop.xlane.xlu0 %6938
      %v6940 = vadd.f32 %v6815, %v6817
      %6941 = vadd.xlane.f32.xlu0 %v6940
      %v6942 = vpop.xlane.xlu0 %6941
      %v6943 = vadd.f32 %v6819, %v6821
      %6944 = vadd.xlane.f32.xlu0 %v6943
      %v6945 = vpop.xlane.xlu0 %6944
      %v6946 = vadd.f32 %v6823, %v6825
      %6947 = vadd.xlane.f32.xlu0 %v6946
      %v6948 = vpop.xlane.xlu0 %6947
      %v6949 = vadd.f32 %v6827, %v6829
      %6950 = vadd.xlane.f32.xlu0 %v6949
      %v6951 = vpop.xlane.xlu0 %6950
      %v6952 = vadd.f32 %v6831, %v6833
      %6953 = vadd.xlane.f32.xlu0 %v6952
      %v6954 = vpop.xlane.xlu0 %6953
      %v6955 = vadd.f32 %v6835, %v6837
      %6956 = vadd.xlane.f32.xlu0 %v6955
      %v6957 = vpop.xlane.xlu0 %6956
      %v6958 = vadd.f32 %v6839, %v6841
      %6959 = vadd.xlane.f32.xlu0 %v6958
      %v6960 = vpop.xlane.xlu0 %6959
      %v6961 = vadd.f32 %v6843, %v6845
      %6962 = vadd.xlane.f32.xlu0 %v6961
      %v6963 = vpop.xlane.xlu0 %6962
      %v6964 = vadd.f32 %v6847, %v6849
      %6965 = vadd.xlane.f32.xlu0 %v6964
      %v6966 = vpop.xlane.xlu0 %6965
      %v6967 = vadd.f32 %v6851, %v6853
      %6968 = vadd.xlane.f32.xlu0 %v6967
      %v6969 = vpop.xlane.xlu0 %6968
      %v6970 = vadd.f32 %v6855, %v6857
      %6971 = vadd.xlane.f32.xlu0 %v6970
      %v6972 = vpop.xlane.xlu0 %6971
      %v6973 = vadd.f32 %v6859, %v6861
      %6974 = vadd.xlane.f32.xlu0 %v6973
      %v6975 = vpop.xlane.xlu0 %6974
      %v6976 = vadd.f32 %v6863, %v6865
      %6977 = vadd.xlane.f32.xlu0 %v6976
      %v6978 = vpop.xlane.xlu0 %6977
      %v6979 = vadd.f32 %v6867, %v6869
      %6980 = vadd.xlane.f32.xlu0 %v6979
      %v6981 = vpop.xlane.xlu0 %6980
      %v6982 = vadd.f32 %v6871, %v6873
      %6983 = vadd.xlane.f32.xlu0 %v6982
      %v6984 = vpop.xlane.xlu0 %6983
      %v6985 = vadd.f32 %v6875, %v6877
      %6986 = vadd.xlane.f32.xlu0 %v6985
      %v6987 = vpop.xlane.xlu0 %6986
      %v6988 = vadd.f32 %v6879, %v6881
      %6989 = vadd.xlane.f32.xlu0 %v6988
      %v6990 = vpop.xlane.xlu0 %6989
      %v6991 = vadd.f32 %v6883, %v6885
      %6992 = vadd.xlane.f32.xlu0 %v6991
      %v6993 = vpop.xlane.xlu0 %6992
      %v6994 = vadd.f32 %v6887, %v6889
      %6995 = vadd.xlane.f32.xlu0 %v6994
      %v6996 = vpop.xlane.xlu0 %6995
      %v6997 = vadd.f32 %v6891, %v6893
      %6998 = vadd.xlane.f32.xlu0 %v6997
      %v6999 = vpop.xlane.xlu0 %6998
      %v7000 = vadd.f32 %v6895, %v6897
      %7001 = vadd.xlane.f32.xlu0 %v7000
      %v7002 = vpop.xlane.xlu0 %7001
      %v7003 = vadd.f32 %v6899, %v6901
      %7004 = vadd.xlane.f32.xlu0 %v7003
      %v7005 = vpop.xlane.xlu0 %7004
      %v7006 = vadd.f32 %v6903, %v6905
      %7007 = vadd.xlane.f32.xlu0 %v7006
      %v7008 = vpop.xlane.xlu0 %7007
      %v7009 = vadd.f32 %v6907, %v6909
      %7010 = vadd.xlane.f32.xlu0 %v7009
      %v7011 = vpop.xlane.xlu0 %7010
      %v7012 = vadd.f32 %v6911, %v6913
      %7013 = vadd.xlane.f32.xlu0 %v7012
      %v7014 = vpop.xlane.xlu0 %7013
      %v7015 = vadd.f32 %v6915, %v6917
      %7016 = vadd.xlane.f32.xlu0 %v7015
      %v7017 = vpop.xlane.xlu0 %7016
      %v7018 = vadd.f32 %v6919, %v6921
      %7019 = vadd.xlane.f32.xlu0 %v7018
      %v7020 = vpop.xlane.xlu0 %7019
      %v7021 = vadd.f32 %v6923, %v6925
      %7022 = vadd.xlane.f32.xlu0 %v7021
      %v7023 = vpop.xlane.xlu0 %7022
      %v7024 = vadd.f32 %v6927, %v6929
      %7025 = vadd.xlane.f32.xlu0 %v7024
      %v7026 = vpop.xlane.xlu0 %7025
      %v7027 = vadd.f32 %v6931, %v6933
      %7028 = vadd.xlane.f32.xlu0 %v7027
      %v7029 = vpop.xlane.xlu0 %7028
      %v7030 = vrcp.pop %v6936
      %v7031 = vrcp.pop %v6939
      %v7032 = vrcp.pop %v6942
      %v7033 = vrcp.pop %v6945
      %v7034 = vrcp.pop %v6948
      %v7035 = vrcp.pop %v6951
      %v7036 = vrcp.pop %v6954
      %v7037 = vrcp.pop %v6957
      %v7038 = vrcp.pop %v6960
      %v7039 = vrcp.pop %v6963
      %v7040 = vrcp.pop %v6966
      %v7041 = vrcp.pop %v6969
      %v7042 = vrcp.pop %v6972
      %v7043 = vrcp.pop %v6975
      %v7044 = vrcp.pop %v6978
      %v7045 = vrcp.pop %v6981
      %v7046 = vrcp.pop %v6984
      %v7047 = vrcp.pop %v6987
      %v7048 = vrcp.pop %v6990
      %v7049 = vrcp.pop %v6993
      %v7050 = vrcp.pop %v6996
      %v7051 = vrcp.pop %v6999
      %v7052 = vrcp.pop %v7002
      %v7053 = vrcp.pop %v7005
      %v7054 = vrcp.pop %v7008
      %v7055 = vrcp.pop %v7011
      %v7056 = vrcp.pop %v7014
      %v7057 = vrcp.pop %v7017
      %v7058 = vrcp.pop %v7020
      %v7059 = vrcp.pop %v7023
      %v7060 = vrcp.pop %v7026
      %v7061 = vrcp.pop %v7029
      %v7062 = vmul.f32 %v6807, %v7030
      %v7063 = vmul.f32 %v6809, %v7030
      %v7064 = vmul.f32 %v6811, %v7031
      %v7065 = vmul.f32 %v6813, %v7031
      %v7066 = vmul.f32 %v6815, %v7032
      %v7067 = vmul.f32 %v6817, %v7032
      %v7068 = vmul.f32 %v6819, %v7033
      %v7069 = vmul.f32 %v6821, %v7033
      %v7070 = vmul.f32 %v6823, %v7034
      %v7071 = vmul.f32 %v6825, %v7034
      %v7072 = vmul.f32 %v6827, %v7035
      %v7073 = vmul.f32 %v6829, %v7035
      %v7074 = vmul.f32 %v6831, %v7036
      %v7075 = vmul.f32 %v6833, %v7036
      %v7076 = vmul.f32 %v6835, %v7037
      %v7077 = vmul.f32 %v6837, %v7037
      %v7078 = vmul.f32 %v6839, %v7038
      %v7079 = vmul.f32 %v6841, %v7038
      %v7080 = vmul.f32 %v6843, %v7039
      %v7081 = vmul.f32 %v6845, %v7039
      %v7082 = vmul.f32 %v6847, %v7040
      %v7083 = vmul.f32 %v6849, %v7040
      %v7084 = vmul.f32 %v6851, %v7041
      %v7085 = vmul.f32 %v6853, %v7041
      %v7086 = vmul.f32 %v6855, %v7042
      %v7087 = vmul.f32 %v6857, %v7042
      %v7088 = vmul.f32 %v6859, %v7043
      %v7089 = vmul.f32 %v6861, %v7043
      %v7090 = vmul.f32 %v6863, %v7044
      %v7091 = vmul.f32 %v6865, %v7044
      %v7092 = vmul.f32 %v6867, %v7045
      %v7093 = vmul.f32 %v6869, %v7045
      %v7094 = vmul.f32 %v6871, %v7046
      %v7095 = vmul.f32 %v6873, %v7046
      %v7096 = vmul.f32 %v6875, %v7047
      %v7097 = vmul.f32 %v6877, %v7047
      %v7098 = vmul.f32 %v6879, %v7048
      %v7099 = vmul.f32 %v6881, %v7048
      %v7100 = vmul.f32 %v6883, %v7049
      %v7101 = vmul.f32 %v6885, %v7049
      %v7102 = vmul.f32 %v6887, %v7050
      %v7103 = vmul.f32 %v6889, %v7050
      %v7104 = vmul.f32 %v6891, %v7051
      %v7105 = vmul.f32 %v6893, %v7051
      %v7106 = vmul.f32 %v6895, %v7052
      %v7107 = vmul.f32 %v6897, %v7052
      %v7108 = vmul.f32 %v6899, %v7053
      %v7109 = vmul.f32 %v6901, %v7053
      %v7110 = vmul.f32 %v6903, %v7054
      %v7111 = vmul.f32 %v6905, %v7054
      %v7112 = vmul.f32 %v6907, %v7055
      %v7113 = vmul.f32 %v6909, %v7055
      %v7114 = vmul.f32 %v6911, %v7056
      %v7115 = vmul.f32 %v6913, %v7056
      %v7116 = vmul.f32 %v6915, %v7057
      %v7117 = vmul.f32 %v6917, %v7057
      %v7118 = vmul.f32 %v6919, %v7058
      %v7119 = vmul.f32 %v6921, %v7058
      %v7120 = vmul.f32 %v6923, %v7059
      %v7121 = vmul.f32 %v6925, %v7059
      %v7122 = vmul.f32 %v6927, %v7060
      %v7123 = vmul.f32 %v6929, %v7060
      %v7124 = vmul.f32 %v6931, %v7061
      %v7125 = vmul.f32 %v6933, %v7061
      %v7126 = vpack.c.bf16 %v7064, %v7062
      %v7127 = vpack.c.bf16 %v7065, %v7063
      %v7128 = vpack.c.bf16 %v7068, %v7066
      %v7129 = vpack.c.bf16 %v7069, %v7067
      %v7130 = vpack.c.bf16 %v7072, %v7070
      %v7131 = vpack.c.bf16 %v7073, %v7071
      %v7132 = vpack.c.bf16 %v7076, %v7074
      %v7133 = vpack.c.bf16 %v7077, %v7075
      %v7134 = vpack.c.bf16 %v7080, %v7078
      %v7135 = vpack.c.bf16 %v7081, %v7079
      %v7136 = vpack.c.bf16 %v7084, %v7082
      %v7137 = vpack.c.bf16 %v7085, %v7083
      %v7138 = vpack.c.bf16 %v7088, %v7086
      %v7139 = vpack.c.bf16 %v7089, %v7087
      %v7140 = vpack.c.bf16 %v7092, %v7090
      %v7141 = vpack.c.bf16 %v7093, %v7091
      %v7142 = vpack.c.bf16 %v7096, %v7094
      %v7143 = vpack.c.bf16 %v7097, %v7095
      %v7144 = vpack.c.bf16 %v7100, %v7098
      %v7145 = vpack.c.bf16 %v7101, %v7099
      %v7146 = vpack.c.bf16 %v7104, %v7102
      %v7147 = vpack.c.bf16 %v7105, %v7103
      %v7148 = vpack.c.bf16 %v7108, %v7106
      %v7149 = vpack.c.bf16 %v7109, %v7107
      %v7150 = vpack.c.bf16 %v7112, %v7110
      %v7151 = vpack.c.bf16 %v7113, %v7111
      %v7152 = vpack.c.bf16 %v7116, %v7114
      %v7153 = vpack.c.bf16 %v7117, %v7115
      %v7154 = vpack.c.bf16 %v7120, %v7118
      %v7155 = vpack.c.bf16 %v7121, %v7119
      %v7156 = vpack.c.bf16 %v7124, %v7122
      %v7157 = vpack.c.bf16 %v7125, %v7123
      %7158 = vrot.lane.b32.xlu0 %v3946, 32
      %v7159 = vpop.permute.xlu0 %7158
      %7160 = vrot.lane.b32.xlu0 %v3947, 32
      %v7161 = vpop.permute.xlu0 %7160
      %7162 = vrot.lane.b32.xlu0 %v3948, 32
      %v7163 = vpop.permute.xlu0 %7162
      %7164 = vrot.lane.b32.xlu0 %v3949, 32
      %v7165 = vpop.permute.xlu0 %7164
      %7166 = vrot.lane.b32.xlu0 %v3950, 32
      %v7167 = vpop.permute.xlu0 %7166
      %7168 = vrot.lane.b32.xlu0 %v3951, 32
      %v7169 = vpop.permute.xlu0 %7168
      %7170 = vrot.lane.b32.xlu0 %v3952, 32
      %v7171 = vpop.permute.xlu0 %7170
      %7172 = vrot.lane.b32.xlu0 %v3953, 32
      %v7173 = vpop.permute.xlu0 %7172
      %7174 = vrot.lane.b32.xlu0 %v3954, 32
      %v7175 = vpop.permute.xlu0 %7174
      %7176 = vrot.lane.b32.xlu0 %v3955, 32
      %v7177 = vpop.permute.xlu0 %7176
      %7178 = vrot.lane.b32.xlu0 %v3956, 32
      %v7179 = vpop.permute.xlu0 %7178
      %7180 = vrot.lane.b32.xlu0 %v3957, 32
      %v7181 = vpop.permute.xlu0 %7180
      %7182 = vrot.lane.b32.xlu0 %v3958, 32
      %v7183 = vpop.permute.xlu0 %7182
      %7184 = vrot.lane.b32.xlu0 %v3959, 32
      %v7185 = vpop.permute.xlu0 %7184
      %7186 = vrot.lane.b32.xlu0 %v3960, 32
      %v7187 = vpop.permute.xlu0 %7186
      %7188 = vrot.lane.b32.xlu0 %v3961, 32
      %v7189 = vpop.permute.xlu0 %7188
      %7206 = vmatpush.bf16.msra.mxu0 %v7173
      %7207 = vmatpush.bf16.msra.mxu0 %v7171
      %7208 = vmatpush.bf16.msra.mxu0 %v7169
      %7209 = vmatpush.bf16.msra.mxu0 %v7167
      %7210 = vmatpush.bf16.msra.mxu0 %v7165
      %7211 = vmatpush.bf16.msra.mxu0 %v7163
      %7212 = vmatpush.bf16.msra.mxu0 %v7161
      %7213 = vmatpush.bf16.msra.mxu0 %v7159
      %7214 = vmatmul.bf16.gmra.mxu0 %v7126
      %v7215 = vpop.f32.mrf.mxu0
      %v7216 = vadd.f32 0.0, %v7215
      %v7217 = vpop.f32.mrf.mxu0
      %v7218 = vadd.f32 0.0, %v7217
      %7219 = vmatmul.bf16.gmra.mxu0 %v7128
      %v7220 = vpop.f32.mrf.mxu0
      %v7221 = vadd.f32 0.0, %v7220
      %v7222 = vpop.f32.mrf.mxu0
      %v7223 = vadd.f32 0.0, %v7222
      %7224 = vmatmul.bf16.gmra.mxu0 %v7130
      %v7225 = vpop.f32.mrf.mxu0
      %v7226 = vadd.f32 0.0, %v7225
      %v7227 = vpop.f32.mrf.mxu0
      %v7228 = vadd.f32 0.0, %v7227
      %7229 = vmatmul.bf16.gmra.mxu0 %v7132
      %v7230 = vpop.f32.mrf.mxu0
      %v7231 = vadd.f32 0.0, %v7230
      %v7232 = vpop.f32.mrf.mxu0
      %v7233 = vadd.f32 0.0, %v7232
      %7234 = vmatmul.bf16.gmra.mxu0 %v7134
      %v7235 = vpop.f32.mrf.mxu0
      %v7236 = vadd.f32 0.0, %v7235
      %v7237 = vpop.f32.mrf.mxu0
      %v7238 = vadd.f32 0.0, %v7237
      %7239 = vmatmul.bf16.gmra.mxu0 %v7136
      %v7240 = vpop.f32.mrf.mxu0
      %v7241 = vadd.f32 0.0, %v7240
      %v7242 = vpop.f32.mrf.mxu0
      %v7243 = vadd.f32 0.0, %v7242
      %7244 = vmatmul.bf16.gmra.mxu0 %v7138
      %v7245 = vpop.f32.mrf.mxu0
      %v7246 = vadd.f32 0.0, %v7245
      %v7247 = vpop.f32.mrf.mxu0
      %v7248 = vadd.f32 0.0, %v7247
      %7249 = vmatmul.bf16.gmra.mxu0 %v7140
      %v7250 = vpop.f32.mrf.mxu0
      %v7251 = vadd.f32 0.0, %v7250
      %v7252 = vpop.f32.mrf.mxu0
      %v7253 = vadd.f32 0.0, %v7252
      %7254 = vmatmul.bf16.gmra.mxu0 %v7142
      %v7255 = vpop.f32.mrf.mxu0
      %v7256 = vadd.f32 0.0, %v7255
      %v7257 = vpop.f32.mrf.mxu0
      %v7258 = vadd.f32 0.0, %v7257
      %7259 = vmatmul.bf16.gmra.mxu0 %v7144
      %v7260 = vpop.f32.mrf.mxu0
      %v7261 = vadd.f32 0.0, %v7260
      %v7262 = vpop.f32.mrf.mxu0
      %v7263 = vadd.f32 0.0, %v7262
      %7264 = vmatmul.bf16.gmra.mxu0 %v7146
      %v7265 = vpop.f32.mrf.mxu0
      %v7266 = vadd.f32 0.0, %v7265
      %v7267 = vpop.f32.mrf.mxu0
      %v7268 = vadd.f32 0.0, %v7267
      %7269 = vmatmul.bf16.gmra.mxu0 %v7148
      %v7270 = vpop.f32.mrf.mxu0
      %v7271 = vadd.f32 0.0, %v7270
      %v7272 = vpop.f32.mrf.mxu0
      %v7273 = vadd.f32 0.0, %v7272
      %7274 = vmatmul.bf16.gmra.mxu0 %v7150
      %v7275 = vpop.f32.mrf.mxu0
      %v7276 = vadd.f32 0.0, %v7275
      %v7277 = vpop.f32.mrf.mxu0
      %v7278 = vadd.f32 0.0, %v7277
      %7279 = vmatmul.bf16.gmra.mxu0 %v7152
      %v7280 = vpop.f32.mrf.mxu0
      %v7281 = vadd.f32 0.0, %v7280
      %v7282 = vpop.f32.mrf.mxu0
      %v7283 = vadd.f32 0.0, %v7282
      %7284 = vmatmul.bf16.gmra.mxu0 %v7154
      %v7285 = vpop.f32.mrf.mxu0
      %v7286 = vadd.f32 0.0, %v7285
      %v7287 = vpop.f32.mrf.mxu0
      %v7288 = vadd.f32 0.0, %v7287
      %7289 = vmatmul.bf16.gmra.mxu0 %v7156
      %v7290 = vpop.f32.mrf.mxu0
      %v7291 = vadd.f32 0.0, %v7290
      %v7292 = vpop.f32.mrf.mxu0
      %v7293 = vadd.f32 0.0, %v7292
      %7294 = vdwg.mxu0
      %7295 = vmatpush.bf16.msra.mxu0 %v7189
      %7296 = vmatpush.bf16.msra.mxu0 %v7187
      %7297 = vmatpush.bf16.msra.mxu0 %v7185
      %7298 = vmatpush.bf16.msra.mxu0 %v7183
      %7299 = vmatpush.bf16.msra.mxu0 %v7181
      %7300 = vmatpush.bf16.msra.mxu0 %v7179
      %7301 = vmatpush.bf16.msra.mxu0 %v7177
      %7302 = vmatpush.bf16.msra.mxu0 %v7175
      %7303 = vmatmul.bf16.gmra.mxu0 %v7127
      %v7304 = vpop.f32.mrf.mxu0
      %v7305 = vadd.f32 %v7216, %v7304
      %v7306 = vpop.f32.mrf.mxu0
      %v7307 = vadd.f32 %v7218, %v7306
      %7308 = vmatmul.bf16.gmra.mxu0 %v7129
      %v7309 = vpop.f32.mrf.mxu0
      %v7310 = vadd.f32 %v7221, %v7309
      %v7311 = vpop.f32.mrf.mxu0
      %v7312 = vadd.f32 %v7223, %v7311
      %7313 = vmatmul.bf16.gmra.mxu0 %v7131
      %v7314 = vpop.f32.mrf.mxu0
      %v7315 = vadd.f32 %v7226, %v7314
      %v7316 = vpop.f32.mrf.mxu0
      %v7317 = vadd.f32 %v7228, %v7316
      %7318 = vmatmul.bf16.gmra.mxu0 %v7133
      %v7319 = vpop.f32.mrf.mxu0
      %v7320 = vadd.f32 %v7231, %v7319
      %v7321 = vpop.f32.mrf.mxu0
      %v7322 = vadd.f32 %v7233, %v7321
      %7323 = vmatmul.bf16.gmra.mxu0 %v7135
      %v7324 = vpop.f32.mrf.mxu0
      %v7325 = vadd.f32 %v7236, %v7324
      %v7326 = vpop.f32.mrf.mxu0
      %v7327 = vadd.f32 %v7238, %v7326
      %7328 = vmatmul.bf16.gmra.mxu0 %v7137
      %v7329 = vpop.f32.mrf.mxu0
      %v7330 = vadd.f32 %v7241, %v7329
      %v7331 = vpop.f32.mrf.mxu0
      %v7332 = vadd.f32 %v7243, %v7331
      %7333 = vmatmul.bf16.gmra.mxu0 %v7139
      %v7334 = vpop.f32.mrf.mxu0
      %v7335 = vadd.f32 %v7246, %v7334
      %v7336 = vpop.f32.mrf.mxu0
      %v7337 = vadd.f32 %v7248, %v7336
      %7338 = vmatmul.bf16.gmra.mxu0 %v7141
      %v7339 = vpop.f32.mrf.mxu0
      %v7340 = vadd.f32 %v7251, %v7339
      %v7341 = vpop.f32.mrf.mxu0
      %v7342 = vadd.f32 %v7253, %v7341
      %7343 = vmatmul.bf16.gmra.mxu0 %v7143
      %v7344 = vpop.f32.mrf.mxu0
      %v7345 = vadd.f32 %v7256, %v7344
      %v7346 = vpop.f32.mrf.mxu0
      %v7347 = vadd.f32 %v7258, %v7346
      %7348 = vmatmul.bf16.gmra.mxu0 %v7145
      %v7349 = vpop.f32.mrf.mxu0
      %v7350 = vadd.f32 %v7261, %v7349
      %v7351 = vpop.f32.mrf.mxu0
      %v7352 = vadd.f32 %v7263, %v7351
      %7353 = vmatmul.bf16.gmra.mxu0 %v7147
      %v7354 = vpop.f32.mrf.mxu0
      %v7355 = vadd.f32 %v7266, %v7354
      %v7356 = vpop.f32.mrf.mxu0
      %v7357 = vadd.f32 %v7268, %v7356
      %7358 = vmatmul.bf16.gmra.mxu0 %v7149
      %v7359 = vpop.f32.mrf.mxu0
      %v7360 = vadd.f32 %v7271, %v7359
      %v7361 = vpop.f32.mrf.mxu0
      %v7362 = vadd.f32 %v7273, %v7361
      %7363 = vmatmul.bf16.gmra.mxu0 %v7151
      %v7364 = vpop.f32.mrf.mxu0
      %v7365 = vadd.f32 %v7276, %v7364
      %v7366 = vpop.f32.mrf.mxu0
      %v7367 = vadd.f32 %v7278, %v7366
      %7368 = vmatmul.bf16.gmra.mxu0 %v7153
      %v7369 = vpop.f32.mrf.mxu0
      %v7370 = vadd.f32 %v7281, %v7369
      %v7371 = vpop.f32.mrf.mxu0
      %v7372 = vadd.f32 %v7283, %v7371
      %7373 = vmatmul.bf16.gmra.mxu0 %v7155
      %v7374 = vpop.f32.mrf.mxu0
      %v7375 = vadd.f32 %v7286, %v7374
      %v7376 = vpop.f32.mrf.mxu0
      %v7377 = vadd.f32 %v7288, %v7376
      %7378 = vmatmul.bf16.gmra.mxu0 %v7157
      %v7379 = vpop.f32.mrf.mxu0
      %v7380 = vadd.f32 %v7291, %v7379
      %v7381 = vpop.f32.mrf.mxu0
      %v7382 = vadd.f32 %v7293, %v7381
      %7383 = vdwg.mxu0
      %7416 = vrot.lane.b32.xlu0 %v5153, 32
      %v7417 = vpop.permute.xlu0 %7416
      %7418 = vrot.lane.b32.xlu0 %v5155, 32
      %v7419 = vpop.permute.xlu0 %7418
      %7420 = vrot.lane.b32.xlu0 %v5158, 32
      %v7421 = vpop.permute.xlu0 %7420
      %7422 = vrot.lane.b32.xlu0 %v5160, 32
      %v7423 = vpop.permute.xlu0 %7422
      %7424 = vrot.lane.b32.xlu0 %v5163, 32
      %v7425 = vpop.permute.xlu0 %7424
      %7426 = vrot.lane.b32.xlu0 %v5165, 32
      %v7427 = vpop.permute.xlu0 %7426
      %7428 = vrot.lane.b32.xlu0 %v5168, 32
      %v7429 = vpop.permute.xlu0 %7428
      %7430 = vrot.lane.b32.xlu0 %v5170, 32
      %v7431 = vpop.permute.xlu0 %7430
      %7432 = vrot.lane.b32.xlu0 %v5173, 32
      %v7433 = vpop.permute.xlu0 %7432
      %7434 = vrot.lane.b32.xlu0 %v5175, 32
      %v7435 = vpop.permute.xlu0 %7434
      %7436 = vrot.lane.b32.xlu0 %v5178, 32
      %v7437 = vpop.permute.xlu0 %7436
      %7438 = vrot.lane.b32.xlu0 %v5180, 32
      %v7439 = vpop.permute.xlu0 %7438
      %7440 = vrot.lane.b32.xlu0 %v5183, 32
      %v7441 = vpop.permute.xlu0 %7440
      %7442 = vrot.lane.b32.xlu0 %v5185, 32
      %v7443 = vpop.permute.xlu0 %7442
      %7444 = vrot.lane.b32.xlu0 %v5188, 32
      %v7445 = vpop.permute.xlu0 %7444
      %7446 = vrot.lane.b32.xlu0 %v5190, 32
      %v7447 = vpop.permute.xlu0 %7446
      %7448 = vrot.lane.b32.xlu0 %v5193, 32
      %v7449 = vpop.permute.xlu0 %7448
      %7450 = vrot.lane.b32.xlu0 %v5195, 32
      %v7451 = vpop.permute.xlu0 %7450
      %7452 = vrot.lane.b32.xlu0 %v5198, 32
      %v7453 = vpop.permute.xlu0 %7452
      %7454 = vrot.lane.b32.xlu0 %v5200, 32
      %v7455 = vpop.permute.xlu0 %7454
      %7456 = vrot.lane.b32.xlu0 %v5203, 32
      %v7457 = vpop.permute.xlu0 %7456
      %7458 = vrot.lane.b32.xlu0 %v5205, 32
      %v7459 = vpop.permute.xlu0 %7458
      %7460 = vrot.lane.b32.xlu0 %v5208, 32
      %v7461 = vpop.permute.xlu0 %7460
      %7462 = vrot.lane.b32.xlu0 %v5210, 32
      %v7463 = vpop.permute.xlu0 %7462
      %7464 = vrot.lane.b32.xlu0 %v5213, 32
      %v7465 = vpop.permute.xlu0 %7464
      %7466 = vrot.lane.b32.xlu0 %v5215, 32
      %v7467 = vpop.permute.xlu0 %7466
      %7468 = vrot.lane.b32.xlu0 %v5218, 32
      %v7469 = vpop.permute.xlu0 %7468
      %7470 = vrot.lane.b32.xlu0 %v5220, 32
      %v7471 = vpop.permute.xlu0 %7470
      %7472 = vrot.lane.b32.xlu0 %v5223, 32
      %v7473 = vpop.permute.xlu0 %7472
      %7474 = vrot.lane.b32.xlu0 %v5225, 32
      %v7475 = vpop.permute.xlu0 %7474
      %7476 = vrot.lane.b32.xlu0 %v5228, 32
      %v7477 = vpop.permute.xlu0 %7476
      %7478 = vrot.lane.b32.xlu0 %v5230, 32
      %v7479 = vpop.permute.xlu0 %7478
      %7544 = vrot.lane.b32.xlu0 %v6229, 64
      %v7545 = vpop.permute.xlu0 %7544
      %7546 = vrot.lane.b32.xlu0 %v6231, 64
      %v7547 = vpop.permute.xlu0 %7546
      %7548 = vrot.lane.b32.xlu0 %v6234, 64
      %v7549 = vpop.permute.xlu0 %7548
      %7550 = vrot.lane.b32.xlu0 %v6236, 64
      %v7551 = vpop.permute.xlu0 %7550
      %7552 = vrot.lane.b32.xlu0 %v6239, 64
      %v7553 = vpop.permute.xlu0 %7552
      %7554 = vrot.lane.b32.xlu0 %v6241, 64
      %v7555 = vpop.permute.xlu0 %7554
      %7556 = vrot.lane.b32.xlu0 %v6244, 64
      %v7557 = vpop.permute.xlu0 %7556
      %7558 = vrot.lane.b32.xlu0 %v6246, 64
      %v7559 = vpop.permute.xlu0 %7558
      %7560 = vrot.lane.b32.xlu0 %v6249, 64
      %v7561 = vpop.permute.xlu0 %7560
      %7562 = vrot.lane.b32.xlu0 %v6251, 64
      %v7563 = vpop.permute.xlu0 %7562
      %7564 = vrot.lane.b32.xlu0 %v6254, 64
      %v7565 = vpop.permute.xlu0 %7564
      %7566 = vrot.lane.b32.xlu0 %v6256, 64
      %v7567 = vpop.permute.xlu0 %7566
      %7568 = vrot.lane.b32.xlu0 %v6259, 64
      %v7569 = vpop.permute.xlu0 %7568
      %7570 = vrot.lane.b32.xlu0 %v6261, 64
      %v7571 = vpop.permute.xlu0 %7570
      %7572 = vrot.lane.b32.xlu0 %v6264, 64
      %v7573 = vpop.permute.xlu0 %7572
      %7574 = vrot.lane.b32.xlu0 %v6266, 64
      %v7575 = vpop.permute.xlu0 %7574
      %7576 = vrot.lane.b32.xlu0 %v6269, 64
      %v7577 = vpop.permute.xlu0 %7576
      %7578 = vrot.lane.b32.xlu0 %v6271, 64
      %v7579 = vpop.permute.xlu0 %7578
      %7580 = vrot.lane.b32.xlu0 %v6274, 64
      %v7581 = vpop.permute.xlu0 %7580
      %7582 = vrot.lane.b32.xlu0 %v6276, 64
      %v7583 = vpop.permute.xlu0 %7582
      %7584 = vrot.lane.b32.xlu0 %v6279, 64
      %v7585 = vpop.permute.xlu0 %7584
      %7586 = vrot.lane.b32.xlu0 %v6281, 64
      %v7587 = vpop.permute.xlu0 %7586
      %7588 = vrot.lane.b32.xlu0 %v6284, 64
      %v7589 = vpop.permute.xlu0 %7588
      %7590 = vrot.lane.b32.xlu0 %v6286, 64
      %v7591 = vpop.permute.xlu0 %7590
      %7592 = vrot.lane.b32.xlu0 %v6289, 64
      %v7593 = vpop.permute.xlu0 %7592
      %7594 = vrot.lane.b32.xlu0 %v6291, 64
      %v7595 = vpop.permute.xlu0 %7594
      %7596 = vrot.lane.b32.xlu0 %v6294, 64
      %v7597 = vpop.permute.xlu0 %7596
      %7598 = vrot.lane.b32.xlu0 %v6296, 64
      %v7599 = vpop.permute.xlu0 %7598
      %7600 = vrot.lane.b32.xlu0 %v6299, 64
      %v7601 = vpop.permute.xlu0 %7600
      %7602 = vrot.lane.b32.xlu0 %v6301, 64
      %v7603 = vpop.permute.xlu0 %7602
      %7604 = vrot.lane.b32.xlu0 %v6304, 64
      %v7605 = vpop.permute.xlu0 %7604
      %7606 = vrot.lane.b32.xlu0 %v6306, 64
      %v7607 = vpop.permute.xlu0 %7606
      %7672 = vrot.lane.b32.xlu0 %v7305, 96
      %v7673 = vpop.permute.xlu0 %7672
      %7674 = vrot.lane.b32.xlu0 %v7307, 96
      %v7675 = vpop.permute.xlu0 %7674
      %7676 = vrot.lane.b32.xlu0 %v7310, 96
      %v7677 = vpop.permute.xlu0 %7676
      %7678 = vrot.lane.b32.xlu0 %v7312, 96
      %v7679 = vpop.permute.xlu0 %7678
      %7680 = vrot.lane.b32.xlu0 %v7315, 96
      %v7681 = vpop.permute.xlu0 %7680
      %7682 = vrot.lane.b32.xlu0 %v7317, 96
      %v7683 = vpop.permute.xlu0 %7682
      %7684 = vrot.lane.b32.xlu0 %v7320, 96
      %v7685 = vpop.permute.xlu0 %7684
      %7686 = vrot.lane.b32.xlu0 %v7322, 96
      %v7687 = vpop.permute.xlu0 %7686
      %7688 = vrot.lane.b32.xlu0 %v7325, 96
      %v7689 = vpop.permute.xlu0 %7688
      %7690 = vrot.lane.b32.xlu0 %v7327, 96
      %v7691 = vpop.permute.xlu0 %7690
      %7692 = vrot.lane.b32.xlu0 %v7330, 96
      %v7693 = vpop.permute.xlu0 %7692
      %7694 = vrot.lane.b32.xlu0 %v7332, 96
      %v7695 = vpop.permute.xlu0 %7694
      %7696 = vrot.lane.b32.xlu0 %v7335, 96
      %v7697 = vpop.permute.xlu0 %7696
      %7698 = vrot.lane.b32.xlu0 %v7337, 96
      %v7699 = vpop.permute.xlu0 %7698
      %7700 = vrot.lane.b32.xlu0 %v7340, 96
      %v7701 = vpop.permute.xlu0 %7700
      %7702 = vrot.lane.b32.xlu0 %v7342, 96
      %v7703 = vpop.permute.xlu0 %7702
      %7704 = vrot.lane.b32.xlu0 %v7345, 96
      %v7705 = vpop.permute.xlu0 %7704
      %7706 = vrot.lane.b32.xlu0 %v7347, 96
      %v7707 = vpop.permute.xlu0 %7706
      %7708 = vrot.lane.b32.xlu0 %v7350, 96
      %v7709 = vpop.permute.xlu0 %7708
      %7710 = vrot.lane.b32.xlu0 %v7352, 96
      %v7711 = vpop.permute.xlu0 %7710
      %7712 = vrot.lane.b32.xlu0 %v7355, 96
      %v7713 = vpop.permute.xlu0 %7712
      %7714 = vrot.lane.b32.xlu0 %v7357, 96
      %v7715 = vpop.permute.xlu0 %7714
      %7716 = vrot.lane.b32.xlu0 %v7360, 96
      %v7717 = vpop.permute.xlu0 %7716
      %7718 = vrot.lane.b32.xlu0 %v7362, 96
      %v7719 = vpop.permute.xlu0 %7718
      %7720 = vrot.lane.b32.xlu0 %v7365, 96
      %v7721 = vpop.permute.xlu0 %7720
      %7722 = vrot.lane.b32.xlu0 %v7367, 96
      %v7723 = vpop.permute.xlu0 %7722
      %7724 = vrot.lane.b32.xlu0 %v7370, 96
      %v7725 = vpop.permute.xlu0 %7724
      %7726 = vrot.lane.b32.xlu0 %v7372, 96
      %v7727 = vpop.permute.xlu0 %7726
      %7728 = vrot.lane.b32.xlu0 %v7375, 96
      %v7729 = vpop.permute.xlu0 %7728
      %7730 = vrot.lane.b32.xlu0 %v7377, 96
      %v7731 = vpop.permute.xlu0 %7730
      %7732 = vrot.lane.b32.xlu0 %v7380, 96
      %v7733 = vpop.permute.xlu0 %7732
      %7734 = vrot.lane.b32.xlu0 %v7382, 96
      %v7735 = vpop.permute.xlu0 %7734
      %v7768 = vsel %vm3095, %v4077, %v7417
      %v7769 = vsel %vm3095, %v4079, %v7419
      %v7770 = vsel %vm3095, %v4082, %v7421
      %v7771 = vsel %vm3095, %v4084, %v7423
      %v7772 = vsel %vm3095, %v4087, %v7425
      %v7773 = vsel %vm3095, %v4089, %v7427
      %v7774 = vsel %vm3095, %v4092, %v7429
      %v7775 = vsel %vm3095, %v4094, %v7431
      %v7776 = vsel %vm3095, %v4097, %v7433
      %v7777 = vsel %vm3095, %v4099, %v7435
      %v7778 = vsel %vm3095, %v4102, %v7437
      %v7779 = vsel %vm3095, %v4104, %v7439
      %v7780 = vsel %vm3095, %v4107, %v7441
      %v7781 = vsel %vm3095, %v4109, %v7443
      %v7782 = vsel %vm3095, %v4112, %v7445
      %v7783 = vsel %vm3095, %v4114, %v7447
      %v7784 = vsel %vm3095, %v4117, %v7449
      %v7785 = vsel %vm3095, %v4119, %v7451
      %v7786 = vsel %vm3095, %v4122, %v7453
      %v7787 = vsel %vm3095, %v4124, %v7455
      %v7788 = vsel %vm3095, %v4127, %v7457
      %v7789 = vsel %vm3095, %v4129, %v7459
      %v7790 = vsel %vm3095, %v4132, %v7461
      %v7791 = vsel %vm3095, %v4134, %v7463
      %v7792 = vsel %vm3095, %v4137, %v7465
      %v7793 = vsel %vm3095, %v4139, %v7467
      %v7794 = vsel %vm3095, %v4142, %v7469
      %v7795 = vsel %vm3095, %v4144, %v7471
      %v7796 = vsel %vm3095, %v4147, %v7473
      %v7797 = vsel %vm3095, %v4149, %v7475
      %v7798 = vsel %vm3095, %v4152, %v7477
      %v7799 = vsel %vm3095, %v4154, %v7479
      %vm7800 = vcmask 523264
      %v7801 = vsel %vm7800, %v7768, %v7545
      %v7802 = vsel %vm7800, %v7769, %v7547
      %v7803 = vsel %vm7800, %v7770, %v7549
      %v7804 = vsel %vm7800, %v7771, %v7551
      %v7805 = vsel %vm7800, %v7772, %v7553
      %v7806 = vsel %vm7800, %v7773, %v7555
      %v7807 = vsel %vm7800, %v7774, %v7557
      %v7808 = vsel %vm7800, %v7775, %v7559
      %v7809 = vsel %vm7800, %v7776, %v7561
      %v7810 = vsel %vm7800, %v7777, %v7563
      %v7811 = vsel %vm7800, %v7778, %v7565
      %v7812 = vsel %vm7800, %v7779, %v7567
      %v7813 = vsel %vm7800, %v7780, %v7569
      %v7814 = vsel %vm7800, %v7781, %v7571
      %v7815 = vsel %vm7800, %v7782, %v7573
      %v7816 = vsel %vm7800, %v7783, %v7575
      %v7817 = vsel %vm7800, %v7784, %v7577
      %v7818 = vsel %vm7800, %v7785, %v7579
      %v7819 = vsel %vm7800, %v7786, %v7581
      %v7820 = vsel %vm7800, %v7787, %v7583
      %v7821 = vsel %vm7800, %v7788, %v7585
      %v7822 = vsel %vm7800, %v7789, %v7587
      %v7823 = vsel %vm7800, %v7790, %v7589
      %v7824 = vsel %vm7800, %v7791, %v7591
      %v7825 = vsel %vm7800, %v7792, %v7593
      %v7826 = vsel %vm7800, %v7793, %v7595
      %v7827 = vsel %vm7800, %v7794, %v7597
      %v7828 = vsel %vm7800, %v7795, %v7599
      %v7829 = vsel %vm7800, %v7796, %v7601
      %v7830 = vsel %vm7800, %v7797, %v7603
      %v7831 = vsel %vm7800, %v7798, %v7605
      %v7832 = vsel %vm7800, %v7799, %v7607
      %vm7833 = vcmask 785408
      %v7834 = vsel %vm7833, %v7801, %v7673
      %v7835 = vsel %vm7833, %v7802, %v7675
      %v7836 = vsel %vm7833, %v7803, %v7677
      %v7837 = vsel %vm7833, %v7804, %v7679
      %v7838 = vsel %vm7833, %v7805, %v7681
      %v7839 = vsel %vm7833, %v7806, %v7683
      %v7840 = vsel %vm7833, %v7807, %v7685
      %v7841 = vsel %vm7833, %v7808, %v7687
      %v7842 = vsel %vm7833, %v7809, %v7689
      %v7843 = vsel %vm7833, %v7810, %v7691
      %v7844 = vsel %vm7833, %v7811, %v7693
      %v7845 = vsel %vm7833, %v7812, %v7695
      %v7846 = vsel %vm7833, %v7813, %v7697
      %v7847 = vsel %vm7833, %v7814, %v7699
      %v7848 = vsel %vm7833, %v7815, %v7701
      %v7849 = vsel %vm7833, %v7816, %v7703
      %v7850 = vsel %vm7833, %v7817, %v7705
      %v7851 = vsel %vm7833, %v7818, %v7707
      %v7852 = vsel %vm7833, %v7819, %v7709
      %v7853 = vsel %vm7833, %v7820, %v7711
      %v7854 = vsel %vm7833, %v7821, %v7713
      %v7855 = vsel %vm7833, %v7822, %v7715
      %v7856 = vsel %vm7833, %v7823, %v7717
      %v7857 = vsel %vm7833, %v7824, %v7719
      %v7858 = vsel %vm7833, %v7825, %v7721
      %v7859 = vsel %vm7833, %v7826, %v7723
      %v7860 = vsel %vm7833, %v7827, %v7725
      %v7861 = vsel %vm7833, %v7828, %v7727
      %v7862 = vsel %vm7833, %v7829, %v7729
      %v7863 = vsel %vm7833, %v7830, %v7731
      %v7864 = vsel %vm7833, %v7831, %v7733
      %v7865 = vsel %vm7833, %v7832, %v7735
      %v7866 = vpack.c.bf16 %v7835, %v7834
      %v7867 = vpack.c.bf16 %v7837, %v7836
      %v7868 = vpack.c.bf16 %v7839, %v7838
      %v7869 = vpack.c.bf16 %v7841, %v7840
      %v7870 = vpack.c.bf16 %v7843, %v7842
      %v7871 = vpack.c.bf16 %v7845, %v7844
      %v7872 = vpack.c.bf16 %v7847, %v7846
      %v7873 = vpack.c.bf16 %v7849, %v7848
      %v7874 = vpack.c.bf16 %v7851, %v7850
      %v7875 = vpack.c.bf16 %v7853, %v7852
      %v7876 = vpack.c.bf16 %v7855, %v7854
      %v7877 = vpack.c.bf16 %v7857, %v7856
      %v7878 = vpack.c.bf16 %v7859, %v7858
      %v7879 = vpack.c.bf16 %v7861, %v7860
      %v7880 = vpack.c.bf16 %v7863, %v7862
      %v7881 = vpack.c.bf16 %v7865, %v7864
      %s7882 = scalar_lea.vmem %s318, 192
      %v7883 = vld [vmem:[%s7882] sm:$0xf]
      %v7884 = vld [vmem:[%s7882 + $0x4] sm:$0xf]
      %v7885 = vld [vmem:[%s7882 + $0x8] sm:$0xf]
      %v7886 = vld [vmem:[%s7882 + $0xc] sm:$0xf]
      %v7887 = vld [vmem:[%s7882 + $0x10] sm:$0xf]
      %v7888 = vld [vmem:[%s7882 + $0x14] sm:$0xf]
      %v7889 = vld [vmem:[%s7882 + $0x18] sm:$0xf]
      %v7890 = vld [vmem:[%s7882 + $0x1c] sm:$0xf]
      %v7891 = vld [vmem:[%s7882 + $0x20] sm:$0xf]
      %v7892 = vld [vmem:[%s7882 + $0x24] sm:$0xf]
      %v7893 = vld [vmem:[%s7882 + $0x28] sm:$0xf]
      %v7894 = vld [vmem:[%s7882 + $0x2c] sm:$0xf]
      %v7895 = vld [vmem:[%s7882 + $0x30] sm:$0xf]
      %v7896 = vld [vmem:[%s7882 + $0x34] sm:$0xf]
      %v7897 = vld [vmem:[%s7882 + $0x38] sm:$0xf]
      %v7898 = vld [vmem:[%s7882 + $0x3c] sm:$0xf]
      %v7899 = vperm.slane %v1611, 0
      %v7916 = vunpack.c.l.b16 %v7883
      %v7917 = vunpack.c.l.b16 %v7884
      %v7918 = vunpack.c.l.b16 %v7885
      %v7919 = vunpack.c.l.b16 %v7886
      %v7920 = vunpack.c.l.b16 %v7887
      %v7921 = vunpack.c.l.b16 %v7888
      %v7922 = vunpack.c.l.b16 %v7889
      %v7923 = vunpack.c.l.b16 %v7890
      %v7924 = vunpack.c.l.b16 %v7891
      %v7925 = vunpack.c.l.b16 %v7892
      %v7926 = vunpack.c.l.b16 %v7893
      %v7927 = vunpack.c.l.b16 %v7894
      %v7928 = vunpack.c.l.b16 %v7895
      %v7929 = vunpack.c.l.b16 %v7896
      %v7930 = vunpack.c.l.b16 %v7897
      %v7931 = vunpack.c.l.b16 %v7898
      %v7932 = vpack.c.b16 %v7917, %v7916
      %v7933 = vpack.c.b16 %v7919, %v7918
      %v7934 = vpack.c.b16 %v7921, %v7920
      %v7935 = vpack.c.b16 %v7923, %v7922
      %v7936 = vpack.c.b16 %v7925, %v7924
      %v7937 = vpack.c.b16 %v7927, %v7926
      %v7938 = vpack.c.b16 %v7929, %v7928
      %v7939 = vpack.c.b16 %v7931, %v7930
      %7948 = vmatpush.bf16.msra.mxu0 %v7939
      %7949 = vmatpush.bf16.msra.mxu0 %v7938
      %7950 = vmatpush.bf16.msra.mxu0 %v7937
      %7951 = vmatpush.bf16.msra.mxu0 %v7936
      %7952 = vmatpush.bf16.msra.mxu0 %v7935
      %7953 = vmatpush.bf16.msra.mxu0 %v7934
      %7954 = vmatpush.bf16.msra.mxu0 %v7933
      %7955 = vmatpush.bf16.msra.mxu0 %v7932
      %7956 = vmatmul.bf16.gmra.mxu0 %v7866
      %v7957 = vpop.f32.mrf.mxu0
      %v7958 = vadd.f32 %v7899, %v7957
      %v7959 = vpop.f32.mrf.mxu0
      %v7960 = vadd.f32 %v7899, %v7959
      %7961 = vmatmul.bf16.gmra.mxu0 %v7867
      %v7962 = vpop.f32.mrf.mxu0
      %v7963 = vadd.f32 %v7899, %v7962
      %v7964 = vpop.f32.mrf.mxu0
      %v7965 = vadd.f32 %v7899, %v7964
      %7966 = vmatmul.bf16.gmra.mxu0 %v7868
      %v7967 = vpop.f32.mrf.mxu0
      %v7968 = vadd.f32 %v7899, %v7967
      %v7969 = vpop.f32.mrf.mxu0
      %v7970 = vadd.f32 %v7899, %v7969
      %7971 = vmatmul.bf16.gmra.mxu0 %v7869
      %v7972 = vpop.f32.mrf.mxu0
      %v7973 = vadd.f32 %v7899, %v7972
      %v7974 = vpop.f32.mrf.mxu0
      %v7975 = vadd.f32 %v7899, %v7974
      %7976 = vmatmul.bf16.gmra.mxu0 %v7870
      %v7977 = vpop.f32.mrf.mxu0
      %v7978 = vadd.f32 %v7899, %v7977
      %v7979 = vpop.f32.mrf.mxu0
      %v7980 = vadd.f32 %v7899, %v7979
      %7981 = vmatmul.bf16.gmra.mxu0 %v7871
      %v7982 = vpop.f32.mrf.mxu0
      %v7983 = vadd.f32 %v7899, %v7982
      %v7984 = vpop.f32.mrf.mxu0
      %v7985 = vadd.f32 %v7899, %v7984
      %7986 = vmatmul.bf16.gmra.mxu0 %v7872
      %v7987 = vpop.f32.mrf.mxu0
      %v7988 = vadd.f32 %v7899, %v7987
      %v7989 = vpop.f32.mrf.mxu0
      %v7990 = vadd.f32 %v7899, %v7989
      %7991 = vmatmul.bf16.gmra.mxu0 %v7873
      %v7992 = vpop.f32.mrf.mxu0
      %v7993 = vadd.f32 %v7899, %v7992
      %v7994 = vpop.f32.mrf.mxu0
      %v7995 = vadd.f32 %v7899, %v7994
      %7996 = vmatmul.bf16.gmra.mxu0 %v7874
      %v7997 = vpop.f32.mrf.mxu0
      %v7998 = vadd.f32 %v7899, %v7997
      %v7999 = vpop.f32.mrf.mxu0
      %v8000 = vadd.f32 %v7899, %v7999
      %8001 = vmatmul.bf16.gmra.mxu0 %v7875
      %v8002 = vpop.f32.mrf.mxu0
      %v8003 = vadd.f32 %v7899, %v8002
      %v8004 = vpop.f32.mrf.mxu0
      %v8005 = vadd.f32 %v7899, %v8004
      %8006 = vmatmul.bf16.gmra.mxu0 %v7876
      %v8007 = vpop.f32.mrf.mxu0
      %v8008 = vadd.f32 %v7899, %v8007
      %v8009 = vpop.f32.mrf.mxu0
      %v8010 = vadd.f32 %v7899, %v8009
      %8011 = vmatmul.bf16.gmra.mxu0 %v7877
      %v8012 = vpop.f32.mrf.mxu0
      %v8013 = vadd.f32 %v7899, %v8012
      %v8014 = vpop.f32.mrf.mxu0
      %v8015 = vadd.f32 %v7899, %v8014
      %8016 = vmatmul.bf16.gmra.mxu0 %v7878
      %v8017 = vpop.f32.mrf.mxu0
      %v8018 = vadd.f32 %v7899, %v8017
      %v8019 = vpop.f32.mrf.mxu0
      %v8020 = vadd.f32 %v7899, %v8019
      %8021 = vmatmul.bf16.gmra.mxu0 %v7879
      %v8022 = vpop.f32.mrf.mxu0
      %v8023 = vadd.f32 %v7899, %v8022
      %v8024 = vpop.f32.mrf.mxu0
      %v8025 = vadd.f32 %v7899, %v8024
      %8026 = vmatmul.bf16.gmra.mxu0 %v7880
      %v8027 = vpop.f32.mrf.mxu0
      %v8028 = vadd.f32 %v7899, %v8027
      %v8029 = vpop.f32.mrf.mxu0
      %v8030 = vadd.f32 %v7899, %v8029
      %8031 = vmatmul.bf16.gmra.mxu0 %v7881
      %v8032 = vpop.f32.mrf.mxu0
      %v8033 = vadd.f32 %v7899, %v8032
      %v8034 = vpop.f32.mrf.mxu0
      %v8035 = vadd.f32 %v7899, %v8034
      %8036 = vdwg.mxu0
      %v8037 = vadd.f32 %v7958, %v1574
      %v8038 = vadd.f32 %v7960, %v1575
      %v8039 = vadd.f32 %v7963, %v1576
      %v8040 = vadd.f32 %v7965, %v1577
      %v8041 = vadd.f32 %v7968, %v1578
      %v8042 = vadd.f32 %v7970, %v1579
      %v8043 = vadd.f32 %v7973, %v1580
      %v8044 = vadd.f32 %v7975, %v1581
      %v8045 = vadd.f32 %v7978, %v1582
      %v8046 = vadd.f32 %v7980, %v1583
      %v8047 = vadd.f32 %v7983, %v1584
      %v8048 = vadd.f32 %v7985, %v1585
      %v8049 = vadd.f32 %v7988, %v1586
      %v8050 = vadd.f32 %v7990, %v1587
      %v8051 = vadd.f32 %v7993, %v1588
      %v8052 = vadd.f32 %v7995, %v1589
      %v8053 = vadd.f32 %v7998, %v1590
      %v8054 = vadd.f32 %v8000, %v1591
      %v8055 = vadd.f32 %v8003, %v1592
      %v8056 = vadd.f32 %v8005, %v1593
      %v8057 = vadd.f32 %v8008, %v1594
      %v8058 = vadd.f32 %v8010, %v1595
      %v8059 = vadd.f32 %v8013, %v1596
      %v8060 = vadd.f32 %v8015, %v1597
      %v8061 = vadd.f32 %v8018, %v1598
      %v8062 = vadd.f32 %v8020, %v1599
      %v8063 = vadd.f32 %v8023, %v1600
      %v8064 = vadd.f32 %v8025, %v1601
      %v8065 = vadd.f32 %v8028, %v1602
      %v8066 = vadd.f32 %v8030, %v1603
      %v8067 = vadd.f32 %v8033, %v1604
      %v8068 = vadd.f32 %v8035, %v1605
      %8069 = vadd.xlane.f32.xlu0 %v8037
      %v8070 = vpop.xlane.xlu0 %8069
      %8071 = vadd.xlane.f32.xlu0 %v8038
      %v8072 = vpop.xlane.xlu0 %8071
      %8073 = vadd.xlane.f32.xlu0 %v8039
      %v8074 = vpop.xlane.xlu0 %8073
      %8075 = vadd.xlane.f32.xlu0 %v8040
      %v8076 = vpop.xlane.xlu0 %8075
      %8077 = vadd.xlane.f32.xlu0 %v8041
      %v8078 = vpop.xlane.xlu0 %8077
      %8079 = vadd.xlane.f32.xlu0 %v8042
      %v8080 = vpop.xlane.xlu0 %8079
      %8081 = vadd.xlane.f32.xlu0 %v8043
      %v8082 = vpop.xlane.xlu0 %8081
      %8083 = vadd.xlane.f32.xlu0 %v8044
      %v8084 = vpop.xlane.xlu0 %8083
      %8085 = vadd.xlane.f32.xlu0 %v8045
      %v8086 = vpop.xlane.xlu0 %8085
      %8087 = vadd.xlane.f32.xlu0 %v8046
      %v8088 = vpop.xlane.xlu0 %8087
      %8089 = vadd.xlane.f32.xlu0 %v8047
      %v8090 = vpop.xlane.xlu0 %8089
      %8091 = vadd.xlane.f32.xlu0 %v8048
      %v8092 = vpop.xlane.xlu0 %8091
      %8093 = vadd.xlane.f32.xlu0 %v8049
      %v8094 = vpop.xlane.xlu0 %8093
      %8095 = vadd.xlane.f32.xlu0 %v8050
      %v8096 = vpop.xlane.xlu0 %8095
      %8097 = vadd.xlane.f32.xlu0 %v8051
      %v8098 = vpop.xlane.xlu0 %8097
      %8099 = vadd.xlane.f32.xlu0 %v8052
      %v8100 = vpop.xlane.xlu0 %8099
      %8101 = vadd.xlane.f32.xlu0 %v8053
      %v8102 = vpop.xlane.xlu0 %8101
      %8103 = vadd.xlane.f32.xlu0 %v8054
      %v8104 = vpop.xlane.xlu0 %8103
      %8105 = vadd.xlane.f32.xlu0 %v8055
      %v8106 = vpop.xlane.xlu0 %8105
      %8107 = vadd.xlane.f32.xlu0 %v8056
      %v8108 = vpop.xlane.xlu0 %8107
      %8109 = vadd.xlane.f32.xlu0 %v8057
      %v8110 = vpop.xlane.xlu0 %8109
      %8111 = vadd.xlane.f32.xlu0 %v8058
      %v8112 = vpop.xlane.xlu0 %8111
      %8113 = vadd.xlane.f32.xlu0 %v8059
      %v8114 = vpop.xlane.xlu0 %8113
      %8115 = vadd.xlane.f32.xlu0 %v8060
      %v8116 = vpop.xlane.xlu0 %8115
      %8117 = vadd.xlane.f32.xlu0 %v8061
      %v8118 = vpop.xlane.xlu0 %8117
      %8119 = vadd.xlane.f32.xlu0 %v8062
      %v8120 = vpop.xlane.xlu0 %8119
      %8121 = vadd.xlane.f32.xlu0 %v8063
      %v8122 = vpop.xlane.xlu0 %8121
      %8123 = vadd.xlane.f32.xlu0 %v8064
      %v8124 = vpop.xlane.xlu0 %8123
      %8125 = vadd.xlane.f32.xlu0 %v8065
      %v8126 = vpop.xlane.xlu0 %8125
      %8127 = vadd.xlane.f32.xlu0 %v8066
      %v8128 = vpop.xlane.xlu0 %8127
      %8129 = vadd.xlane.f32.xlu0 %v8067
      %v8130 = vpop.xlane.xlu0 %8129
      %8131 = vadd.xlane.f32.xlu0 %v8068
      %v8132 = vpop.xlane.xlu0 %8131
      %v8133 = vmul.f32 %v8070, %v1684
      %v8134 = vmul.f32 %v8072, %v1684
      %v8135 = vmul.f32 %v8074, %v1684
      %v8136 = vmul.f32 %v8076, %v1684
      %v8137 = vmul.f32 %v8078, %v1684
      %v8138 = vmul.f32 %v8080, %v1684
      %v8139 = vmul.f32 %v8082, %v1684
      %v8140 = vmul.f32 %v8084, %v1684
      %v8141 = vmul.f32 %v8086, %v1684
      %v8142 = vmul.f32 %v8088, %v1684
      %v8143 = vmul.f32 %v8090, %v1684
      %v8144 = vmul.f32 %v8092, %v1684
      %v8145 = vmul.f32 %v8094, %v1684
      %v8146 = vmul.f32 %v8096, %v1684
      %v8147 = vmul.f32 %v8098, %v1684
      %v8148 = vmul.f32 %v8100, %v1684
      %v8149 = vmul.f32 %v8102, %v1684
      %v8150 = vmul.f32 %v8104, %v1684
      %v8151 = vmul.f32 %v8106, %v1684
      %v8152 = vmul.f32 %v8108, %v1684
      %v8153 = vmul.f32 %v8110, %v1684
      %v8154 = vmul.f32 %v8112, %v1684
      %v8155 = vmul.f32 %v8114, %v1684
      %v8156 = vmul.f32 %v8116, %v1684
      %v8157 = vmul.f32 %v8118, %v1684
      %v8158 = vmul.f32 %v8120, %v1684
      %v8159 = vmul.f32 %v8122, %v1684
      %v8160 = vmul.f32 %v8124, %v1684
      %v8161 = vmul.f32 %v8126, %v1684
      %v8162 = vmul.f32 %v8128, %v1684
      %v8163 = vmul.f32 %v8130, %v1684
      %v8164 = vmul.f32 %v8132, %v1684
      %v8165 = vsub.f32 %v8037, %v8133
      %v8166 = vsub.f32 %v8038, %v8134
      %v8167 = vsub.f32 %v8039, %v8135
      %v8168 = vsub.f32 %v8040, %v8136
      %v8169 = vsub.f32 %v8041, %v8137
      %v8170 = vsub.f32 %v8042, %v8138
      %v8171 = vsub.f32 %v8043, %v8139
      %v8172 = vsub.f32 %v8044, %v8140
      %v8173 = vsub.f32 %v8045, %v8141
      %v8174 = vsub.f32 %v8046, %v8142
      %v8175 = vsub.f32 %v8047, %v8143
      %v8176 = vsub.f32 %v8048, %v8144
      %v8177 = vsub.f32 %v8049, %v8145
      %v8178 = vsub.f32 %v8050, %v8146
      %v8179 = vsub.f32 %v8051, %v8147
      %v8180 = vsub.f32 %v8052, %v8148
      %v8181 = vsub.f32 %v8053, %v8149
      %v8182 = vsub.f32 %v8054, %v8150
      %v8183 = vsub.f32 %v8055, %v8151
      %v8184 = vsub.f32 %v8056, %v8152
      %v8185 = vsub.f32 %v8057, %v8153
      %v8186 = vsub.f32 %v8058, %v8154
      %v8187 = vsub.f32 %v8059, %v8155
      %v8188 = vsub.f32 %v8060, %v8156
      %v8189 = vsub.f32 %v8061, %v8157
      %v8190 = vsub.f32 %v8062, %v8158
      %v8191 = vsub.f32 %v8063, %v8159
      %v8192 = vsub.f32 %v8064, %v8160
      %v8193 = vsub.f32 %v8065, %v8161
      %v8194 = vsub.f32 %v8066, %v8162
      %v8195 = vsub.f32 %v8067, %v8163
      %v8196 = vsub.f32 %v8068, %v8164
      %v8197 = vmul.f32 %v8165, %v8165
      %v8198 = vmul.f32 %v8166, %v8166
      %v8199 = vmul.f32 %v8167, %v8167
      %v8200 = vmul.f32 %v8168, %v8168
      %v8201 = vmul.f32 %v8169, %v8169
      %v8202 = vmul.f32 %v8170, %v8170
      %v8203 = vmul.f32 %v8171, %v8171
      %v8204 = vmul.f32 %v8172, %v8172
      %v8205 = vmul.f32 %v8173, %v8173
      %v8206 = vmul.f32 %v8174, %v8174
      %v8207 = vmul.f32 %v8175, %v8175
      %v8208 = vmul.f32 %v8176, %v8176
      %v8209 = vmul.f32 %v8177, %v8177
      %v8210 = vmul.f32 %v8178, %v8178
      %v8211 = vmul.f32 %v8179, %v8179
      %v8212 = vmul.f32 %v8180, %v8180
      %v8213 = vmul.f32 %v8181, %v8181
      %v8214 = vmul.f32 %v8182, %v8182
      %v8215 = vmul.f32 %v8183, %v8183
      %v8216 = vmul.f32 %v8184, %v8184
      %v8217 = vmul.f32 %v8185, %v8185
      %v8218 = vmul.f32 %v8186, %v8186
      %v8219 = vmul.f32 %v8187, %v8187
      %v8220 = vmul.f32 %v8188, %v8188
      %v8221 = vmul.f32 %v8189, %v8189
      %v8222 = vmul.f32 %v8190, %v8190
      %v8223 = vmul.f32 %v8191, %v8191
      %v8224 = vmul.f32 %v8192, %v8192
      %v8225 = vmul.f32 %v8193, %v8193
      %v8226 = vmul.f32 %v8194, %v8194
      %v8227 = vmul.f32 %v8195, %v8195
      %v8228 = vmul.f32 %v8196, %v8196
      %8229 = vadd.xlane.f32.xlu0 %v8197
      %v8230 = vpop.xlane.xlu0 %8229
      %8231 = vadd.xlane.f32.xlu0 %v8198
      %v8232 = vpop.xlane.xlu0 %8231
      %8233 = vadd.xlane.f32.xlu0 %v8199
      %v8234 = vpop.xlane.xlu0 %8233
      %8235 = vadd.xlane.f32.xlu0 %v8200
      %v8236 = vpop.xlane.xlu0 %8235
      %8237 = vadd.xlane.f32.xlu0 %v8201
      %v8238 = vpop.xlane.xlu0 %8237
      %8239 = vadd.xlane.f32.xlu0 %v8202
      %v8240 = vpop.xlane.xlu0 %8239
      %8241 = vadd.xlane.f32.xlu0 %v8203
      %v8242 = vpop.xlane.xlu0 %8241
      %8243 = vadd.xlane.f32.xlu0 %v8204
      %v8244 = vpop.xlane.xlu0 %8243
      %8245 = vadd.xlane.f32.xlu0 %v8205
      %v8246 = vpop.xlane.xlu0 %8245
      %8247 = vadd.xlane.f32.xlu0 %v8206
      %v8248 = vpop.xlane.xlu0 %8247
      %8249 = vadd.xlane.f32.xlu0 %v8207
      %v8250 = vpop.xlane.xlu0 %8249
      %8251 = vadd.xlane.f32.xlu0 %v8208
      %v8252 = vpop.xlane.xlu0 %8251
      %8253 = vadd.xlane.f32.xlu0 %v8209
      %v8254 = vpop.xlane.xlu0 %8253
      %8255 = vadd.xlane.f32.xlu0 %v8210
      %v8256 = vpop.xlane.xlu0 %8255
      %8257 = vadd.xlane.f32.xlu0 %v8211
      %v8258 = vpop.xlane.xlu0 %8257
      %8259 = vadd.xlane.f32.xlu0 %v8212
      %v8260 = vpop.xlane.xlu0 %8259
      %8261 = vadd.xlane.f32.xlu0 %v8213
      %v8262 = vpop.xlane.xlu0 %8261
      %8263 = vadd.xlane.f32.xlu0 %v8214
      %v8264 = vpop.xlane.xlu0 %8263
      %8265 = vadd.xlane.f32.xlu0 %v8215
      %v8266 = vpop.xlane.xlu0 %8265
      %8267 = vadd.xlane.f32.xlu0 %v8216
      %v8268 = vpop.xlane.xlu0 %8267
      %8269 = vadd.xlane.f32.xlu0 %v8217
      %v8270 = vpop.xlane.xlu0 %8269
      %8271 = vadd.xlane.f32.xlu0 %v8218
      %v8272 = vpop.xlane.xlu0 %8271
      %8273 = vadd.xlane.f32.xlu0 %v8219
      %v8274 = vpop.xlane.xlu0 %8273
      %8275 = vadd.xlane.f32.xlu0 %v8220
      %v8276 = vpop.xlane.xlu0 %8275
      %8277 = vadd.xlane.f32.xlu0 %v8221
      %v8278 = vpop.xlane.xlu0 %8277
      %8279 = vadd.xlane.f32.xlu0 %v8222
      %v8280 = vpop.xlane.xlu0 %8279
      %8281 = vadd.xlane.f32.xlu0 %v8223
      %v8282 = vpop.xlane.xlu0 %8281
      %8283 = vadd.xlane.f32.xlu0 %v8224
      %v8284 = vpop.xlane.xlu0 %8283
      %8285 = vadd.xlane.f32.xlu0 %v8225
      %v8286 = vpop.xlane.xlu0 %8285
      %8287 = vadd.xlane.f32.xlu0 %v8226
      %v8288 = vpop.xlane.xlu0 %8287
      %8289 = vadd.xlane.f32.xlu0 %v8227
      %v8290 = vpop.xlane.xlu0 %8289
      %8291 = vadd.xlane.f32.xlu0 %v8228
      %v8292 = vpop.xlane.xlu0 %8291
      %v8293 = vmul.f32 %v8230, %v1684
      %v8294 = vmul.f32 %v8232, %v1684
      %v8295 = vmul.f32 %v8234, %v1684
      %v8296 = vmul.f32 %v8236, %v1684
      %v8297 = vmul.f32 %v8238, %v1684
      %v8298 = vmul.f32 %v8240, %v1684
      %v8299 = vmul.f32 %v8242, %v1684
      %v8300 = vmul.f32 %v8244, %v1684
      %v8301 = vmul.f32 %v8246, %v1684
      %v8302 = vmul.f32 %v8248, %v1684
      %v8303 = vmul.f32 %v8250, %v1684
      %v8304 = vmul.f32 %v8252, %v1684
      %v8305 = vmul.f32 %v8254, %v1684
      %v8306 = vmul.f32 %v8256, %v1684
      %v8307 = vmul.f32 %v8258, %v1684
      %v8308 = vmul.f32 %v8260, %v1684
      %v8309 = vmul.f32 %v8262, %v1684
      %v8310 = vmul.f32 %v8264, %v1684
      %v8311 = vmul.f32 %v8266, %v1684
      %v8312 = vmul.f32 %v8268, %v1684
      %v8313 = vmul.f32 %v8270, %v1684
      %v8314 = vmul.f32 %v8272, %v1684
      %v8315 = vmul.f32 %v8274, %v1684
      %v8316 = vmul.f32 %v8276, %v1684
      %v8317 = vmul.f32 %v8278, %v1684
      %v8318 = vmul.f32 %v8280, %v1684
      %v8319 = vmul.f32 %v8282, %v1684
      %v8320 = vmul.f32 %v8284, %v1684
      %v8321 = vmul.f32 %v8286, %v1684
      %v8322 = vmul.f32 %v8288, %v1684
      %v8323 = vmul.f32 %v8290, %v1684
      %v8324 = vmul.f32 %v8292, %v1684
      %v8325 = vadd.f32 %v8293, 1e-05
      %v8326 = vadd.f32 %v8294, 1e-05
      %v8327 = vadd.f32 %v8295, 1e-05
      %v8328 = vadd.f32 %v8296, 1e-05
      %v8329 = vadd.f32 %v8297, 1e-05
      %v8330 = vadd.f32 %v8298, 1e-05
      %v8331 = vadd.f32 %v8299, 1e-05
      %v8332 = vadd.f32 %v8300, 1e-05
      %v8333 = vadd.f32 %v8301, 1e-05
      %v8334 = vadd.f32 %v8302, 1e-05
      %v8335 = vadd.f32 %v8303, 1e-05
      %v8336 = vadd.f32 %v8304, 1e-05
      %v8337 = vadd.f32 %v8305, 1e-05
      %v8338 = vadd.f32 %v8306, 1e-05
      %v8339 = vadd.f32 %v8307, 1e-05
      %v8340 = vadd.f32 %v8308, 1e-05
      %v8341 = vadd.f32 %v8309, 1e-05
      %v8342 = vadd.f32 %v8310, 1e-05
      %v8343 = vadd.f32 %v8311, 1e-05
      %v8344 = vadd.f32 %v8312, 1e-05
      %v8345 = vadd.f32 %v8313, 1e-05
      %v8346 = vadd.f32 %v8314, 1e-05
      %v8347 = vadd.f32 %v8315, 1e-05
      %v8348 = vadd.f32 %v8316, 1e-05
      %v8349 = vadd.f32 %v8317, 1e-05
      %v8350 = vadd.f32 %v8318, 1e-05
      %v8351 = vadd.f32 %v8319, 1e-05
      %v8352 = vadd.f32 %v8320, 1e-05
      %v8353 = vadd.f32 %v8321, 1e-05
      %v8354 = vadd.f32 %v8322, 1e-05
      %v8355 = vadd.f32 %v8323, 1e-05
      %v8356 = vadd.f32 %v8324, 1e-05
      %v8357 = vrsqrt.pop %v8325
      %v8358 = vmul.f32 %v8357, %v8325
      %v8359 = vmul.f32 %v8358, %v8357
      %v8360 = vmul.f32 0.5, %v8359
      %v8361 = vsub.f32 1.5, %v8360
      %v8362 = vmul.f32 %v8357, %v8361
      %vm8363 = vweird.f32 %v8325
      %vm8364 = vweird.f32 %v8357
      %vm8365 = vmor %vm8363, %vm8364
      %v8366 = vsel %vm8365, %v8357, %v8362
      %v8367 = vrsqrt.pop %v8326
      %v8368 = vmul.f32 %v8367, %v8326
      %v8369 = vmul.f32 %v8368, %v8367
      %v8370 = vmul.f32 0.5, %v8369
      %v8371 = vsub.f32 1.5, %v8370
      %v8372 = vmul.f32 %v8367, %v8371
      %vm8373 = vweird.f32 %v8326
      %vm8374 = vweird.f32 %v8367
      %vm8375 = vmor %vm8373, %vm8374
      %v8376 = vsel %vm8375, %v8367, %v8372
      %v8377 = vrsqrt.pop %v8327
      %v8378 = vmul.f32 %v8377, %v8327
      %v8379 = vmul.f32 %v8378, %v8377
      %v8380 = vmul.f32 0.5, %v8379
      %v8381 = vsub.f32 1.5, %v8380
      %v8382 = vmul.f32 %v8377, %v8381
      %vm8383 = vweird.f32 %v8327
      %vm8384 = vweird.f32 %v8377
      %vm8385 = vmor %vm8383, %vm8384
      %v8386 = vsel %vm8385, %v8377, %v8382
      %v8387 = vrsqrt.pop %v8328
      %v8388 = vmul.f32 %v8387, %v8328
      %v8389 = vmul.f32 %v8388, %v8387
      %v8390 = vmul.f32 0.5, %v8389
      %v8391 = vsub.f32 1.5, %v8390
      %v8392 = vmul.f32 %v8387, %v8391
      %vm8393 = vweird.f32 %v8328
      %vm8394 = vweird.f32 %v8387
      %vm8395 = vmor %vm8393, %vm8394
      %v8396 = vsel %vm8395, %v8387, %v8392
      %v8397 = vrsqrt.pop %v8329
      %v8398 = vmul.f32 %v8397, %v8329
      %v8399 = vmul.f32 %v8398, %v8397
      %v8400 = vmul.f32 0.5, %v8399
      %v8401 = vsub.f32 1.5, %v8400
      %v8402 = vmul.f32 %v8397, %v8401
      %vm8403 = vweird.f32 %v8329
      %vm8404 = vweird.f32 %v8397
      %vm8405 = vmor %vm8403, %vm8404
      %v8406 = vsel %vm8405, %v8397, %v8402
      %v8407 = vrsqrt.pop %v8330
      %v8408 = vmul.f32 %v8407, %v8330
      %v8409 = vmul.f32 %v8408, %v8407
      %v8410 = vmul.f32 0.5, %v8409
      %v8411 = vsub.f32 1.5, %v8410
      %v8412 = vmul.f32 %v8407, %v8411
      %vm8413 = vweird.f32 %v8330
      %vm8414 = vweird.f32 %v8407
      %vm8415 = vmor %vm8413, %vm8414
      %v8416 = vsel %vm8415, %v8407, %v8412
      %v8417 = vrsqrt.pop %v8331
      %v8418 = vmul.f32 %v8417, %v8331
      %v8419 = vmul.f32 %v8418, %v8417
      %v8420 = vmul.f32 0.5, %v8419
      %v8421 = vsub.f32 1.5, %v8420
      %v8422 = vmul.f32 %v8417, %v8421
      %vm8423 = vweird.f32 %v8331
      %vm8424 = vweird.f32 %v8417
      %vm8425 = vmor %vm8423, %vm8424
      %v8426 = vsel %vm8425, %v8417, %v8422
      %v8427 = vrsqrt.pop %v8332
      %v8428 = vmul.f32 %v8427, %v8332
      %v8429 = vmul.f32 %v8428, %v8427
      %v8430 = vmul.f32 0.5, %v8429
      %v8431 = vsub.f32 1.5, %v8430
      %v8432 = vmul.f32 %v8427, %v8431
      %vm8433 = vweird.f32 %v8332
      %vm8434 = vweird.f32 %v8427
      %vm8435 = vmor %vm8433, %vm8434
      %v8436 = vsel %vm8435, %v8427, %v8432
      %v8437 = vrsqrt.pop %v8333
      %v8438 = vmul.f32 %v8437, %v8333
      %v8439 = vmul.f32 %v8438, %v8437
      %v8440 = vmul.f32 0.5, %v8439
      %v8441 = vsub.f32 1.5, %v8440
      %v8442 = vmul.f32 %v8437, %v8441
      %vm8443 = vweird.f32 %v8333
      %vm8444 = vweird.f32 %v8437
      %vm8445 = vmor %vm8443, %vm8444
      %v8446 = vsel %vm8445, %v8437, %v8442
      %v8447 = vrsqrt.pop %v8334
      %v8448 = vmul.f32 %v8447, %v8334
      %v8449 = vmul.f32 %v8448, %v8447
      %v8450 = vmul.f32 0.5, %v8449
      %v8451 = vsub.f32 1.5, %v8450
      %v8452 = vmul.f32 %v8447, %v8451
      %vm8453 = vweird.f32 %v8334
      %vm8454 = vweird.f32 %v8447
      %vm8455 = vmor %vm8453, %vm8454
      %v8456 = vsel %vm8455, %v8447, %v8452
      %v8457 = vrsqrt.pop %v8335
      %v8458 = vmul.f32 %v8457, %v8335
      %v8459 = vmul.f32 %v8458, %v8457
      %v8460 = vmul.f32 0.5, %v8459
      %v8461 = vsub.f32 1.5, %v8460
      %v8462 = vmul.f32 %v8457, %v8461
      %vm8463 = vweird.f32 %v8335
      %vm8464 = vweird.f32 %v8457
      %vm8465 = vmor %vm8463, %vm8464
      %v8466 = vsel %vm8465, %v8457, %v8462
      %v8467 = vrsqrt.pop %v8336
      %v8468 = vmul.f32 %v8467, %v8336
      %v8469 = vmul.f32 %v8468, %v8467
      %v8470 = vmul.f32 0.5, %v8469
      %v8471 = vsub.f32 1.5, %v8470
      %v8472 = vmul.f32 %v8467, %v8471
      %vm8473 = vweird.f32 %v8336
      %vm8474 = vweird.f32 %v8467
      %vm8475 = vmor %vm8473, %vm8474
      %v8476 = vsel %vm8475, %v8467, %v8472
      %v8477 = vrsqrt.pop %v8337
      %v8478 = vmul.f32 %v8477, %v8337
      %v8479 = vmul.f32 %v8478, %v8477
      %v8480 = vmul.f32 0.5, %v8479
      %v8481 = vsub.f32 1.5, %v8480
      %v8482 = vmul.f32 %v8477, %v8481
      %vm8483 = vweird.f32 %v8337
      %vm8484 = vweird.f32 %v8477
      %vm8485 = vmor %vm8483, %vm8484
      %v8486 = vsel %vm8485, %v8477, %v8482
      %v8487 = vrsqrt.pop %v8338
      %v8488 = vmul.f32 %v8487, %v8338
      %v8489 = vmul.f32 %v8488, %v8487
      %v8490 = vmul.f32 0.5, %v8489
      %v8491 = vsub.f32 1.5, %v8490
      %v8492 = vmul.f32 %v8487, %v8491
      %vm8493 = vweird.f32 %v8338
      %vm8494 = vweird.f32 %v8487
      %vm8495 = vmor %vm8493, %vm8494
      %v8496 = vsel %vm8495, %v8487, %v8492
      %v8497 = vrsqrt.pop %v8339
      %v8498 = vmul.f32 %v8497, %v8339
      %v8499 = vmul.f32 %v8498, %v8497
      %v8500 = vmul.f32 0.5, %v8499
      %v8501 = vsub.f32 1.5, %v8500
      %v8502 = vmul.f32 %v8497, %v8501
      %vm8503 = vweird.f32 %v8339
      %vm8504 = vweird.f32 %v8497
      %vm8505 = vmor %vm8503, %vm8504
      %v8506 = vsel %vm8505, %v8497, %v8502
      %v8507 = vrsqrt.pop %v8340
      %v8508 = vmul.f32 %v8507, %v8340
      %v8509 = vmul.f32 %v8508, %v8507
      %v8510 = vmul.f32 0.5, %v8509
      %v8511 = vsub.f32 1.5, %v8510
      %v8512 = vmul.f32 %v8507, %v8511
      %vm8513 = vweird.f32 %v8340
      %vm8514 = vweird.f32 %v8507
      %vm8515 = vmor %vm8513, %vm8514
      %v8516 = vsel %vm8515, %v8507, %v8512
      %v8517 = vrsqrt.pop %v8341
      %v8518 = vmul.f32 %v8517, %v8341
      %v8519 = vmul.f32 %v8518, %v8517
      %v8520 = vmul.f32 0.5, %v8519
      %v8521 = vsub.f32 1.5, %v8520
      %v8522 = vmul.f32 %v8517, %v8521
      %vm8523 = vweird.f32 %v8341
      %vm8524 = vweird.f32 %v8517
      %vm8525 = vmor %vm8523, %vm8524
      %v8526 = vsel %vm8525, %v8517, %v8522
      %v8527 = vrsqrt.pop %v8342
      %v8528 = vmul.f32 %v8527, %v8342
      %v8529 = vmul.f32 %v8528, %v8527
      %v8530 = vmul.f32 0.5, %v8529
      %v8531 = vsub.f32 1.5, %v8530
      %v8532 = vmul.f32 %v8527, %v8531
      %vm8533 = vweird.f32 %v8342
      %vm8534 = vweird.f32 %v8527
      %vm8535 = vmor %vm8533, %vm8534
      %v8536 = vsel %vm8535, %v8527, %v8532
      %v8537 = vrsqrt.pop %v8343
      %v8538 = vmul.f32 %v8537, %v8343
      %v8539 = vmul.f32 %v8538, %v8537
      %v8540 = vmul.f32 0.5, %v8539
      %v8541 = vsub.f32 1.5, %v8540
      %v8542 = vmul.f32 %v8537, %v8541
      %vm8543 = vweird.f32 %v8343
      %vm8544 = vweird.f32 %v8537
      %vm8545 = vmor %vm8543, %vm8544
      %v8546 = vsel %vm8545, %v8537, %v8542
      %v8547 = vrsqrt.pop %v8344
      %v8548 = vmul.f32 %v8547, %v8344
      %v8549 = vmul.f32 %v8548, %v8547
      %v8550 = vmul.f32 0.5, %v8549
      %v8551 = vsub.f32 1.5, %v8550
      %v8552 = vmul.f32 %v8547, %v8551
      %vm8553 = vweird.f32 %v8344
      %vm8554 = vweird.f32 %v8547
      %vm8555 = vmor %vm8553, %vm8554
      %v8556 = vsel %vm8555, %v8547, %v8552
      %v8557 = vrsqrt.pop %v8345
      %v8558 = vmul.f32 %v8557, %v8345
      %v8559 = vmul.f32 %v8558, %v8557
      %v8560 = vmul.f32 0.5, %v8559
      %v8561 = vsub.f32 1.5, %v8560
      %v8562 = vmul.f32 %v8557, %v8561
      %vm8563 = vweird.f32 %v8345
      %vm8564 = vweird.f32 %v8557
      %vm8565 = vmor %vm8563, %vm8564
      %v8566 = vsel %vm8565, %v8557, %v8562
      %v8567 = vrsqrt.pop %v8346
      %v8568 = vmul.f32 %v8567, %v8346
      %v8569 = vmul.f32 %v8568, %v8567
      %v8570 = vmul.f32 0.5, %v8569
      %v8571 = vsub.f32 1.5, %v8570
      %v8572 = vmul.f32 %v8567, %v8571
      %vm8573 = vweird.f32 %v8346
      %vm8574 = vweird.f32 %v8567
      %vm8575 = vmor %vm8573, %vm8574
      %v8576 = vsel %vm8575, %v8567, %v8572
      %v8577 = vrsqrt.pop %v8347
      %v8578 = vmul.f32 %v8577, %v8347
      %v8579 = vmul.f32 %v8578, %v8577
      %v8580 = vmul.f32 0.5, %v8579
      %v8581 = vsub.f32 1.5, %v8580
      %v8582 = vmul.f32 %v8577, %v8581
      %vm8583 = vweird.f32 %v8347
      %vm8584 = vweird.f32 %v8577
      %vm8585 = vmor %vm8583, %vm8584
      %v8586 = vsel %vm8585, %v8577, %v8582
      %v8587 = vrsqrt.pop %v8348
      %v8588 = vmul.f32 %v8587, %v8348
      %v8589 = vmul.f32 %v8588, %v8587
      %v8590 = vmul.f32 0.5, %v8589
      %v8591 = vsub.f32 1.5, %v8590
      %v8592 = vmul.f32 %v8587, %v8591
      %vm8593 = vweird.f32 %v8348
      %vm8594 = vweird.f32 %v8587
      %vm8595 = vmor %vm8593, %vm8594
      %v8596 = vsel %vm8595, %v8587, %v8592
      %v8597 = vrsqrt.pop %v8349
      %v8598 = vmul.f32 %v8597, %v8349
      %v8599 = vmul.f32 %v8598, %v8597
      %v8600 = vmul.f32 0.5, %v8599
      %v8601 = vsub.f32 1.5, %v8600
      %v8602 = vmul.f32 %v8597, %v8601
      %vm8603 = vweird.f32 %v8349
      %vm8604 = vweird.f32 %v8597
      %vm8605 = vmor %vm8603, %vm8604
      %v8606 = vsel %vm8605, %v8597, %v8602
      %v8607 = vrsqrt.pop %v8350
      %v8608 = vmul.f32 %v8607, %v8350
      %v8609 = vmul.f32 %v8608, %v8607
      %v8610 = vmul.f32 0.5, %v8609
      %v8611 = vsub.f32 1.5, %v8610
      %v8612 = vmul.f32 %v8607, %v8611
      %vm8613 = vweird.f32 %v8350
      %vm8614 = vweird.f32 %v8607
      %vm8615 = vmor %vm8613, %vm8614
      %v8616 = vsel %vm8615, %v8607, %v8612
      %v8617 = vrsqrt.pop %v8351
      %v8618 = vmul.f32 %v8617, %v8351
      %v8619 = vmul.f32 %v8618, %v8617
      %v8620 = vmul.f32 0.5, %v8619
      %v8621 = vsub.f32 1.5, %v8620
      %v8622 = vmul.f32 %v8617, %v8621
      %vm8623 = vweird.f32 %v8351
      %vm8624 = vweird.f32 %v8617
      %vm8625 = vmor %vm8623, %vm8624
      %v8626 = vsel %vm8625, %v8617, %v8622
      %v8627 = vrsqrt.pop %v8352
      %v8628 = vmul.f32 %v8627, %v8352
      %v8629 = vmul.f32 %v8628, %v8627
      %v8630 = vmul.f32 0.5, %v8629
      %v8631 = vsub.f32 1.5, %v8630
      %v8632 = vmul.f32 %v8627, %v8631
      %vm8633 = vweird.f32 %v8352
      %vm8634 = vweird.f32 %v8627
      %vm8635 = vmor %vm8633, %vm8634
      %v8636 = vsel %vm8635, %v8627, %v8632
      %v8637 = vrsqrt.pop %v8353
      %v8638 = vmul.f32 %v8637, %v8353
      %v8639 = vmul.f32 %v8638, %v8637
      %v8640 = vmul.f32 0.5, %v8639
      %v8641 = vsub.f32 1.5, %v8640
      %v8642 = vmul.f32 %v8637, %v8641
      %vm8643 = vweird.f32 %v8353
      %vm8644 = vweird.f32 %v8637
      %vm8645 = vmor %vm8643, %vm8644
      %v8646 = vsel %vm8645, %v8637, %v8642
      %v8647 = vrsqrt.pop %v8354
      %v8648 = vmul.f32 %v8647, %v8354
      %v8649 = vmul.f32 %v8648, %v8647
      %v8650 = vmul.f32 0.5, %v8649
      %v8651 = vsub.f32 1.5, %v8650
      %v8652 = vmul.f32 %v8647, %v8651
      %vm8653 = vweird.f32 %v8354
      %vm8654 = vweird.f32 %v8647
      %vm8655 = vmor %vm8653, %vm8654
      %v8656 = vsel %vm8655, %v8647, %v8652
      %v8657 = vrsqrt.pop %v8355
      %v8658 = vmul.f32 %v8657, %v8355
      %v8659 = vmul.f32 %v8658, %v8657
      %v8660 = vmul.f32 0.5, %v8659
      %v8661 = vsub.f32 1.5, %v8660
      %v8662 = vmul.f32 %v8657, %v8661
      %vm8663 = vweird.f32 %v8355
      %vm8664 = vweird.f32 %v8657
      %vm8665 = vmor %vm8663, %vm8664
      %v8666 = vsel %vm8665, %v8657, %v8662
      %v8667 = vrsqrt.pop %v8356
      %v8668 = vmul.f32 %v8667, %v8356
      %v8669 = vmul.f32 %v8668, %v8667
      %v8670 = vmul.f32 0.5, %v8669
      %v8671 = vsub.f32 1.5, %v8670
      %v8672 = vmul.f32 %v8667, %v8671
      %vm8673 = vweird.f32 %v8356
      %vm8674 = vweird.f32 %v8667
      %vm8675 = vmor %vm8673, %vm8674
      %v8676 = vsel %vm8675, %v8667, %v8672
      %v8677 = vmul.f32 %v8165, %v8366
      %v8678 = vmul.f32 %v8166, %v8376
      %v8679 = vmul.f32 %v8167, %v8386
      %v8680 = vmul.f32 %v8168, %v8396
      %v8681 = vmul.f32 %v8169, %v8406
      %v8682 = vmul.f32 %v8170, %v8416
      %v8683 = vmul.f32 %v8171, %v8426
      %v8684 = vmul.f32 %v8172, %v8436
      %v8685 = vmul.f32 %v8173, %v8446
      %v8686 = vmul.f32 %v8174, %v8456
      %v8687 = vmul.f32 %v8175, %v8466
      %v8688 = vmul.f32 %v8176, %v8476
      %v8689 = vmul.f32 %v8177, %v8486
      %v8690 = vmul.f32 %v8178, %v8496
      %v8691 = vmul.f32 %v8179, %v8506
      %v8692 = vmul.f32 %v8180, %v8516
      %v8693 = vmul.f32 %v8181, %v8526
      %v8694 = vmul.f32 %v8182, %v8536
      %v8695 = vmul.f32 %v8183, %v8546
      %v8696 = vmul.f32 %v8184, %v8556
      %v8697 = vmul.f32 %v8185, %v8566
      %v8698 = vmul.f32 %v8186, %v8576
      %v8699 = vmul.f32 %v8187, %v8586
      %v8700 = vmul.f32 %v8188, %v8596
      %v8701 = vmul.f32 %v8189, %v8606
      %v8702 = vmul.f32 %v8190, %v8616
      %v8703 = vmul.f32 %v8191, %v8626
      %v8704 = vmul.f32 %v8192, %v8636
      %v8705 = vmul.f32 %v8193, %v8646
      %v8706 = vmul.f32 %v8194, %v8656
      %v8707 = vmul.f32 %v8195, %v8666
      %v8708 = vmul.f32 %v8196, %v8676
      %v8709 = vperm.slane %v1612, 0
      %v8710 = vmul.f32 %v8677, %v8709
      %v8711 = vmul.f32 %v8678, %v8709
      %v8712 = vmul.f32 %v8679, %v8709
      %v8713 = vmul.f32 %v8680, %v8709
      %v8714 = vmul.f32 %v8681, %v8709
      %v8715 = vmul.f32 %v8682, %v8709
      %v8716 = vmul.f32 %v8683, %v8709
      %v8717 = vmul.f32 %v8684, %v8709
      %v8718 = vmul.f32 %v8685, %v8709
      %v8719 = vmul.f32 %v8686, %v8709
      %v8720 = vmul.f32 %v8687, %v8709
      %v8721 = vmul.f32 %v8688, %v8709
      %v8722 = vmul.f32 %v8689, %v8709
      %v8723 = vmul.f32 %v8690, %v8709
      %v8724 = vmul.f32 %v8691, %v8709
      %v8725 = vmul.f32 %v8692, %v8709
      %v8726 = vmul.f32 %v8693, %v8709
      %v8727 = vmul.f32 %v8694, %v8709
      %v8728 = vmul.f32 %v8695, %v8709
      %v8729 = vmul.f32 %v8696, %v8709
      %v8730 = vmul.f32 %v8697, %v8709
      %v8731 = vmul.f32 %v8698, %v8709
      %v8732 = vmul.f32 %v8699, %v8709
      %v8733 = vmul.f32 %v8700, %v8709
      %v8734 = vmul.f32 %v8701, %v8709
      %v8735 = vmul.f32 %v8702, %v8709
      %v8736 = vmul.f32 %v8703, %v8709
      %v8737 = vmul.f32 %v8704, %v8709
      %v8738 = vmul.f32 %v8705, %v8709
      %v8739 = vmul.f32 %v8706, %v8709
      %v8740 = vmul.f32 %v8707, %v8709
      %v8741 = vmul.f32 %v8708, %v8709
      %v8742 = vperm.slane %v1613, 0
      %v8743 = vadd.f32 %v8710, %v8742
      %v8744 = vadd.f32 %v8711, %v8742
      %v8745 = vadd.f32 %v8712, %v8742
      %v8746 = vadd.f32 %v8713, %v8742
      %v8747 = vadd.f32 %v8714, %v8742
      %v8748 = vadd.f32 %v8715, %v8742
      %v8749 = vadd.f32 %v8716, %v8742
      %v8750 = vadd.f32 %v8717, %v8742
      %v8751 = vadd.f32 %v8718, %v8742
      %v8752 = vadd.f32 %v8719, %v8742
      %v8753 = vadd.f32 %v8720, %v8742
      %v8754 = vadd.f32 %v8721, %v8742
      %v8755 = vadd.f32 %v8722, %v8742
      %v8756 = vadd.f32 %v8723, %v8742
      %v8757 = vadd.f32 %v8724, %v8742
      %v8758 = vadd.f32 %v8725, %v8742
      %v8759 = vadd.f32 %v8726, %v8742
      %v8760 = vadd.f32 %v8727, %v8742
      %v8761 = vadd.f32 %v8728, %v8742
      %v8762 = vadd.f32 %v8729, %v8742
      %v8763 = vadd.f32 %v8730, %v8742
      %v8764 = vadd.f32 %v8731, %v8742
      %v8765 = vadd.f32 %v8732, %v8742
      %v8766 = vadd.f32 %v8733, %v8742
      %v8767 = vadd.f32 %v8734, %v8742
      %v8768 = vadd.f32 %v8735, %v8742
      %v8769 = vadd.f32 %v8736, %v8742
      %v8770 = vadd.f32 %v8737, %v8742
      %v8771 = vadd.f32 %v8738, %v8742
      %v8772 = vadd.f32 %v8739, %v8742
      %v8773 = vadd.f32 %v8740, %v8742
      %v8774 = vadd.f32 %v8741, %v8742
      %v8775 = vpack.c.bf16 %v8744, %v8743
      %v8776 = vpack.c.bf16 %v8746, %v8745
      %v8777 = vpack.c.bf16 %v8748, %v8747
      %v8778 = vpack.c.bf16 %v8750, %v8749
      %v8779 = vpack.c.bf16 %v8752, %v8751
      %v8780 = vpack.c.bf16 %v8754, %v8753
      %v8781 = vpack.c.bf16 %v8756, %v8755
      %v8782 = vpack.c.bf16 %v8758, %v8757
      %v8783 = vpack.c.bf16 %v8760, %v8759
      %v8784 = vpack.c.bf16 %v8762, %v8761
      %v8785 = vpack.c.bf16 %v8764, %v8763
      %v8786 = vpack.c.bf16 %v8766, %v8765
      %v8787 = vpack.c.bf16 %v8768, %v8767
      %v8788 = vpack.c.bf16 %v8770, %v8769
      %v8789 = vpack.c.bf16 %v8772, %v8771
      %v8790 = vpack.c.bf16 %v8774, %v8773
      %s8791 = scalar_lea.vmem %s318, 256
      %v8792 = vld [vmem:[%s8791] sm:$0xf]
      %v8793 = vld [vmem:[%s8791 + $0x4] sm:$0xf]
      %v8794 = vld [vmem:[%s8791 + $0x8] sm:$0xf]
      %v8795 = vld [vmem:[%s8791 + $0xc] sm:$0xf]
      %v8796 = vld [vmem:[%s8791 + $0x10] sm:$0xf]
      %v8797 = vld [vmem:[%s8791 + $0x14] sm:$0xf]
      %v8798 = vld [vmem:[%s8791 + $0x18] sm:$0xf]
      %v8799 = vld [vmem:[%s8791 + $0x1c] sm:$0xf]
      %v8800 = vld [vmem:[%s8791 + $0x20] sm:$0xf]
      %v8801 = vld [vmem:[%s8791 + $0x24] sm:$0xf]
      %v8802 = vld [vmem:[%s8791 + $0x28] sm:$0xf]
      %v8803 = vld [vmem:[%s8791 + $0x2c] sm:$0xf]
      %v8804 = vld [vmem:[%s8791 + $0x30] sm:$0xf]
      %v8805 = vld [vmem:[%s8791 + $0x34] sm:$0xf]
      %v8806 = vld [vmem:[%s8791 + $0x38] sm:$0xf]
      %v8807 = vld [vmem:[%s8791 + $0x3c] sm:$0xf]
      %v8824 = vunpack.c.l.b16 %v8792
      %v8825 = vunpack.c.l.b16 %v8793
      %v8826 = vunpack.c.l.b16 %v8794
      %v8827 = vunpack.c.l.b16 %v8795
      %v8828 = vunpack.c.l.b16 %v8796
      %v8829 = vunpack.c.l.b16 %v8797
      %v8830 = vunpack.c.l.b16 %v8798
      %v8831 = vunpack.c.l.b16 %v8799
      %v8832 = vunpack.c.l.b16 %v8800
      %v8833 = vunpack.c.l.b16 %v8801
      %v8834 = vunpack.c.l.b16 %v8802
      %v8835 = vunpack.c.l.b16 %v8803
      %v8836 = vunpack.c.l.b16 %v8804
      %v8837 = vunpack.c.l.b16 %v8805
      %v8838 = vunpack.c.l.b16 %v8806
      %v8839 = vunpack.c.l.b16 %v8807
      %v8840 = vpack.c.b16 %v8825, %v8824
      %v8841 = vpack.c.b16 %v8827, %v8826
      %v8842 = vpack.c.b16 %v8829, %v8828
      %v8843 = vpack.c.b16 %v8831, %v8830
      %v8844 = vpack.c.b16 %v8833, %v8832
      %v8845 = vpack.c.b16 %v8835, %v8834
      %v8846 = vpack.c.b16 %v8837, %v8836
      %v8847 = vpack.c.b16 %v8839, %v8838
      %8856 = vmatpush.bf16.msra.mxu0 %v8847
      %8857 = vmatpush.bf16.msra.mxu0 %v8846
      %8858 = vmatpush.bf16.msra.mxu0 %v8845
      %8859 = vmatpush.bf16.msra.mxu0 %v8844
      %8860 = vmatpush.bf16.msra.mxu0 %v8843
      %8861 = vmatpush.bf16.msra.mxu0 %v8842
      %8862 = vmatpush.bf16.msra.mxu0 %v8841
      %8863 = vmatpush.bf16.msra.mxu0 %v8840
      %8864 = vmatmul.bf16.gmra.mxu0 %v8775
      %v8865 = vpop.f32.mrf.mxu0
      %v8866 = vadd.f32 %v8743, %v8865
      %v8867 = vpop.f32.mrf.mxu0
      %v8868 = vadd.f32 %v8744, %v8867
      %8869 = vmatmul.bf16.gmra.mxu0 %v8776
      %v8870 = vpop.f32.mrf.mxu0
      %v8871 = vadd.f32 %v8745, %v8870
      %v8872 = vpop.f32.mrf.mxu0
      %v8873 = vadd.f32 %v8746, %v8872
      %8874 = vmatmul.bf16.gmra.mxu0 %v8777
      %v8875 = vpop.f32.mrf.mxu0
      %v8876 = vadd.f32 %v8747, %v8875
      %v8877 = vpop.f32.mrf.mxu0
      %v8878 = vadd.f32 %v8748, %v8877
      %8879 = vmatmul.bf16.gmra.mxu0 %v8778
      %v8880 = vpop.f32.mrf.mxu0
      %v8881 = vadd.f32 %v8749, %v8880
      %v8882 = vpop.f32.mrf.mxu0
      %v8883 = vadd.f32 %v8750, %v8882
      %8884 = vmatmul.bf16.gmra.mxu0 %v8779
      %v8885 = vpop.f32.mrf.mxu0
      %v8886 = vadd.f32 %v8751, %v8885
      %v8887 = vpop.f32.mrf.mxu0
      %v8888 = vadd.f32 %v8752, %v8887
      %8889 = vmatmul.bf16.gmra.mxu0 %v8780
      %v8890 = vpop.f32.mrf.mxu0
      %v8891 = vadd.f32 %v8753, %v8890
      %v8892 = vpop.f32.mrf.mxu0
      %v8893 = vadd.f32 %v8754, %v8892
      %8894 = vmatmul.bf16.gmra.mxu0 %v8781
      %v8895 = vpop.f32.mrf.mxu0
      %v8896 = vadd.f32 %v8755, %v8895
      %v8897 = vpop.f32.mrf.mxu0
      %v8898 = vadd.f32 %v8756, %v8897
      %8899 = vmatmul.bf16.gmra.mxu0 %v8782
      %v8900 = vpop.f32.mrf.mxu0
      %v8901 = vadd.f32 %v8757, %v8900
      %v8902 = vpop.f32.mrf.mxu0
      %v8903 = vadd.f32 %v8758, %v8902
      %8904 = vmatmul.bf16.gmra.mxu0 %v8783
      %v8905 = vpop.f32.mrf.mxu0
      %v8906 = vadd.f32 %v8759, %v8905
      %v8907 = vpop.f32.mrf.mxu0
      %v8908 = vadd.f32 %v8760, %v8907
      %8909 = vmatmul.bf16.gmra.mxu0 %v8784
      %v8910 = vpop.f32.mrf.mxu0
      %v8911 = vadd.f32 %v8761, %v8910
      %v8912 = vpop.f32.mrf.mxu0
      %v8913 = vadd.f32 %v8762, %v8912
      %8914 = vmatmul.bf16.gmra.mxu0 %v8785
      %v8915 = vpop.f32.mrf.mxu0
      %v8916 = vadd.f32 %v8763, %v8915
      %v8917 = vpop.f32.mrf.mxu0
      %v8918 = vadd.f32 %v8764, %v8917
      %8919 = vmatmul.bf16.gmra.mxu0 %v8786
      %v8920 = vpop.f32.mrf.mxu0
      %v8921 = vadd.f32 %v8765, %v8920
      %v8922 = vpop.f32.mrf.mxu0
      %v8923 = vadd.f32 %v8766, %v8922
      %8924 = vmatmul.bf16.gmra.mxu0 %v8787
      %v8925 = vpop.f32.mrf.mxu0
      %v8926 = vadd.f32 %v8767, %v8925
      %v8927 = vpop.f32.mrf.mxu0
      %v8928 = vadd.f32 %v8768, %v8927
      %8929 = vmatmul.bf16.gmra.mxu0 %v8788
      %v8930 = vpop.f32.mrf.mxu0
      %v8931 = vadd.f32 %v8769, %v8930
      %v8932 = vpop.f32.mrf.mxu0
      %v8933 = vadd.f32 %v8770, %v8932
      %8934 = vmatmul.bf16.gmra.mxu0 %v8789
      %v8935 = vpop.f32.mrf.mxu0
      %v8936 = vadd.f32 %v8771, %v8935
      %v8937 = vpop.f32.mrf.mxu0
      %v8938 = vadd.f32 %v8772, %v8937
      %8939 = vmatmul.bf16.gmra.mxu0 %v8790
      %v8940 = vpop.f32.mrf.mxu0
      %v8941 = vadd.f32 %v8773, %v8940
      %v8942 = vpop.f32.mrf.mxu0
      %v8943 = vadd.f32 %v8774, %v8942
      %8944 = vdwg.mxu0
      %8945 = vst [vmem:[#allocation2] sm:$0xff] %v8866
      %8946 = vst [vmem:[#allocation2 + $0x8] sm:$0xff] %v8868
      %8947 = vst [vmem:[#allocation2 + $0x10] sm:$0xff] %v8871
      %8948 = vst [vmem:[#allocation2 + $0x18] sm:$0xff] %v8873
      %8949 = vst [vmem:[#allocation2 + $0x20] sm:$0xff] %v8876
      %8950 = vst [vmem:[#allocation2 + $0x28] sm:$0xff] %v8878
      %8951 = vst [vmem:[#allocation2 + $0x30] sm:$0xff] %v8881
      %8952 = vst [vmem:[#allocation2 + $0x38] sm:$0xff] %v8883
      %8953 = vst [vmem:[#allocation2 + $0x40] sm:$0xff] %v8886
      %8954 = vst [vmem:[#allocation2 + $0x48] sm:$0xff] %v8888
      %8955 = vst [vmem:[#allocation2 + $0x50] sm:$0xff] %v8891
      %8956 = vst [vmem:[#allocation2 + $0x58] sm:$0xff] %v8893
      %8957 = vst [vmem:[#allocation2 + $0x60] sm:$0xff] %v8896
      %8958 = vst [vmem:[#allocation2 + $0x68] sm:$0xff] %v8898
      %8959 = vst [vmem:[#allocation2 + $0x70] sm:$0xff] %v8901
      %8960 = vst [vmem:[#allocation2 + $0x78] sm:$0xff] %v8903
      %8961 = vst [vmem:[#allocation2 + $0x80] sm:$0xff] %v8906
      %8962 = vst [vmem:[#allocation2 + $0x88] sm:$0xff] %v8908
      %8963 = vst [vmem:[#allocation2 + $0x90] sm:$0xff] %v8911
      %8964 = vst [vmem:[#allocation2 + $0x98] sm:$0xff] %v8913
      %8965 = vst [vmem:[#allocation2 + $0xa0] sm:$0xff] %v8916
      %8966 = vst [vmem:[#allocation2 + $0xa8] sm:$0xff] %v8918
      %8967 = vst [vmem:[#allocation2 + $0xb0] sm:$0xff] %v8921
      %8968 = vst [vmem:[#allocation2 + $0xb8] sm:$0xff] %v8923
      %8969 = vst [vmem:[#allocation2 + $0xc0] sm:$0xff] %v8926
      %8970 = vst [vmem:[#allocation2 + $0xc8] sm:$0xff] %v8928
      %8971 = vst [vmem:[#allocation2 + $0xd0] sm:$0xff] %v8931
      %8972 = vst [vmem:[#allocation2 + $0xd8] sm:$0xff] %v8933
      %8973 = vst [vmem:[#allocation2 + $0xe0] sm:$0xff] %v8936
      %8974 = vst [vmem:[#allocation2 + $0xe8] sm:$0xff] %v8938
      %8975 = vst [vmem:[#allocation2 + $0xf0] sm:$0xff] %v8941
      %8976 = vst [vmem:[#allocation2 + $0xf8] sm:$0xff] %v8943
      %p8977 = scmp.eq.s32.totalorder %s23, 1
      // Predicated region
      $region53: #{transformer_block_forward.1} parent=47 // pred_check
        %p8978 = pneg %p8977
      $region54: #{transformer_block_forward.1} parent=47 // pred_check_branch
        %8980 = sbr.rel (%p8978) target = $region56
      $region55: #{transformer_block_forward.1} parent=47 // pred_region
        %8981 = vxpose.xlu0.b32.start [1/16] %v8866, 128
        %8982 = vxpose.xlu0.b32.cont [2/16] %v8868, 128
        %8983 = vxpose.xlu0.b32.cont [3/16] %v8871, 128
        %8984 = vxpose.xlu0.b32.cont [4/16] %v8873, 128
        %8985 = vxpose.xlu0.b32.cont [5/16] %v8876, 128
        %8986 = vxpose.xlu0.b32.cont [6/16] %v8878, 128
        %8987 = vxpose.xlu0.b32.cont [7/16] %v8881, 128
        %8988 = vxpose.xlu0.b32.cont [8/16] %v8883, 128
        %8989 = vxpose.xlu0.b32.cont [9/16] %v8886, 128
        %8990 = vxpose.xlu0.b32.cont [10/16] %v8888, 128
        %8991 = vxpose.xlu0.b32.cont [11/16] %v8891, 128
        %8992 = vxpose.xlu0.b32.cont [12/16] %v8893, 128
        %8993 = vxpose.xlu0.b32.cont [13/16] %v8896, 128
        %8994 = vxpose.xlu0.b32.cont [14/16] %v8898, 128
        %8995 = vxpose.xlu0.b32.cont [15/16] %v8901, 128
        %8996 = vxpose.xlu0.b32.end [16/16] %v8903, 128
        %v8997 = vpop.trf.xlu0
        %v8998 = vpop.trf.xlu0
        %v8999 = vpop.trf.xlu0
        %v9000 = vpop.trf.xlu0
        %v9001 = vpop.trf.xlu0
        %v9002 = vpop.trf.xlu0
        %v9003 = vpop.trf.xlu0
        %v9004 = vpop.trf.xlu0
        %v9005 = vpop.trf.xlu0
        %v9006 = vpop.trf.xlu0
        %v9007 = vpop.trf.xlu0
        %v9008 = vpop.trf.xlu0
        %v9009 = vpop.trf.xlu0
        %v9010 = vpop.trf.xlu0
        %v9011 = vpop.trf.xlu0
        %v9012 = vpop.trf.xlu0
        %9013 = vxpose.xlu0.b32.start [1/16] %v8906, 128
        %9014 = vxpose.xlu0.b32.cont [2/16] %v8908, 128
        %9015 = vxpose.xlu0.b32.cont [3/16] %v8911, 128
        %9016 = vxpose.xlu0.b32.cont [4/16] %v8913, 128
        %9017 = vxpose.xlu0.b32.cont [5/16] %v8916, 128
        %9018 = vxpose.xlu0.b32.cont [6/16] %v8918, 128
        %9019 = vxpose.xlu0.b32.cont [7/16] %v8921, 128
        %9020 = vxpose.xlu0.b32.cont [8/16] %v8923, 128
        %9021 = vxpose.xlu0.b32.cont [9/16] %v8926, 128
        %9022 = vxpose.xlu0.b32.cont [10/16] %v8928, 128
        %9023 = vxpose.xlu0.b32.cont [11/16] %v8931, 128
        %9024 = vxpose.xlu0.b32.cont [12/16] %v8933, 128
        %9025 = vxpose.xlu0.b32.cont [13/16] %v8936, 128
        %9026 = vxpose.xlu0.b32.cont [14/16] %v8938, 128
        %9027 = vxpose.xlu0.b32.cont [15/16] %v8941, 128
        %9028 = vxpose.xlu0.b32.end [16/16] %v8943, 128
        %v9029 = vpop.trf.xlu0
        %v9030 = vpop.trf.xlu0
        %v9031 = vpop.trf.xlu0
        %v9032 = vpop.trf.xlu0
        %v9033 = vpop.trf.xlu0
        %v9034 = vpop.trf.xlu0
        %v9035 = vpop.trf.xlu0
        %v9036 = vpop.trf.xlu0
        %v9037 = vpop.trf.xlu0
        %v9038 = vpop.trf.xlu0
        %v9039 = vpop.trf.xlu0
        %v9040 = vpop.trf.xlu0
        %v9041 = vpop.trf.xlu0
        %v9042 = vpop.trf.xlu0
        %v9043 = vpop.trf.xlu0
        %v9044 = vpop.trf.xlu0
        %9045 = vst [vmem:[%s327] sm:$0xff] %v8997
        %9046 = vst [vmem:[%s327 + $0x8] sm:$0xff] %v9029
        %9047 = vst [vmem:[%s327 + $0x10] sm:$0xff] %v8998
        %9048 = vst [vmem:[%s327 + $0x18] sm:$0xff] %v9030
        %9049 = vst [vmem:[%s327 + $0x20] sm:$0xff] %v8999
        %9050 = vst [vmem:[%s327 + $0x28] sm:$0xff] %v9031
        %9051 = vst [vmem:[%s327 + $0x30] sm:$0xff] %v9000
        %9052 = vst [vmem:[%s327 + $0x38] sm:$0xff] %v9032
        %9053 = vst [vmem:[%s327 + $0x40] sm:$0xff] %v9001
        %9054 = vst [vmem:[%s327 + $0x48] sm:$0xff] %v9033
        %9055 = vst [vmem:[%s327 + $0x50] sm:$0xff] %v9002
        %9056 = vst [vmem:[%s327 + $0x58] sm:$0xff] %v9034
        %9057 = vst [vmem:[%s327 + $0x60] sm:$0xff] %v9003
        %9058 = vst [vmem:[%s327 + $0x68] sm:$0xff] %v9035
        %9059 = vst [vmem:[%s327 + $0x70] sm:$0xff] %v9004
        %9060 = vst [vmem:[%s327 + $0x78] sm:$0xff] %v9036
        %9061 = vst [vmem:[%s327 + $0x80] sm:$0xff] %v9005
        %9062 = vst [vmem:[%s327 + $0x88] sm:$0xff] %v9037
        %9063 = vst [vmem:[%s327 + $0x90] sm:$0xff] %v9006
        %9064 = vst [vmem:[%s327 + $0x98] sm:$0xff] %v9038
        %9065 = vst [vmem:[%s327 + $0xa0] sm:$0xff] %v9007
        %9066 = vst [vmem:[%s327 + $0xa8] sm:$0xff] %v9039
        %9067 = vst [vmem:[%s327 + $0xb0] sm:$0xff] %v9008
        %9068 = vst [vmem:[%s327 + $0xb8] sm:$0xff] %v9040
        %9069 = vst [vmem:[%s327 + $0xc0] sm:$0xff] %v9009
        %9070 = vst [vmem:[%s327 + $0xc8] sm:$0xff] %v9041
        %9071 = vst [vmem:[%s327 + $0xd0] sm:$0xff] %v9010
        %9072 = vst [vmem:[%s327 + $0xd8] sm:$0xff] %v9042
        %9073 = vst [vmem:[%s327 + $0xe0] sm:$0xff] %v9011
        %9074 = vst [vmem:[%s327 + $0xe8] sm:$0xff] %v9043
        %9075 = vst [vmem:[%s327 + $0xf0] sm:$0xff] %v9012
        %9076 = vst [vmem:[%s327 + $0xf8] sm:$0xff] %v9044
      $region56: #{transformer_block_forward.1} parent=47 // pred_fallthru
        _
      %p9077 = scmp.lt.s32.totalorder %s22, 1
      %s9078 = scalar_select %p9077, %s22, 1
      %s9079 = smul.addr %s9078, 32
      %s9080 = smul.addr %s9079, 8
      %s9081 = scalar_lea.vmem %s7, %s9080
      // Predicated region
      $region57: #{transformer_block_forward.1} parent=47 // pred_check
        %p9082 = pneg %p210
      $region58: #{transformer_block_forward.1} parent=47 // pred_check_branch
        %9084 = sbr.rel (%p9082) target = $region60
      $region59: #{transformer_block_forward.1} parent=47 // pred_region
        _
      $region60: #{transformer_block_forward.1} parent=47 // pred_fallthru
        _
    $region48: #{transformer_block_forward.1} parent=5 // pred_fallthru
      _
    %p9085 = scmp.le.s32.totalorder 2, %s13
    // Predicated region
    $region61: #{transformer_block_forward.1} parent=5 // pred_check
      %p9086 = pneg %p9085
    $region62: #{transformer_block_forward.1} parent=5 // pred_check_branch
      %9088 = sbr.rel (%p9086) target = $region64
    $region63: #{transformer_block_forward.1} parent=5 // pred_region
      %s9089 = ssub.s32 %s13, 2
      // Predicated region
      $region65: #{transformer_block_forward.1} parent=63 // pred_check
        %p9090 = pneg %p216
      $region66: #{transformer_block_forward.1} parent=63 // pred_check_branch
        %9092 = sbr.rel (%p9090) target = $region68
      $region67: #{transformer_block_forward.1} parent=63 // pred_region
        %p9093 = scmp.lt.s32.totalorder %s24, 1
        %s9094 = scalar_select %p9093, %s24, 1
        %s9095 = smul.addr %s9094, 32
        %s9096 = smul.addr %s9095, 8
        %s9097 = scalar_lea.vmem %s7, %s9096
      $region68: #{transformer_block_forward.1} parent=63 // pred_fallthru
        _
    $region64: #{transformer_block_forward.1} parent=5 // pred_fallthru
      _
  $region6: #{transformer_block_forward.1} parent=0 // loop_footer
    %s17 = sadd.s32 1, %s13
  $region7: #{transformer_block_forward.1} parent=0 // loop_footer_branch
    %12 = sbr.rel target = $region3
  $region8: #{transformer_block_forward.1} parent=0 // loop_exit
    _

</llo_original>
